<compile_context>
chip_gen: v7x
topology: tpu7x:2x2x1
jax: 0.10.0
libtpu: 0.0.40
codegen_flags: <defaults>
</compile_context>

<pallas_src>
import random
from functools import partial

import jax
import jax.numpy as jnp
from jax.experimental import pallas as pl
from jax.experimental.pallas import tpu as pltpu  # noqa: F401  (no pltpu-specific calls needed at these sizes)


# ----------------------------------------------------------------------------
# GRU cell math (PyTorch semantics), lane-padded gate blocks
# ----------------------------------------------------------------------------
def _sigmoid(x):
    # single EUP tanh instead of exp + divide (shortens the serial recurrence chain)
    return 0.5 * jnp.tanh(0.5 * x) + 0.5


def _gru_cell(gx, gh, h, H):
    """gx = x@Wih + bih, gh = h@Whh + bhh; both (N, 128) with gates r,z,n at [0:H,H:2H,2H:3H]."""
    rz = _sigmoid(gx[:, 0:2 * H] + gh[:, 0:2 * H])
    r = rz[:, 0:H]
    z = rz[:, H:2 * H]
    n = jnp.tanh(gx[:, 2 * H:3 * H] + r * gh[:, 2 * H:3 * H])
    return (1.0 - z) * n + z * h


# ----------------------------------------------------------------------------
# Fused encoder kernel (single pallas_call, no grid: everything in VMEM)
# ----------------------------------------------------------------------------
def encoder_kernel(xqf_ref, xcf_ref, xc3_ref,
                   wih_ref, whh_ref, bih_ref, bhh_ref,
                   fcqw_ref, fcqb_ref, awh_ref, awc_ref, ab_ref,
                   linw_ref, linb_ref, hid_ref):
    """
    xqf : (Sq*Np, E)   question embeddings, time-major flat (batch padded to Np=8)
    xcf : (Sc*Np, E)   context embeddings, time-major flat
    xc3 : (Sc, Np, E)  context embeddings, 3-D (for attention)
    wih : (3, E, 2*128)   input->gate weights  [0]=bilstm_q [1]=bilstm_c [2]=attn_bigru
    whh : (3, 2H, 2*128)  block-diagonal recurrent weights (fwd rows 0:H -> lanes 0:3H,
                          bwd rows H:2H -> lanes 128:128+3H)
    bih/bhh : (3, 1, 2*128) biases in the same padded lane layout
    fcqw/fcqb : fc_hidden_q;  awh/awc/ab : attn_linear split for [hidden ; context]
    linw/linb : final Linear(2H -> H)
    hid : (2, Np, H) encoder output hidden state
    """
    Sc, Np, E = xc3_ref.shape
    H = fcqw_ref.shape[1]
    GP = wih_ref.shape[2] // 2           # 128-lane block per direction
    Sq = xqf_ref.shape[0] // Np

    # Hoisted input projections: one wide MXU matmul per RNN covers every
    # timestep, all 3 gates and both directions.
    xg_q = jnp.dot(xqf_ref[...], wih_ref[0], preferred_element_type=jnp.float32) + bih_ref[0]
    xg_c = jnp.dot(xcf_ref[...], wih_ref[1], preferred_element_type=jnp.float32) + bih_ref[1]

    whh_q, bhh_q = whh_ref[0], bhh_ref[0]
    whh_c, bhh_c = whh_ref[1], bhh_ref[1]

    def bigru_step(hcat, xg, whh, bhh, t, S):
        # one merged recurrent matmul for both directions (block-diagonal whh)
        gh = jnp.dot(hcat, whh, preferred_element_type=jnp.float32) + bhh     # (Np, 2GP)
        tb = S - 1 - t                                                        # bwd walks reversed time
        hf = _gru_cell(xg[t * Np:(t + 1) * Np, 0:GP], gh[:, 0:GP], hcat[:, 0:H], H)
        hb = _gru_cell(xg[tb * Np:(tb + 1) * Np, GP:2 * GP], gh[:, GP:2 * GP], hcat[:, H:2 * H], H)
        return jnp.concatenate([hf, hb], axis=-1)                             # (Np, 2H)

    hq_cat = jnp.zeros((Np, 2 * H), jnp.float32)   # [h_fwd | h_bwd] of bilstm_q
    hc_cat = jnp.zeros((Np, 2 * H), jnp.float32)   # [h_fwd | h_bwd] of bilstm_c
    # Interleave the two independent recurrences (single basic block: their MXU /
    # EUP work fills each other's dependency stalls).
    for t in range(max(Sq, Sc)):
        if t < Sq:
            hq_cat = bigru_step(hq_cat, xg_q, whh_q, bhh_q, t, Sq)
        if t < Sc:
            hc_cat = bigru_step(hc_cat, xg_c, whh_c, bhh_c, t, Sc)

    # hq = fc_hidden_q([h_fwd | h_bwd])
    hq = jnp.dot(hq_cat, fcqw_ref[...], preferred_element_type=jnp.float32) + fcqb_ref[...]   # (Np, H)

    # Attention over context time steps (never leaves VMEM).
    ctx = xc3_ref[...]                                                    # (Sc, Np, E)
    s_c = jnp.sum(ctx * awc_ref[...], axis=-1, keepdims=True)             # (Sc, Np, 1)
    s_h = jnp.sum(hq * awh_ref[...], axis=-1, keepdims=True)              # (Np, 1)
    scores = s_c + s_h + ab_ref[...]                                      # (Sc, Np, 1)
    m = jnp.max(scores, axis=0, keepdims=True)
    e = jnp.exp(scores - m)
    denom = jnp.sum(e, axis=0, keepdims=True)
    energy = e * pl.reciprocal(denom, approx=True)                        # softmax over time
    cv = jnp.sum(energy * ctx, axis=0)                                    # (Np, E)

    # attn_bigru: 1-step bidirectional GRU, h0 = [hq, hq]
    xg_a = jnp.dot(cv, wih_ref[2], preferred_element_type=jnp.float32) + bih_ref[2]
    ha0 = jnp.concatenate([hq, hq], axis=-1)                              # (Np, 2H)
    gh_a = jnp.dot(ha0, whh_ref[2], preferred_element_type=jnp.float32) + bhh_ref[2]
    ha_f = _gru_cell(xg_a[:, 0:GP], gh_a[:, 0:GP], hq, H)
    ha_b = _gru_cell(xg_a[:, GP:2 * GP], gh_a[:, GP:2 * GP], hq, H)

    # hidden = Linear(cat([hidden_attn, h_c], dim=2)); concat expressed as row-split dots.
    linw, linb = linw_ref[...], linb_ref[...]
    hc_f, hc_b = hc_cat[:, 0:H], hc_cat[:, H:2 * H]
    hid_ref[0] = (jnp.dot(ha_f, linw[0:H, :], preferred_element_type=jnp.float32)
                  + jnp.dot(hc_f, linw[H:2 * H, :], preferred_element_type=jnp.float32) + linb)
    hid_ref[1] = (jnp.dot(ha_b, linw[0:H, :], preferred_element_type=jnp.float32)
                  + jnp.dot(hc_b, linw[H:2 * H, :], preferred_element_type=jnp.float32) + linb)


# ----------------------------------------------------------------------------
# Fused decoder kernel: whole decode loop in one pallas_call
# ----------------------------------------------------------------------------
def decoder_kernel(hid0_ref, ans_ref, tfm_ref, emb_ref, wih_ref, whh_ref,
                   bih_ref, bhh_ref, fcw_ref, fcb_ref, out_ref, *, vocab_size):
    """
    hid0 : (2, Np, H)        encoder hidden (GRU h0)
    ans  : (Sa, Np, 1) int32 answer tokens (teacher inputs), batch padded
    tfm  : (Sa-1, Np, 1) i32 teacher-forcing decisions (1 = use answer[t])
    emb  : (V, E)            decoder embedding table (gathered via one-hot matmul)
    wih  : (E, 2*128), whh : (2H, 2*128) block-diag, bih/bhh : (1, 2*128)
    fcw  : (2H, Vp) vocab zero-padded to 128 lanes, fcb : (1, Vp)
    out  : (Sa, Np, Vp)      logits; out[0] stays zero (PyTorch convention)
    """
    Sa, Np, Vp = out_ref.shape
    V, E = emb_ref.shape
    H = whh_ref.shape[0] // 2
    GP = wih_ref.shape[1] // 2

    out_ref[0] = jnp.zeros((Np, Vp), jnp.float32)

    # Weights loaded once, VMEM-resident across all decode steps.
    emb_tab = emb_ref[...]
    wih, whh = wih_ref[...], whh_ref[...]
    bih, bhh = bih_ref[...], bhh_ref[...]
    fcw, fcb = fcw_ref[...], fcb_ref[...]

    iota_v = jax.lax.broadcasted_iota(jnp.int32, (Np, V), 1)
    iota_vp = jax.lax.broadcasted_iota(jnp.int32, (Np, Vp), 1)
    neg_inf = jnp.float32(-jnp.inf)

    hcat = jnp.concatenate([hid0_ref[0], hid0_ref[1]], axis=-1)            # (Np, 2H)
    tok = ans_ref[0]                                                       # (Np, 1) int32

    for t in range(1, Sa):                     # fully unrolled decode loop
        # embedding row gather as a one-hot MXU matmul (dropout: eval identity)
        onehot = (iota_v == tok).astype(jnp.float32)                       # (Np, V)
        emb = jnp.dot(onehot, emb_tab, preferred_element_type=jnp.float32) # (Np, E)

        # 1-step bidirectional GRU (merged block-diagonal recurrent matmul)
        xg = jnp.dot(emb, wih, preferred_element_type=jnp.float32) + bih   # (Np, 2GP)
        gh = jnp.dot(hcat, whh, preferred_element_type=jnp.float32) + bhh  # (Np, 2GP)
        hf = _gru_cell(xg[:, 0:GP], gh[:, 0:GP], hcat[:, 0:H], H)
        hb = _gru_cell(xg[:, GP:2 * GP], gh[:, GP:2 * GP], hcat[:, H:2 * H], H)
        hcat = jnp.concatenate([hf, hb], axis=-1)

        # output projection fc([hf | hb]) -> lane-dense padded vocab, stored directly
        logits = (jnp.dot(hf, fcw[0:H, :], preferred_element_type=jnp.float32)
                  + jnp.dot(hb, fcw[H:2 * H, :], preferred_element_type=jnp.float32)
                  + fcb)                                                   # (Np, Vp)
        out_ref[t] = logits

        # argmax over REAL vocab lanes only (padded lanes masked to -inf)
        masked = jnp.where(iota_vp < vocab_size, logits, neg_inf)
        mx = jnp.max(masked, axis=1, keepdims=True)
        best = jnp.min(jnp.where(masked >= mx, iota_vp, Vp), axis=1, keepdims=True)   # (Np, 1)

        # teacher-forcing select, in-kernel
        tok = jnp.where(tfm_ref[t - 1] > 0, ans_ref[t], best)


# ----------------------------------------------------------------------------
# Jitted forward (2 pallas_calls total)
# ----------------------------------------------------------------------------
@partial(jax.jit, static_argnames=("vocab_size",))
def seq2seq_forward(params, context, question, answer, tf_mask, *, vocab_size):
    enc, dec = params["enc"], params["dec"]
    Sq, N = question.shape
    Sc = context.shape[0]
    Sa = answer.shape[0]
    H = enc["fcq_w"].shape[1]
    E = enc["emb_question"].shape[1]
    Np = max(8, ((N + 7) // 8) * 8)          # sublane-aligned batch

    def pad_tokens(tok):
        return jnp.pad(tok, ((0, 0), (0, Np - N)))

    q_pad = pad_tokens(question)
    c_pad = pad_tokens(context)
    a_pad = pad_tokens(answer)

    # Encoder embedding gathers (tiny XLA gathers; dropout = eval identity).
    xq3 = enc["emb_question"][q_pad]          # (Sq, Np, E)
    xc3 = enc["emb_context"][c_pad]           # (Sc, Np, E)

    hidden = pl.pallas_call(
        encoder_kernel,
        out_shape=jax.ShapeDtypeStruct((2, Np, H), jnp.float32),
    )(xq3.reshape(Sq * Np, E), xc3.reshape(Sc * Np, E), xc3,
      enc["gru_wih"], enc["gru_whh"], enc["gru_bih"], enc["gru_bhh"],
      enc["fcq_w"], enc["fcq_b"], enc["attn_wh"], enc["attn_wc"], enc["attn_b"],
      enc["lin_w"], enc["lin_b"])

    Vp = dec["fc_w"].shape[1]
    ans3 = a_pad.astype(jnp.int32).reshape(Sa, Np, 1)
    tfm3 = jnp.broadcast_to(tf_mask.astype(jnp.int32)[:, None, None], (Sa - 1, Np, 1))

    out_pad = pl.pallas_call(
        partial(decoder_kernel, vocab_size=vocab_size),
        out_shape=jax.ShapeDtypeStruct((Sa, Np, Vp), jnp.float32),
    )(hidden, ans3, tfm3, dec["embedding"],
      dec["gru"]["wih"], dec["gru"]["whh"], dec["gru"]["bih"], dec["gru"]["bhh"],
      dec["fc_w"], dec["fc_b"])

    return out_pad[:, :N, :vocab_size]        # (Sa, N, V); row 0 is zeros


def run_seq2seq(params, context, question, answer, vocab_size, teacher_forcing_ratio=0.5):
    # Pre-sample teacher-forcing decisions with the seeded host RNG (same call
    # sequence as the original per-step random.random()); passed as a traced
    # array so jit does not bake them in.
    answer_len = answer.shape[0]
    tf_mask = jnp.array([random.random() < teacher_forcing_ratio
                         for _ in range(answer_len - 1)], dtype=bool)
    return seq2seq_forward(params, context, question, answer, tf_mask,
                           vocab_size=vocab_size)


# ----------------------------------------------------------------------------
# Deterministic parameter init (kernel-friendly padded layouts)
# ----------------------------------------------------------------------------
def init_bigru_fused(key, E, H, GP=128):
    """Bidirectional GRU, packed: each direction's 3H gate block zero-padded to 128 lanes,
    recurrent weights block-diagonal on the concatenated [h_fwd | h_bwd] state."""
    k = 1.0 / (H ** 0.5)
    ks = jax.random.split(key, 8)
    u = lambda kk, shape: jax.random.uniform(kk, shape, jnp.float32, -k, k)
    wih_f, wih_b = u(ks[0], (E, 3 * H)), u(ks[1], (E, 3 * H))
    whh_f, whh_b = u(ks[2], (H, 3 * H)), u(ks[3], (H, 3 * H))
    bih_f, bih_b = u(ks[4], (1, 3 * H)), u(ks[5], (1, 3 * H))
    bhh_f, bhh_b = u(ks[6], (1, 3 * H)), u(ks[7], (1, 3 * H))

    wih = jnp.zeros((E, 2 * GP), jnp.float32)
    wih = wih.at[:, 0:3 * H].set(wih_f).at[:, GP:GP + 3 * H].set(wih_b)
    whh = jnp.zeros((2 * H, 2 * GP), jnp.float32)
    whh = whh.at[0:H, 0:3 * H].set(whh_f).at[H:2 * H, GP:GP + 3 * H].set(whh_b)
    bih = jnp.zeros((1, 2 * GP), jnp.float32)
    bih = bih.at[:, 0:3 * H].set(bih_f).at[:, GP:GP + 3 * H].set(bih_b)
    bhh = jnp.zeros((1, 2 * GP), jnp.float32)
    bhh = bhh.at[:, 0:3 * H].set(bhh_f).at[:, GP:GP + 3 * H].set(bhh_b)
    return dict(wih=wih, whh=whh, bih=bih, bhh=bhh)


def init_linear(key, In, Out):
    k = 1.0 / (In ** 0.5)
    kw, kb = jax.random.split(key)
    return dict(w=jax.random.uniform(kw, (In, Out), jnp.float32, -k, k),
                b=jax.random.uniform(kb, (1, Out), jnp.float32, -k, k))


def init_params(key, input_size, output_size, H, E, lane_pad=128):
    GP = lane_pad
    ks = jax.random.split(key, 11)
    gru_q = init_bigru_fused(ks[2], E, H, GP)
    gru_c = init_bigru_fused(ks[3], E, H, GP)
    gru_a = init_bigru_fused(ks[7], E, H, GP)
    fcq = init_linear(ks[4], 2 * H, H)
    lin = init_linear(ks[5], 2 * H, H)
    attn_lin = init_linear(ks[6], H + E, 1)    # nn.Linear(H+E, 1), split for the kernel

    enc = dict(
        emb_question=jax.random.normal(ks[0], (input_size, E), jnp.float32),
        emb_context=jax.random.normal(ks[1], (input_size, E), jnp.float32),
        gru_wih=jnp.stack([gru_q["wih"], gru_c["wih"], gru_a["wih"]]),   # (3, E, 2GP)
        gru_whh=jnp.stack([gru_q["whh"], gru_c["whh"], gru_a["whh"]]),   # (3, 2H, 2GP)
        gru_bih=jnp.stack([gru_q["bih"], gru_c["bih"], gru_a["bih"]]),   # (3, 1, 2GP)
        gru_bhh=jnp.stack([gru_q["bhh"], gru_c["bhh"], gru_a["bhh"]]),   # (3, 1, 2GP)
        fcq_w=fcq["w"], fcq_b=fcq["b"],
        attn_wh=attn_lin["w"][:H, 0].reshape(1, H),
        attn_wc=attn_lin["w"][H:, 0].reshape(1, E),
        attn_b=attn_lin["b"].reshape(1, 1),
        lin_w=lin["w"], lin_b=lin["b"],
    )

    # Decoder fc: zero-pad the vocab axis to a multiple of 128 lanes (lane-dense stores;
    # padded logits are exactly 0 and are masked to -inf before the in-kernel argmax).
    fc = init_linear(ks[10], 2 * H, output_size)
    Vp = ((output_size + lane_pad - 1) // lane_pad) * lane_pad
    fc_w = jnp.zeros((2 * H, Vp), jnp.float32).at[:, :output_size].set(fc["w"])
    fc_b = jnp.zeros((1, Vp), jnp.float32).at[:, :output_size].set(fc["b"])
    dec = dict(
        embedding=jax.random.normal(ks[8], (input_size, E), jnp.float32),
        gru=init_bigru_fused(ks[9], E, H, GP),
        fc_w=fc_w, fc_b=fc_b,
    )
    return dict(enc=enc, dec=dec)


# ----------------------------------------------------------------------------
if __name__ == "__main__":
    random.seed(0)

    HIDDEN_SIZE = 32
    NUM_LAYERS = 1        # TODO(synk): num_layers > 1 not implemented
    EMBEDDING_DIM = 16
    P = 0.5               # dropout prob; eval-mode identity in this synthetic kernel

    VOCAB = 24            # input_size == output_size == len(vocab.index2word)
    N = 2                 # batch
    S_CTX, S_Q, S_ANS = 8, 6, 5

    key = jax.random.PRNGKey(0)
    kp, kc, kq, ka = jax.random.split(key, 4)

    params = init_params(kp, VOCAB, VOCAB, HIDDEN_SIZE, EMBEDDING_DIM)
    context = jax.random.randint(kc, (S_CTX, N), 0, VOCAB, dtype=jnp.int32)
    question = jax.random.randint(kq, (S_Q, N), 0, VOCAB, dtype=jnp.int32)
    answer = jax.random.randint(ka, (S_ANS, N), 0, VOCAB, dtype=jnp.int32)

    outputs = run_seq2seq(params, context, question, answer, VOCAB,
                          teacher_forcing_ratio=0.5)
    outputs = jax.block_until_ready(outputs)

    assert outputs.shape == (S_ANS, N, VOCAB), outputs.shape
    assert bool(jnp.all(jnp.isfinite(outputs)))
    print("KERNEL_OK")
</pallas_src>

<mosaic_0001>
module attributes {stable_mosaic.version = 11 : i64} {
  func.func @encoder_kernel(%arg0: memref<48x16xf32, #tpu.memory_space<vmem>>, %arg1: memref<64x16xf32, #tpu.memory_space<vmem>>, %arg2: memref<8x8x16xf32, #tpu.memory_space<vmem>>, %arg3: memref<3x16x256xf32, #tpu.memory_space<vmem>>, %arg4: memref<3x64x256xf32, #tpu.memory_space<vmem>>, %arg5: memref<3x1x256xf32, #tpu.memory_space<vmem>>, %arg6: memref<3x1x256xf32, #tpu.memory_space<vmem>>, %arg7: memref<64x32xf32, #tpu.memory_space<vmem>>, %arg8: memref<1x32xf32, #tpu.memory_space<vmem>>, %arg9: memref<1x32xf32, #tpu.memory_space<vmem>>, %arg10: memref<1x16xf32, #tpu.memory_space<vmem>>, %arg11: memref<1x1xf32, #tpu.memory_space<vmem>>, %arg12: memref<64x32xf32, #tpu.memory_space<vmem>>, %arg13: memref<1x32xf32, #tpu.memory_space<vmem>>, %arg14: memref<2x8x32xf32, #tpu.memory_space<vmem>>) attributes {dimension_semantics = [], scalar_prefetch = 0 : i64, scratch_operands = 0 : i64, tpu.core_type = #tpu.core_type<tc>} {
    %c0 = arith.constant 0 : index
    %c0_0 = arith.constant 0 : index
    %0 = vector.load %arg0[%c0, %c0_0] : memref<48x16xf32, #tpu.memory_space<vmem>>, vector<48x16xf32>
    %c0_1 = arith.constant 0 : index
    %c0_2 = arith.constant 0 : index
    %c0_3 = arith.constant 0 : index
    %1 = vector.load %arg3[%c0_1, %c0_2, %c0_3] : memref<3x16x256xf32, #tpu.memory_space<vmem>>, vector<1x16x256xf32>
    %2 = vector.shape_cast %1 : vector<1x16x256xf32> to vector<16x256xf32>
    %cst = arith.constant dense<0.000000e+00> : vector<48x256xf32>
    %3 = tpu.matmul %0, %2, %cst {dimension_numbers = #tpu.dot_dimension_numbers<[1], [0], [0], [1], [0, 0, 1, 1], [], []>} : vector<48x16xf32>, vector<16x256xf32>, vector<48x256xf32> -> vector<48x256xf32>
    %c0_4 = arith.constant 0 : index
    %c0_5 = arith.constant 0 : index
    %c0_6 = arith.constant 0 : index
    %4 = vector.load %arg5[%c0_4, %c0_5, %c0_6] : memref<3x1x256xf32, #tpu.memory_space<vmem>>, vector<1x1x256xf32>
    %5 = vector.shape_cast %4 : vector<1x1x256xf32> to vector<1x256xf32>
    %6 = vector.broadcast %5 : vector<1x256xf32> to vector<48x256xf32>
    %7 = arith.addf %3, %6 : vector<48x256xf32>
    %c0_7 = arith.constant 0 : index
    %c0_8 = arith.constant 0 : index
    %8 = vector.load %arg1[%c0_7, %c0_8] : memref<64x16xf32, #tpu.memory_space<vmem>>, vector<64x16xf32>
    %c1 = arith.constant 1 : index
    %c0_9 = arith.constant 0 : index
    %c0_10 = arith.constant 0 : index
    %9 = vector.load %arg3[%c1, %c0_9, %c0_10] : memref<3x16x256xf32, #tpu.memory_space<vmem>>, vector<1x16x256xf32>
    %10 = vector.shape_cast %9 : vector<1x16x256xf32> to vector<16x256xf32>
    %cst_11 = arith.constant dense<0.000000e+00> : vector<64x256xf32>
    %11 = tpu.matmul %8, %10, %cst_11 {dimension_numbers = #tpu.dot_dimension_numbers<[1], [0], [0], [1], [0, 0, 1, 1], [], []>} : vector<64x16xf32>, vector<16x256xf32>, vector<64x256xf32> -> vector<64x256xf32>
    %c1_12 = arith.constant 1 : index
    %c0_13 = arith.constant 0 : index
    %c0_14 = arith.constant 0 : index
    %12 = vector.load %arg5[%c1_12, %c0_13, %c0_14] : memref<3x1x256xf32, #tpu.memory_space<vmem>>, vector<1x1x256xf32>
    %13 = vector.shape_cast %12 : vector<1x1x256xf32> to vector<1x256xf32>
    %14 = vector.broadcast %13 : vector<1x256xf32> to vector<64x256xf32>
    %15 = arith.addf %11, %14 : vector<64x256xf32>
    %c0_15 = arith.constant 0 : index
    %c0_16 = arith.constant 0 : index
    %c0_17 = arith.constant 0 : index
    %16 = vector.load %arg4[%c0_15, %c0_16, %c0_17] : memref<3x64x256xf32, #tpu.memory_space<vmem>>, vector<1x64x256xf32>
    %17 = vector.shape_cast %16 : vector<1x64x256xf32> to vector<64x256xf32>
    %c0_18 = arith.constant 0 : index
    %c0_19 = arith.constant 0 : index
    %c0_20 = arith.constant 0 : index
    %18 = vector.load %arg6[%c0_18, %c0_19, %c0_20] : memref<3x1x256xf32, #tpu.memory_space<vmem>>, vector<1x1x256xf32>
    %19 = vector.shape_cast %18 : vector<1x1x256xf32> to vector<1x256xf32>
    %c1_21 = arith.constant 1 : index
    %c0_22 = arith.constant 0 : index
    %c0_23 = arith.constant 0 : index
    %20 = vector.load %arg4[%c1_21, %c0_22, %c0_23] : memref<3x64x256xf32, #tpu.memory_space<vmem>>, vector<1x64x256xf32>
    %21 = vector.shape_cast %20 : vector<1x64x256xf32> to vector<64x256xf32>
    %c1_24 = arith.constant 1 : index
    %c0_25 = arith.constant 0 : index
    %c0_26 = arith.constant 0 : index
    %22 = vector.load %arg6[%c1_24, %c0_25, %c0_26] : memref<3x1x256xf32, #tpu.memory_space<vmem>>, vector<1x1x256xf32>
    %23 = vector.shape_cast %22 : vector<1x1x256xf32> to vector<1x256xf32>
    %cst_27 = arith.constant 0.000000e+00 : f32
    %24 = vector.broadcast %cst_27 : f32 to vector<8x64xf32>
    %cst_28 = arith.constant 0.000000e+00 : f32
    %25 = vector.broadcast %cst_28 : f32 to vector<8x64xf32>
    %cst_29 = arith.constant dense<0.000000e+00> : vector<8x256xf32>
    %26 = tpu.matmul %24, %17, %cst_29 {dimension_numbers = #tpu.dot_dimension_numbers<[1], [0], [0], [1], [0, 0, 1, 1], [], []>} : vector<8x64xf32>, vector<64x256xf32>, vector<8x256xf32> -> vector<8x256xf32>
    %27 = vector.broadcast %19 : vector<1x256xf32> to vector<8x256xf32>
    %28 = arith.addf %26, %27 : vector<8x256xf32>
    %29 = vector.extract_strided_slice %7 {offsets = [0, 0], sizes = [8, 128], strides = [1, 1]} : vector<48x256xf32> to vector<8x128xf32>
    %30 = vector.extract_strided_slice %28 {offsets = [0, 0], sizes = [8, 128], strides = [1, 1]} : vector<8x256xf32> to vector<8x128xf32>
    %31 = vector.extract_strided_slice %24 {offsets = [0, 0], sizes = [8, 32], strides = [1, 1]} : vector<8x64xf32> to vector<8x32xf32>
    %32 = vector.extract_strided_slice %29 {offsets = [0, 0], sizes = [8, 64], strides = [1, 1]} : vector<8x128xf32> to vector<8x64xf32>
    %33 = vector.extract_strided_slice %30 {offsets = [0, 0], sizes = [8, 64], strides = [1, 1]} : vector<8x128xf32> to vector<8x64xf32>
    %34 = arith.addf %32, %33 : vector<8x64xf32>
    %cst_30 = arith.constant 5.000000e-01 : f32
    %35 = vector.broadcast %cst_30 : f32 to vector<8x64xf32>
    %36 = arith.mulf %35, %34 : vector<8x64xf32>
    %37 = math.tanh %36 : vector<8x64xf32>
    %cst_31 = arith.constant 5.000000e-01 : f32
    %38 = vector.broadcast %cst_31 : f32 to vector<8x64xf32>
    %39 = arith.mulf %38, %37 : vector<8x64xf32>
    %cst_32 = arith.constant 5.000000e-01 : f32
    %40 = vector.broadcast %cst_32 : f32 to vector<8x64xf32>
    %41 = arith.addf %39, %40 : vector<8x64xf32>
    %42 = vector.extract_strided_slice %41 {offsets = [0, 0], sizes = [8, 32], strides = [1, 1]} : vector<8x64xf32> to vector<8x32xf32>
    %43 = vector.extract_strided_slice %41 {offsets = [0, 32], sizes = [8, 32], strides = [1, 1]} : vector<8x64xf32> to vector<8x32xf32>
    %44 = vector.extract_strided_slice %29 {offsets = [0, 64], sizes = [8, 32], strides = [1, 1]} : vector<8x128xf32> to vector<8x32xf32>
    %45 = vector.extract_strided_slice %30 {offsets = [0, 64], sizes = [8, 32], strides = [1, 1]} : vector<8x128xf32> to vector<8x32xf32>
    %46 = arith.mulf %42, %45 : vector<8x32xf32>
    %47 = arith.addf %44, %46 : vector<8x32xf32>
    %48 = math.tanh %47 : vector<8x32xf32>
    %cst_33 = arith.constant 1.000000e+00 : f32
    %49 = vector.broadcast %cst_33 : f32 to vector<8x32xf32>
    %50 = arith.subf %49, %43 : vector<8x32xf32>
    %51 = arith.mulf %50, %48 : vector<8x32xf32>
    %52 = arith.mulf %43, %31 : vector<8x32xf32>
    %53 = arith.addf %51, %52 : vector<8x32xf32>
    %54 = vector.extract_strided_slice %7 {offsets = [40, 128], sizes = [8, 128], strides = [1, 1]} : vector<48x256xf32> to vector<8x128xf32>
    %55 = vector.extract_strided_slice %28 {offsets = [0, 128], sizes = [8, 128], strides = [1, 1]} : vector<8x256xf32> to vector<8x128xf32>
    %56 = vector.extract_strided_slice %24 {offsets = [0, 32], sizes = [8, 32], strides = [1, 1]} : vector<8x64xf32> to vector<8x32xf32>
    %57 = vector.extract_strided_slice %54 {offsets = [0, 0], sizes = [8, 64], strides = [1, 1]} : vector<8x128xf32> to vector<8x64xf32>
    %58 = vector.extract_strided_slice %55 {offsets = [0, 0], sizes = [8, 64], strides = [1, 1]} : vector<8x128xf32> to vector<8x64xf32>
    %59 = arith.addf %57, %58 : vector<8x64xf32>
    %cst_34 = arith.constant 5.000000e-01 : f32
    %60 = vector.broadcast %cst_34 : f32 to vector<8x64xf32>
    %61 = arith.mulf %60, %59 : vector<8x64xf32>
    %62 = math.tanh %61 : vector<8x64xf32>
    %cst_35 = arith.constant 5.000000e-01 : f32
    %63 = vector.broadcast %cst_35 : f32 to vector<8x64xf32>
    %64 = arith.mulf %63, %62 : vector<8x64xf32>
    %cst_36 = arith.constant 5.000000e-01 : f32
    %65 = vector.broadcast %cst_36 : f32 to vector<8x64xf32>
    %66 = arith.addf %64, %65 : vector<8x64xf32>
    %67 = vector.extract_strided_slice %66 {offsets = [0, 0], sizes = [8, 32], strides = [1, 1]} : vector<8x64xf32> to vector<8x32xf32>
    %68 = vector.extract_strided_slice %66 {offsets = [0, 32], sizes = [8, 32], strides = [1, 1]} : vector<8x64xf32> to vector<8x32xf32>
    %69 = vector.extract_strided_slice %54 {offsets = [0, 64], sizes = [8, 32], strides = [1, 1]} : vector<8x128xf32> to vector<8x32xf32>
    %70 = vector.extract_strided_slice %55 {offsets = [0, 64], sizes = [8, 32], strides = [1, 1]} : vector<8x128xf32> to vector<8x32xf32>
    %71 = arith.mulf %67, %70 : vector<8x32xf32>
    %72 = arith.addf %69, %71 : vector<8x32xf32>
    %73 = math.tanh %72 : vector<8x32xf32>
    %cst_37 = arith.constant 1.000000e+00 : f32
    %74 = vector.broadcast %cst_37 : f32 to vector<8x32xf32>
    %75 = arith.subf %74, %68 : vector<8x32xf32>
    %76 = arith.mulf %75, %73 : vector<8x32xf32>
    %77 = arith.mulf %68, %56 : vector<8x32xf32>
    %78 = arith.addf %76, %77 : vector<8x32xf32>
    %79 = tpu.concatenate %53, %78 in 1 : vector<8x32xf32>, vector<8x32xf32> -> vector<8x64xf32>
    %cst_38 = arith.constant dense<0.000000e+00> : vector<8x256xf32>
    %80 = tpu.matmul %25, %21, %cst_38 {dimension_numbers = #tpu.dot_dimension_numbers<[1], [0], [0], [1], [0, 0, 1, 1], [], []>} : vector<8x64xf32>, vector<64x256xf32>, vector<8x256xf32> -> vector<8x256xf32>
    %81 = vector.broadcast %23 : vector<1x256xf32> to vector<8x256xf32>
    %82 = arith.addf %80, %81 : vector<8x256xf32>
    %83 = vector.extract_strided_slice %15 {offsets = [0, 0], sizes = [8, 128], strides = [1, 1]} : vector<64x256xf32> to vector<8x128xf32>
    %84 = vector.extract_strided_slice %82 {offsets = [0, 0], sizes = [8, 128], strides = [1, 1]} : vector<8x256xf32> to vector<8x128xf32>
    %85 = vector.extract_strided_slice %25 {offsets = [0, 0], sizes = [8, 32], strides = [1, 1]} : vector<8x64xf32> to vector<8x32xf32>
    %86 = vector.extract_strided_slice %83 {offsets = [0, 0], sizes = [8, 64], strides = [1, 1]} : vector<8x128xf32> to vector<8x64xf32>
    %87 = vector.extract_strided_slice %84 {offsets = [0, 0], sizes = [8, 64], strides = [1, 1]} : vector<8x128xf32> to vector<8x64xf32>
    %88 = arith.addf %86, %87 : vector<8x64xf32>
    %cst_39 = arith.constant 5.000000e-01 : f32
    %89 = vector.broadcast %cst_39 : f32 to vector<8x64xf32>
    %90 = arith.mulf %89, %88 : vector<8x64xf32>
    %91 = math.tanh %90 : vector<8x64xf32>
    %cst_40 = arith.constant 5.000000e-01 : f32
    %92 = vector.broadcast %cst_40 : f32 to vector<8x64xf32>
    %93 = arith.mulf %92, %91 : vector<8x64xf32>
    %cst_41 = arith.constant 5.000000e-01 : f32
    %94 = vector.broadcast %cst_41 : f32 to vector<8x64xf32>
    %95 = arith.addf %93, %94 : vector<8x64xf32>
    %96 = vector.extract_strided_slice %95 {offsets = [0, 0], sizes = [8, 32], strides = [1, 1]} : vector<8x64xf32> to vector<8x32xf32>
    %97 = vector.extract_strided_slice %95 {offsets = [0, 32], sizes = [8, 32], strides = [1, 1]} : vector<8x64xf32> to vector<8x32xf32>
    %98 = vector.extract_strided_slice %83 {offsets = [0, 64], sizes = [8, 32], strides = [1, 1]} : vector<8x128xf32> to vector<8x32xf32>
    %99 = vector.extract_strided_slice %84 {offsets = [0, 64], sizes = [8, 32], strides = [1, 1]} : vector<8x128xf32> to vector<8x32xf32>
    %100 = arith.mulf %96, %99 : vector<8x32xf32>
    %101 = arith.addf %98, %100 : vector<8x32xf32>
    %102 = math.tanh %101 : vector<8x32xf32>
    %cst_42 = arith.constant 1.000000e+00 : f32
    %103 = vector.broadcast %cst_42 : f32 to vector<8x32xf32>
    %104 = arith.subf %103, %97 : vector<8x32xf32>
    %105 = arith.mulf %104, %102 : vector<8x32xf32>
    %106 = arith.mulf %97, %85 : vector<8x32xf32>
    %107 = arith.addf %105, %106 : vector<8x32xf32>
    %108 = vector.extract_strided_slice %15 {offsets = [56, 128], sizes = [8, 128], strides = [1, 1]} : vector<64x256xf32> to vector<8x128xf32>
    %109 = vector.extract_strided_slice %82 {offsets = [0, 128], sizes = [8, 128], strides = [1, 1]} : vector<8x256xf32> to vector<8x128xf32>
    %110 = vector.extract_strided_slice %25 {offsets = [0, 32], sizes = [8, 32], strides = [1, 1]} : vector<8x64xf32> to vector<8x32xf32>
    %111 = vector.extract_strided_slice %108 {offsets = [0, 0], sizes = [8, 64], strides = [1, 1]} : vector<8x128xf32> to vector<8x64xf32>
    %112 = vector.extract_strided_slice %109 {offsets = [0, 0], sizes = [8, 64], strides = [1, 1]} : vector<8x128xf32> to vector<8x64xf32>
    %113 = arith.addf %111, %112 : vector<8x64xf32>
    %cst_43 = arith.constant 5.000000e-01 : f32
    %114 = vector.broadcast %cst_43 : f32 to vector<8x64xf32>
    %115 = arith.mulf %114, %113 : vector<8x64xf32>
    %116 = math.tanh %115 : vector<8x64xf32>
    %cst_44 = arith.constant 5.000000e-01 : f32
    %117 = vector.broadcast %cst_44 : f32 to vector<8x64xf32>
    %118 = arith.mulf %117, %116 : vector<8x64xf32>
    %cst_45 = arith.constant 5.000000e-01 : f32
    %119 = vector.broadcast %cst_45 : f32 to vector<8x64xf32>
    %120 = arith.addf %118, %119 : vector<8x64xf32>
    %121 = vector.extract_strided_slice %120 {offsets = [0, 0], sizes = [8, 32], strides = [1, 1]} : vector<8x64xf32> to vector<8x32xf32>
    %122 = vector.extract_strided_slice %120 {offsets = [0, 32], sizes = [8, 32], strides = [1, 1]} : vector<8x64xf32> to vector<8x32xf32>
    %123 = vector.extract_strided_slice %108 {offsets = [0, 64], sizes = [8, 32], strides = [1, 1]} : vector<8x128xf32> to vector<8x32xf32>
    %124 = vector.extract_strided_slice %109 {offsets = [0, 64], sizes = [8, 32], strides = [1, 1]} : vector<8x128xf32> to vector<8x32xf32>
    %125 = arith.mulf %121, %124 : vector<8x32xf32>
    %126 = arith.addf %123, %125 : vector<8x32xf32>
    %127 = math.tanh %126 : vector<8x32xf32>
    %cst_46 = arith.constant 1.000000e+00 : f32
    %128 = vector.broadcast %cst_46 : f32 to vector<8x32xf32>
    %129 = arith.subf %128, %122 : vector<8x32xf32>
    %130 = arith.mulf %129, %127 : vector<8x32xf32>
    %131 = arith.mulf %122, %110 : vector<8x32xf32>
    %132 = arith.addf %130, %131 : vector<8x32xf32>
    %133 = tpu.concatenate %107, %132 in 1 : vector<8x32xf32>, vector<8x32xf32> -> vector<8x64xf32>
    %cst_47 = arith.constant dense<0.000000e+00> : vector<8x256xf32>
    %134 = tpu.matmul %79, %17, %cst_47 {dimension_numbers = #tpu.dot_dimension_numbers<[1], [0], [0], [1], [0, 0, 1, 1], [], []>} : vector<8x64xf32>, vector<64x256xf32>, vector<8x256xf32> -> vector<8x256xf32>
    %135 = vector.broadcast %19 : vector<1x256xf32> to vector<8x256xf32>
    %136 = arith.addf %134, %135 : vector<8x256xf32>
    %137 = vector.extract_strided_slice %7 {offsets = [8, 0], sizes = [8, 128], strides = [1, 1]} : vector<48x256xf32> to vector<8x128xf32>
    %138 = vector.extract_strided_slice %136 {offsets = [0, 0], sizes = [8, 128], strides = [1, 1]} : vector<8x256xf32> to vector<8x128xf32>
    %139 = vector.extract_strided_slice %79 {offsets = [0, 0], sizes = [8, 32], strides = [1, 1]} : vector<8x64xf32> to vector<8x32xf32>
    %140 = vector.extract_strided_slice %137 {offsets = [0, 0], sizes = [8, 64], strides = [1, 1]} : vector<8x128xf32> to vector<8x64xf32>
    %141 = vector.extract_strided_slice %138 {offsets = [0, 0], sizes = [8, 64], strides = [1, 1]} : vector<8x128xf32> to vector<8x64xf32>
    %142 = arith.addf %140, %141 : vector<8x64xf32>
    %cst_48 = arith.constant 5.000000e-01 : f32
    %143 = vector.broadcast %cst_48 : f32 to vector<8x64xf32>
    %144 = arith.mulf %143, %142 : vector<8x64xf32>
    %145 = math.tanh %144 : vector<8x64xf32>
    %cst_49 = arith.constant 5.000000e-01 : f32
    %146 = vector.broadcast %cst_49 : f32 to vector<8x64xf32>
    %147 = arith.mulf %146, %145 : vector<8x64xf32>
    %cst_50 = arith.constant 5.000000e-01 : f32
    %148 = vector.broadcast %cst_50 : f32 to vector<8x64xf32>
    %149 = arith.addf %147, %148 : vector<8x64xf32>
    %150 = vector.extract_strided_slice %149 {offsets = [0, 0], sizes = [8, 32], strides = [1, 1]} : vector<8x64xf32> to vector<8x32xf32>
    %151 = vector.extract_strided_slice %149 {offsets = [0, 32], sizes = [8, 32], strides = [1, 1]} : vector<8x64xf32> to vector<8x32xf32>
    %152 = vector.extract_strided_slice %137 {offsets = [0, 64], sizes = [8, 32], strides = [1, 1]} : vector<8x128xf32> to vector<8x32xf32>
    %153 = vector.extract_strided_slice %138 {offsets = [0, 64], sizes = [8, 32], strides = [1, 1]} : vector<8x128xf32> to vector<8x32xf32>
    %154 = arith.mulf %150, %153 : vector<8x32xf32>
    %155 = arith.addf %152, %154 : vector<8x32xf32>
    %156 = math.tanh %155 : vector<8x32xf32>
    %cst_51 = arith.constant 1.000000e+00 : f32
    %157 = vector.broadcast %cst_51 : f32 to vector<8x32xf32>
    %158 = arith.subf %157, %151 : vector<8x32xf32>
    %159 = arith.mulf %158, %156 : vector<8x32xf32>
    %160 = arith.mulf %151, %139 : vector<8x32xf32>
    %161 = arith.addf %159, %160 : vector<8x32xf32>
    %162 = vector.extract_strided_slice %7 {offsets = [32, 128], sizes = [8, 128], strides = [1, 1]} : vector<48x256xf32> to vector<8x128xf32>
    %163 = vector.extract_strided_slice %136 {offsets = [0, 128], sizes = [8, 128], strides = [1, 1]} : vector<8x256xf32> to vector<8x128xf32>
    %164 = vector.extract_strided_slice %79 {offsets = [0, 32], sizes = [8, 32], strides = [1, 1]} : vector<8x64xf32> to vector<8x32xf32>
    %165 = vector.extract_strided_slice %162 {offsets = [0, 0], sizes = [8, 64], strides = [1, 1]} : vector<8x128xf32> to vector<8x64xf32>
    %166 = vector.extract_strided_slice %163 {offsets = [0, 0], sizes = [8, 64], strides = [1, 1]} : vector<8x128xf32> to vector<8x64xf32>
    %167 = arith.addf %165, %166 : vector<8x64xf32>
    %cst_52 = arith.constant 5.000000e-01 : f32
    %168 = vector.broadcast %cst_52 : f32 to vector<8x64xf32>
    %169 = arith.mulf %168, %167 : vector<8x64xf32>
    %170 = math.tanh %169 : vector<8x64xf32>
    %cst_53 = arith.constant 5.000000e-01 : f32
    %171 = vector.broadcast %cst_53 : f32 to vector<8x64xf32>
    %172 = arith.mulf %171, %170 : vector<8x64xf32>
    %cst_54 = arith.constant 5.000000e-01 : f32
    %173 = vector.broadcast %cst_54 : f32 to vector<8x64xf32>
    %174 = arith.addf %172, %173 : vector<8x64xf32>
    %175 = vector.extract_strided_slice %174 {offsets = [0, 0], sizes = [8, 32], strides = [1, 1]} : vector<8x64xf32> to vector<8x32xf32>
    %176 = vector.extract_strided_slice %174 {offsets = [0, 32], sizes = [8, 32], strides = [1, 1]} : vector<8x64xf32> to vector<8x32xf32>
    %177 = vector.extract_strided_slice %162 {offsets = [0, 64], sizes = [8, 32], strides = [1, 1]} : vector<8x128xf32> to vector<8x32xf32>
    %178 = vector.extract_strided_slice %163 {offsets = [0, 64], sizes = [8, 32], strides = [1, 1]} : vector<8x128xf32> to vector<8x32xf32>
    %179 = arith.mulf %175, %178 : vector<8x32xf32>
    %180 = arith.addf %177, %179 : vector<8x32xf32>
    %181 = math.tanh %180 : vector<8x32xf32>
    %cst_55 = arith.constant 1.000000e+00 : f32
    %182 = vector.broadcast %cst_55 : f32 to vector<8x32xf32>
    %183 = arith.subf %182, %176 : vector<8x32xf32>
    %184 = arith.mulf %183, %181 : vector<8x32xf32>
    %185 = arith.mulf %176, %164 : vector<8x32xf32>
    %186 = arith.addf %184, %185 : vector<8x32xf32>
    %187 = tpu.concatenate %161, %186 in 1 : vector<8x32xf32>, vector<8x32xf32> -> vector<8x64xf32>
    %cst_56 = arith.constant dense<0.000000e+00> : vector<8x256xf32>
    %188 = tpu.matmul %133, %21, %cst_56 {dimension_numbers = #tpu.dot_dimension_numbers<[1], [0], [0], [1], [0, 0, 1, 1], [], []>} : vector<8x64xf32>, vector<64x256xf32>, vector<8x256xf32> -> vector<8x256xf32>
    %189 = vector.broadcast %23 : vector<1x256xf32> to vector<8x256xf32>
    %190 = arith.addf %188, %189 : vector<8x256xf32>
    %191 = vector.extract_strided_slice %15 {offsets = [8, 0], sizes = [8, 128], strides = [1, 1]} : vector<64x256xf32> to vector<8x128xf32>
    %192 = vector.extract_strided_slice %190 {offsets = [0, 0], sizes = [8, 128], strides = [1, 1]} : vector<8x256xf32> to vector<8x128xf32>
    %193 = vector.extract_strided_slice %133 {offsets = [0, 0], sizes = [8, 32], strides = [1, 1]} : vector<8x64xf32> to vector<8x32xf32>
    %194 = vector.extract_strided_slice %191 {offsets = [0, 0], sizes = [8, 64], strides = [1, 1]} : vector<8x128xf32> to vector<8x64xf32>
    %195 = vector.extract_strided_slice %192 {offsets = [0, 0], sizes = [8, 64], strides = [1, 1]} : vector<8x128xf32> to vector<8x64xf32>
    %196 = arith.addf %194, %195 : vector<8x64xf32>
    %cst_57 = arith.constant 5.000000e-01 : f32
    %197 = vector.broadcast %cst_57 : f32 to vector<8x64xf32>
    %198 = arith.mulf %197, %196 : vector<8x64xf32>
    %199 = math.tanh %198 : vector<8x64xf32>
    %cst_58 = arith.constant 5.000000e-01 : f32
    %200 = vector.broadcast %cst_58 : f32 to vector<8x64xf32>
    %201 = arith.mulf %200, %199 : vector<8x64xf32>
    %cst_59 = arith.constant 5.000000e-01 : f32
    %202 = vector.broadcast %cst_59 : f32 to vector<8x64xf32>
    %203 = arith.addf %201, %202 : vector<8x64xf32>
    %204 = vector.extract_strided_slice %203 {offsets = [0, 0], sizes = [8, 32], strides = [1, 1]} : vector<8x64xf32> to vector<8x32xf32>
    %205 = vector.extract_strided_slice %203 {offsets = [0, 32], sizes = [8, 32], strides = [1, 1]} : vector<8x64xf32> to vector<8x32xf32>
    %206 = vector.extract_strided_slice %191 {offsets = [0, 64], sizes = [8, 32], strides = [1, 1]} : vector<8x128xf32> to vector<8x32xf32>
    %207 = vector.extract_strided_slice %192 {offsets = [0, 64], sizes = [8, 32], strides = [1, 1]} : vector<8x128xf32> to vector<8x32xf32>
    %208 = arith.mulf %204, %207 : vector<8x32xf32>
    %209 = arith.addf %206, %208 : vector<8x32xf32>
    %210 = math.tanh %209 : vector<8x32xf32>
    %cst_60 = arith.constant 1.000000e+00 : f32
    %211 = vector.broadcast %cst_60 : f32 to vector<8x32xf32>
    %212 = arith.subf %211, %205 : vector<8x32xf32>
    %213 = arith.mulf %212, %210 : vector<8x32xf32>
    %214 = arith.mulf %205, %193 : vector<8x32xf32>
    %215 = arith.addf %213, %214 : vector<8x32xf32>
    %216 = vector.extract_strided_slice %15 {offsets = [48, 128], sizes = [8, 128], strides = [1, 1]} : vector<64x256xf32> to vector<8x128xf32>
    %217 = vector.extract_strided_slice %190 {offsets = [0, 128], sizes = [8, 128], strides = [1, 1]} : vector<8x256xf32> to vector<8x128xf32>
    %218 = vector.extract_strided_slice %133 {offsets = [0, 32], sizes = [8, 32], strides = [1, 1]} : vector<8x64xf32> to vector<8x32xf32>
    %219 = vector.extract_strided_slice %216 {offsets = [0, 0], sizes = [8, 64], strides = [1, 1]} : vector<8x128xf32> to vector<8x64xf32>
    %220 = vector.extract_strided_slice %217 {offsets = [0, 0], sizes = [8, 64], strides = [1, 1]} : vector<8x128xf32> to vector<8x64xf32>
    %221 = arith.addf %219, %220 : vector<8x64xf32>
    %cst_61 = arith.constant 5.000000e-01 : f32
    %222 = vector.broadcast %cst_61 : f32 to vector<8x64xf32>
    %223 = arith.mulf %222, %221 : vector<8x64xf32>
    %224 = math.tanh %223 : vector<8x64xf32>
    %cst_62 = arith.constant 5.000000e-01 : f32
    %225 = vector.broadcast %cst_62 : f32 to vector<8x64xf32>
    %226 = arith.mulf %225, %224 : vector<8x64xf32>
    %cst_63 = arith.constant 5.000000e-01 : f32
    %227 = vector.broadcast %cst_63 : f32 to vector<8x64xf32>
    %228 = arith.addf %226, %227 : vector<8x64xf32>
    %229 = vector.extract_strided_slice %228 {offsets = [0, 0], sizes = [8, 32], strides = [1, 1]} : vector<8x64xf32> to vector<8x32xf32>
    %230 = vector.extract_strided_slice %228 {offsets = [0, 32], sizes = [8, 32], strides = [1, 1]} : vector<8x64xf32> to vector<8x32xf32>
    %231 = vector.extract_strided_slice %216 {offsets = [0, 64], sizes = [8, 32], strides = [1, 1]} : vector<8x128xf32> to vector<8x32xf32>
    %232 = vector.extract_strided_slice %217 {offsets = [0, 64], sizes = [8, 32], strides = [1, 1]} : vector<8x128xf32> to vector<8x32xf32>
    %233 = arith.mulf %229, %232 : vector<8x32xf32>
    %234 = arith.addf %231, %233 : vector<8x32xf32>
    %235 = math.tanh %234 : vector<8x32xf32>
    %cst_64 = arith.constant 1.000000e+00 : f32
    %236 = vector.broadcast %cst_64 : f32 to vector<8x32xf32>
    %237 = arith.subf %236, %230 : vector<8x32xf32>
    %238 = arith.mulf %237, %235 : vector<8x32xf32>
    %239 = arith.mulf %230, %218 : vector<8x32xf32>
    %240 = arith.addf %238, %239 : vector<8x32xf32>
    %241 = tpu.concatenate %215, %240 in 1 : vector<8x32xf32>, vector<8x32xf32> -> vector<8x64xf32>
    %cst_65 = arith.constant dense<0.000000e+00> : vector<8x256xf32>
    %242 = tpu.matmul %187, %17, %cst_65 {dimension_numbers = #tpu.dot_dimension_numbers<[1], [0], [0], [1], [0, 0, 1, 1], [], []>} : vector<8x64xf32>, vector<64x256xf32>, vector<8x256xf32> -> vector<8x256xf32>
    %243 = vector.broadcast %19 : vector<1x256xf32> to vector<8x256xf32>
    %244 = arith.addf %242, %243 : vector<8x256xf32>
    %245 = vector.extract_strided_slice %7 {offsets = [16, 0], sizes = [8, 128], strides = [1, 1]} : vector<48x256xf32> to vector<8x128xf32>
    %246 = vector.extract_strided_slice %244 {offsets = [0, 0], sizes = [8, 128], strides = [1, 1]} : vector<8x256xf32> to vector<8x128xf32>
    %247 = vector.extract_strided_slice %187 {offsets = [0, 0], sizes = [8, 32], strides = [1, 1]} : vector<8x64xf32> to vector<8x32xf32>
    %248 = vector.extract_strided_slice %245 {offsets = [0, 0], sizes = [8, 64], strides = [1, 1]} : vector<8x128xf32> to vector<8x64xf32>
    %249 = vector.extract_strided_slice %246 {offsets = [0, 0], sizes = [8, 64], strides = [1, 1]} : vector<8x128xf32> to vector<8x64xf32>
    %250 = arith.addf %248, %249 : vector<8x64xf32>
    %cst_66 = arith.constant 5.000000e-01 : f32
    %251 = vector.broadcast %cst_66 : f32 to vector<8x64xf32>
    %252 = arith.mulf %251, %250 : vector<8x64xf32>
    %253 = math.tanh %252 : vector<8x64xf32>
    %cst_67 = arith.constant 5.000000e-01 : f32
    %254 = vector.broadcast %cst_67 : f32 to vector<8x64xf32>
    %255 = arith.mulf %254, %253 : vector<8x64xf32>
    %cst_68 = arith.constant 5.000000e-01 : f32
    %256 = vector.broadcast %cst_68 : f32 to vector<8x64xf32>
    %257 = arith.addf %255, %256 : vector<8x64xf32>
    %258 = vector.extract_strided_slice %257 {offsets = [0, 0], sizes = [8, 32], strides = [1, 1]} : vector<8x64xf32> to vector<8x32xf32>
    %259 = vector.extract_strided_slice %257 {offsets = [0, 32], sizes = [8, 32], strides = [1, 1]} : vector<8x64xf32> to vector<8x32xf32>
    %260 = vector.extract_strided_slice %245 {offsets = [0, 64], sizes = [8, 32], strides = [1, 1]} : vector<8x128xf32> to vector<8x32xf32>
    %261 = vector.extract_strided_slice %246 {offsets = [0, 64], sizes = [8, 32], strides = [1, 1]} : vector<8x128xf32> to vector<8x32xf32>
    %262 = arith.mulf %258, %261 : vector<8x32xf32>
    %263 = arith.addf %260, %262 : vector<8x32xf32>
    %264 = math.tanh %263 : vector<8x32xf32>
    %cst_69 = arith.constant 1.000000e+00 : f32
    %265 = vector.broadcast %cst_69 : f32 to vector<8x32xf32>
    %266 = arith.subf %265, %259 : vector<8x32xf32>
    %267 = arith.mulf %266, %264 : vector<8x32xf32>
    %268 = arith.mulf %259, %247 : vector<8x32xf32>
    %269 = arith.addf %267, %268 : vector<8x32xf32>
    %270 = vector.extract_strided_slice %7 {offsets = [24, 128], sizes = [8, 128], strides = [1, 1]} : vector<48x256xf32> to vector<8x128xf32>
    %271 = vector.extract_strided_slice %244 {offsets = [0, 128], sizes = [8, 128], strides = [1, 1]} : vector<8x256xf32> to vector<8x128xf32>
    %272 = vector.extract_strided_slice %187 {offsets = [0, 32], sizes = [8, 32], strides = [1, 1]} : vector<8x64xf32> to vector<8x32xf32>
    %273 = vector.extract_strided_slice %270 {offsets = [0, 0], sizes = [8, 64], strides = [1, 1]} : vector<8x128xf32> to vector<8x64xf32>
    %274 = vector.extract_strided_slice %271 {offsets = [0, 0], sizes = [8, 64], strides = [1, 1]} : vector<8x128xf32> to vector<8x64xf32>
    %275 = arith.addf %273, %274 : vector<8x64xf32>
    %cst_70 = arith.constant 5.000000e-01 : f32
    %276 = vector.broadcast %cst_70 : f32 to vector<8x64xf32>
    %277 = arith.mulf %276, %275 : vector<8x64xf32>
    %278 = math.tanh %277 : vector<8x64xf32>
    %cst_71 = arith.constant 5.000000e-01 : f32
    %279 = vector.broadcast %cst_71 : f32 to vector<8x64xf32>
    %280 = arith.mulf %279, %278 : vector<8x64xf32>
    %cst_72 = arith.constant 5.000000e-01 : f32
    %281 = vector.broadcast %cst_72 : f32 to vector<8x64xf32>
    %282 = arith.addf %280, %281 : vector<8x64xf32>
    %283 = vector.extract_strided_slice %282 {offsets = [0, 0], sizes = [8, 32], strides = [1, 1]} : vector<8x64xf32> to vector<8x32xf32>
    %284 = vector.extract_strided_slice %282 {offsets = [0, 32], sizes = [8, 32], strides = [1, 1]} : vector<8x64xf32> to vector<8x32xf32>
    %285 = vector.extract_strided_slice %270 {offsets = [0, 64], sizes = [8, 32], strides = [1, 1]} : vector<8x128xf32> to vector<8x32xf32>
    %286 = vector.extract_strided_slice %271 {offsets = [0, 64], sizes = [8, 32], strides = [1, 1]} : vector<8x128xf32> to vector<8x32xf32>
    %287 = arith.mulf %283, %286 : vector<8x32xf32>
    %288 = arith.addf %285, %287 : vector<8x32xf32>
    %289 = math.tanh %288 : vector<8x32xf32>
    %cst_73 = arith.constant 1.000000e+00 : f32
    %290 = vector.broadcast %cst_73 : f32 to vector<8x32xf32>
    %291 = arith.subf %290, %284 : vector<8x32xf32>
    %292 = arith.mulf %291, %289 : vector<8x32xf32>
    %293 = arith.mulf %284, %272 : vector<8x32xf32>
    %294 = arith.addf %292, %293 : vector<8x32xf32>
    %295 = tpu.concatenate %269, %294 in 1 : vector<8x32xf32>, vector<8x32xf32> -> vector<8x64xf32>
    %cst_74 = arith.constant dense<0.000000e+00> : vector<8x256xf32>
    %296 = tpu.matmul %241, %21, %cst_74 {dimension_numbers = #tpu.dot_dimension_numbers<[1], [0], [0], [1], [0, 0, 1, 1], [], []>} : vector<8x64xf32>, vector<64x256xf32>, vector<8x256xf32> -> vector<8x256xf32>
    %297 = vector.broadcast %23 : vector<1x256xf32> to vector<8x256xf32>
    %298 = arith.addf %296, %297 : vector<8x256xf32>
    %299 = vector.extract_strided_slice %15 {offsets = [16, 0], sizes = [8, 128], strides = [1, 1]} : vector<64x256xf32> to vector<8x128xf32>
    %300 = vector.extract_strided_slice %298 {offsets = [0, 0], sizes = [8, 128], strides = [1, 1]} : vector<8x256xf32> to vector<8x128xf32>
    %301 = vector.extract_strided_slice %241 {offsets = [0, 0], sizes = [8, 32], strides = [1, 1]} : vector<8x64xf32> to vector<8x32xf32>
    %302 = vector.extract_strided_slice %299 {offsets = [0, 0], sizes = [8, 64], strides = [1, 1]} : vector<8x128xf32> to vector<8x64xf32>
    %303 = vector.extract_strided_slice %300 {offsets = [0, 0], sizes = [8, 64], strides = [1, 1]} : vector<8x128xf32> to vector<8x64xf32>
    %304 = arith.addf %302, %303 : vector<8x64xf32>
    %cst_75 = arith.constant 5.000000e-01 : f32
    %305 = vector.broadcast %cst_75 : f32 to vector<8x64xf32>
    %306 = arith.mulf %305, %304 : vector<8x64xf32>
    %307 = math.tanh %306 : vector<8x64xf32>
    %cst_76 = arith.constant 5.000000e-01 : f32
    %308 = vector.broadcast %cst_76 : f32 to vector<8x64xf32>
    %309 = arith.mulf %308, %307 : vector<8x64xf32>
    %cst_77 = arith.constant 5.000000e-01 : f32
    %310 = vector.broadcast %cst_77 : f32 to vector<8x64xf32>
    %311 = arith.addf %309, %310 : vector<8x64xf32>
    %312 = vector.extract_strided_slice %311 {offsets = [0, 0], sizes = [8, 32], strides = [1, 1]} : vector<8x64xf32> to vector<8x32xf32>
    %313 = vector.extract_strided_slice %311 {offsets = [0, 32], sizes = [8, 32], strides = [1, 1]} : vector<8x64xf32> to vector<8x32xf32>
    %314 = vector.extract_strided_slice %299 {offsets = [0, 64], sizes = [8, 32], strides = [1, 1]} : vector<8x128xf32> to vector<8x32xf32>
    %315 = vector.extract_strided_slice %300 {offsets = [0, 64], sizes = [8, 32], strides = [1, 1]} : vector<8x128xf32> to vector<8x32xf32>
    %316 = arith.mulf %312, %315 : vector<8x32xf32>
    %317 = arith.addf %314, %316 : vector<8x32xf32>
    %318 = math.tanh %317 : vector<8x32xf32>
    %cst_78 = arith.constant 1.000000e+00 : f32
    %319 = vector.broadcast %cst_78 : f32 to vector<8x32xf32>
    %320 = arith.subf %319, %313 : vector<8x32xf32>
    %321 = arith.mulf %320, %318 : vector<8x32xf32>
    %322 = arith.mulf %313, %301 : vector<8x32xf32>
    %323 = arith.addf %321, %322 : vector<8x32xf32>
    %324 = vector.extract_strided_slice %15 {offsets = [40, 128], sizes = [8, 128], strides = [1, 1]} : vector<64x256xf32> to vector<8x128xf32>
    %325 = vector.extract_strided_slice %298 {offsets = [0, 128], sizes = [8, 128], strides = [1, 1]} : vector<8x256xf32> to vector<8x128xf32>
    %326 = vector.extract_strided_slice %241 {offsets = [0, 32], sizes = [8, 32], strides = [1, 1]} : vector<8x64xf32> to vector<8x32xf32>
    %327 = vector.extract_strided_slice %324 {offsets = [0, 0], sizes = [8, 64], strides = [1, 1]} : vector<8x128xf32> to vector<8x64xf32>
    %328 = vector.extract_strided_slice %325 {offsets = [0, 0], sizes = [8, 64], strides = [1, 1]} : vector<8x128xf32> to vector<8x64xf32>
    %329 = arith.addf %327, %328 : vector<8x64xf32>
    %cst_79 = arith.constant 5.000000e-01 : f32
    %330 = vector.broadcast %cst_79 : f32 to vector<8x64xf32>
    %331 = arith.mulf %330, %329 : vector<8x64xf32>
    %332 = math.tanh %331 : vector<8x64xf32>
    %cst_80 = arith.constant 5.000000e-01 : f32
    %333 = vector.broadcast %cst_80 : f32 to vector<8x64xf32>
    %334 = arith.mulf %333, %332 : vector<8x64xf32>
    %cst_81 = arith.constant 5.000000e-01 : f32
    %335 = vector.broadcast %cst_81 : f32 to vector<8x64xf32>
    %336 = arith.addf %334, %335 : vector<8x64xf32>
    %337 = vector.extract_strided_slice %336 {offsets = [0, 0], sizes = [8, 32], strides = [1, 1]} : vector<8x64xf32> to vector<8x32xf32>
    %338 = vector.extract_strided_slice %336 {offsets = [0, 32], sizes = [8, 32], strides = [1, 1]} : vector<8x64xf32> to vector<8x32xf32>
    %339 = vector.extract_strided_slice %324 {offsets = [0, 64], sizes = [8, 32], strides = [1, 1]} : vector<8x128xf32> to vector<8x32xf32>
    %340 = vector.extract_strided_slice %325 {offsets = [0, 64], sizes = [8, 32], strides = [1, 1]} : vector<8x128xf32> to vector<8x32xf32>
    %341 = arith.mulf %337, %340 : vector<8x32xf32>
    %342 = arith.addf %339, %341 : vector<8x32xf32>
    %343 = math.tanh %342 : vector<8x32xf32>
    %cst_82 = arith.constant 1.000000e+00 : f32
    %344 = vector.broadcast %cst_82 : f32 to vector<8x32xf32>
    %345 = arith.subf %344, %338 : vector<8x32xf32>
    %346 = arith.mulf %345, %343 : vector<8x32xf32>
    %347 = arith.mulf %338, %326 : vector<8x32xf32>
    %348 = arith.addf %346, %347 : vector<8x32xf32>
    %349 = tpu.concatenate %323, %348 in 1 : vector<8x32xf32>, vector<8x32xf32> -> vector<8x64xf32>
    %cst_83 = arith.constant dense<0.000000e+00> : vector<8x256xf32>
    %350 = tpu.matmul %295, %17, %cst_83 {dimension_numbers = #tpu.dot_dimension_numbers<[1], [0], [0], [1], [0, 0, 1, 1], [], []>} : vector<8x64xf32>, vector<64x256xf32>, vector<8x256xf32> -> vector<8x256xf32>
    %351 = vector.broadcast %19 : vector<1x256xf32> to vector<8x256xf32>
    %352 = arith.addf %350, %351 : vector<8x256xf32>
    %353 = vector.extract_strided_slice %7 {offsets = [24, 0], sizes = [8, 128], strides = [1, 1]} : vector<48x256xf32> to vector<8x128xf32>
    %354 = vector.extract_strided_slice %352 {offsets = [0, 0], sizes = [8, 128], strides = [1, 1]} : vector<8x256xf32> to vector<8x128xf32>
    %355 = vector.extract_strided_slice %295 {offsets = [0, 0], sizes = [8, 32], strides = [1, 1]} : vector<8x64xf32> to vector<8x32xf32>
    %356 = vector.extract_strided_slice %353 {offsets = [0, 0], sizes = [8, 64], strides = [1, 1]} : vector<8x128xf32> to vector<8x64xf32>
    %357 = vector.extract_strided_slice %354 {offsets = [0, 0], sizes = [8, 64], strides = [1, 1]} : vector<8x128xf32> to vector<8x64xf32>
    %358 = arith.addf %356, %357 : vector<8x64xf32>
    %cst_84 = arith.constant 5.000000e-01 : f32
    %359 = vector.broadcast %cst_84 : f32 to vector<8x64xf32>
    %360 = arith.mulf %359, %358 : vector<8x64xf32>
    %361 = math.tanh %360 : vector<8x64xf32>
    %cst_85 = arith.constant 5.000000e-01 : f32
    %362 = vector.broadcast %cst_85 : f32 to vector<8x64xf32>
    %363 = arith.mulf %362, %361 : vector<8x64xf32>
    %cst_86 = arith.constant 5.000000e-01 : f32
    %364 = vector.broadcast %cst_86 : f32 to vector<8x64xf32>
    %365 = arith.addf %363, %364 : vector<8x64xf32>
    %366 = vector.extract_strided_slice %365 {offsets = [0, 0], sizes = [8, 32], strides = [1, 1]} : vector<8x64xf32> to vector<8x32xf32>
    %367 = vector.extract_strided_slice %365 {offsets = [0, 32], sizes = [8, 32], strides = [1, 1]} : vector<8x64xf32> to vector<8x32xf32>
    %368 = vector.extract_strided_slice %353 {offsets = [0, 64], sizes = [8, 32], strides = [1, 1]} : vector<8x128xf32> to vector<8x32xf32>
    %369 = vector.extract_strided_slice %354 {offsets = [0, 64], sizes = [8, 32], strides = [1, 1]} : vector<8x128xf32> to vector<8x32xf32>
    %370 = arith.mulf %366, %369 : vector<8x32xf32>
    %371 = arith.addf %368, %370 : vector<8x32xf32>
    %372 = math.tanh %371 : vector<8x32xf32>
    %cst_87 = arith.constant 1.000000e+00 : f32
    %373 = vector.broadcast %cst_87 : f32 to vector<8x32xf32>
    %374 = arith.subf %373, %367 : vector<8x32xf32>
    %375 = arith.mulf %374, %372 : vector<8x32xf32>
    %376 = arith.mulf %367, %355 : vector<8x32xf32>
    %377 = arith.addf %375, %376 : vector<8x32xf32>
    %378 = vector.extract_strided_slice %7 {offsets = [16, 128], sizes = [8, 128], strides = [1, 1]} : vector<48x256xf32> to vector<8x128xf32>
    %379 = vector.extract_strided_slice %352 {offsets = [0, 128], sizes = [8, 128], strides = [1, 1]} : vector<8x256xf32> to vector<8x128xf32>
    %380 = vector.extract_strided_slice %295 {offsets = [0, 32], sizes = [8, 32], strides = [1, 1]} : vector<8x64xf32> to vector<8x32xf32>
    %381 = vector.extract_strided_slice %378 {offsets = [0, 0], sizes = [8, 64], strides = [1, 1]} : vector<8x128xf32> to vector<8x64xf32>
    %382 = vector.extract_strided_slice %379 {offsets = [0, 0], sizes = [8, 64], strides = [1, 1]} : vector<8x128xf32> to vector<8x64xf32>
    %383 = arith.addf %381, %382 : vector<8x64xf32>
    %cst_88 = arith.constant 5.000000e-01 : f32
    %384 = vector.broadcast %cst_88 : f32 to vector<8x64xf32>
    %385 = arith.mulf %384, %383 : vector<8x64xf32>
    %386 = math.tanh %385 : vector<8x64xf32>
    %cst_89 = arith.constant 5.000000e-01 : f32
    %387 = vector.broadcast %cst_89 : f32 to vector<8x64xf32>
    %388 = arith.mulf %387, %386 : vector<8x64xf32>
    %cst_90 = arith.constant 5.000000e-01 : f32
    %389 = vector.broadcast %cst_90 : f32 to vector<8x64xf32>
    %390 = arith.addf %388, %389 : vector<8x64xf32>
    %391 = vector.extract_strided_slice %390 {offsets = [0, 0], sizes = [8, 32], strides = [1, 1]} : vector<8x64xf32> to vector<8x32xf32>
    %392 = vector.extract_strided_slice %390 {offsets = [0, 32], sizes = [8, 32], strides = [1, 1]} : vector<8x64xf32> to vector<8x32xf32>
    %393 = vector.extract_strided_slice %378 {offsets = [0, 64], sizes = [8, 32], strides = [1, 1]} : vector<8x128xf32> to vector<8x32xf32>
    %394 = vector.extract_strided_slice %379 {offsets = [0, 64], sizes = [8, 32], strides = [1, 1]} : vector<8x128xf32> to vector<8x32xf32>
    %395 = arith.mulf %391, %394 : vector<8x32xf32>
    %396 = arith.addf %393, %395 : vector<8x32xf32>
    %397 = math.tanh %396 : vector<8x32xf32>
    %cst_91 = arith.constant 1.000000e+00 : f32
    %398 = vector.broadcast %cst_91 : f32 to vector<8x32xf32>
    %399 = arith.subf %398, %392 : vector<8x32xf32>
    %400 = arith.mulf %399, %397 : vector<8x32xf32>
    %401 = arith.mulf %392, %380 : vector<8x32xf32>
    %402 = arith.addf %400, %401 : vector<8x32xf32>
    %403 = tpu.concatenate %377, %402 in 1 : vector<8x32xf32>, vector<8x32xf32> -> vector<8x64xf32>
    %cst_92 = arith.constant dense<0.000000e+00> : vector<8x256xf32>
    %404 = tpu.matmul %349, %21, %cst_92 {dimension_numbers = #tpu.dot_dimension_numbers<[1], [0], [0], [1], [0, 0, 1, 1], [], []>} : vector<8x64xf32>, vector<64x256xf32>, vector<8x256xf32> -> vector<8x256xf32>
    %405 = vector.broadcast %23 : vector<1x256xf32> to vector<8x256xf32>
    %406 = arith.addf %404, %405 : vector<8x256xf32>
    %407 = vector.extract_strided_slice %15 {offsets = [24, 0], sizes = [8, 128], strides = [1, 1]} : vector<64x256xf32> to vector<8x128xf32>
    %408 = vector.extract_strided_slice %406 {offsets = [0, 0], sizes = [8, 128], strides = [1, 1]} : vector<8x256xf32> to vector<8x128xf32>
    %409 = vector.extract_strided_slice %349 {offsets = [0, 0], sizes = [8, 32], strides = [1, 1]} : vector<8x64xf32> to vector<8x32xf32>
    %410 = vector.extract_strided_slice %407 {offsets = [0, 0], sizes = [8, 64], strides = [1, 1]} : vector<8x128xf32> to vector<8x64xf32>
    %411 = vector.extract_strided_slice %408 {offsets = [0, 0], sizes = [8, 64], strides = [1, 1]} : vector<8x128xf32> to vector<8x64xf32>
    %412 = arith.addf %410, %411 : vector<8x64xf32>
    %cst_93 = arith.constant 5.000000e-01 : f32
    %413 = vector.broadcast %cst_93 : f32 to vector<8x64xf32>
    %414 = arith.mulf %413, %412 : vector<8x64xf32>
    %415 = math.tanh %414 : vector<8x64xf32>
    %cst_94 = arith.constant 5.000000e-01 : f32
    %416 = vector.broadcast %cst_94 : f32 to vector<8x64xf32>
    %417 = arith.mulf %416, %415 : vector<8x64xf32>
    %cst_95 = arith.constant 5.000000e-01 : f32
    %418 = vector.broadcast %cst_95 : f32 to vector<8x64xf32>
    %419 = arith.addf %417, %418 : vector<8x64xf32>
    %420 = vector.extract_strided_slice %419 {offsets = [0, 0], sizes = [8, 32], strides = [1, 1]} : vector<8x64xf32> to vector<8x32xf32>
    %421 = vector.extract_strided_slice %419 {offsets = [0, 32], sizes = [8, 32], strides = [1, 1]} : vector<8x64xf32> to vector<8x32xf32>
    %422 = vector.extract_strided_slice %407 {offsets = [0, 64], sizes = [8, 32], strides = [1, 1]} : vector<8x128xf32> to vector<8x32xf32>
    %423 = vector.extract_strided_slice %408 {offsets = [0, 64], sizes = [8, 32], strides = [1, 1]} : vector<8x128xf32> to vector<8x32xf32>
    %424 = arith.mulf %420, %423 : vector<8x32xf32>
    %425 = arith.addf %422, %424 : vector<8x32xf32>
    %426 = math.tanh %425 : vector<8x32xf32>
    %cst_96 = arith.constant 1.000000e+00 : f32
    %427 = vector.broadcast %cst_96 : f32 to vector<8x32xf32>
    %428 = arith.subf %427, %421 : vector<8x32xf32>
    %429 = arith.mulf %428, %426 : vector<8x32xf32>
    %430 = arith.mulf %421, %409 : vector<8x32xf32>
    %431 = arith.addf %429, %430 : vector<8x32xf32>
    %432 = vector.extract_strided_slice %15 {offsets = [32, 128], sizes = [8, 128], strides = [1, 1]} : vector<64x256xf32> to vector<8x128xf32>
    %433 = vector.extract_strided_slice %406 {offsets = [0, 128], sizes = [8, 128], strides = [1, 1]} : vector<8x256xf32> to vector<8x128xf32>
    %434 = vector.extract_strided_slice %349 {offsets = [0, 32], sizes = [8, 32], strides = [1, 1]} : vector<8x64xf32> to vector<8x32xf32>
    %435 = vector.extract_strided_slice %432 {offsets = [0, 0], sizes = [8, 64], strides = [1, 1]} : vector<8x128xf32> to vector<8x64xf32>
    %436 = vector.extract_strided_slice %433 {offsets = [0, 0], sizes = [8, 64], strides = [1, 1]} : vector<8x128xf32> to vector<8x64xf32>
    %437 = arith.addf %435, %436 : vector<8x64xf32>
    %cst_97 = arith.constant 5.000000e-01 : f32
    %438 = vector.broadcast %cst_97 : f32 to vector<8x64xf32>
    %439 = arith.mulf %438, %437 : vector<8x64xf32>
    %440 = math.tanh %439 : vector<8x64xf32>
    %cst_98 = arith.constant 5.000000e-01 : f32
    %441 = vector.broadcast %cst_98 : f32 to vector<8x64xf32>
    %442 = arith.mulf %441, %440 : vector<8x64xf32>
    %cst_99 = arith.constant 5.000000e-01 : f32
    %443 = vector.broadcast %cst_99 : f32 to vector<8x64xf32>
    %444 = arith.addf %442, %443 : vector<8x64xf32>
    %445 = vector.extract_strided_slice %444 {offsets = [0, 0], sizes = [8, 32], strides = [1, 1]} : vector<8x64xf32> to vector<8x32xf32>
    %446 = vector.extract_strided_slice %444 {offsets = [0, 32], sizes = [8, 32], strides = [1, 1]} : vector<8x64xf32> to vector<8x32xf32>
    %447 = vector.extract_strided_slice %432 {offsets = [0, 64], sizes = [8, 32], strides = [1, 1]} : vector<8x128xf32> to vector<8x32xf32>
    %448 = vector.extract_strided_slice %433 {offsets = [0, 64], sizes = [8, 32], strides = [1, 1]} : vector<8x128xf32> to vector<8x32xf32>
    %449 = arith.mulf %445, %448 : vector<8x32xf32>
    %450 = arith.addf %447, %449 : vector<8x32xf32>
    %451 = math.tanh %450 : vector<8x32xf32>
    %cst_100 = arith.constant 1.000000e+00 : f32
    %452 = vector.broadcast %cst_100 : f32 to vector<8x32xf32>
    %453 = arith.subf %452, %446 : vector<8x32xf32>
    %454 = arith.mulf %453, %451 : vector<8x32xf32>
    %455 = arith.mulf %446, %434 : vector<8x32xf32>
    %456 = arith.addf %454, %455 : vector<8x32xf32>
    %457 = tpu.concatenate %431, %456 in 1 : vector<8x32xf32>, vector<8x32xf32> -> vector<8x64xf32>
    %cst_101 = arith.constant dense<0.000000e+00> : vector<8x256xf32>
    %458 = tpu.matmul %403, %17, %cst_101 {dimension_numbers = #tpu.dot_dimension_numbers<[1], [0], [0], [1], [0, 0, 1, 1], [], []>} : vector<8x64xf32>, vector<64x256xf32>, vector<8x256xf32> -> vector<8x256xf32>
    %459 = vector.broadcast %19 : vector<1x256xf32> to vector<8x256xf32>
    %460 = arith.addf %458, %459 : vector<8x256xf32>
    %461 = vector.extract_strided_slice %7 {offsets = [32, 0], sizes = [8, 128], strides = [1, 1]} : vector<48x256xf32> to vector<8x128xf32>
    %462 = vector.extract_strided_slice %460 {offsets = [0, 0], sizes = [8, 128], strides = [1, 1]} : vector<8x256xf32> to vector<8x128xf32>
    %463 = vector.extract_strided_slice %403 {offsets = [0, 0], sizes = [8, 32], strides = [1, 1]} : vector<8x64xf32> to vector<8x32xf32>
    %464 = vector.extract_strided_slice %461 {offsets = [0, 0], sizes = [8, 64], strides = [1, 1]} : vector<8x128xf32> to vector<8x64xf32>
    %465 = vector.extract_strided_slice %462 {offsets = [0, 0], sizes = [8, 64], strides = [1, 1]} : vector<8x128xf32> to vector<8x64xf32>
    %466 = arith.addf %464, %465 : vector<8x64xf32>
    %cst_102 = arith.constant 5.000000e-01 : f32
    %467 = vector.broadcast %cst_102 : f32 to vector<8x64xf32>
    %468 = arith.mulf %467, %466 : vector<8x64xf32>
    %469 = math.tanh %468 : vector<8x64xf32>
    %cst_103 = arith.constant 5.000000e-01 : f32
    %470 = vector.broadcast %cst_103 : f32 to vector<8x64xf32>
    %471 = arith.mulf %470, %469 : vector<8x64xf32>
    %cst_104 = arith.constant 5.000000e-01 : f32
    %472 = vector.broadcast %cst_104 : f32 to vector<8x64xf32>
    %473 = arith.addf %471, %472 : vector<8x64xf32>
    %474 = vector.extract_strided_slice %473 {offsets = [0, 0], sizes = [8, 32], strides = [1, 1]} : vector<8x64xf32> to vector<8x32xf32>
    %475 = vector.extract_strided_slice %473 {offsets = [0, 32], sizes = [8, 32], strides = [1, 1]} : vector<8x64xf32> to vector<8x32xf32>
    %476 = vector.extract_strided_slice %461 {offsets = [0, 64], sizes = [8, 32], strides = [1, 1]} : vector<8x128xf32> to vector<8x32xf32>
    %477 = vector.extract_strided_slice %462 {offsets = [0, 64], sizes = [8, 32], strides = [1, 1]} : vector<8x128xf32> to vector<8x32xf32>
    %478 = arith.mulf %474, %477 : vector<8x32xf32>
    %479 = arith.addf %476, %478 : vector<8x32xf32>
    %480 = math.tanh %479 : vector<8x32xf32>
    %cst_105 = arith.constant 1.000000e+00 : f32
    %481 = vector.broadcast %cst_105 : f32 to vector<8x32xf32>
    %482 = arith.subf %481, %475 : vector<8x32xf32>
    %483 = arith.mulf %482, %480 : vector<8x32xf32>
    %484 = arith.mulf %475, %463 : vector<8x32xf32>
    %485 = arith.addf %483, %484 : vector<8x32xf32>
    %486 = vector.extract_strided_slice %7 {offsets = [8, 128], sizes = [8, 128], strides = [1, 1]} : vector<48x256xf32> to vector<8x128xf32>
    %487 = vector.extract_strided_slice %460 {offsets = [0, 128], sizes = [8, 128], strides = [1, 1]} : vector<8x256xf32> to vector<8x128xf32>
    %488 = vector.extract_strided_slice %403 {offsets = [0, 32], sizes = [8, 32], strides = [1, 1]} : vector<8x64xf32> to vector<8x32xf32>
    %489 = vector.extract_strided_slice %486 {offsets = [0, 0], sizes = [8, 64], strides = [1, 1]} : vector<8x128xf32> to vector<8x64xf32>
    %490 = vector.extract_strided_slice %487 {offsets = [0, 0], sizes = [8, 64], strides = [1, 1]} : vector<8x128xf32> to vector<8x64xf32>
    %491 = arith.addf %489, %490 : vector<8x64xf32>
    %cst_106 = arith.constant 5.000000e-01 : f32
    %492 = vector.broadcast %cst_106 : f32 to vector<8x64xf32>
    %493 = arith.mulf %492, %491 : vector<8x64xf32>
    %494 = math.tanh %493 : vector<8x64xf32>
    %cst_107 = arith.constant 5.000000e-01 : f32
    %495 = vector.broadcast %cst_107 : f32 to vector<8x64xf32>
    %496 = arith.mulf %495, %494 : vector<8x64xf32>
    %cst_108 = arith.constant 5.000000e-01 : f32
    %497 = vector.broadcast %cst_108 : f32 to vector<8x64xf32>
    %498 = arith.addf %496, %497 : vector<8x64xf32>
    %499 = vector.extract_strided_slice %498 {offsets = [0, 0], sizes = [8, 32], strides = [1, 1]} : vector<8x64xf32> to vector<8x32xf32>
    %500 = vector.extract_strided_slice %498 {offsets = [0, 32], sizes = [8, 32], strides = [1, 1]} : vector<8x64xf32> to vector<8x32xf32>
    %501 = vector.extract_strided_slice %486 {offsets = [0, 64], sizes = [8, 32], strides = [1, 1]} : vector<8x128xf32> to vector<8x32xf32>
    %502 = vector.extract_strided_slice %487 {offsets = [0, 64], sizes = [8, 32], strides = [1, 1]} : vector<8x128xf32> to vector<8x32xf32>
    %503 = arith.mulf %499, %502 : vector<8x32xf32>
    %504 = arith.addf %501, %503 : vector<8x32xf32>
    %505 = math.tanh %504 : vector<8x32xf32>
    %cst_109 = arith.constant 1.000000e+00 : f32
    %506 = vector.broadcast %cst_109 : f32 to vector<8x32xf32>
    %507 = arith.subf %506, %500 : vector<8x32xf32>
    %508 = arith.mulf %507, %505 : vector<8x32xf32>
    %509 = arith.mulf %500, %488 : vector<8x32xf32>
    %510 = arith.addf %508, %509 : vector<8x32xf32>
    %511 = tpu.concatenate %485, %510 in 1 : vector<8x32xf32>, vector<8x32xf32> -> vector<8x64xf32>
    %cst_110 = arith.constant dense<0.000000e+00> : vector<8x256xf32>
    %512 = tpu.matmul %457, %21, %cst_110 {dimension_numbers = #tpu.dot_dimension_numbers<[1], [0], [0], [1], [0, 0, 1, 1], [], []>} : vector<8x64xf32>, vector<64x256xf32>, vector<8x256xf32> -> vector<8x256xf32>
    %513 = vector.broadcast %23 : vector<1x256xf32> to vector<8x256xf32>
    %514 = arith.addf %512, %513 : vector<8x256xf32>
    %515 = vector.extract_strided_slice %15 {offsets = [32, 0], sizes = [8, 128], strides = [1, 1]} : vector<64x256xf32> to vector<8x128xf32>
    %516 = vector.extract_strided_slice %514 {offsets = [0, 0], sizes = [8, 128], strides = [1, 1]} : vector<8x256xf32> to vector<8x128xf32>
    %517 = vector.extract_strided_slice %457 {offsets = [0, 0], sizes = [8, 32], strides = [1, 1]} : vector<8x64xf32> to vector<8x32xf32>
    %518 = vector.extract_strided_slice %515 {offsets = [0, 0], sizes = [8, 64], strides = [1, 1]} : vector<8x128xf32> to vector<8x64xf32>
    %519 = vector.extract_strided_slice %516 {offsets = [0, 0], sizes = [8, 64], strides = [1, 1]} : vector<8x128xf32> to vector<8x64xf32>
    %520 = arith.addf %518, %519 : vector<8x64xf32>
    %cst_111 = arith.constant 5.000000e-01 : f32
    %521 = vector.broadcast %cst_111 : f32 to vector<8x64xf32>
    %522 = arith.mulf %521, %520 : vector<8x64xf32>
    %523 = math.tanh %522 : vector<8x64xf32>
    %cst_112 = arith.constant 5.000000e-01 : f32
    %524 = vector.broadcast %cst_112 : f32 to vector<8x64xf32>
    %525 = arith.mulf %524, %523 : vector<8x64xf32>
    %cst_113 = arith.constant 5.000000e-01 : f32
    %526 = vector.broadcast %cst_113 : f32 to vector<8x64xf32>
    %527 = arith.addf %525, %526 : vector<8x64xf32>
    %528 = vector.extract_strided_slice %527 {offsets = [0, 0], sizes = [8, 32], strides = [1, 1]} : vector<8x64xf32> to vector<8x32xf32>
    %529 = vector.extract_strided_slice %527 {offsets = [0, 32], sizes = [8, 32], strides = [1, 1]} : vector<8x64xf32> to vector<8x32xf32>
    %530 = vector.extract_strided_slice %515 {offsets = [0, 64], sizes = [8, 32], strides = [1, 1]} : vector<8x128xf32> to vector<8x32xf32>
    %531 = vector.extract_strided_slice %516 {offsets = [0, 64], sizes = [8, 32], strides = [1, 1]} : vector<8x128xf32> to vector<8x32xf32>
    %532 = arith.mulf %528, %531 : vector<8x32xf32>
    %533 = arith.addf %530, %532 : vector<8x32xf32>
    %534 = math.tanh %533 : vector<8x32xf32>
    %cst_114 = arith.constant 1.000000e+00 : f32
    %535 = vector.broadcast %cst_114 : f32 to vector<8x32xf32>
    %536 = arith.subf %535, %529 : vector<8x32xf32>
    %537 = arith.mulf %536, %534 : vector<8x32xf32>
    %538 = arith.mulf %529, %517 : vector<8x32xf32>
    %539 = arith.addf %537, %538 : vector<8x32xf32>
    %540 = vector.extract_strided_slice %15 {offsets = [24, 128], sizes = [8, 128], strides = [1, 1]} : vector<64x256xf32> to vector<8x128xf32>
    %541 = vector.extract_strided_slice %514 {offsets = [0, 128], sizes = [8, 128], strides = [1, 1]} : vector<8x256xf32> to vector<8x128xf32>
    %542 = vector.extract_strided_slice %457 {offsets = [0, 32], sizes = [8, 32], strides = [1, 1]} : vector<8x64xf32> to vector<8x32xf32>
    %543 = vector.extract_strided_slice %540 {offsets = [0, 0], sizes = [8, 64], strides = [1, 1]} : vector<8x128xf32> to vector<8x64xf32>
    %544 = vector.extract_strided_slice %541 {offsets = [0, 0], sizes = [8, 64], strides = [1, 1]} : vector<8x128xf32> to vector<8x64xf32>
    %545 = arith.addf %543, %544 : vector<8x64xf32>
    %cst_115 = arith.constant 5.000000e-01 : f32
    %546 = vector.broadcast %cst_115 : f32 to vector<8x64xf32>
    %547 = arith.mulf %546, %545 : vector<8x64xf32>
    %548 = math.tanh %547 : vector<8x64xf32>
    %cst_116 = arith.constant 5.000000e-01 : f32
    %549 = vector.broadcast %cst_116 : f32 to vector<8x64xf32>
    %550 = arith.mulf %549, %548 : vector<8x64xf32>
    %cst_117 = arith.constant 5.000000e-01 : f32
    %551 = vector.broadcast %cst_117 : f32 to vector<8x64xf32>
    %552 = arith.addf %550, %551 : vector<8x64xf32>
    %553 = vector.extract_strided_slice %552 {offsets = [0, 0], sizes = [8, 32], strides = [1, 1]} : vector<8x64xf32> to vector<8x32xf32>
    %554 = vector.extract_strided_slice %552 {offsets = [0, 32], sizes = [8, 32], strides = [1, 1]} : vector<8x64xf32> to vector<8x32xf32>
    %555 = vector.extract_strided_slice %540 {offsets = [0, 64], sizes = [8, 32], strides = [1, 1]} : vector<8x128xf32> to vector<8x32xf32>
    %556 = vector.extract_strided_slice %541 {offsets = [0, 64], sizes = [8, 32], strides = [1, 1]} : vector<8x128xf32> to vector<8x32xf32>
    %557 = arith.mulf %553, %556 : vector<8x32xf32>
    %558 = arith.addf %555, %557 : vector<8x32xf32>
    %559 = math.tanh %558 : vector<8x32xf32>
    %cst_118 = arith.constant 1.000000e+00 : f32
    %560 = vector.broadcast %cst_118 : f32 to vector<8x32xf32>
    %561 = arith.subf %560, %554 : vector<8x32xf32>
    %562 = arith.mulf %561, %559 : vector<8x32xf32>
    %563 = arith.mulf %554, %542 : vector<8x32xf32>
    %564 = arith.addf %562, %563 : vector<8x32xf32>
    %565 = tpu.concatenate %539, %564 in 1 : vector<8x32xf32>, vector<8x32xf32> -> vector<8x64xf32>
    %cst_119 = arith.constant dense<0.000000e+00> : vector<8x256xf32>
    %566 = tpu.matmul %511, %17, %cst_119 {dimension_numbers = #tpu.dot_dimension_numbers<[1], [0], [0], [1], [0, 0, 1, 1], [], []>} : vector<8x64xf32>, vector<64x256xf32>, vector<8x256xf32> -> vector<8x256xf32>
    %567 = vector.broadcast %19 : vector<1x256xf32> to vector<8x256xf32>
    %568 = arith.addf %566, %567 : vector<8x256xf32>
    %569 = vector.extract_strided_slice %7 {offsets = [40, 0], sizes = [8, 128], strides = [1, 1]} : vector<48x256xf32> to vector<8x128xf32>
    %570 = vector.extract_strided_slice %568 {offsets = [0, 0], sizes = [8, 128], strides = [1, 1]} : vector<8x256xf32> to vector<8x128xf32>
    %571 = vector.extract_strided_slice %511 {offsets = [0, 0], sizes = [8, 32], strides = [1, 1]} : vector<8x64xf32> to vector<8x32xf32>
    %572 = vector.extract_strided_slice %569 {offsets = [0, 0], sizes = [8, 64], strides = [1, 1]} : vector<8x128xf32> to vector<8x64xf32>
    %573 = vector.extract_strided_slice %570 {offsets = [0, 0], sizes = [8, 64], strides = [1, 1]} : vector<8x128xf32> to vector<8x64xf32>
    %574 = arith.addf %572, %573 : vector<8x64xf32>
    %cst_120 = arith.constant 5.000000e-01 : f32
    %575 = vector.broadcast %cst_120 : f32 to vector<8x64xf32>
    %576 = arith.mulf %575, %574 : vector<8x64xf32>
    %577 = math.tanh %576 : vector<8x64xf32>
    %cst_121 = arith.constant 5.000000e-01 : f32
    %578 = vector.broadcast %cst_121 : f32 to vector<8x64xf32>
    %579 = arith.mulf %578, %577 : vector<8x64xf32>
    %cst_122 = arith.constant 5.000000e-01 : f32
    %580 = vector.broadcast %cst_122 : f32 to vector<8x64xf32>
    %581 = arith.addf %579, %580 : vector<8x64xf32>
    %582 = vector.extract_strided_slice %581 {offsets = [0, 0], sizes = [8, 32], strides = [1, 1]} : vector<8x64xf32> to vector<8x32xf32>
    %583 = vector.extract_strided_slice %581 {offsets = [0, 32], sizes = [8, 32], strides = [1, 1]} : vector<8x64xf32> to vector<8x32xf32>
    %584 = vector.extract_strided_slice %569 {offsets = [0, 64], sizes = [8, 32], strides = [1, 1]} : vector<8x128xf32> to vector<8x32xf32>
    %585 = vector.extract_strided_slice %570 {offsets = [0, 64], sizes = [8, 32], strides = [1, 1]} : vector<8x128xf32> to vector<8x32xf32>
    %586 = arith.mulf %582, %585 : vector<8x32xf32>
    %587 = arith.addf %584, %586 : vector<8x32xf32>
    %588 = math.tanh %587 : vector<8x32xf32>
    %cst_123 = arith.constant 1.000000e+00 : f32
    %589 = vector.broadcast %cst_123 : f32 to vector<8x32xf32>
    %590 = arith.subf %589, %583 : vector<8x32xf32>
    %591 = arith.mulf %590, %588 : vector<8x32xf32>
    %592 = arith.mulf %583, %571 : vector<8x32xf32>
    %593 = arith.addf %591, %592 : vector<8x32xf32>
    %594 = vector.extract_strided_slice %7 {offsets = [0, 128], sizes = [8, 128], strides = [1, 1]} : vector<48x256xf32> to vector<8x128xf32>
    %595 = vector.extract_strided_slice %568 {offsets = [0, 128], sizes = [8, 128], strides = [1, 1]} : vector<8x256xf32> to vector<8x128xf32>
    %596 = vector.extract_strided_slice %511 {offsets = [0, 32], sizes = [8, 32], strides = [1, 1]} : vector<8x64xf32> to vector<8x32xf32>
    %597 = vector.extract_strided_slice %594 {offsets = [0, 0], sizes = [8, 64], strides = [1, 1]} : vector<8x128xf32> to vector<8x64xf32>
    %598 = vector.extract_strided_slice %595 {offsets = [0, 0], sizes = [8, 64], strides = [1, 1]} : vector<8x128xf32> to vector<8x64xf32>
    %599 = arith.addf %597, %598 : vector<8x64xf32>
    %cst_124 = arith.constant 5.000000e-01 : f32
    %600 = vector.broadcast %cst_124 : f32 to vector<8x64xf32>
    %601 = arith.mulf %600, %599 : vector<8x64xf32>
    %602 = math.tanh %601 : vector<8x64xf32>
    %cst_125 = arith.constant 5.000000e-01 : f32
    %603 = vector.broadcast %cst_125 : f32 to vector<8x64xf32>
    %604 = arith.mulf %603, %602 : vector<8x64xf32>
    %cst_126 = arith.constant 5.000000e-01 : f32
    %605 = vector.broadcast %cst_126 : f32 to vector<8x64xf32>
    %606 = arith.addf %604, %605 : vector<8x64xf32>
    %607 = vector.extract_strided_slice %606 {offsets = [0, 0], sizes = [8, 32], strides = [1, 1]} : vector<8x64xf32> to vector<8x32xf32>
    %608 = vector.extract_strided_slice %606 {offsets = [0, 32], sizes = [8, 32], strides = [1, 1]} : vector<8x64xf32> to vector<8x32xf32>
    %609 = vector.extract_strided_slice %594 {offsets = [0, 64], sizes = [8, 32], strides = [1, 1]} : vector<8x128xf32> to vector<8x32xf32>
    %610 = vector.extract_strided_slice %595 {offsets = [0, 64], sizes = [8, 32], strides = [1, 1]} : vector<8x128xf32> to vector<8x32xf32>
    %611 = arith.mulf %607, %610 : vector<8x32xf32>
    %612 = arith.addf %609, %611 : vector<8x32xf32>
    %613 = math.tanh %612 : vector<8x32xf32>
    %cst_127 = arith.constant 1.000000e+00 : f32
    %614 = vector.broadcast %cst_127 : f32 to vector<8x32xf32>
    %615 = arith.subf %614, %608 : vector<8x32xf32>
    %616 = arith.mulf %615, %613 : vector<8x32xf32>
    %617 = arith.mulf %608, %596 : vector<8x32xf32>
    %618 = arith.addf %616, %617 : vector<8x32xf32>
    %619 = tpu.concatenate %593, %618 in 1 : vector<8x32xf32>, vector<8x32xf32> -> vector<8x64xf32>
    %cst_128 = arith.constant dense<0.000000e+00> : vector<8x256xf32>
    %620 = tpu.matmul %565, %21, %cst_128 {dimension_numbers = #tpu.dot_dimension_numbers<[1], [0], [0], [1], [0, 0, 1, 1], [], []>} : vector<8x64xf32>, vector<64x256xf32>, vector<8x256xf32> -> vector<8x256xf32>
    %621 = vector.broadcast %23 : vector<1x256xf32> to vector<8x256xf32>
    %622 = arith.addf %620, %621 : vector<8x256xf32>
    %623 = vector.extract_strided_slice %15 {offsets = [40, 0], sizes = [8, 128], strides = [1, 1]} : vector<64x256xf32> to vector<8x128xf32>
    %624 = vector.extract_strided_slice %622 {offsets = [0, 0], sizes = [8, 128], strides = [1, 1]} : vector<8x256xf32> to vector<8x128xf32>
    %625 = vector.extract_strided_slice %565 {offsets = [0, 0], sizes = [8, 32], strides = [1, 1]} : vector<8x64xf32> to vector<8x32xf32>
    %626 = vector.extract_strided_slice %623 {offsets = [0, 0], sizes = [8, 64], strides = [1, 1]} : vector<8x128xf32> to vector<8x64xf32>
    %627 = vector.extract_strided_slice %624 {offsets = [0, 0], sizes = [8, 64], strides = [1, 1]} : vector<8x128xf32> to vector<8x64xf32>
    %628 = arith.addf %626, %627 : vector<8x64xf32>
    %cst_129 = arith.constant 5.000000e-01 : f32
    %629 = vector.broadcast %cst_129 : f32 to vector<8x64xf32>
    %630 = arith.mulf %629, %628 : vector<8x64xf32>
    %631 = math.tanh %630 : vector<8x64xf32>
    %cst_130 = arith.constant 5.000000e-01 : f32
    %632 = vector.broadcast %cst_130 : f32 to vector<8x64xf32>
    %633 = arith.mulf %632, %631 : vector<8x64xf32>
    %cst_131 = arith.constant 5.000000e-01 : f32
    %634 = vector.broadcast %cst_131 : f32 to vector<8x64xf32>
    %635 = arith.addf %633, %634 : vector<8x64xf32>
    %636 = vector.extract_strided_slice %635 {offsets = [0, 0], sizes = [8, 32], strides = [1, 1]} : vector<8x64xf32> to vector<8x32xf32>
    %637 = vector.extract_strided_slice %635 {offsets = [0, 32], sizes = [8, 32], strides = [1, 1]} : vector<8x64xf32> to vector<8x32xf32>
    %638 = vector.extract_strided_slice %623 {offsets = [0, 64], sizes = [8, 32], strides = [1, 1]} : vector<8x128xf32> to vector<8x32xf32>
    %639 = vector.extract_strided_slice %624 {offsets = [0, 64], sizes = [8, 32], strides = [1, 1]} : vector<8x128xf32> to vector<8x32xf32>
    %640 = arith.mulf %636, %639 : vector<8x32xf32>
    %641 = arith.addf %638, %640 : vector<8x32xf32>
    %642 = math.tanh %641 : vector<8x32xf32>
    %cst_132 = arith.constant 1.000000e+00 : f32
    %643 = vector.broadcast %cst_132 : f32 to vector<8x32xf32>
    %644 = arith.subf %643, %637 : vector<8x32xf32>
    %645 = arith.mulf %644, %642 : vector<8x32xf32>
    %646 = arith.mulf %637, %625 : vector<8x32xf32>
    %647 = arith.addf %645, %646 : vector<8x32xf32>
    %648 = vector.extract_strided_slice %15 {offsets = [16, 128], sizes = [8, 128], strides = [1, 1]} : vector<64x256xf32> to vector<8x128xf32>
    %649 = vector.extract_strided_slice %622 {offsets = [0, 128], sizes = [8, 128], strides = [1, 1]} : vector<8x256xf32> to vector<8x128xf32>
    %650 = vector.extract_strided_slice %565 {offsets = [0, 32], sizes = [8, 32], strides = [1, 1]} : vector<8x64xf32> to vector<8x32xf32>
    %651 = vector.extract_strided_slice %648 {offsets = [0, 0], sizes = [8, 64], strides = [1, 1]} : vector<8x128xf32> to vector<8x64xf32>
    %652 = vector.extract_strided_slice %649 {offsets = [0, 0], sizes = [8, 64], strides = [1, 1]} : vector<8x128xf32> to vector<8x64xf32>
    %653 = arith.addf %651, %652 : vector<8x64xf32>
    %cst_133 = arith.constant 5.000000e-01 : f32
    %654 = vector.broadcast %cst_133 : f32 to vector<8x64xf32>
    %655 = arith.mulf %654, %653 : vector<8x64xf32>
    %656 = math.tanh %655 : vector<8x64xf32>
    %cst_134 = arith.constant 5.000000e-01 : f32
    %657 = vector.broadcast %cst_134 : f32 to vector<8x64xf32>
    %658 = arith.mulf %657, %656 : vector<8x64xf32>
    %cst_135 = arith.constant 5.000000e-01 : f32
    %659 = vector.broadcast %cst_135 : f32 to vector<8x64xf32>
    %660 = arith.addf %658, %659 : vector<8x64xf32>
    %661 = vector.extract_strided_slice %660 {offsets = [0, 0], sizes = [8, 32], strides = [1, 1]} : vector<8x64xf32> to vector<8x32xf32>
    %662 = vector.extract_strided_slice %660 {offsets = [0, 32], sizes = [8, 32], strides = [1, 1]} : vector<8x64xf32> to vector<8x32xf32>
    %663 = vector.extract_strided_slice %648 {offsets = [0, 64], sizes = [8, 32], strides = [1, 1]} : vector<8x128xf32> to vector<8x32xf32>
    %664 = vector.extract_strided_slice %649 {offsets = [0, 64], sizes = [8, 32], strides = [1, 1]} : vector<8x128xf32> to vector<8x32xf32>
    %665 = arith.mulf %661, %664 : vector<8x32xf32>
    %666 = arith.addf %663, %665 : vector<8x32xf32>
    %667 = math.tanh %666 : vector<8x32xf32>
    %cst_136 = arith.constant 1.000000e+00 : f32
    %668 = vector.broadcast %cst_136 : f32 to vector<8x32xf32>
    %669 = arith.subf %668, %662 : vector<8x32xf32>
    %670 = arith.mulf %669, %667 : vector<8x32xf32>
    %671 = arith.mulf %662, %650 : vector<8x32xf32>
    %672 = arith.addf %670, %671 : vector<8x32xf32>
    %673 = tpu.concatenate %647, %672 in 1 : vector<8x32xf32>, vector<8x32xf32> -> vector<8x64xf32>
    %cst_137 = arith.constant dense<0.000000e+00> : vector<8x256xf32>
    %674 = tpu.matmul %673, %21, %cst_137 {dimension_numbers = #tpu.dot_dimension_numbers<[1], [0], [0], [1], [0, 0, 1, 1], [], []>} : vector<8x64xf32>, vector<64x256xf32>, vector<8x256xf32> -> vector<8x256xf32>
    %675 = vector.broadcast %23 : vector<1x256xf32> to vector<8x256xf32>
    %676 = arith.addf %674, %675 : vector<8x256xf32>
    %677 = vector.extract_strided_slice %15 {offsets = [48, 0], sizes = [8, 128], strides = [1, 1]} : vector<64x256xf32> to vector<8x128xf32>
    %678 = vector.extract_strided_slice %676 {offsets = [0, 0], sizes = [8, 128], strides = [1, 1]} : vector<8x256xf32> to vector<8x128xf32>
    %679 = vector.extract_strided_slice %673 {offsets = [0, 0], sizes = [8, 32], strides = [1, 1]} : vector<8x64xf32> to vector<8x32xf32>
    %680 = vector.extract_strided_slice %677 {offsets = [0, 0], sizes = [8, 64], strides = [1, 1]} : vector<8x128xf32> to vector<8x64xf32>
    %681 = vector.extract_strided_slice %678 {offsets = [0, 0], sizes = [8, 64], strides = [1, 1]} : vector<8x128xf32> to vector<8x64xf32>
    %682 = arith.addf %680, %681 : vector<8x64xf32>
    %cst_138 = arith.constant 5.000000e-01 : f32
    %683 = vector.broadcast %cst_138 : f32 to vector<8x64xf32>
    %684 = arith.mulf %683, %682 : vector<8x64xf32>
    %685 = math.tanh %684 : vector<8x64xf32>
    %cst_139 = arith.constant 5.000000e-01 : f32
    %686 = vector.broadcast %cst_139 : f32 to vector<8x64xf32>
    %687 = arith.mulf %686, %685 : vector<8x64xf32>
    %cst_140 = arith.constant 5.000000e-01 : f32
    %688 = vector.broadcast %cst_140 : f32 to vector<8x64xf32>
    %689 = arith.addf %687, %688 : vector<8x64xf32>
    %690 = vector.extract_strided_slice %689 {offsets = [0, 0], sizes = [8, 32], strides = [1, 1]} : vector<8x64xf32> to vector<8x32xf32>
    %691 = vector.extract_strided_slice %689 {offsets = [0, 32], sizes = [8, 32], strides = [1, 1]} : vector<8x64xf32> to vector<8x32xf32>
    %692 = vector.extract_strided_slice %677 {offsets = [0, 64], sizes = [8, 32], strides = [1, 1]} : vector<8x128xf32> to vector<8x32xf32>
    %693 = vector.extract_strided_slice %678 {offsets = [0, 64], sizes = [8, 32], strides = [1, 1]} : vector<8x128xf32> to vector<8x32xf32>
    %694 = arith.mulf %690, %693 : vector<8x32xf32>
    %695 = arith.addf %692, %694 : vector<8x32xf32>
    %696 = math.tanh %695 : vector<8x32xf32>
    %cst_141 = arith.constant 1.000000e+00 : f32
    %697 = vector.broadcast %cst_141 : f32 to vector<8x32xf32>
    %698 = arith.subf %697, %691 : vector<8x32xf32>
    %699 = arith.mulf %698, %696 : vector<8x32xf32>
    %700 = arith.mulf %691, %679 : vector<8x32xf32>
    %701 = arith.addf %699, %700 : vector<8x32xf32>
    %702 = vector.extract_strided_slice %15 {offsets = [8, 128], sizes = [8, 128], strides = [1, 1]} : vector<64x256xf32> to vector<8x128xf32>
    %703 = vector.extract_strided_slice %676 {offsets = [0, 128], sizes = [8, 128], strides = [1, 1]} : vector<8x256xf32> to vector<8x128xf32>
    %704 = vector.extract_strided_slice %673 {offsets = [0, 32], sizes = [8, 32], strides = [1, 1]} : vector<8x64xf32> to vector<8x32xf32>
    %705 = vector.extract_strided_slice %702 {offsets = [0, 0], sizes = [8, 64], strides = [1, 1]} : vector<8x128xf32> to vector<8x64xf32>
    %706 = vector.extract_strided_slice %703 {offsets = [0, 0], sizes = [8, 64], strides = [1, 1]} : vector<8x128xf32> to vector<8x64xf32>
    %707 = arith.addf %705, %706 : vector<8x64xf32>
    %cst_142 = arith.constant 5.000000e-01 : f32
    %708 = vector.broadcast %cst_142 : f32 to vector<8x64xf32>
    %709 = arith.mulf %708, %707 : vector<8x64xf32>
    %710 = math.tanh %709 : vector<8x64xf32>
    %cst_143 = arith.constant 5.000000e-01 : f32
    %711 = vector.broadcast %cst_143 : f32 to vector<8x64xf32>
    %712 = arith.mulf %711, %710 : vector<8x64xf32>
    %cst_144 = arith.constant 5.000000e-01 : f32
    %713 = vector.broadcast %cst_144 : f32 to vector<8x64xf32>
    %714 = arith.addf %712, %713 : vector<8x64xf32>
    %715 = vector.extract_strided_slice %714 {offsets = [0, 0], sizes = [8, 32], strides = [1, 1]} : vector<8x64xf32> to vector<8x32xf32>
    %716 = vector.extract_strided_slice %714 {offsets = [0, 32], sizes = [8, 32], strides = [1, 1]} : vector<8x64xf32> to vector<8x32xf32>
    %717 = vector.extract_strided_slice %702 {offsets = [0, 64], sizes = [8, 32], strides = [1, 1]} : vector<8x128xf32> to vector<8x32xf32>
    %718 = vector.extract_strided_slice %703 {offsets = [0, 64], sizes = [8, 32], strides = [1, 1]} : vector<8x128xf32> to vector<8x32xf32>
    %719 = arith.mulf %715, %718 : vector<8x32xf32>
    %720 = arith.addf %717, %719 : vector<8x32xf32>
    %721 = math.tanh %720 : vector<8x32xf32>
    %cst_145 = arith.constant 1.000000e+00 : f32
    %722 = vector.broadcast %cst_145 : f32 to vector<8x32xf32>
    %723 = arith.subf %722, %716 : vector<8x32xf32>
    %724 = arith.mulf %723, %721 : vector<8x32xf32>
    %725 = arith.mulf %716, %704 : vector<8x32xf32>
    %726 = arith.addf %724, %725 : vector<8x32xf32>
    %727 = tpu.concatenate %701, %726 in 1 : vector<8x32xf32>, vector<8x32xf32> -> vector<8x64xf32>
    %cst_146 = arith.constant dense<0.000000e+00> : vector<8x256xf32>
    %728 = tpu.matmul %727, %21, %cst_146 {dimension_numbers = #tpu.dot_dimension_numbers<[1], [0], [0], [1], [0, 0, 1, 1], [], []>} : vector<8x64xf32>, vector<64x256xf32>, vector<8x256xf32> -> vector<8x256xf32>
    %729 = vector.broadcast %23 : vector<1x256xf32> to vector<8x256xf32>
    %730 = arith.addf %728, %729 : vector<8x256xf32>
    %731 = vector.extract_strided_slice %15 {offsets = [56, 0], sizes = [8, 128], strides = [1, 1]} : vector<64x256xf32> to vector<8x128xf32>
    %732 = vector.extract_strided_slice %730 {offsets = [0, 0], sizes = [8, 128], strides = [1, 1]} : vector<8x256xf32> to vector<8x128xf32>
    %733 = vector.extract_strided_slice %727 {offsets = [0, 0], sizes = [8, 32], strides = [1, 1]} : vector<8x64xf32> to vector<8x32xf32>
    %734 = vector.extract_strided_slice %731 {offsets = [0, 0], sizes = [8, 64], strides = [1, 1]} : vector<8x128xf32> to vector<8x64xf32>
    %735 = vector.extract_strided_slice %732 {offsets = [0, 0], sizes = [8, 64], strides = [1, 1]} : vector<8x128xf32> to vector<8x64xf32>
    %736 = arith.addf %734, %735 : vector<8x64xf32>
    %cst_147 = arith.constant 5.000000e-01 : f32
    %737 = vector.broadcast %cst_147 : f32 to vector<8x64xf32>
    %738 = arith.mulf %737, %736 : vector<8x64xf32>
    %739 = math.tanh %738 : vector<8x64xf32>
    %cst_148 = arith.constant 5.000000e-01 : f32
    %740 = vector.broadcast %cst_148 : f32 to vector<8x64xf32>
    %741 = arith.mulf %740, %739 : vector<8x64xf32>
    %cst_149 = arith.constant 5.000000e-01 : f32
    %742 = vector.broadcast %cst_149 : f32 to vector<8x64xf32>
    %743 = arith.addf %741, %742 : vector<8x64xf32>
    %744 = vector.extract_strided_slice %743 {offsets = [0, 0], sizes = [8, 32], strides = [1, 1]} : vector<8x64xf32> to vector<8x32xf32>
    %745 = vector.extract_strided_slice %743 {offsets = [0, 32], sizes = [8, 32], strides = [1, 1]} : vector<8x64xf32> to vector<8x32xf32>
    %746 = vector.extract_strided_slice %731 {offsets = [0, 64], sizes = [8, 32], strides = [1, 1]} : vector<8x128xf32> to vector<8x32xf32>
    %747 = vector.extract_strided_slice %732 {offsets = [0, 64], sizes = [8, 32], strides = [1, 1]} : vector<8x128xf32> to vector<8x32xf32>
    %748 = arith.mulf %744, %747 : vector<8x32xf32>
    %749 = arith.addf %746, %748 : vector<8x32xf32>
    %750 = math.tanh %749 : vector<8x32xf32>
    %cst_150 = arith.constant 1.000000e+00 : f32
    %751 = vector.broadcast %cst_150 : f32 to vector<8x32xf32>
    %752 = arith.subf %751, %745 : vector<8x32xf32>
    %753 = arith.mulf %752, %750 : vector<8x32xf32>
    %754 = arith.mulf %745, %733 : vector<8x32xf32>
    %755 = arith.addf %753, %754 : vector<8x32xf32>
    %756 = vector.extract_strided_slice %15 {offsets = [0, 128], sizes = [8, 128], strides = [1, 1]} : vector<64x256xf32> to vector<8x128xf32>
    %757 = vector.extract_strided_slice %730 {offsets = [0, 128], sizes = [8, 128], strides = [1, 1]} : vector<8x256xf32> to vector<8x128xf32>
    %758 = vector.extract_strided_slice %727 {offsets = [0, 32], sizes = [8, 32], strides = [1, 1]} : vector<8x64xf32> to vector<8x32xf32>
    %759 = vector.extract_strided_slice %756 {offsets = [0, 0], sizes = [8, 64], strides = [1, 1]} : vector<8x128xf32> to vector<8x64xf32>
    %760 = vector.extract_strided_slice %757 {offsets = [0, 0], sizes = [8, 64], strides = [1, 1]} : vector<8x128xf32> to vector<8x64xf32>
    %761 = arith.addf %759, %760 : vector<8x64xf32>
    %cst_151 = arith.constant 5.000000e-01 : f32
    %762 = vector.broadcast %cst_151 : f32 to vector<8x64xf32>
    %763 = arith.mulf %762, %761 : vector<8x64xf32>
    %764 = math.tanh %763 : vector<8x64xf32>
    %cst_152 = arith.constant 5.000000e-01 : f32
    %765 = vector.broadcast %cst_152 : f32 to vector<8x64xf32>
    %766 = arith.mulf %765, %764 : vector<8x64xf32>
    %cst_153 = arith.constant 5.000000e-01 : f32
    %767 = vector.broadcast %cst_153 : f32 to vector<8x64xf32>
    %768 = arith.addf %766, %767 : vector<8x64xf32>
    %769 = vector.extract_strided_slice %768 {offsets = [0, 0], sizes = [8, 32], strides = [1, 1]} : vector<8x64xf32> to vector<8x32xf32>
    %770 = vector.extract_strided_slice %768 {offsets = [0, 32], sizes = [8, 32], strides = [1, 1]} : vector<8x64xf32> to vector<8x32xf32>
    %771 = vector.extract_strided_slice %756 {offsets = [0, 64], sizes = [8, 32], strides = [1, 1]} : vector<8x128xf32> to vector<8x32xf32>
    %772 = vector.extract_strided_slice %757 {offsets = [0, 64], sizes = [8, 32], strides = [1, 1]} : vector<8x128xf32> to vector<8x32xf32>
    %773 = arith.mulf %769, %772 : vector<8x32xf32>
    %774 = arith.addf %771, %773 : vector<8x32xf32>
    %775 = math.tanh %774 : vector<8x32xf32>
    %cst_154 = arith.constant 1.000000e+00 : f32
    %776 = vector.broadcast %cst_154 : f32 to vector<8x32xf32>
    %777 = arith.subf %776, %770 : vector<8x32xf32>
    %778 = arith.mulf %777, %775 : vector<8x32xf32>
    %779 = arith.mulf %770, %758 : vector<8x32xf32>
    %780 = arith.addf %778, %779 : vector<8x32xf32>
    %781 = tpu.concatenate %755, %780 in 1 : vector<8x32xf32>, vector<8x32xf32> -> vector<8x64xf32>
    %c0_155 = arith.constant 0 : index
    %c0_156 = arith.constant 0 : index
    %782 = vector.load %arg7[%c0_155, %c0_156] : memref<64x32xf32, #tpu.memory_space<vmem>>, vector<64x32xf32>
    %cst_157 = arith.constant dense<0.000000e+00> : vector<8x32xf32>
    %783 = tpu.matmul %619, %782, %cst_157 {dimension_numbers = #tpu.dot_dimension_numbers<[1], [0], [0], [1], [0, 0, 1, 1], [], []>} : vector<8x64xf32>, vector<64x32xf32>, vector<8x32xf32> -> vector<8x32xf32>
    %c0_158 = arith.constant 0 : index
    %c0_159 = arith.constant 0 : index
    %784 = vector.load %arg8[%c0_158, %c0_159] : memref<1x32xf32, #tpu.memory_space<vmem>>, vector<1x32xf32>
    %785 = vector.broadcast %784 : vector<1x32xf32> to vector<8x32xf32>
    %786 = arith.addf %783, %785 : vector<8x32xf32>
    %c0_160 = arith.constant 0 : index
    %c0_161 = arith.constant 0 : index
    %c0_162 = arith.constant 0 : index
    %787 = vector.load %arg2[%c0_160, %c0_161, %c0_162] : memref<8x8x16xf32, #tpu.memory_space<vmem>>, vector<8x8x16xf32>
    %c0_163 = arith.constant 0 : index
    %c0_164 = arith.constant 0 : index
    %788 = vector.load %arg10[%c0_163, %c0_164] : memref<1x16xf32, #tpu.memory_space<vmem>>, vector<1x16xf32>
    %789 = vector.shape_cast %788 : vector<1x16xf32> to vector<1x1x16xf32>
    %790 = vector.broadcast %789 : vector<1x1x16xf32> to vector<8x8x16xf32>
    %791 = arith.mulf %787, %790 : vector<8x8x16xf32>
    %cst_165 = arith.constant dense<0.000000e+00> : vector<8x8xf32>
    %792 = vector.multi_reduction <add>, %791, %cst_165 [2] : vector<8x8x16xf32> to vector<8x8xf32>
    %793 = vector.shape_cast %792 : vector<8x8xf32> to vector<8x8x1xf32>
    %c0_166 = arith.constant 0 : index
    %c0_167 = arith.constant 0 : index
    %794 = vector.load %arg9[%c0_166, %c0_167] : memref<1x32xf32, #tpu.memory_space<vmem>>, vector<1x32xf32>
    %795 = vector.broadcast %794 : vector<1x32xf32> to vector<8x32xf32>
    %796 = arith.mulf %786, %795 : vector<8x32xf32>
    %cst_168 = arith.constant dense<0.000000e+00> : vector<8xf32>
    %797 = vector.multi_reduction <add>, %796, %cst_168 [1] : vector<8x32xf32> to vector<8xf32>
    %798 = vector.shape_cast %797 : vector<8xf32> to vector<8x1xf32>
    %799 = vector.shape_cast %798 : vector<8x1xf32> to vector<1x8x1xf32>
    %800 = vector.broadcast %799 : vector<1x8x1xf32> to vector<8x8x1xf32>
    %801 = arith.addf %793, %800 : vector<8x8x1xf32>
    %c0_169 = arith.constant 0 : index
    %c0_170 = arith.constant 0 : index
    %802 = vector.load %arg11[%c0_169, %c0_170] : memref<1x1xf32, #tpu.memory_space<vmem>>, vector<1x1xf32>
    %803 = vector.shape_cast %802 : vector<1x1xf32> to vector<1x1x1xf32>
    %804 = vector.broadcast %803 : vector<1x1x1xf32> to vector<8x8x1xf32>
    %805 = arith.addf %801, %804 : vector<8x8x1xf32>
    %cst_171 = arith.constant dense<0xFF800000> : vector<8x1xf32>
    %806 = vector.multi_reduction <maximumf>, %805, %cst_171 [0] : vector<8x8x1xf32> to vector<8x1xf32>
    %807 = vector.shape_cast %806 : vector<8x1xf32> to vector<1x8x1xf32>
    %808 = vector.broadcast %807 : vector<1x8x1xf32> to vector<8x8x1xf32>
    %809 = arith.subf %805, %808 : vector<8x8x1xf32>
    %810 = math.exp %809 : vector<8x8x1xf32>
    %cst_172 = arith.constant dense<0.000000e+00> : vector<8x1xf32>
    %811 = vector.multi_reduction <add>, %810, %cst_172 [0] : vector<8x8x1xf32> to vector<8x1xf32>
    %812 = vector.shape_cast %811 : vector<8x1xf32> to vector<1x8x1xf32>
    %813 = tpu.reciprocal %812 {approx = true} : vector<1x8x1xf32> -> vector<1x8x1xf32>
    %814 = vector.broadcast %813 : vector<1x8x1xf32> to vector<8x8x1xf32>
    %815 = arith.mulf %810, %814 : vector<8x8x1xf32>
    %816 = vector.broadcast %815 : vector<8x8x1xf32> to vector<8x8x16xf32>
    %817 = arith.mulf %816, %787 : vector<8x8x16xf32>
    %cst_173 = arith.constant dense<0.000000e+00> : vector<8x16xf32>
    %818 = vector.multi_reduction <add>, %817, %cst_173 [0] : vector<8x8x16xf32> to vector<8x16xf32>
    %c2 = arith.constant 2 : index
    %c0_174 = arith.constant 0 : index
    %c0_175 = arith.constant 0 : index
    %819 = vector.load %arg3[%c2, %c0_174, %c0_175] : memref<3x16x256xf32, #tpu.memory_space<vmem>>, vector<1x16x256xf32>
    %820 = vector.shape_cast %819 : vector<1x16x256xf32> to vector<16x256xf32>
    %cst_176 = arith.constant dense<0.000000e+00> : vector<8x256xf32>
    %821 = tpu.matmul %818, %820, %cst_176 {dimension_numbers = #tpu.dot_dimension_numbers<[1], [0], [0], [1], [0, 0, 1, 1], [], []>} : vector<8x16xf32>, vector<16x256xf32>, vector<8x256xf32> -> vector<8x256xf32>
    %c2_177 = arith.constant 2 : index
    %c0_178 = arith.constant 0 : index
    %c0_179 = arith.constant 0 : index
    %822 = vector.load %arg5[%c2_177, %c0_178, %c0_179] : memref<3x1x256xf32, #tpu.memory_space<vmem>>, vector<1x1x256xf32>
    %823 = vector.shape_cast %822 : vector<1x1x256xf32> to vector<1x256xf32>
    %824 = vector.broadcast %823 : vector<1x256xf32> to vector<8x256xf32>
    %825 = arith.addf %821, %824 : vector<8x256xf32>
    %826 = tpu.concatenate %786, %786 in 1 : vector<8x32xf32>, vector<8x32xf32> -> vector<8x64xf32>
    %c2_180 = arith.constant 2 : index
    %c0_181 = arith.constant 0 : index
    %c0_182 = arith.constant 0 : index
    %827 = vector.load %arg4[%c2_180, %c0_181, %c0_182] : memref<3x64x256xf32, #tpu.memory_space<vmem>>, vector<1x64x256xf32>
    %828 = vector.shape_cast %827 : vector<1x64x256xf32> to vector<64x256xf32>
    %cst_183 = arith.constant dense<0.000000e+00> : vector<8x256xf32>
    %829 = tpu.matmul %826, %828, %cst_183 {dimension_numbers = #tpu.dot_dimension_numbers<[1], [0], [0], [1], [0, 0, 1, 1], [], []>} : vector<8x64xf32>, vector<64x256xf32>, vector<8x256xf32> -> vector<8x256xf32>
    %c2_184 = arith.constant 2 : index
    %c0_185 = arith.constant 0 : index
    %c0_186 = arith.constant 0 : index
    %830 = vector.load %arg6[%c2_184, %c0_185, %c0_186] : memref<3x1x256xf32, #tpu.memory_space<vmem>>, vector<1x1x256xf32>
    %831 = vector.shape_cast %830 : vector<1x1x256xf32> to vector<1x256xf32>
    %832 = vector.broadcast %831 : vector<1x256xf32> to vector<8x256xf32>
    %833 = arith.addf %829, %832 : vector<8x256xf32>
    %834 = vector.extract_strided_slice %825 {offsets = [0, 0], sizes = [8, 128], strides = [1, 1]} : vector<8x256xf32> to vector<8x128xf32>
    %835 = vector.extract_strided_slice %833 {offsets = [0, 0], sizes = [8, 128], strides = [1, 1]} : vector<8x256xf32> to vector<8x128xf32>
    %836 = vector.extract_strided_slice %834 {offsets = [0, 0], sizes = [8, 64], strides = [1, 1]} : vector<8x128xf32> to vector<8x64xf32>
    %837 = vector.extract_strided_slice %835 {offsets = [0, 0], sizes = [8, 64], strides = [1, 1]} : vector<8x128xf32> to vector<8x64xf32>
    %838 = arith.addf %836, %837 : vector<8x64xf32>
    %cst_187 = arith.constant 5.000000e-01 : f32
    %839 = vector.broadcast %cst_187 : f32 to vector<8x64xf32>
    %840 = arith.mulf %839, %838 : vector<8x64xf32>
    %841 = math.tanh %840 : vector<8x64xf32>
    %cst_188 = arith.constant 5.000000e-01 : f32
    %842 = vector.broadcast %cst_188 : f32 to vector<8x64xf32>
    %843 = arith.mulf %842, %841 : vector<8x64xf32>
    %cst_189 = arith.constant 5.000000e-01 : f32
    %844 = vector.broadcast %cst_189 : f32 to vector<8x64xf32>
    %845 = arith.addf %843, %844 : vector<8x64xf32>
    %846 = vector.extract_strided_slice %845 {offsets = [0, 0], sizes = [8, 32], strides = [1, 1]} : vector<8x64xf32> to vector<8x32xf32>
    %847 = vector.extract_strided_slice %845 {offsets = [0, 32], sizes = [8, 32], strides = [1, 1]} : vector<8x64xf32> to vector<8x32xf32>
    %848 = vector.extract_strided_slice %834 {offsets = [0, 64], sizes = [8, 32], strides = [1, 1]} : vector<8x128xf32> to vector<8x32xf32>
    %849 = vector.extract_strided_slice %835 {offsets = [0, 64], sizes = [8, 32], strides = [1, 1]} : vector<8x128xf32> to vector<8x32xf32>
    %850 = arith.mulf %846, %849 : vector<8x32xf32>
    %851 = arith.addf %848, %850 : vector<8x32xf32>
    %852 = math.tanh %851 : vector<8x32xf32>
    %cst_190 = arith.constant 1.000000e+00 : f32
    %853 = vector.broadcast %cst_190 : f32 to vector<8x32xf32>
    %854 = arith.subf %853, %847 : vector<8x32xf32>
    %855 = arith.mulf %854, %852 : vector<8x32xf32>
    %856 = arith.mulf %847, %786 : vector<8x32xf32>
    %857 = arith.addf %855, %856 : vector<8x32xf32>
    %858 = vector.extract_strided_slice %825 {offsets = [0, 128], sizes = [8, 128], strides = [1, 1]} : vector<8x256xf32> to vector<8x128xf32>
    %859 = vector.extract_strided_slice %833 {offsets = [0, 128], sizes = [8, 128], strides = [1, 1]} : vector<8x256xf32> to vector<8x128xf32>
    %860 = vector.extract_strided_slice %858 {offsets = [0, 0], sizes = [8, 64], strides = [1, 1]} : vector<8x128xf32> to vector<8x64xf32>
    %861 = vector.extract_strided_slice %859 {offsets = [0, 0], sizes = [8, 64], strides = [1, 1]} : vector<8x128xf32> to vector<8x64xf32>
    %862 = arith.addf %860, %861 : vector<8x64xf32>
    %cst_191 = arith.constant 5.000000e-01 : f32
    %863 = vector.broadcast %cst_191 : f32 to vector<8x64xf32>
    %864 = arith.mulf %863, %862 : vector<8x64xf32>
    %865 = math.tanh %864 : vector<8x64xf32>
    %cst_192 = arith.constant 5.000000e-01 : f32
    %866 = vector.broadcast %cst_192 : f32 to vector<8x64xf32>
    %867 = arith.mulf %866, %865 : vector<8x64xf32>
    %cst_193 = arith.constant 5.000000e-01 : f32
    %868 = vector.broadcast %cst_193 : f32 to vector<8x64xf32>
    %869 = arith.addf %867, %868 : vector<8x64xf32>
    %870 = vector.extract_strided_slice %869 {offsets = [0, 0], sizes = [8, 32], strides = [1, 1]} : vector<8x64xf32> to vector<8x32xf32>
    %871 = vector.extract_strided_slice %869 {offsets = [0, 32], sizes = [8, 32], strides = [1, 1]} : vector<8x64xf32> to vector<8x32xf32>
    %872 = vector.extract_strided_slice %858 {offsets = [0, 64], sizes = [8, 32], strides = [1, 1]} : vector<8x128xf32> to vector<8x32xf32>
    %873 = vector.extract_strided_slice %859 {offsets = [0, 64], sizes = [8, 32], strides = [1, 1]} : vector<8x128xf32> to vector<8x32xf32>
    %874 = arith.mulf %870, %873 : vector<8x32xf32>
    %875 = arith.addf %872, %874 : vector<8x32xf32>
    %876 = math.tanh %875 : vector<8x32xf32>
    %cst_194 = arith.constant 1.000000e+00 : f32
    %877 = vector.broadcast %cst_194 : f32 to vector<8x32xf32>
    %878 = arith.subf %877, %871 : vector<8x32xf32>
    %879 = arith.mulf %878, %876 : vector<8x32xf32>
    %880 = arith.mulf %871, %786 : vector<8x32xf32>
    %881 = arith.addf %879, %880 : vector<8x32xf32>
    %c0_195 = arith.constant 0 : index
    %c0_196 = arith.constant 0 : index
    %882 = vector.load %arg12[%c0_195, %c0_196] : memref<64x32xf32, #tpu.memory_space<vmem>>, vector<64x32xf32>
    %c0_197 = arith.constant 0 : index
    %c0_198 = arith.constant 0 : index
    %883 = vector.load %arg13[%c0_197, %c0_198] : memref<1x32xf32, #tpu.memory_space<vmem>>, vector<1x32xf32>
    %884 = vector.extract_strided_slice %781 {offsets = [0, 0], sizes = [8, 32], strides = [1, 1]} : vector<8x64xf32> to vector<8x32xf32>
    %885 = vector.extract_strided_slice %781 {offsets = [0, 32], sizes = [8, 32], strides = [1, 1]} : vector<8x64xf32> to vector<8x32xf32>
    %886 = vector.extract_strided_slice %882 {offsets = [0, 0], sizes = [32, 32], strides = [1, 1]} : vector<64x32xf32> to vector<32x32xf32>
    %cst_199 = arith.constant dense<0.000000e+00> : vector<8x32xf32>
    %887 = tpu.matmul %857, %886, %cst_199 {dimension_numbers = #tpu.dot_dimension_numbers<[1], [0], [0], [1], [0, 0, 1, 1], [], []>} : vector<8x32xf32>, vector<32x32xf32>, vector<8x32xf32> -> vector<8x32xf32>
    %888 = vector.extract_strided_slice %882 {offsets = [32, 0], sizes = [32, 32], strides = [1, 1]} : vector<64x32xf32> to vector<32x32xf32>
    %cst_200 = arith.constant dense<0.000000e+00> : vector<8x32xf32>
    %889 = tpu.matmul %884, %888, %cst_200 {dimension_numbers = #tpu.dot_dimension_numbers<[1], [0], [0], [1], [0, 0, 1, 1], [], []>} : vector<8x32xf32>, vector<32x32xf32>, vector<8x32xf32> -> vector<8x32xf32>
    %890 = arith.addf %887, %889 : vector<8x32xf32>
    %891 = vector.broadcast %883 : vector<1x32xf32> to vector<8x32xf32>
    %892 = arith.addf %890, %891 : vector<8x32xf32>
    %c0_201 = arith.constant 0 : index
    %c0_202 = arith.constant 0 : index
    %c0_203 = arith.constant 0 : index
    %893 = vector.load %arg14[%c0_201, %c0_202, %c0_203] : memref<2x8x32xf32, #tpu.memory_space<vmem>>, vector<1x8x32xf32>
    %894 = vector.shape_cast %893 : vector<1x8x32xf32> to vector<8x32xf32>
    %895 = vector.shape_cast %892 : vector<8x32xf32> to vector<1x8x32xf32>
    tpu.vector_store %arg14[%c0_201, %c0_202, %c0_203], %895 {strides = array<i32>} : memref<2x8x32xf32, #tpu.memory_space<vmem>>, vector<1x8x32xf32>,
    %896 = vector.extract_strided_slice %882 {offsets = [0, 0], sizes = [32, 32], strides = [1, 1]} : vector<64x32xf32> to vector<32x32xf32>
    %cst_204 = arith.constant dense<0.000000e+00> : vector<8x32xf32>
    %897 = tpu.matmul %881, %896, %cst_204 {dimension_numbers = #tpu.dot_dimension_numbers<[1], [0], [0], [1], [0, 0, 1, 1], [], []>} : vector<8x32xf32>, vector<32x32xf32>, vector<8x32xf32> -> vector<8x32xf32>
    %898 = vector.extract_strided_slice %882 {offsets = [32, 0], sizes = [32, 32], strides = [1, 1]} : vector<64x32xf32> to vector<32x32xf32>
    %cst_205 = arith.constant dense<0.000000e+00> : vector<8x32xf32>
    %899 = tpu.matmul %885, %898, %cst_205 {dimension_numbers = #tpu.dot_dimension_numbers<[1], [0], [0], [1], [0, 0, 1, 1], [], []>} : vector<8x32xf32>, vector<32x32xf32>, vector<8x32xf32> -> vector<8x32xf32>
    %900 = arith.addf %897, %899 : vector<8x32xf32>
    %901 = vector.broadcast %883 : vector<1x32xf32> to vector<8x32xf32>
    %902 = arith.addf %900, %901 : vector<8x32xf32>
    %c1_206 = arith.constant 1 : index
    %c0_207 = arith.constant 0 : index
    %c0_208 = arith.constant 0 : index
    %903 = vector.load %arg14[%c1_206, %c0_207, %c0_208] : memref<2x8x32xf32, #tpu.memory_space<vmem>>, vector<1x8x32xf32>
    %904 = vector.shape_cast %903 : vector<1x8x32xf32> to vector<8x32xf32>
    %905 = vector.shape_cast %902 : vector<8x32xf32> to vector<1x8x32xf32>
    tpu.vector_store %arg14[%c1_206, %c0_207, %c0_208], %905 {strides = array<i32>} : memref<2x8x32xf32, #tpu.memory_space<vmem>>, vector<1x8x32xf32>,
    return
  }
}

module attributes {stable_mosaic.version = 11 : i64} {
  func.func @decoder_kernel(%arg0: memref<2x8x32xf32, #tpu.memory_space<vmem>>, %arg1: memref<5x8x1xi32, #tpu.memory_space<vmem>>, %arg2: memref<4x8x1xi32, #tpu.memory_space<vmem>>, %arg3: memref<24x16xf32, #tpu.memory_space<vmem>>, %arg4: memref<16x256xf32, #tpu.memory_space<vmem>>, %arg5: memref<64x256xf32, #tpu.memory_space<vmem>>, %arg6: memref<1x256xf32, #tpu.memory_space<vmem>>, %arg7: memref<1x256xf32, #tpu.memory_space<vmem>>, %arg8: memref<64x128xf32, #tpu.memory_space<vmem>>, %arg9: memref<1x128xf32, #tpu.memory_space<vmem>>, %arg10: memref<5x8x128xf32, #tpu.memory_space<vmem>>) attributes {dimension_semantics = [], scalar_prefetch = 0 : i64, scratch_operands = 0 : i64, tpu.core_type = #tpu.core_type<tc>} {
    %cst = arith.constant 0.000000e+00 : f32
    %0 = vector.broadcast %cst : f32 to vector<8x128xf32>
    %c0 = arith.constant 0 : index
    %c0_0 = arith.constant 0 : index
    %c0_1 = arith.constant 0 : index
    %1 = vector.load %arg10[%c0, %c0_0, %c0_1] : memref<5x8x128xf32, #tpu.memory_space<vmem>>, vector<1x8x128xf32>
    %2 = vector.shape_cast %1 : vector<1x8x128xf32> to vector<8x128xf32>
    %3 = vector.shape_cast %0 : vector<8x128xf32> to vector<1x8x128xf32>
    tpu.vector_store %arg10[%c0, %c0_0, %c0_1], %3 {strides = array<i32>} : memref<5x8x128xf32, #tpu.memory_space<vmem>>, vector<1x8x128xf32>,
    %c0_2 = arith.constant 0 : index
    %c0_3 = arith.constant 0 : index
    %4 = vector.load %arg3[%c0_2, %c0_3] : memref<24x16xf32, #tpu.memory_space<vmem>>, vector<24x16xf32>
    %c0_4 = arith.constant 0 : index
    %c0_5 = arith.constant 0 : index
    %5 = vector.load %arg4[%c0_4, %c0_5] : memref<16x256xf32, #tpu.memory_space<vmem>>, vector<16x256xf32>
    %c0_6 = arith.constant 0 : index
    %c0_7 = arith.constant 0 : index
    %6 = vector.load %arg5[%c0_6, %c0_7] : memref<64x256xf32, #tpu.memory_space<vmem>>, vector<64x256xf32>
    %c0_8 = arith.constant 0 : index
    %c0_9 = arith.constant 0 : index
    %7 = vector.load %arg6[%c0_8, %c0_9] : memref<1x256xf32, #tpu.memory_space<vmem>>, vector<1x256xf32>
    %c0_10 = arith.constant 0 : index
    %c0_11 = arith.constant 0 : index
    %8 = vector.load %arg7[%c0_10, %c0_11] : memref<1x256xf32, #tpu.memory_space<vmem>>, vector<1x256xf32>
    %c0_12 = arith.constant 0 : index
    %c0_13 = arith.constant 0 : index
    %9 = vector.load %arg8[%c0_12, %c0_13] : memref<64x128xf32, #tpu.memory_space<vmem>>, vector<64x128xf32>
    %c0_14 = arith.constant 0 : index
    %c0_15 = arith.constant 0 : index
    %10 = vector.load %arg9[%c0_14, %c0_15] : memref<1x128xf32, #tpu.memory_space<vmem>>, vector<1x128xf32>
    %11 = tpu.iota {dimensions = array<i32: 1>} : vector<8x24xi32>
    %12 = tpu.iota {dimensions = array<i32: 1>} : vector<8x128xi32>
    %c0_16 = arith.constant 0 : index
    %c0_17 = arith.constant 0 : index
    %c0_18 = arith.constant 0 : index
    %13 = vector.load %arg0[%c0_16, %c0_17, %c0_18] : memref<2x8x32xf32, #tpu.memory_space<vmem>>, vector<1x8x32xf32>
    %14 = vector.shape_cast %13 : vector<1x8x32xf32> to vector<8x32xf32>
    %c1 = arith.constant 1 : index
    %c0_19 = arith.constant 0 : index
    %c0_20 = arith.constant 0 : index
    %15 = vector.load %arg0[%c1, %c0_19, %c0_20] : memref<2x8x32xf32, #tpu.memory_space<vmem>>, vector<1x8x32xf32>
    %16 = vector.shape_cast %15 : vector<1x8x32xf32> to vector<8x32xf32>
    %17 = tpu.concatenate %14, %16 in 1 : vector<8x32xf32>, vector<8x32xf32> -> vector<8x64xf32>
    %c0_21 = arith.constant 0 : index
    %c0_22 = arith.constant 0 : index
    %c0_23 = arith.constant 0 : index
    %18 = vector.load %arg1[%c0_21, %c0_22, %c0_23] : memref<5x8x1xi32, #tpu.memory_space<vmem>>, vector<1x8x1xi32>
    %19 = vector.shape_cast %18 : vector<1x8x1xi32> to vector<8x1xi32>
    %20 = vector.broadcast %19 : vector<8x1xi32> to vector<8x24xi32>
    %21 = arith.cmpi eq, %11, %20 : vector<8x24xi32>
    %22 = arith.extui %21 : vector<8x24xi1> to vector<8x24xi32>
    %23 = arith.sitofp %22 : vector<8x24xi32> to vector<8x24xf32>
    %cst_24 = arith.constant dense<0.000000e+00> : vector<8x16xf32>
    %24 = tpu.matmul %23, %4, %cst_24 {dimension_numbers = #tpu.dot_dimension_numbers<[1], [0], [0], [1], [0, 0, 1, 1], [], []>} : vector<8x24xf32>, vector<24x16xf32>, vector<8x16xf32> -> vector<8x16xf32>
    %cst_25 = arith.constant dense<0.000000e+00> : vector<8x256xf32>
    %25 = tpu.matmul %24, %5, %cst_25 {dimension_numbers = #tpu.dot_dimension_numbers<[1], [0], [0], [1], [0, 0, 1, 1], [], []>} : vector<8x16xf32>, vector<16x256xf32>, vector<8x256xf32> -> vector<8x256xf32>
    %26 = vector.broadcast %7 : vector<1x256xf32> to vector<8x256xf32>
    %27 = arith.addf %25, %26 : vector<8x256xf32>
    %cst_26 = arith.constant dense<0.000000e+00> : vector<8x256xf32>
    %28 = tpu.matmul %17, %6, %cst_26 {dimension_numbers = #tpu.dot_dimension_numbers<[1], [0], [0], [1], [0, 0, 1, 1], [], []>} : vector<8x64xf32>, vector<64x256xf32>, vector<8x256xf32> -> vector<8x256xf32>
    %29 = vector.broadcast %8 : vector<1x256xf32> to vector<8x256xf32>
    %30 = arith.addf %28, %29 : vector<8x256xf32>
    %31 = vector.extract_strided_slice %27 {offsets = [0, 0], sizes = [8, 128], strides = [1, 1]} : vector<8x256xf32> to vector<8x128xf32>
    %32 = vector.extract_strided_slice %30 {offsets = [0, 0], sizes = [8, 128], strides = [1, 1]} : vector<8x256xf32> to vector<8x128xf32>
    %33 = vector.extract_strided_slice %17 {offsets = [0, 0], sizes = [8, 32], strides = [1, 1]} : vector<8x64xf32> to vector<8x32xf32>
    %34 = vector.extract_strided_slice %31 {offsets = [0, 0], sizes = [8, 64], strides = [1, 1]} : vector<8x128xf32> to vector<8x64xf32>
    %35 = vector.extract_strided_slice %32 {offsets = [0, 0], sizes = [8, 64], strides = [1, 1]} : vector<8x128xf32> to vector<8x64xf32>
    %36 = arith.addf %34, %35 : vector<8x64xf32>
    %cst_27 = arith.constant 5.000000e-01 : f32
    %37 = vector.broadcast %cst_27 : f32 to vector<8x64xf32>
    %38 = arith.mulf %37, %36 : vector<8x64xf32>
    %39 = math.tanh %38 : vector<8x64xf32>
    %cst_28 = arith.constant 5.000000e-01 : f32
    %40 = vector.broadcast %cst_28 : f32 to vector<8x64xf32>
    %41 = arith.mulf %40, %39 : vector<8x64xf32>
    %cst_29 = arith.constant 5.000000e-01 : f32
    %42 = vector.broadcast %cst_29 : f32 to vector<8x64xf32>
    %43 = arith.addf %41, %42 : vector<8x64xf32>
    %44 = vector.extract_strided_slice %43 {offsets = [0, 0], sizes = [8, 32], strides = [1, 1]} : vector<8x64xf32> to vector<8x32xf32>
    %45 = vector.extract_strided_slice %43 {offsets = [0, 32], sizes = [8, 32], strides = [1, 1]} : vector<8x64xf32> to vector<8x32xf32>
    %46 = vector.extract_strided_slice %31 {offsets = [0, 64], sizes = [8, 32], strides = [1, 1]} : vector<8x128xf32> to vector<8x32xf32>
    %47 = vector.extract_strided_slice %32 {offsets = [0, 64], sizes = [8, 32], strides = [1, 1]} : vector<8x128xf32> to vector<8x32xf32>
    %48 = arith.mulf %44, %47 : vector<8x32xf32>
    %49 = arith.addf %46, %48 : vector<8x32xf32>
    %50 = math.tanh %49 : vector<8x32xf32>
    %cst_30 = arith.constant 1.000000e+00 : f32
    %51 = vector.broadcast %cst_30 : f32 to vector<8x32xf32>
    %52 = arith.subf %51, %45 : vector<8x32xf32>
    %53 = arith.mulf %52, %50 : vector<8x32xf32>
    %54 = arith.mulf %45, %33 : vector<8x32xf32>
    %55 = arith.addf %53, %54 : vector<8x32xf32>
    %56 = vector.extract_strided_slice %27 {offsets = [0, 128], sizes = [8, 128], strides = [1, 1]} : vector<8x256xf32> to vector<8x128xf32>
    %57 = vector.extract_strided_slice %30 {offsets = [0, 128], sizes = [8, 128], strides = [1, 1]} : vector<8x256xf32> to vector<8x128xf32>
    %58 = vector.extract_strided_slice %17 {offsets = [0, 32], sizes = [8, 32], strides = [1, 1]} : vector<8x64xf32> to vector<8x32xf32>
    %59 = vector.extract_strided_slice %56 {offsets = [0, 0], sizes = [8, 64], strides = [1, 1]} : vector<8x128xf32> to vector<8x64xf32>
    %60 = vector.extract_strided_slice %57 {offsets = [0, 0], sizes = [8, 64], strides = [1, 1]} : vector<8x128xf32> to vector<8x64xf32>
    %61 = arith.addf %59, %60 : vector<8x64xf32>
    %cst_31 = arith.constant 5.000000e-01 : f32
    %62 = vector.broadcast %cst_31 : f32 to vector<8x64xf32>
    %63 = arith.mulf %62, %61 : vector<8x64xf32>
    %64 = math.tanh %63 : vector<8x64xf32>
    %cst_32 = arith.constant 5.000000e-01 : f32
    %65 = vector.broadcast %cst_32 : f32 to vector<8x64xf32>
    %66 = arith.mulf %65, %64 : vector<8x64xf32>
    %cst_33 = arith.constant 5.000000e-01 : f32
    %67 = vector.broadcast %cst_33 : f32 to vector<8x64xf32>
    %68 = arith.addf %66, %67 : vector<8x64xf32>
    %69 = vector.extract_strided_slice %68 {offsets = [0, 0], sizes = [8, 32], strides = [1, 1]} : vector<8x64xf32> to vector<8x32xf32>
    %70 = vector.extract_strided_slice %68 {offsets = [0, 32], sizes = [8, 32], strides = [1, 1]} : vector<8x64xf32> to vector<8x32xf32>
    %71 = vector.extract_strided_slice %56 {offsets = [0, 64], sizes = [8, 32], strides = [1, 1]} : vector<8x128xf32> to vector<8x32xf32>
    %72 = vector.extract_strided_slice %57 {offsets = [0, 64], sizes = [8, 32], strides = [1, 1]} : vector<8x128xf32> to vector<8x32xf32>
    %73 = arith.mulf %69, %72 : vector<8x32xf32>
    %74 = arith.addf %71, %73 : vector<8x32xf32>
    %75 = math.tanh %74 : vector<8x32xf32>
    %cst_34 = arith.constant 1.000000e+00 : f32
    %76 = vector.broadcast %cst_34 : f32 to vector<8x32xf32>
    %77 = arith.subf %76, %70 : vector<8x32xf32>
    %78 = arith.mulf %77, %75 : vector<8x32xf32>
    %79 = arith.mulf %70, %58 : vector<8x32xf32>
    %80 = arith.addf %78, %79 : vector<8x32xf32>
    %81 = tpu.concatenate %55, %80 in 1 : vector<8x32xf32>, vector<8x32xf32> -> vector<8x64xf32>
    %82 = vector.extract_strided_slice %9 {offsets = [0, 0], sizes = [32, 128], strides = [1, 1]} : vector<64x128xf32> to vector<32x128xf32>
    %cst_35 = arith.constant dense<0.000000e+00> : vector<8x128xf32>
    %83 = tpu.matmul %55, %82, %cst_35 {dimension_numbers = #tpu.dot_dimension_numbers<[1], [0], [0], [1], [0, 0, 1, 1], [], []>} : vector<8x32xf32>, vector<32x128xf32>, vector<8x128xf32> -> vector<8x128xf32>
    %84 = vector.extract_strided_slice %9 {offsets = [32, 0], sizes = [32, 128], strides = [1, 1]} : vector<64x128xf32> to vector<32x128xf32>
    %cst_36 = arith.constant dense<0.000000e+00> : vector<8x128xf32>
    %85 = tpu.matmul %80, %84, %cst_36 {dimension_numbers = #tpu.dot_dimension_numbers<[1], [0], [0], [1], [0, 0, 1, 1], [], []>} : vector<8x32xf32>, vector<32x128xf32>, vector<8x128xf32> -> vector<8x128xf32>
    %86 = arith.addf %83, %85 : vector<8x128xf32>
    %87 = vector.broadcast %10 : vector<1x128xf32> to vector<8x128xf32>
    %88 = arith.addf %86, %87 : vector<8x128xf32>
    %c1_37 = arith.constant 1 : index
    %c0_38 = arith.constant 0 : index
    %c0_39 = arith.constant 0 : index
    %89 = vector.load %arg10[%c1_37, %c0_38, %c0_39] : memref<5x8x128xf32, #tpu.memory_space<vmem>>, vector<1x8x128xf32>
    %90 = vector.shape_cast %89 : vector<1x8x128xf32> to vector<8x128xf32>
    %91 = vector.shape_cast %88 : vector<8x128xf32> to vector<1x8x128xf32>
    tpu.vector_store %arg10[%c1_37, %c0_38, %c0_39], %91 {strides = array<i32>} : memref<5x8x128xf32, #tpu.memory_space<vmem>>, vector<1x8x128xf32>,
    %c24_i32 = arith.constant 24 : i32
    %92 = vector.broadcast %c24_i32 : i32 to vector<8x128xi32>
    %93 = arith.cmpi slt, %12, %92 : vector<8x128xi32>
    %cst_40 = arith.constant 0xFF800000 : f32
    %94 = vector.broadcast %cst_40 : f32 to vector<8x128xf32>
    %95 = arith.select %93, %88, %94 : vector<8x128xi1>, vector<8x128xf32>
    %cst_41 = arith.constant dense<0xFF800000> : vector<8xf32>
    %96 = vector.multi_reduction <maximumf>, %95, %cst_41 [1] : vector<8x128xf32> to vector<8xf32>
    %97 = vector.shape_cast %96 : vector<8xf32> to vector<8x1xf32>
    %98 = vector.broadcast %97 : vector<8x1xf32> to vector<8x128xf32>
    %99 = arith.cmpf oge, %95, %98 : vector<8x128xf32>
    %c128_i32 = arith.constant 128 : i32
    %100 = vector.broadcast %c128_i32 : i32 to vector<8x128xi32>
    %101 = arith.select %99, %12, %100 : vector<8x128xi1>, vector<8x128xi32>
    %cst_42 = arith.constant dense<2147483647> : vector<8xi32>
    %102 = vector.multi_reduction <minsi>, %101, %cst_42 [1] : vector<8x128xi32> to vector<8xi32>
    %103 = vector.shape_cast %102 : vector<8xi32> to vector<8x1xi32>
    %c0_43 = arith.constant 0 : index
    %c0_44 = arith.constant 0 : index
    %c0_45 = arith.constant 0 : index
    %104 = vector.load %arg2[%c0_43, %c0_44, %c0_45] : memref<4x8x1xi32, #tpu.memory_space<vmem>>, vector<1x8x1xi32>
    %105 = vector.shape_cast %104 : vector<1x8x1xi32> to vector<8x1xi32>
    %c0_i32 = arith.constant 0 : i32
    %106 = vector.broadcast %c0_i32 : i32 to vector<8x1xi32>
    %107 = arith.cmpi sgt, %105, %106 : vector<8x1xi32>
    %c1_46 = arith.constant 1 : index
    %c0_47 = arith.constant 0 : index
    %c0_48 = arith.constant 0 : index
    %108 = vector.load %arg1[%c1_46, %c0_47, %c0_48] : memref<5x8x1xi32, #tpu.memory_space<vmem>>, vector<1x8x1xi32>
    %109 = vector.shape_cast %108 : vector<1x8x1xi32> to vector<8x1xi32>
    %110 = arith.select %107, %109, %103 : vector<8x1xi1>, vector<8x1xi32>
    %111 = vector.broadcast %110 : vector<8x1xi32> to vector<8x24xi32>
    %112 = arith.cmpi eq, %11, %111 : vector<8x24xi32>
    %113 = arith.extui %112 : vector<8x24xi1> to vector<8x24xi32>
    %114 = arith.sitofp %113 : vector<8x24xi32> to vector<8x24xf32>
    %cst_49 = arith.constant dense<0.000000e+00> : vector<8x16xf32>
    %115 = tpu.matmul %114, %4, %cst_49 {dimension_numbers = #tpu.dot_dimension_numbers<[1], [0], [0], [1], [0, 0, 1, 1], [], []>} : vector<8x24xf32>, vector<24x16xf32>, vector<8x16xf32> -> vector<8x16xf32>
    %cst_50 = arith.constant dense<0.000000e+00> : vector<8x256xf32>
    %116 = tpu.matmul %115, %5, %cst_50 {dimension_numbers = #tpu.dot_dimension_numbers<[1], [0], [0], [1], [0, 0, 1, 1], [], []>} : vector<8x16xf32>, vector<16x256xf32>, vector<8x256xf32> -> vector<8x256xf32>
    %117 = vector.broadcast %7 : vector<1x256xf32> to vector<8x256xf32>
    %118 = arith.addf %116, %117 : vector<8x256xf32>
    %cst_51 = arith.constant dense<0.000000e+00> : vector<8x256xf32>
    %119 = tpu.matmul %81, %6, %cst_51 {dimension_numbers = #tpu.dot_dimension_numbers<[1], [0], [0], [1], [0, 0, 1, 1], [], []>} : vector<8x64xf32>, vector<64x256xf32>, vector<8x256xf32> -> vector<8x256xf32>
    %120 = vector.broadcast %8 : vector<1x256xf32> to vector<8x256xf32>
    %121 = arith.addf %119, %120 : vector<8x256xf32>
    %122 = vector.extract_strided_slice %118 {offsets = [0, 0], sizes = [8, 128], strides = [1, 1]} : vector<8x256xf32> to vector<8x128xf32>
    %123 = vector.extract_strided_slice %121 {offsets = [0, 0], sizes = [8, 128], strides = [1, 1]} : vector<8x256xf32> to vector<8x128xf32>
    %124 = vector.extract_strided_slice %81 {offsets = [0, 0], sizes = [8, 32], strides = [1, 1]} : vector<8x64xf32> to vector<8x32xf32>
    %125 = vector.extract_strided_slice %122 {offsets = [0, 0], sizes = [8, 64], strides = [1, 1]} : vector<8x128xf32> to vector<8x64xf32>
    %126 = vector.extract_strided_slice %123 {offsets = [0, 0], sizes = [8, 64], strides = [1, 1]} : vector<8x128xf32> to vector<8x64xf32>
    %127 = arith.addf %125, %126 : vector<8x64xf32>
    %cst_52 = arith.constant 5.000000e-01 : f32
    %128 = vector.broadcast %cst_52 : f32 to vector<8x64xf32>
    %129 = arith.mulf %128, %127 : vector<8x64xf32>
    %130 = math.tanh %129 : vector<8x64xf32>
    %cst_53 = arith.constant 5.000000e-01 : f32
    %131 = vector.broadcast %cst_53 : f32 to vector<8x64xf32>
    %132 = arith.mulf %131, %130 : vector<8x64xf32>
    %cst_54 = arith.constant 5.000000e-01 : f32
    %133 = vector.broadcast %cst_54 : f32 to vector<8x64xf32>
    %134 = arith.addf %132, %133 : vector<8x64xf32>
    %135 = vector.extract_strided_slice %134 {offsets = [0, 0], sizes = [8, 32], strides = [1, 1]} : vector<8x64xf32> to vector<8x32xf32>
    %136 = vector.extract_strided_slice %134 {offsets = [0, 32], sizes = [8, 32], strides = [1, 1]} : vector<8x64xf32> to vector<8x32xf32>
    %137 = vector.extract_strided_slice %122 {offsets = [0, 64], sizes = [8, 32], strides = [1, 1]} : vector<8x128xf32> to vector<8x32xf32>
    %138 = vector.extract_strided_slice %123 {offsets = [0, 64], sizes = [8, 32], strides = [1, 1]} : vector<8x128xf32> to vector<8x32xf32>
    %139 = arith.mulf %135, %138 : vector<8x32xf32>
    %140 = arith.addf %137, %139 : vector<8x32xf32>
    %141 = math.tanh %140 : vector<8x32xf32>
    %cst_55 = arith.constant 1.000000e+00 : f32
    %142 = vector.broadcast %cst_55 : f32 to vector<8x32xf32>
    %143 = arith.subf %142, %136 : vector<8x32xf32>
    %144 = arith.mulf %143, %141 : vector<8x32xf32>
    %145 = arith.mulf %136, %124 : vector<8x32xf32>
    %146 = arith.addf %144, %145 : vector<8x32xf32>
    %147 = vector.extract_strided_slice %118 {offsets = [0, 128], sizes = [8, 128], strides = [1, 1]} : vector<8x256xf32> to vector<8x128xf32>
    %148 = vector.extract_strided_slice %121 {offsets = [0, 128], sizes = [8, 128], strides = [1, 1]} : vector<8x256xf32> to vector<8x128xf32>
    %149 = vector.extract_strided_slice %81 {offsets = [0, 32], sizes = [8, 32], strides = [1, 1]} : vector<8x64xf32> to vector<8x32xf32>
    %150 = vector.extract_strided_slice %147 {offsets = [0, 0], sizes = [8, 64], strides = [1, 1]} : vector<8x128xf32> to vector<8x64xf32>
    %151 = vector.extract_strided_slice %148 {offsets = [0, 0], sizes = [8, 64], strides = [1, 1]} : vector<8x128xf32> to vector<8x64xf32>
    %152 = arith.addf %150, %151 : vector<8x64xf32>
    %cst_56 = arith.constant 5.000000e-01 : f32
    %153 = vector.broadcast %cst_56 : f32 to vector<8x64xf32>
    %154 = arith.mulf %153, %152 : vector<8x64xf32>
    %155 = math.tanh %154 : vector<8x64xf32>
    %cst_57 = arith.constant 5.000000e-01 : f32
    %156 = vector.broadcast %cst_57 : f32 to vector<8x64xf32>
    %157 = arith.mulf %156, %155 : vector<8x64xf32>
    %cst_58 = arith.constant 5.000000e-01 : f32
    %158 = vector.broadcast %cst_58 : f32 to vector<8x64xf32>
    %159 = arith.addf %157, %158 : vector<8x64xf32>
    %160 = vector.extract_strided_slice %159 {offsets = [0, 0], sizes = [8, 32], strides = [1, 1]} : vector<8x64xf32> to vector<8x32xf32>
    %161 = vector.extract_strided_slice %159 {offsets = [0, 32], sizes = [8, 32], strides = [1, 1]} : vector<8x64xf32> to vector<8x32xf32>
    %162 = vector.extract_strided_slice %147 {offsets = [0, 64], sizes = [8, 32], strides = [1, 1]} : vector<8x128xf32> to vector<8x32xf32>
    %163 = vector.extract_strided_slice %148 {offsets = [0, 64], sizes = [8, 32], strides = [1, 1]} : vector<8x128xf32> to vector<8x32xf32>
    %164 = arith.mulf %160, %163 : vector<8x32xf32>
    %165 = arith.addf %162, %164 : vector<8x32xf32>
    %166 = math.tanh %165 : vector<8x32xf32>
    %cst_59 = arith.constant 1.000000e+00 : f32
    %167 = vector.broadcast %cst_59 : f32 to vector<8x32xf32>
    %168 = arith.subf %167, %161 : vector<8x32xf32>
    %169 = arith.mulf %168, %166 : vector<8x32xf32>
    %170 = arith.mulf %161, %149 : vector<8x32xf32>
    %171 = arith.addf %169, %170 : vector<8x32xf32>
    %172 = tpu.concatenate %146, %171 in 1 : vector<8x32xf32>, vector<8x32xf32> -> vector<8x64xf32>
    %173 = vector.extract_strided_slice %9 {offsets = [0, 0], sizes = [32, 128], strides = [1, 1]} : vector<64x128xf32> to vector<32x128xf32>
    %cst_60 = arith.constant dense<0.000000e+00> : vector<8x128xf32>
    %174 = tpu.matmul %146, %173, %cst_60 {dimension_numbers = #tpu.dot_dimension_numbers<[1], [0], [0], [1], [0, 0, 1, 1], [], []>} : vector<8x32xf32>, vector<32x128xf32>, vector<8x128xf32> -> vector<8x128xf32>
    %175 = vector.extract_strided_slice %9 {offsets = [32, 0], sizes = [32, 128], strides = [1, 1]} : vector<64x128xf32> to vector<32x128xf32>
    %cst_61 = arith.constant dense<0.000000e+00> : vector<8x128xf32>
    %176 = tpu.matmul %171, %175, %cst_61 {dimension_numbers = #tpu.dot_dimension_numbers<[1], [0], [0], [1], [0, 0, 1, 1], [], []>} : vector<8x32xf32>, vector<32x128xf32>, vector<8x128xf32> -> vector<8x128xf32>
    %177 = arith.addf %174, %176 : vector<8x128xf32>
    %178 = vector.broadcast %10 : vector<1x128xf32> to vector<8x128xf32>
    %179 = arith.addf %177, %178 : vector<8x128xf32>
    %c2 = arith.constant 2 : index
    %c0_62 = arith.constant 0 : index
    %c0_63 = arith.constant 0 : index
    %180 = vector.load %arg10[%c2, %c0_62, %c0_63] : memref<5x8x128xf32, #tpu.memory_space<vmem>>, vector<1x8x128xf32>
    %181 = vector.shape_cast %180 : vector<1x8x128xf32> to vector<8x128xf32>
    %182 = vector.shape_cast %179 : vector<8x128xf32> to vector<1x8x128xf32>
    tpu.vector_store %arg10[%c2, %c0_62, %c0_63], %182 {strides = array<i32>} : memref<5x8x128xf32, #tpu.memory_space<vmem>>, vector<1x8x128xf32>,
    %c24_i32_64 = arith.constant 24 : i32
    %183 = vector.broadcast %c24_i32_64 : i32 to vector<8x128xi32>
    %184 = arith.cmpi slt, %12, %183 : vector<8x128xi32>
    %cst_65 = arith.constant 0xFF800000 : f32
    %185 = vector.broadcast %cst_65 : f32 to vector<8x128xf32>
    %186 = arith.select %184, %179, %185 : vector<8x128xi1>, vector<8x128xf32>
    %cst_66 = arith.constant dense<0xFF800000> : vector<8xf32>
    %187 = vector.multi_reduction <maximumf>, %186, %cst_66 [1] : vector<8x128xf32> to vector<8xf32>
    %188 = vector.shape_cast %187 : vector<8xf32> to vector<8x1xf32>
    %189 = vector.broadcast %188 : vector<8x1xf32> to vector<8x128xf32>
    %190 = arith.cmpf oge, %186, %189 : vector<8x128xf32>
    %c128_i32_67 = arith.constant 128 : i32
    %191 = vector.broadcast %c128_i32_67 : i32 to vector<8x128xi32>
    %192 = arith.select %190, %12, %191 : vector<8x128xi1>, vector<8x128xi32>
    %cst_68 = arith.constant dense<2147483647> : vector<8xi32>
    %193 = vector.multi_reduction <minsi>, %192, %cst_68 [1] : vector<8x128xi32> to vector<8xi32>
    %194 = vector.shape_cast %193 : vector<8xi32> to vector<8x1xi32>
    %c1_69 = arith.constant 1 : index
    %c0_70 = arith.constant 0 : index
    %c0_71 = arith.constant 0 : index
    %195 = vector.load %arg2[%c1_69, %c0_70, %c0_71] : memref<4x8x1xi32, #tpu.memory_space<vmem>>, vector<1x8x1xi32>
    %196 = vector.shape_cast %195 : vector<1x8x1xi32> to vector<8x1xi32>
    %c0_i32_72 = arith.constant 0 : i32
    %197 = vector.broadcast %c0_i32_72 : i32 to vector<8x1xi32>
    %198 = arith.cmpi sgt, %196, %197 : vector<8x1xi32>
    %c2_73 = arith.constant 2 : index
    %c0_74 = arith.constant 0 : index
    %c0_75 = arith.constant 0 : index
    %199 = vector.load %arg1[%c2_73, %c0_74, %c0_75] : memref<5x8x1xi32, #tpu.memory_space<vmem>>, vector<1x8x1xi32>
    %200 = vector.shape_cast %199 : vector<1x8x1xi32> to vector<8x1xi32>
    %201 = arith.select %198, %200, %194 : vector<8x1xi1>, vector<8x1xi32>
    %202 = vector.broadcast %201 : vector<8x1xi32> to vector<8x24xi32>
    %203 = arith.cmpi eq, %11, %202 : vector<8x24xi32>
    %204 = arith.extui %203 : vector<8x24xi1> to vector<8x24xi32>
    %205 = arith.sitofp %204 : vector<8x24xi32> to vector<8x24xf32>
    %cst_76 = arith.constant dense<0.000000e+00> : vector<8x16xf32>
    %206 = tpu.matmul %205, %4, %cst_76 {dimension_numbers = #tpu.dot_dimension_numbers<[1], [0], [0], [1], [0, 0, 1, 1], [], []>} : vector<8x24xf32>, vector<24x16xf32>, vector<8x16xf32> -> vector<8x16xf32>
    %cst_77 = arith.constant dense<0.000000e+00> : vector<8x256xf32>
    %207 = tpu.matmul %206, %5, %cst_77 {dimension_numbers = #tpu.dot_dimension_numbers<[1], [0], [0], [1], [0, 0, 1, 1], [], []>} : vector<8x16xf32>, vector<16x256xf32>, vector<8x256xf32> -> vector<8x256xf32>
    %208 = vector.broadcast %7 : vector<1x256xf32> to vector<8x256xf32>
    %209 = arith.addf %207, %208 : vector<8x256xf32>
    %cst_78 = arith.constant dense<0.000000e+00> : vector<8x256xf32>
    %210 = tpu.matmul %172, %6, %cst_78 {dimension_numbers = #tpu.dot_dimension_numbers<[1], [0], [0], [1], [0, 0, 1, 1], [], []>} : vector<8x64xf32>, vector<64x256xf32>, vector<8x256xf32> -> vector<8x256xf32>
    %211 = vector.broadcast %8 : vector<1x256xf32> to vector<8x256xf32>
    %212 = arith.addf %210, %211 : vector<8x256xf32>
    %213 = vector.extract_strided_slice %209 {offsets = [0, 0], sizes = [8, 128], strides = [1, 1]} : vector<8x256xf32> to vector<8x128xf32>
    %214 = vector.extract_strided_slice %212 {offsets = [0, 0], sizes = [8, 128], strides = [1, 1]} : vector<8x256xf32> to vector<8x128xf32>
    %215 = vector.extract_strided_slice %172 {offsets = [0, 0], sizes = [8, 32], strides = [1, 1]} : vector<8x64xf32> to vector<8x32xf32>
    %216 = vector.extract_strided_slice %213 {offsets = [0, 0], sizes = [8, 64], strides = [1, 1]} : vector<8x128xf32> to vector<8x64xf32>
    %217 = vector.extract_strided_slice %214 {offsets = [0, 0], sizes = [8, 64], strides = [1, 1]} : vector<8x128xf32> to vector<8x64xf32>
    %218 = arith.addf %216, %217 : vector<8x64xf32>
    %cst_79 = arith.constant 5.000000e-01 : f32
    %219 = vector.broadcast %cst_79 : f32 to vector<8x64xf32>
    %220 = arith.mulf %219, %218 : vector<8x64xf32>
    %221 = math.tanh %220 : vector<8x64xf32>
    %cst_80 = arith.constant 5.000000e-01 : f32
    %222 = vector.broadcast %cst_80 : f32 to vector<8x64xf32>
    %223 = arith.mulf %222, %221 : vector<8x64xf32>
    %cst_81 = arith.constant 5.000000e-01 : f32
    %224 = vector.broadcast %cst_81 : f32 to vector<8x64xf32>
    %225 = arith.addf %223, %224 : vector<8x64xf32>
    %226 = vector.extract_strided_slice %225 {offsets = [0, 0], sizes = [8, 32], strides = [1, 1]} : vector<8x64xf32> to vector<8x32xf32>
    %227 = vector.extract_strided_slice %225 {offsets = [0, 32], sizes = [8, 32], strides = [1, 1]} : vector<8x64xf32> to vector<8x32xf32>
    %228 = vector.extract_strided_slice %213 {offsets = [0, 64], sizes = [8, 32], strides = [1, 1]} : vector<8x128xf32> to vector<8x32xf32>
    %229 = vector.extract_strided_slice %214 {offsets = [0, 64], sizes = [8, 32], strides = [1, 1]} : vector<8x128xf32> to vector<8x32xf32>
    %230 = arith.mulf %226, %229 : vector<8x32xf32>
    %231 = arith.addf %228, %230 : vector<8x32xf32>
    %232 = math.tanh %231 : vector<8x32xf32>
    %cst_82 = arith.constant 1.000000e+00 : f32
    %233 = vector.broadcast %cst_82 : f32 to vector<8x32xf32>
    %234 = arith.subf %233, %227 : vector<8x32xf32>
    %235 = arith.mulf %234, %232 : vector<8x32xf32>
    %236 = arith.mulf %227, %215 : vector<8x32xf32>
    %237 = arith.addf %235, %236 : vector<8x32xf32>
    %238 = vector.extract_strided_slice %209 {offsets = [0, 128], sizes = [8, 128], strides = [1, 1]} : vector<8x256xf32> to vector<8x128xf32>
    %239 = vector.extract_strided_slice %212 {offsets = [0, 128], sizes = [8, 128], strides = [1, 1]} : vector<8x256xf32> to vector<8x128xf32>
    %240 = vector.extract_strided_slice %172 {offsets = [0, 32], sizes = [8, 32], strides = [1, 1]} : vector<8x64xf32> to vector<8x32xf32>
    %241 = vector.extract_strided_slice %238 {offsets = [0, 0], sizes = [8, 64], strides = [1, 1]} : vector<8x128xf32> to vector<8x64xf32>
    %242 = vector.extract_strided_slice %239 {offsets = [0, 0], sizes = [8, 64], strides = [1, 1]} : vector<8x128xf32> to vector<8x64xf32>
    %243 = arith.addf %241, %242 : vector<8x64xf32>
    %cst_83 = arith.constant 5.000000e-01 : f32
    %244 = vector.broadcast %cst_83 : f32 to vector<8x64xf32>
    %245 = arith.mulf %244, %243 : vector<8x64xf32>
    %246 = math.tanh %245 : vector<8x64xf32>
    %cst_84 = arith.constant 5.000000e-01 : f32
    %247 = vector.broadcast %cst_84 : f32 to vector<8x64xf32>
    %248 = arith.mulf %247, %246 : vector<8x64xf32>
    %cst_85 = arith.constant 5.000000e-01 : f32
    %249 = vector.broadcast %cst_85 : f32 to vector<8x64xf32>
    %250 = arith.addf %248, %249 : vector<8x64xf32>
    %251 = vector.extract_strided_slice %250 {offsets = [0, 0], sizes = [8, 32], strides = [1, 1]} : vector<8x64xf32> to vector<8x32xf32>
    %252 = vector.extract_strided_slice %250 {offsets = [0, 32], sizes = [8, 32], strides = [1, 1]} : vector<8x64xf32> to vector<8x32xf32>
    %253 = vector.extract_strided_slice %238 {offsets = [0, 64], sizes = [8, 32], strides = [1, 1]} : vector<8x128xf32> to vector<8x32xf32>
    %254 = vector.extract_strided_slice %239 {offsets = [0, 64], sizes = [8, 32], strides = [1, 1]} : vector<8x128xf32> to vector<8x32xf32>
    %255 = arith.mulf %251, %254 : vector<8x32xf32>
    %256 = arith.addf %253, %255 : vector<8x32xf32>
    %257 = math.tanh %256 : vector<8x32xf32>
    %cst_86 = arith.constant 1.000000e+00 : f32
    %258 = vector.broadcast %cst_86 : f32 to vector<8x32xf32>
    %259 = arith.subf %258, %252 : vector<8x32xf32>
    %260 = arith.mulf %259, %257 : vector<8x32xf32>
    %261 = arith.mulf %252, %240 : vector<8x32xf32>
    %262 = arith.addf %260, %261 : vector<8x32xf32>
    %263 = tpu.concatenate %237, %262 in 1 : vector<8x32xf32>, vector<8x32xf32> -> vector<8x64xf32>
    %264 = vector.extract_strided_slice %9 {offsets = [0, 0], sizes = [32, 128], strides = [1, 1]} : vector<64x128xf32> to vector<32x128xf32>
    %cst_87 = arith.constant dense<0.000000e+00> : vector<8x128xf32>
    %265 = tpu.matmul %237, %264, %cst_87 {dimension_numbers = #tpu.dot_dimension_numbers<[1], [0], [0], [1], [0, 0, 1, 1], [], []>} : vector<8x32xf32>, vector<32x128xf32>, vector<8x128xf32> -> vector<8x128xf32>
    %266 = vector.extract_strided_slice %9 {offsets = [32, 0], sizes = [32, 128], strides = [1, 1]} : vector<64x128xf32> to vector<32x128xf32>
    %cst_88 = arith.constant dense<0.000000e+00> : vector<8x128xf32>
    %267 = tpu.matmul %262, %266, %cst_88 {dimension_numbers = #tpu.dot_dimension_numbers<[1], [0], [0], [1], [0, 0, 1, 1], [], []>} : vector<8x32xf32>, vector<32x128xf32>, vector<8x128xf32> -> vector<8x128xf32>
    %268 = arith.addf %265, %267 : vector<8x128xf32>
    %269 = vector.broadcast %10 : vector<1x128xf32> to vector<8x128xf32>
    %270 = arith.addf %268, %269 : vector<8x128xf32>
    %c3 = arith.constant 3 : index
    %c0_89 = arith.constant 0 : index
    %c0_90 = arith.constant 0 : index
    %271 = vector.load %arg10[%c3, %c0_89, %c0_90] : memref<5x8x128xf32, #tpu.memory_space<vmem>>, vector<1x8x128xf32>
    %272 = vector.shape_cast %271 : vector<1x8x128xf32> to vector<8x128xf32>
    %273 = vector.shape_cast %270 : vector<8x128xf32> to vector<1x8x128xf32>
    tpu.vector_store %arg10[%c3, %c0_89, %c0_90], %273 {strides = array<i32>} : memref<5x8x128xf32, #tpu.memory_space<vmem>>, vector<1x8x128xf32>,
    %c24_i32_91 = arith.constant 24 : i32
    %274 = vector.broadcast %c24_i32_91 : i32 to vector<8x128xi32>
    %275 = arith.cmpi slt, %12, %274 : vector<8x128xi32>
    %cst_92 = arith.constant 0xFF800000 : f32
    %276 = vector.broadcast %cst_92 : f32 to vector<8x128xf32>
    %277 = arith.select %275, %270, %276 : vector<8x128xi1>, vector<8x128xf32>
    %cst_93 = arith.constant dense<0xFF800000> : vector<8xf32>
    %278 = vector.multi_reduction <maximumf>, %277, %cst_93 [1] : vector<8x128xf32> to vector<8xf32>
    %279 = vector.shape_cast %278 : vector<8xf32> to vector<8x1xf32>
    %280 = vector.broadcast %279 : vector<8x1xf32> to vector<8x128xf32>
    %281 = arith.cmpf oge, %277, %280 : vector<8x128xf32>
    %c128_i32_94 = arith.constant 128 : i32
    %282 = vector.broadcast %c128_i32_94 : i32 to vector<8x128xi32>
    %283 = arith.select %281, %12, %282 : vector<8x128xi1>, vector<8x128xi32>
    %cst_95 = arith.constant dense<2147483647> : vector<8xi32>
    %284 = vector.multi_reduction <minsi>, %283, %cst_95 [1] : vector<8x128xi32> to vector<8xi32>
    %285 = vector.shape_cast %284 : vector<8xi32> to vector<8x1xi32>
    %c2_96 = arith.constant 2 : index
    %c0_97 = arith.constant 0 : index
    %c0_98 = arith.constant 0 : index
    %286 = vector.load %arg2[%c2_96, %c0_97, %c0_98] : memref<4x8x1xi32, #tpu.memory_space<vmem>>, vector<1x8x1xi32>
    %287 = vector.shape_cast %286 : vector<1x8x1xi32> to vector<8x1xi32>
    %c0_i32_99 = arith.constant 0 : i32
    %288 = vector.broadcast %c0_i32_99 : i32 to vector<8x1xi32>
    %289 = arith.cmpi sgt, %287, %288 : vector<8x1xi32>
    %c3_100 = arith.constant 3 : index
    %c0_101 = arith.constant 0 : index
    %c0_102 = arith.constant 0 : index
    %290 = vector.load %arg1[%c3_100, %c0_101, %c0_102] : memref<5x8x1xi32, #tpu.memory_space<vmem>>, vector<1x8x1xi32>
    %291 = vector.shape_cast %290 : vector<1x8x1xi32> to vector<8x1xi32>
    %292 = arith.select %289, %291, %285 : vector<8x1xi1>, vector<8x1xi32>
    %293 = vector.broadcast %292 : vector<8x1xi32> to vector<8x24xi32>
    %294 = arith.cmpi eq, %11, %293 : vector<8x24xi32>
    %295 = arith.extui %294 : vector<8x24xi1> to vector<8x24xi32>
    %296 = arith.sitofp %295 : vector<8x24xi32> to vector<8x24xf32>
    %cst_103 = arith.constant dense<0.000000e+00> : vector<8x16xf32>
    %297 = tpu.matmul %296, %4, %cst_103 {dimension_numbers = #tpu.dot_dimension_numbers<[1], [0], [0], [1], [0, 0, 1, 1], [], []>} : vector<8x24xf32>, vector<24x16xf32>, vector<8x16xf32> -> vector<8x16xf32>
    %cst_104 = arith.constant dense<0.000000e+00> : vector<8x256xf32>
    %298 = tpu.matmul %297, %5, %cst_104 {dimension_numbers = #tpu.dot_dimension_numbers<[1], [0], [0], [1], [0, 0, 1, 1], [], []>} : vector<8x16xf32>, vector<16x256xf32>, vector<8x256xf32> -> vector<8x256xf32>
    %299 = vector.broadcast %7 : vector<1x256xf32> to vector<8x256xf32>
    %300 = arith.addf %298, %299 : vector<8x256xf32>
    %cst_105 = arith.constant dense<0.000000e+00> : vector<8x256xf32>
    %301 = tpu.matmul %263, %6, %cst_105 {dimension_numbers = #tpu.dot_dimension_numbers<[1], [0], [0], [1], [0, 0, 1, 1], [], []>} : vector<8x64xf32>, vector<64x256xf32>, vector<8x256xf32> -> vector<8x256xf32>
    %302 = vector.broadcast %8 : vector<1x256xf32> to vector<8x256xf32>
    %303 = arith.addf %301, %302 : vector<8x256xf32>
    %304 = vector.extract_strided_slice %300 {offsets = [0, 0], sizes = [8, 128], strides = [1, 1]} : vector<8x256xf32> to vector<8x128xf32>
    %305 = vector.extract_strided_slice %303 {offsets = [0, 0], sizes = [8, 128], strides = [1, 1]} : vector<8x256xf32> to vector<8x128xf32>
    %306 = vector.extract_strided_slice %263 {offsets = [0, 0], sizes = [8, 32], strides = [1, 1]} : vector<8x64xf32> to vector<8x32xf32>
    %307 = vector.extract_strided_slice %304 {offsets = [0, 0], sizes = [8, 64], strides = [1, 1]} : vector<8x128xf32> to vector<8x64xf32>
    %308 = vector.extract_strided_slice %305 {offsets = [0, 0], sizes = [8, 64], strides = [1, 1]} : vector<8x128xf32> to vector<8x64xf32>
    %309 = arith.addf %307, %308 : vector<8x64xf32>
    %cst_106 = arith.constant 5.000000e-01 : f32
    %310 = vector.broadcast %cst_106 : f32 to vector<8x64xf32>
    %311 = arith.mulf %310, %309 : vector<8x64xf32>
    %312 = math.tanh %311 : vector<8x64xf32>
    %cst_107 = arith.constant 5.000000e-01 : f32
    %313 = vector.broadcast %cst_107 : f32 to vector<8x64xf32>
    %314 = arith.mulf %313, %312 : vector<8x64xf32>
    %cst_108 = arith.constant 5.000000e-01 : f32
    %315 = vector.broadcast %cst_108 : f32 to vector<8x64xf32>
    %316 = arith.addf %314, %315 : vector<8x64xf32>
    %317 = vector.extract_strided_slice %316 {offsets = [0, 0], sizes = [8, 32], strides = [1, 1]} : vector<8x64xf32> to vector<8x32xf32>
    %318 = vector.extract_strided_slice %316 {offsets = [0, 32], sizes = [8, 32], strides = [1, 1]} : vector<8x64xf32> to vector<8x32xf32>
    %319 = vector.extract_strided_slice %304 {offsets = [0, 64], sizes = [8, 32], strides = [1, 1]} : vector<8x128xf32> to vector<8x32xf32>
    %320 = vector.extract_strided_slice %305 {offsets = [0, 64], sizes = [8, 32], strides = [1, 1]} : vector<8x128xf32> to vector<8x32xf32>
    %321 = arith.mulf %317, %320 : vector<8x32xf32>
    %322 = arith.addf %319, %321 : vector<8x32xf32>
    %323 = math.tanh %322 : vector<8x32xf32>
    %cst_109 = arith.constant 1.000000e+00 : f32
    %324 = vector.broadcast %cst_109 : f32 to vector<8x32xf32>
    %325 = arith.subf %324, %318 : vector<8x32xf32>
    %326 = arith.mulf %325, %323 : vector<8x32xf32>
    %327 = arith.mulf %318, %306 : vector<8x32xf32>
    %328 = arith.addf %326, %327 : vector<8x32xf32>
    %329 = vector.extract_strided_slice %300 {offsets = [0, 128], sizes = [8, 128], strides = [1, 1]} : vector<8x256xf32> to vector<8x128xf32>
    %330 = vector.extract_strided_slice %303 {offsets = [0, 128], sizes = [8, 128], strides = [1, 1]} : vector<8x256xf32> to vector<8x128xf32>
    %331 = vector.extract_strided_slice %263 {offsets = [0, 32], sizes = [8, 32], strides = [1, 1]} : vector<8x64xf32> to vector<8x32xf32>
    %332 = vector.extract_strided_slice %329 {offsets = [0, 0], sizes = [8, 64], strides = [1, 1]} : vector<8x128xf32> to vector<8x64xf32>
    %333 = vector.extract_strided_slice %330 {offsets = [0, 0], sizes = [8, 64], strides = [1, 1]} : vector<8x128xf32> to vector<8x64xf32>
    %334 = arith.addf %332, %333 : vector<8x64xf32>
    %cst_110 = arith.constant 5.000000e-01 : f32
    %335 = vector.broadcast %cst_110 : f32 to vector<8x64xf32>
    %336 = arith.mulf %335, %334 : vector<8x64xf32>
    %337 = math.tanh %336 : vector<8x64xf32>
    %cst_111 = arith.constant 5.000000e-01 : f32
    %338 = vector.broadcast %cst_111 : f32 to vector<8x64xf32>
    %339 = arith.mulf %338, %337 : vector<8x64xf32>
    %cst_112 = arith.constant 5.000000e-01 : f32
    %340 = vector.broadcast %cst_112 : f32 to vector<8x64xf32>
    %341 = arith.addf %339, %340 : vector<8x64xf32>
    %342 = vector.extract_strided_slice %341 {offsets = [0, 0], sizes = [8, 32], strides = [1, 1]} : vector<8x64xf32> to vector<8x32xf32>
    %343 = vector.extract_strided_slice %341 {offsets = [0, 32], sizes = [8, 32], strides = [1, 1]} : vector<8x64xf32> to vector<8x32xf32>
    %344 = vector.extract_strided_slice %329 {offsets = [0, 64], sizes = [8, 32], strides = [1, 1]} : vector<8x128xf32> to vector<8x32xf32>
    %345 = vector.extract_strided_slice %330 {offsets = [0, 64], sizes = [8, 32], strides = [1, 1]} : vector<8x128xf32> to vector<8x32xf32>
    %346 = arith.mulf %342, %345 : vector<8x32xf32>
    %347 = arith.addf %344, %346 : vector<8x32xf32>
    %348 = math.tanh %347 : vector<8x32xf32>
    %cst_113 = arith.constant 1.000000e+00 : f32
    %349 = vector.broadcast %cst_113 : f32 to vector<8x32xf32>
    %350 = arith.subf %349, %343 : vector<8x32xf32>
    %351 = arith.mulf %350, %348 : vector<8x32xf32>
    %352 = arith.mulf %343, %331 : vector<8x32xf32>
    %353 = arith.addf %351, %352 : vector<8x32xf32>
    %354 = vector.extract_strided_slice %9 {offsets = [0, 0], sizes = [32, 128], strides = [1, 1]} : vector<64x128xf32> to vector<32x128xf32>
    %cst_114 = arith.constant dense<0.000000e+00> : vector<8x128xf32>
    %355 = tpu.matmul %328, %354, %cst_114 {dimension_numbers = #tpu.dot_dimension_numbers<[1], [0], [0], [1], [0, 0, 1, 1], [], []>} : vector<8x32xf32>, vector<32x128xf32>, vector<8x128xf32> -> vector<8x128xf32>
    %356 = vector.extract_strided_slice %9 {offsets = [32, 0], sizes = [32, 128], strides = [1, 1]} : vector<64x128xf32> to vector<32x128xf32>
    %cst_115 = arith.constant dense<0.000000e+00> : vector<8x128xf32>
    %357 = tpu.matmul %353, %356, %cst_115 {dimension_numbers = #tpu.dot_dimension_numbers<[1], [0], [0], [1], [0, 0, 1, 1], [], []>} : vector<8x32xf32>, vector<32x128xf32>, vector<8x128xf32> -> vector<8x128xf32>
    %358 = arith.addf %355, %357 : vector<8x128xf32>
    %359 = vector.broadcast %10 : vector<1x128xf32> to vector<8x128xf32>
    %360 = arith.addf %358, %359 : vector<8x128xf32>
    %c4 = arith.constant 4 : index
    %c0_116 = arith.constant 0 : index
    %c0_117 = arith.constant 0 : index
    %361 = vector.load %arg10[%c4, %c0_116, %c0_117] : memref<5x8x128xf32, #tpu.memory_space<vmem>>, vector<1x8x128xf32>
    %362 = vector.shape_cast %361 : vector<1x8x128xf32> to vector<8x128xf32>
    %363 = vector.shape_cast %360 : vector<8x128xf32> to vector<1x8x128xf32>
    tpu.vector_store %arg10[%c4, %c0_116, %c0_117], %363 {strides = array<i32>} : memref<5x8x128xf32, #tpu.memory_space<vmem>>, vector<1x8x128xf32>,
    return
  }
}

</mosaic_0001>

<llo_original>
// kernel: seq2seq_forward.3
$region0: #{seq2seq_forward.3}
  #allocation0 [shape = 'u32[]', space=smem, size = 0x4, offset = 0x4, fixed_abs, tag = 'smem constant byte address 0x4 - core index']
  #allocation1 [shape = 'u32[144,128]{1,0:T(1,128)}', space=vmem, size = 0x12000, scoped, tag = 'internal scratch']
  %s0 = inlined_call_operand.vmem [shape: f32[2,8,32], index: 0, kind: input, shape index: {}]
  %s1 = inlined_call_operand.vmem [shape: s32[5,8,1], index: 1, kind: input, shape index: {}]
  %s2 = inlined_call_operand.vmem [shape: s32[4,8,1], index: 2, kind: input, shape index: {}]
  %s3 = inlined_call_operand.vmem [shape: f32[24,16], index: 3, kind: input, shape index: {}]
  %s4 = inlined_call_operand.vmem [shape: f32[16,256], index: 4, kind: input, shape index: {}]
  %s5 = inlined_call_operand.vmem [shape: f32[64,256], index: 5, kind: input, shape index: {}]
  %s6 = inlined_call_operand.vmem [shape: f32[1,256], index: 6, kind: input, shape index: {}]
  %s7 = inlined_call_operand.vmem [shape: f32[1,256], index: 7, kind: input, shape index: {}]
  %s8 = inlined_call_operand.vmem [shape: f32[64,128], index: 8, kind: input, shape index: {}]
  %s9 = inlined_call_operand.vmem [shape: f32[1,128], index: 9, kind: input, shape index: {}]
  %s10 = inlined_call_operand.vmem [shape: f32[5,8,128], index: 10, kind: output, shape index: {}]
  %s11 = sld [smem:[#allocation0]]
  $region50: #{seq2seq_forward.3} parent=0
    _
  %s13 = ssub.s32 1, %s11
  %s14 = scalar_select 0, %s13, %s11
  // Predicated region
  $region2: #{seq2seq_forward.3} parent=0 // pred_check
    _
  $region3: #{seq2seq_forward.3} parent=0 // pred_check_branch
    %16 = sbr.rel (0) target = $region5
  $region4: #{seq2seq_forward.3} parent=0 // pred_region
    _
  $region5: #{seq2seq_forward.3} parent=0 // pred_fallthru
    _
  // Predicated region
  $region6: #{seq2seq_forward.3} parent=0 // pred_check
    _
  $region7: #{seq2seq_forward.3} parent=0 // pred_check_branch
    %18 = sbr.rel (0) target = $region9
  $region8: #{seq2seq_forward.3} parent=0 // pred_region
    _
  $region9: #{seq2seq_forward.3} parent=0 // pred_fallthru
    _
  // Predicated region
  $region10: #{seq2seq_forward.3} parent=0 // pred_check
    _
  $region11: #{seq2seq_forward.3} parent=0 // pred_check_branch
    %20 = sbr.rel (0) target = $region13
  $region12: #{seq2seq_forward.3} parent=0 // pred_region
    _
  $region13: #{seq2seq_forward.3} parent=0 // pred_fallthru
    _
  // Predicated region
  $region14: #{seq2seq_forward.3} parent=0 // pred_check
    _
  $region15: #{seq2seq_forward.3} parent=0 // pred_check_branch
    %22 = sbr.rel (0) target = $region17
  $region16: #{seq2seq_forward.3} parent=0 // pred_region
    _
  $region17: #{seq2seq_forward.3} parent=0 // pred_fallthru
    _
  // Predicated region
  $region18: #{seq2seq_forward.3} parent=0 // pred_check
    _
  $region19: #{seq2seq_forward.3} parent=0 // pred_check_branch
    %24 = sbr.rel (0) target = $region21
  $region20: #{seq2seq_forward.3} parent=0 // pred_region
    _
  $region21: #{seq2seq_forward.3} parent=0 // pred_fallthru
    _
  // Predicated region
  $region22: #{seq2seq_forward.3} parent=0 // pred_check
    _
  $region23: #{seq2seq_forward.3} parent=0 // pred_check_branch
    %26 = sbr.rel (0) target = $region25
  $region24: #{seq2seq_forward.3} parent=0 // pred_region
    _
  $region25: #{seq2seq_forward.3} parent=0 // pred_fallthru
    _
  // Predicated region
  $region26: #{seq2seq_forward.3} parent=0 // pred_check
    _
  $region27: #{seq2seq_forward.3} parent=0 // pred_check_branch
    %28 = sbr.rel (0) target = $region29
  $region28: #{seq2seq_forward.3} parent=0 // pred_region
    _
  $region29: #{seq2seq_forward.3} parent=0 // pred_fallthru
    _
  // Predicated region
  $region30: #{seq2seq_forward.3} parent=0 // pred_check
    _
  $region31: #{seq2seq_forward.3} parent=0 // pred_check_branch
    %30 = sbr.rel (0) target = $region33
  $region32: #{seq2seq_forward.3} parent=0 // pred_region
    _
  $region33: #{seq2seq_forward.3} parent=0 // pred_fallthru
    _
  // Predicated region
  $region34: #{seq2seq_forward.3} parent=0 // pred_check
    _
  $region35: #{seq2seq_forward.3} parent=0 // pred_check_branch
    %32 = sbr.rel (0) target = $region37
  $region36: #{seq2seq_forward.3} parent=0 // pred_region
    _
  $region37: #{seq2seq_forward.3} parent=0 // pred_fallthru
    _
  // Predicated region
  $region38: #{seq2seq_forward.3} parent=0 // pred_check
    _
  $region39: #{seq2seq_forward.3} parent=0 // pred_check_branch
    %34 = sbr.rel (0) target = $region41
  $region40: #{seq2seq_forward.3} parent=0 // pred_region
    _
  $region41: #{seq2seq_forward.3} parent=0 // pred_fallthru
    _
  %35 = vst [vmem:[%s10] sm:$0xff] 0.0
  %v36 = vld [vmem:[%s3] sm:$0xff]
  %v37 = vld [vmem:[%s3 + $0x8] sm:$0xff]
  %v38 = vld [vmem:[%s3 + $0x10] sm:$0xff]
  %v39 = vld [vmem:[%s4] sm:$0xff]
  %v40 = vld [vmem:[%s4 + $0x8] sm:$0xff]
  %v41 = vld [vmem:[%s4 + $0x10] sm:$0xff]
  %v42 = vld [vmem:[%s4 + $0x18] sm:$0xff]
  %v43 = vld [vmem:[%s5] sm:$0xff]
  %v44 = vld [vmem:[%s5 + $0x8] sm:$0xff]
  %v45 = vld [vmem:[%s5 + $0x10] sm:$0xff]
  %v46 = vld [vmem:[%s5 + $0x18] sm:$0xff]
  %v47 = vld [vmem:[%s5 + $0x20] sm:$0xff]
  %v48 = vld [vmem:[%s5 + $0x28] sm:$0xff]
  %v49 = vld [vmem:[%s5 + $0x30] sm:$0xff]
  %v50 = vld [vmem:[%s5 + $0x38] sm:$0xff]
  %v51 = vld [vmem:[%s5 + $0x40] sm:$0xff]
  %v52 = vld [vmem:[%s5 + $0x48] sm:$0xff]
  %v53 = vld [vmem:[%s5 + $0x50] sm:$0xff]
  %v54 = vld [vmem:[%s5 + $0x58] sm:$0xff]
  %v55 = vld [vmem:[%s5 + $0x60] sm:$0xff]
  %v56 = vld [vmem:[%s5 + $0x68] sm:$0xff]
  %v57 = vld [vmem:[%s5 + $0x70] sm:$0xff]
  %v58 = vld [vmem:[%s5 + $0x78] sm:$0xff]
  %v59 = vld [vmem:[%s6] sm:$0x3]
  %v60 = vld [vmem:[%s7] sm:$0x3]
  %v61 = vld [vmem:[%s8] sm:$0xff]
  %v62 = vld [vmem:[%s8 + $0x8] sm:$0xff]
  %v63 = vld [vmem:[%s8 + $0x10] sm:$0xff]
  %v64 = vld [vmem:[%s8 + $0x18] sm:$0xff]
  %v65 = vld [vmem:[%s8 + $0x20] sm:$0xff]
  %v66 = vld [vmem:[%s8 + $0x28] sm:$0xff]
  %v67 = vld [vmem:[%s8 + $0x30] sm:$0xff]
  %v68 = vld [vmem:[%s8 + $0x38] sm:$0xff]
  %v69 = vld [vmem:[%s9] sm:$0x1]
  %v70 = vlaneseq
  %v71 = vand.u32 %v70, 127
  %v72 = vld [vmem:[%s0] sm:$0xff]
  %s73 = scalar_lea.vmem %s0, 8
  %v74 = vld [vmem:[%s73] sm:$0xff]
  %76 = vrot.lane.b32.xlu0 %v74, 32
  %v77 = vpop.permute.xlu0 %76
  %vm79 = vcmask 261120
  %v80 = vsel %vm79, %v72, %v77
  %v81 = vld [vmem:[%s1] sm:$0xff]
  %82 = vset.pattern.permute.xlu0 0
  %83 = vperm.xlu0 %82, %v81
  %v84 = vpop.permute.xlu0 %83
  %vm85 = vcmp.eq.s32.totalorder %v71, %v84
  %v86 = vsel %vm85, 1, 0
  %v87 = vcvt.s32.f32 %v86
  %vm88 = vcmask 195584
  %v90 = vsel %vm88, %v87, 0
  %92 = vmatprep.subr.mxu0 0.0
  %93 = vmatpush1.msra.mxu0 %v36
  %94 = vmatprep.subr.mxu0 0.0
  %95 = vmatpush1.msra.mxu0 %v37
  %96 = vmatprep.subr.mxu0 0.0
  %97 = vmatpush1.msra.mxu0 %v38
  %98 = vmatprep.subr.mxu0 0.0
  %99 = vmatpush1.msra.mxu0 0.0
  %100 = vmatprep.subr.mxu0 0.0
  %101 = vmatpush1.msra.mxu0 0.0
  %102 = vmatprep.subr.mxu0 0.0
  %103 = vmatpush1.msra.mxu0 0.0
  %104 = vmatprep.subr.mxu0 0.0
  %105 = vmatpush1.msra.mxu0 0.0
  %106 = vmatprep.subr.mxu0 0.0
  %107 = vmatpush1.msra.mxu0 0.0
  %108 = vmatprep.subr.mxu0 0.0
  %109 = vmatpush1.msra.mxu0 0.0
  %110 = vmatprep.subr.mxu0 0.0
  %111 = vmatpush1.msra.mxu0 0.0
  %112 = vmatprep.subr.mxu0 0.0
  %113 = vmatpush1.msra.mxu0 0.0
  %114 = vmatprep.subr.mxu0 0.0
  %115 = vmatpush1.msra.mxu0 0.0
  %116 = vmatprep.subr.mxu0 0.0
  %117 = vmatpush1.msra.mxu0 0.0
  %118 = vmatprep.subr.mxu0 0.0
  %119 = vmatpush1.msra.mxu0 0.0
  %120 = vmatprep.subr.mxu0 0.0
  %121 = vmatpush1.msra.mxu0 0.0
  %122 = vmatprep.subr.mxu0 0.0
  %123 = vmatpush1.msra.mxu0 0.0
  %124 = vmatprep.subr.mxu0 0.0
  %125 = vmatpush1.msra.mxu0 0.0
  %126 = vmatprep.subr.mxu0 0.0
  %127 = vmatpush1.msra.mxu0 0.0
  %128 = vmatprep.subr.mxu0 0.0
  %129 = vmatpush1.msra.mxu0 0.0
  %130 = vmatprep.subr.mxu0 0.0
  %131 = vmatpush1.msra.mxu0 0.0
  %132 = vmatprep.subr.mxu0 0.0
  %133 = vmatpush1.msra.mxu0 0.0
  %134 = vmatprep.subr.mxu0 0.0
  %135 = vmatpush1.msra.mxu0 0.0
  %136 = vmatprep.subr.mxu0 0.0
  %137 = vmatpush1.msra.mxu0 0.0
  %138 = vmatprep.subr.mxu0 0.0
  %139 = vmatpush1.msra.mxu0 0.0
  %140 = vmatprep.subr.mxu0 0.0
  %141 = vmatpush1.msra.mxu0 0.0
  %142 = vmatprep.subr.mxu0 0.0
  %143 = vmatpush1.msra.mxu0 0.0
  %144 = vmatprep.subr.mxu0 0.0
  %145 = vmatpush1.msra.mxu0 0.0
  %146 = vmatprep.subr.mxu0 0.0
  %147 = vmatpush1.msra.mxu0 0.0
  %148 = vmatprep.subr.mxu0 0.0
  %149 = vmatpush1.msra.mxu0 0.0
  %150 = vmatprep.subr.mxu0 0.0
  %151 = vmatpush1.msra.mxu0 0.0
  %152 = vmatprep.subr.mxu0 0.0
  %153 = vmatpush1.msra.mxu0 0.0
  %154 = vmatprep.subr.mxu0 0.0
  %155 = vmatpush1.msra.mxu0 0.0
  %156 = vmatprep.mubr.f32.mxu0 0.0
  %157 = vmatmul.mubr.f32.gmra.mrb[0].mxu0 %v90
  %v158 = vpop.f32.mrb[0].mxu0
  %v159 = vadd.f32 0.0, %v158
  %v160 = vpop.f32.mrb[0].mxu0
  %161 = vdwg.mxu0
  %v163 = vlaneseq
  %v164 = vshrl.u32 %v163, 7
  %v165 = vsub.s32 0, %v164
  %v166 = vrot.slane %v59, %v165
  %v167 = vlaneseq
  %v168 = vshrl.u32 %v167, 7
  %v169 = vsub.s32 1, %v168
  %v170 = vrot.slane %v59, %v169
  %vm173 = vcmask 130048
  %v175 = vsel %vm173, %v159, 0
  %177 = vmatprep.subr.mxu0 %v40
  %178 = vmatpush1.msra.mxu0 %v39
  %179 = vmatprep.subr.mxu0 %v42
  %180 = vmatpush1.msra.mxu0 %v41
  %181 = vmatprep.subr.mxu0 0.0
  %182 = vmatpush1.msra.mxu0 0.0
  %183 = vmatprep.subr.mxu0 0.0
  %184 = vmatpush1.msra.mxu0 0.0
  %185 = vmatprep.subr.mxu0 0.0
  %186 = vmatpush1.msra.mxu0 0.0
  %187 = vmatprep.subr.mxu0 0.0
  %188 = vmatpush1.msra.mxu0 0.0
  %189 = vmatprep.subr.mxu0 0.0
  %190 = vmatpush1.msra.mxu0 0.0
  %191 = vmatprep.subr.mxu0 0.0
  %192 = vmatpush1.msra.mxu0 0.0
  %193 = vmatprep.subr.mxu0 0.0
  %194 = vmatpush1.msra.mxu0 0.0
  %195 = vmatprep.subr.mxu0 0.0
  %196 = vmatpush1.msra.mxu0 0.0
  %197 = vmatprep.subr.mxu0 0.0
  %198 = vmatpush1.msra.mxu0 0.0
  %199 = vmatprep.subr.mxu0 0.0
  %200 = vmatpush1.msra.mxu0 0.0
  %201 = vmatprep.subr.mxu0 0.0
  %202 = vmatpush1.msra.mxu0 0.0
  %203 = vmatprep.subr.mxu0 0.0
  %204 = vmatpush1.msra.mxu0 0.0
  %205 = vmatprep.subr.mxu0 0.0
  %206 = vmatpush1.msra.mxu0 0.0
  %207 = vmatprep.subr.mxu0 0.0
  %208 = vmatpush1.msra.mxu0 0.0
  %209 = vmatprep.subr.mxu0 0.0
  %210 = vmatpush1.msra.mxu0 0.0
  %211 = vmatprep.subr.mxu0 0.0
  %212 = vmatpush1.msra.mxu0 0.0
  %213 = vmatprep.subr.mxu0 0.0
  %214 = vmatpush1.msra.mxu0 0.0
  %215 = vmatprep.subr.mxu0 0.0
  %216 = vmatpush1.msra.mxu0 0.0
  %217 = vmatprep.subr.mxu0 0.0
  %218 = vmatpush1.msra.mxu0 0.0
  %219 = vmatprep.subr.mxu0 0.0
  %220 = vmatpush1.msra.mxu0 0.0
  %221 = vmatprep.subr.mxu0 0.0
  %222 = vmatpush1.msra.mxu0 0.0
  %223 = vmatprep.subr.mxu0 0.0
  %224 = vmatpush1.msra.mxu0 0.0
  %225 = vmatprep.subr.mxu0 0.0
  %226 = vmatpush1.msra.mxu0 0.0
  %227 = vmatprep.subr.mxu0 0.0
  %228 = vmatpush1.msra.mxu0 0.0
  %229 = vmatprep.subr.mxu0 0.0
  %230 = vmatpush1.msra.mxu0 0.0
  %231 = vmatprep.subr.mxu0 0.0
  %232 = vmatpush1.msra.mxu0 0.0
  %233 = vmatprep.subr.mxu0 0.0
  %234 = vmatpush1.msra.mxu0 0.0
  %235 = vmatprep.subr.mxu0 0.0
  %236 = vmatpush1.msra.mxu0 0.0
  %237 = vmatprep.subr.mxu0 0.0
  %238 = vmatpush1.msra.mxu0 0.0
  %239 = vmatprep.subr.mxu0 0.0
  %240 = vmatpush1.msra.mxu0 0.0
  %241 = vmatprep.mubr.f32.mxu0 0.0
  %242 = vmatmul.mubr.f32.gmra.mrb[0].mxu0 %v175
  %v243 = vpop.f32.mrb[0].mxu0
  %v244 = vadd.f32 %v166, %v243
  %v245 = vpop.f32.mrb[0].mxu0
  %v246 = vadd.f32 %v170, %v245
  %247 = vdwg.mxu0
  %v249 = vlaneseq
  %v250 = vshrl.u32 %v249, 7
  %v251 = vsub.s32 0, %v250
  %v252 = vrot.slane %v60, %v251
  %v253 = vlaneseq
  %v254 = vshrl.u32 %v253, 7
  %v255 = vsub.s32 1, %v254
  %v256 = vrot.slane %v60, %v255
  %vm259 = vcmask 523264
  %v261 = vsel %vm259, %v80, 0
  %263 = vmatprep.subr.mxu0 %v44
  %264 = vmatpush1.msra.mxu0 %v43
  %265 = vmatprep.subr.mxu0 %v46
  %266 = vmatpush1.msra.mxu0 %v45
  %267 = vmatprep.subr.mxu0 %v48
  %268 = vmatpush1.msra.mxu0 %v47
  %269 = vmatprep.subr.mxu0 %v50
  %270 = vmatpush1.msra.mxu0 %v49
  %271 = vmatprep.subr.mxu0 %v52
  %272 = vmatpush1.msra.mxu0 %v51
  %273 = vmatprep.subr.mxu0 %v54
  %274 = vmatpush1.msra.mxu0 %v53
  %275 = vmatprep.subr.mxu0 %v56
  %276 = vmatpush1.msra.mxu0 %v55
  %277 = vmatprep.subr.mxu0 %v58
  %278 = vmatpush1.msra.mxu0 %v57
  %279 = vmatprep.subr.mxu0 0.0
  %280 = vmatpush1.msra.mxu0 0.0
  %281 = vmatprep.subr.mxu0 0.0
  %282 = vmatpush1.msra.mxu0 0.0
  %283 = vmatprep.subr.mxu0 0.0
  %284 = vmatpush1.msra.mxu0 0.0
  %285 = vmatprep.subr.mxu0 0.0
  %286 = vmatpush1.msra.mxu0 0.0
  %287 = vmatprep.subr.mxu0 0.0
  %288 = vmatpush1.msra.mxu0 0.0
  %289 = vmatprep.subr.mxu0 0.0
  %290 = vmatpush1.msra.mxu0 0.0
  %291 = vmatprep.subr.mxu0 0.0
  %292 = vmatpush1.msra.mxu0 0.0
  %293 = vmatprep.subr.mxu0 0.0
  %294 = vmatpush1.msra.mxu0 0.0
  %295 = vmatprep.subr.mxu0 0.0
  %296 = vmatpush1.msra.mxu0 0.0
  %297 = vmatprep.subr.mxu0 0.0
  %298 = vmatpush1.msra.mxu0 0.0
  %299 = vmatprep.subr.mxu0 0.0
  %300 = vmatpush1.msra.mxu0 0.0
  %301 = vmatprep.subr.mxu0 0.0
  %302 = vmatpush1.msra.mxu0 0.0
  %303 = vmatprep.subr.mxu0 0.0
  %304 = vmatpush1.msra.mxu0 0.0
  %305 = vmatprep.subr.mxu0 0.0
  %306 = vmatpush1.msra.mxu0 0.0
  %307 = vmatprep.subr.mxu0 0.0
  %308 = vmatpush1.msra.mxu0 0.0
  %309 = vmatprep.subr.mxu0 0.0
  %310 = vmatpush1.msra.mxu0 0.0
  %311 = vmatprep.subr.mxu0 0.0
  %312 = vmatpush1.msra.mxu0 0.0
  %313 = vmatprep.subr.mxu0 0.0
  %314 = vmatpush1.msra.mxu0 0.0
  %315 = vmatprep.subr.mxu0 0.0
  %316 = vmatpush1.msra.mxu0 0.0
  %317 = vmatprep.subr.mxu0 0.0
  %318 = vmatpush1.msra.mxu0 0.0
  %319 = vmatprep.subr.mxu0 0.0
  %320 = vmatpush1.msra.mxu0 0.0
  %321 = vmatprep.subr.mxu0 0.0
  %322 = vmatpush1.msra.mxu0 0.0
  %323 = vmatprep.subr.mxu0 0.0
  %324 = vmatpush1.msra.mxu0 0.0
  %325 = vmatprep.subr.mxu0 0.0
  %326 = vmatpush1.msra.mxu0 0.0
  %327 = vmatprep.mubr.f32.mxu0 0.0
  %328 = vmatmul.mubr.f32.gmra.mrb[0].mxu0 %v261
  %v329 = vpop.f32.mrb[0].mxu0
  %v330 = vadd.f32 %v252, %v329
  %v331 = vpop.f32.mrb[0].mxu0
  %v332 = vadd.f32 %v256, %v331
  %333 = vdwg.mxu0
  %v334 = vadd.f32 %v244, %v330
  %v335 = vmul.f32 %v334, 0.5
  %v336 = vtanh.pop %v335
  %v337 = vmul.f32 %v336, 0.5
  %v338 = vadd.f32 %v337, 0.5
  %340 = vrot.lane.b32.xlu0 %v330, 64
  %v341 = vpop.permute.xlu0 %340
  %v343 = vmul.f32 %v338, %v341
  %345 = vrot.lane.b32.xlu0 %v343, 64
  %v346 = vpop.permute.xlu0 %345
  %v348 = vadd.f32 %v244, %v346
  %v349 = vtanh.pop %v348
  %v350 = vsub.f32 1.0, %v338
  %352 = vrot.lane.b32.xlu0 %v349, 96
  %v353 = vpop.permute.xlu0 %352
  %v355 = vmul.f32 %v350, %v353
  %356 = vrot.lane.b32.xlu0 %v80, 32
  %v357 = vpop.permute.xlu0 %356
  %v359 = vmul.f32 %v338, %v357
  %v360 = vadd.f32 %v355, %v359
  %v361 = vadd.f32 %v246, %v332
  %v362 = vmul.f32 %v361, 0.5
  %v363 = vtanh.pop %v362
  %v364 = vmul.f32 %v363, 0.5
  %v365 = vadd.f32 %v364, 0.5
  %367 = vrot.lane.b32.xlu0 %v332, 64
  %v368 = vpop.permute.xlu0 %367
  %v370 = vmul.f32 %v365, %v368
  %372 = vrot.lane.b32.xlu0 %v370, 64
  %v373 = vpop.permute.xlu0 %372
  %v375 = vadd.f32 %v246, %v373
  %v376 = vtanh.pop %v375
  %v377 = vsub.f32 1.0, %v365
  %379 = vrot.lane.b32.xlu0 %v376, 96
  %v380 = vpop.permute.xlu0 %379
  %v382 = vmul.f32 %v377, %v380
  %v383 = vmul.f32 %v365, %v80
  %v384 = vadd.f32 %v382, %v383
  %386 = vrot.lane.b32.xlu0 %v360, 96
  %v387 = vpop.permute.xlu0 %386
  %v389 = vsel %vm79, %v387, %v384
  %391 = vrot.lane.b32.xlu0 %v384, 96
  %v392 = vpop.permute.xlu0 %391
  %v393 = vsel %vm79, %v392, 0
  %395 = vmatprep.subr.mxu0 0.0
  %396 = vmatpush1.msra.mxu0 %v65
  %397 = vmatprep.subr.mxu0 0.0
  %398 = vmatpush1.msra.mxu0 %v66
  %399 = vmatprep.subr.mxu0 0.0
  %400 = vmatpush1.msra.mxu0 %v67
  %401 = vmatprep.subr.mxu0 0.0
  %402 = vmatpush1.msra.mxu0 %v68
  %403 = vmatprep.subr.mxu0 0.0
  %404 = vmatpush1.msra.mxu0 0.0
  %405 = vmatprep.subr.mxu0 0.0
  %406 = vmatpush1.msra.mxu0 0.0
  %407 = vmatprep.subr.mxu0 0.0
  %408 = vmatpush1.msra.mxu0 0.0
  %409 = vmatprep.subr.mxu0 0.0
  %410 = vmatpush1.msra.mxu0 0.0
  %411 = vmatprep.subr.mxu0 0.0
  %412 = vmatpush1.msra.mxu0 0.0
  %413 = vmatprep.subr.mxu0 0.0
  %414 = vmatpush1.msra.mxu0 0.0
  %415 = vmatprep.subr.mxu0 0.0
  %416 = vmatpush1.msra.mxu0 0.0
  %417 = vmatprep.subr.mxu0 0.0
  %418 = vmatpush1.msra.mxu0 0.0
  %419 = vmatprep.subr.mxu0 0.0
  %420 = vmatpush1.msra.mxu0 0.0
  %421 = vmatprep.subr.mxu0 0.0
  %422 = vmatpush1.msra.mxu0 0.0
  %423 = vmatprep.subr.mxu0 0.0
  %424 = vmatpush1.msra.mxu0 0.0
  %425 = vmatprep.subr.mxu0 0.0
  %426 = vmatpush1.msra.mxu0 0.0
  %427 = vmatprep.subr.mxu0 0.0
  %428 = vmatpush1.msra.mxu0 0.0
  %429 = vmatprep.subr.mxu0 0.0
  %430 = vmatpush1.msra.mxu0 0.0
  %431 = vmatprep.subr.mxu0 0.0
  %432 = vmatpush1.msra.mxu0 0.0
  %433 = vmatprep.subr.mxu0 0.0
  %434 = vmatpush1.msra.mxu0 0.0
  %435 = vmatprep.subr.mxu0 0.0
  %436 = vmatpush1.msra.mxu0 0.0
  %437 = vmatprep.subr.mxu0 0.0
  %438 = vmatpush1.msra.mxu0 0.0
  %439 = vmatprep.subr.mxu0 0.0
  %440 = vmatpush1.msra.mxu0 0.0
  %441 = vmatprep.subr.mxu0 0.0
  %442 = vmatpush1.msra.mxu0 0.0
  %443 = vmatprep.subr.mxu0 0.0
  %444 = vmatpush1.msra.mxu0 0.0
  %445 = vmatprep.subr.mxu0 0.0
  %446 = vmatpush1.msra.mxu0 0.0
  %447 = vmatprep.subr.mxu0 0.0
  %448 = vmatpush1.msra.mxu0 0.0
  %449 = vmatprep.subr.mxu0 0.0
  %450 = vmatpush1.msra.mxu0 0.0
  %451 = vmatprep.subr.mxu0 0.0
  %452 = vmatpush1.msra.mxu0 0.0
  %453 = vmatprep.subr.mxu0 0.0
  %454 = vmatpush1.msra.mxu0 0.0
  %455 = vmatprep.subr.mxu0 0.0
  %456 = vmatpush1.msra.mxu0 0.0
  %457 = vmatprep.subr.mxu0 0.0
  %458 = vmatpush1.msra.mxu0 0.0
  %459 = vmatprep.mubr.f32.mxu0 0.0
  %460 = vmatmul.mubr.f32.gmra.mrb[0].mxu0 %v393
  %v461 = vpop.f32.mrb[0].mxu0
  %v462 = vadd.f32 0.0, %v461
  %v463 = vpop.f32.mrb[0].mxu0
  %464 = vdwg.mxu0
  %v465 = vsel %vm79, %v387, 0
  %467 = vmatprep.subr.mxu0 0.0
  %468 = vmatpush1.msra.mxu0 %v61
  %469 = vmatprep.subr.mxu0 0.0
  %470 = vmatpush1.msra.mxu0 %v62
  %471 = vmatprep.subr.mxu0 0.0
  %472 = vmatpush1.msra.mxu0 %v63
  %473 = vmatprep.subr.mxu0 0.0
  %474 = vmatpush1.msra.mxu0 %v64
  %475 = vmatprep.subr.mxu0 0.0
  %476 = vmatpush1.msra.mxu0 0.0
  %477 = vmatprep.subr.mxu0 0.0
  %478 = vmatpush1.msra.mxu0 0.0
  %479 = vmatprep.subr.mxu0 0.0
  %480 = vmatpush1.msra.mxu0 0.0
  %481 = vmatprep.subr.mxu0 0.0
  %482 = vmatpush1.msra.mxu0 0.0
  %483 = vmatprep.subr.mxu0 0.0
  %484 = vmatpush1.msra.mxu0 0.0
  %485 = vmatprep.subr.mxu0 0.0
  %486 = vmatpush1.msra.mxu0 0.0
  %487 = vmatprep.subr.mxu0 0.0
  %488 = vmatpush1.msra.mxu0 0.0
  %489 = vmatprep.subr.mxu0 0.0
  %490 = vmatpush1.msra.mxu0 0.0
  %491 = vmatprep.subr.mxu0 0.0
  %492 = vmatpush1.msra.mxu0 0.0
  %493 = vmatprep.subr.mxu0 0.0
  %494 = vmatpush1.msra.mxu0 0.0
  %495 = vmatprep.subr.mxu0 0.0
  %496 = vmatpush1.msra.mxu0 0.0
  %497 = vmatprep.subr.mxu0 0.0
  %498 = vmatpush1.msra.mxu0 0.0
  %499 = vmatprep.subr.mxu0 0.0
  %500 = vmatpush1.msra.mxu0 0.0
  %501 = vmatprep.subr.mxu0 0.0
  %502 = vmatpush1.msra.mxu0 0.0
  %503 = vmatprep.subr.mxu0 0.0
  %504 = vmatpush1.msra.mxu0 0.0
  %505 = vmatprep.subr.mxu0 0.0
  %506 = vmatpush1.msra.mxu0 0.0
  %507 = vmatprep.subr.mxu0 0.0
  %508 = vmatpush1.msra.mxu0 0.0
  %509 = vmatprep.subr.mxu0 0.0
  %510 = vmatpush1.msra.mxu0 0.0
  %511 = vmatprep.subr.mxu0 0.0
  %512 = vmatpush1.msra.mxu0 0.0
  %513 = vmatprep.subr.mxu0 0.0
  %514 = vmatpush1.msra.mxu0 0.0
  %515 = vmatprep.subr.mxu0 0.0
  %516 = vmatpush1.msra.mxu0 0.0
  %517 = vmatprep.subr.mxu0 0.0
  %518 = vmatpush1.msra.mxu0 0.0
  %519 = vmatprep.subr.mxu0 0.0
  %520 = vmatpush1.msra.mxu0 0.0
  %521 = vmatprep.subr.mxu0 0.0
  %522 = vmatpush1.msra.mxu0 0.0
  %523 = vmatprep.subr.mxu0 0.0
  %524 = vmatpush1.msra.mxu0 0.0
  %525 = vmatprep.subr.mxu0 0.0
  %526 = vmatpush1.msra.mxu0 0.0
  %527 = vmatprep.subr.mxu0 0.0
  %528 = vmatpush1.msra.mxu0 0.0
  %529 = vmatprep.subr.mxu0 0.0
  %530 = vmatpush1.msra.mxu0 0.0
  %531 = vmatprep.mubr.f32.mxu0 0.0
  %532 = vmatmul.mubr.f32.gmra.mrb[0].mxu0 %v465
  %v533 = vpop.f32.mrb[0].mxu0
  %v534 = vadd.f32 %v462, %v533
  %v535 = vpop.f32.mrb[0].mxu0
  %536 = vdwg.mxu0
  %v538 = vlaneseq
  %v539 = vshrl.u32 %v538, 7
  %v540 = vsub.s32 0, %v539
  %v541 = vrot.slane %v69, %v540
  %v543 = vadd.f32 %v534, %v541
  %s544 = scalar_lea.vmem %s10, 8
  %545 = vst [vmem:[%s544] sm:$0xff] %v543
  %vm546 = vcmp.lt.s32.totalorder %v71, 24
  %v547 = vsel %vm546, %v543, -inf
  %548 = vmax.xlane.f32.xlu0 %v547
  %v549 = vpop.xlane.xlu0 %548
  %vm550 = vcmp.ge.f32.partialorder %v547, %v549
  %v551 = vsel %vm550, %v71, 128
  %v552 = vand.u32 %v551, 65535
  %v553 = vshra.s32 %v551, 16
  %v554 = vcvt.s32.f32 %v552
  %v555 = vcvt.s32.f32 %v553
  %556 = vmin.xlane.f32.xlu0 %v555
  %v557 = vpop.xlane.xlu0 %556
  %vm558 = vcmp.eq.f32.partialorder %v555, %v557
  %v559 = vsel %vm558, %v554, inf
  %560 = vmin.xlane.f32.xlu0 %v559
  %v561 = vpop.xlane.xlu0 %560
  %v562 = vcvt.f32.s32 %v561
  %v563 = vcvt.f32.s32 %v557
  %v564 = vshll.u32 %v563, 16
  %v565 = vadd.s32 %v564, %v562
  %v566 = vld [vmem:[%s2] sm:$0xff]
  %vm567 = vcmp.gt.s32.totalorder %v566, 0
  %s568 = scalar_lea.vmem %s1, 8
  %v569 = vld [vmem:[%s568] sm:$0xff]
  %v570 = vsel %vm567, %v569, %v565
  %571 = vset.pattern.permute.xlu0 0
  %572 = vperm.xlu0 %571, %v570
  %v573 = vpop.permute.xlu0 %572
  %vm574 = vcmp.eq.s32.totalorder %v71, %v573
  %v575 = vsel %vm574, 1, 0
  %v576 = vcvt.s32.f32 %v575
  %v578 = vsel %vm88, %v576, 0
  %580 = vmatprep.subr.mxu0 0.0
  %581 = vmatpush1.msra.mxu0 %v36
  %582 = vmatprep.subr.mxu0 0.0
  %583 = vmatpush1.msra.mxu0 %v37
  %584 = vmatprep.subr.mxu0 0.0
  %585 = vmatpush1.msra.mxu0 %v38
  %586 = vmatprep.subr.mxu0 0.0
  %587 = vmatpush1.msra.mxu0 0.0
  %588 = vmatprep.subr.mxu0 0.0
  %589 = vmatpush1.msra.mxu0 0.0
  %590 = vmatprep.subr.mxu0 0.0
  %591 = vmatpush1.msra.mxu0 0.0
  %592 = vmatprep.subr.mxu0 0.0
  %593 = vmatpush1.msra.mxu0 0.0
  %594 = vmatprep.subr.mxu0 0.0
  %595 = vmatpush1.msra.mxu0 0.0
  %596 = vmatprep.subr.mxu0 0.0
  %597 = vmatpush1.msra.mxu0 0.0
  %598 = vmatprep.subr.mxu0 0.0
  %599 = vmatpush1.msra.mxu0 0.0
  %600 = vmatprep.subr.mxu0 0.0
  %601 = vmatpush1.msra.mxu0 0.0
  %602 = vmatprep.subr.mxu0 0.0
  %603 = vmatpush1.msra.mxu0 0.0
  %604 = vmatprep.subr.mxu0 0.0
  %605 = vmatpush1.msra.mxu0 0.0
  %606 = vmatprep.subr.mxu0 0.0
  %607 = vmatpush1.msra.mxu0 0.0
  %608 = vmatprep.subr.mxu0 0.0
  %609 = vmatpush1.msra.mxu0 0.0
  %610 = vmatprep.subr.mxu0 0.0
  %611 = vmatpush1.msra.mxu0 0.0
  %612 = vmatprep.subr.mxu0 0.0
  %613 = vmatpush1.msra.mxu0 0.0
  %614 = vmatprep.subr.mxu0 0.0
  %615 = vmatpush1.msra.mxu0 0.0
  %616 = vmatprep.subr.mxu0 0.0
  %617 = vmatpush1.msra.mxu0 0.0
  %618 = vmatprep.subr.mxu0 0.0
  %619 = vmatpush1.msra.mxu0 0.0
  %620 = vmatprep.subr.mxu0 0.0
  %621 = vmatpush1.msra.mxu0 0.0
  %622 = vmatprep.subr.mxu0 0.0
  %623 = vmatpush1.msra.mxu0 0.0
  %624 = vmatprep.subr.mxu0 0.0
  %625 = vmatpush1.msra.mxu0 0.0
  %626 = vmatprep.subr.mxu0 0.0
  %627 = vmatpush1.msra.mxu0 0.0
  %628 = vmatprep.subr.mxu0 0.0
  %629 = vmatpush1.msra.mxu0 0.0
  %630 = vmatprep.subr.mxu0 0.0
  %631 = vmatpush1.msra.mxu0 0.0
  %632 = vmatprep.subr.mxu0 0.0
  %633 = vmatpush1.msra.mxu0 0.0
  %634 = vmatprep.subr.mxu0 0.0
  %635 = vmatpush1.msra.mxu0 0.0
  %636 = vmatprep.subr.mxu0 0.0
  %637 = vmatpush1.msra.mxu0 0.0
  %638 = vmatprep.subr.mxu0 0.0
  %639 = vmatpush1.msra.mxu0 0.0
  %640 = vmatprep.subr.mxu0 0.0
  %641 = vmatpush1.msra.mxu0 0.0
  %642 = vmatprep.subr.mxu0 0.0
  %643 = vmatpush1.msra.mxu0 0.0
  %644 = vmatprep.mubr.f32.mxu0 0.0
  %645 = vmatmul.mubr.f32.gmra.mrb[0].mxu0 %v578
  %v646 = vpop.f32.mrb[0].mxu0
  %v647 = vadd.f32 0.0, %v646
  %v648 = vpop.f32.mrb[0].mxu0
  %649 = vdwg.mxu0
  %v651 = vsel %vm173, %v647, 0
  %653 = vmatprep.subr.mxu0 %v40
  %654 = vmatpush1.msra.mxu0 %v39
  %655 = vmatprep.subr.mxu0 %v42
  %656 = vmatpush1.msra.mxu0 %v41
  %657 = vmatprep.subr.mxu0 0.0
  %658 = vmatpush1.msra.mxu0 0.0
  %659 = vmatprep.subr.mxu0 0.0
  %660 = vmatpush1.msra.mxu0 0.0
  %661 = vmatprep.subr.mxu0 0.0
  %662 = vmatpush1.msra.mxu0 0.0
  %663 = vmatprep.subr.mxu0 0.0
  %664 = vmatpush1.msra.mxu0 0.0
  %665 = vmatprep.subr.mxu0 0.0
  %666 = vmatpush1.msra.mxu0 0.0
  %667 = vmatprep.subr.mxu0 0.0
  %668 = vmatpush1.msra.mxu0 0.0
  %669 = vmatprep.subr.mxu0 0.0
  %670 = vmatpush1.msra.mxu0 0.0
  %671 = vmatprep.subr.mxu0 0.0
  %672 = vmatpush1.msra.mxu0 0.0
  %673 = vmatprep.subr.mxu0 0.0
  %674 = vmatpush1.msra.mxu0 0.0
  %675 = vmatprep.subr.mxu0 0.0
  %676 = vmatpush1.msra.mxu0 0.0
  %677 = vmatprep.subr.mxu0 0.0
  %678 = vmatpush1.msra.mxu0 0.0
  %679 = vmatprep.subr.mxu0 0.0
  %680 = vmatpush1.msra.mxu0 0.0
  %681 = vmatprep.subr.mxu0 0.0
  %682 = vmatpush1.msra.mxu0 0.0
  %683 = vmatprep.subr.mxu0 0.0
  %684 = vmatpush1.msra.mxu0 0.0
  %685 = vmatprep.subr.mxu0 0.0
  %686 = vmatpush1.msra.mxu0 0.0
  %687 = vmatprep.subr.mxu0 0.0
  %688 = vmatpush1.msra.mxu0 0.0
  %689 = vmatprep.subr.mxu0 0.0
  %690 = vmatpush1.msra.mxu0 0.0
  %691 = vmatprep.subr.mxu0 0.0
  %692 = vmatpush1.msra.mxu0 0.0
  %693 = vmatprep.subr.mxu0 0.0
  %694 = vmatpush1.msra.mxu0 0.0
  %695 = vmatprep.subr.mxu0 0.0
  %696 = vmatpush1.msra.mxu0 0.0
  %697 = vmatprep.subr.mxu0 0.0
  %698 = vmatpush1.msra.mxu0 0.0
  %699 = vmatprep.subr.mxu0 0.0
  %700 = vmatpush1.msra.mxu0 0.0
  %701 = vmatprep.subr.mxu0 0.0
  %702 = vmatpush1.msra.mxu0 0.0
  %703 = vmatprep.subr.mxu0 0.0
  %704 = vmatpush1.msra.mxu0 0.0
  %705 = vmatprep.subr.mxu0 0.0
  %706 = vmatpush1.msra.mxu0 0.0
  %707 = vmatprep.subr.mxu0 0.0
  %708 = vmatpush1.msra.mxu0 0.0
  %709 = vmatprep.subr.mxu0 0.0
  %710 = vmatpush1.msra.mxu0 0.0
  %711 = vmatprep.subr.mxu0 0.0
  %712 = vmatpush1.msra.mxu0 0.0
  %713 = vmatprep.subr.mxu0 0.0
  %714 = vmatpush1.msra.mxu0 0.0
  %715 = vmatprep.subr.mxu0 0.0
  %716 = vmatpush1.msra.mxu0 0.0
  %717 = vmatprep.mubr.f32.mxu0 0.0
  %718 = vmatmul.mubr.f32.gmra.mrb[0].mxu0 %v651
  %v719 = vpop.f32.mrb[0].mxu0
  %v720 = vadd.f32 %v166, %v719
  %v721 = vpop.f32.mrb[0].mxu0
  %v722 = vadd.f32 %v170, %v721
  %723 = vdwg.mxu0
  %v725 = vsel %vm259, %v389, 0
  %727 = vmatprep.subr.mxu0 %v44
  %728 = vmatpush1.msra.mxu0 %v43
  %729 = vmatprep.subr.mxu0 %v46
  %730 = vmatpush1.msra.mxu0 %v45
  %731 = vmatprep.subr.mxu0 %v48
  %732 = vmatpush1.msra.mxu0 %v47
  %733 = vmatprep.subr.mxu0 %v50
  %734 = vmatpush1.msra.mxu0 %v49
  %735 = vmatprep.subr.mxu0 %v52
  %736 = vmatpush1.msra.mxu0 %v51
  %737 = vmatprep.subr.mxu0 %v54
  %738 = vmatpush1.msra.mxu0 %v53
  %739 = vmatprep.subr.mxu0 %v56
  %740 = vmatpush1.msra.mxu0 %v55
  %741 = vmatprep.subr.mxu0 %v58
  %742 = vmatpush1.msra.mxu0 %v57
  %743 = vmatprep.subr.mxu0 0.0
  %744 = vmatpush1.msra.mxu0 0.0
  %745 = vmatprep.subr.mxu0 0.0
  %746 = vmatpush1.msra.mxu0 0.0
  %747 = vmatprep.subr.mxu0 0.0
  %748 = vmatpush1.msra.mxu0 0.0
  %749 = vmatprep.subr.mxu0 0.0
  %750 = vmatpush1.msra.mxu0 0.0
  %751 = vmatprep.subr.mxu0 0.0
  %752 = vmatpush1.msra.mxu0 0.0
  %753 = vmatprep.subr.mxu0 0.0
  %754 = vmatpush1.msra.mxu0 0.0
  %755 = vmatprep.subr.mxu0 0.0
  %756 = vmatpush1.msra.mxu0 0.0
  %757 = vmatprep.subr.mxu0 0.0
  %758 = vmatpush1.msra.mxu0 0.0
  %759 = vmatprep.subr.mxu0 0.0
  %760 = vmatpush1.msra.mxu0 0.0
  %761 = vmatprep.subr.mxu0 0.0
  %762 = vmatpush1.msra.mxu0 0.0
  %763 = vmatprep.subr.mxu0 0.0
  %764 = vmatpush1.msra.mxu0 0.0
  %765 = vmatprep.subr.mxu0 0.0
  %766 = vmatpush1.msra.mxu0 0.0
  %767 = vmatprep.subr.mxu0 0.0
  %768 = vmatpush1.msra.mxu0 0.0
  %769 = vmatprep.subr.mxu0 0.0
  %770 = vmatpush1.msra.mxu0 0.0
  %771 = vmatprep.subr.mxu0 0.0
  %772 = vmatpush1.msra.mxu0 0.0
  %773 = vmatprep.subr.mxu0 0.0
  %774 = vmatpush1.msra.mxu0 0.0
  %775 = vmatprep.subr.mxu0 0.0
  %776 = vmatpush1.msra.mxu0 0.0
  %777 = vmatprep.subr.mxu0 0.0
  %778 = vmatpush1.msra.mxu0 0.0
  %779 = vmatprep.subr.mxu0 0.0
  %780 = vmatpush1.msra.mxu0 0.0
  %781 = vmatprep.subr.mxu0 0.0
  %782 = vmatpush1.msra.mxu0 0.0
  %783 = vmatprep.subr.mxu0 0.0
  %784 = vmatpush1.msra.mxu0 0.0
  %785 = vmatprep.subr.mxu0 0.0
  %786 = vmatpush1.msra.mxu0 0.0
  %787 = vmatprep.subr.mxu0 0.0
  %788 = vmatpush1.msra.mxu0 0.0
  %789 = vmatprep.subr.mxu0 0.0
  %790 = vmatpush1.msra.mxu0 0.0
  %791 = vmatprep.mubr.f32.mxu0 0.0
  %792 = vmatmul.mubr.f32.gmra.mrb[0].mxu0 %v725
  %v793 = vpop.f32.mrb[0].mxu0
  %v794 = vadd.f32 %v252, %v793
  %v795 = vpop.f32.mrb[0].mxu0
  %v796 = vadd.f32 %v256, %v795
  %797 = vdwg.mxu0
  %v798 = vadd.f32 %v720, %v794
  %v799 = vmul.f32 %v798, 0.5
  %v800 = vtanh.pop %v799
  %v801 = vmul.f32 %v800, 0.5
  %v802 = vadd.f32 %v801, 0.5
  %804 = vrot.lane.b32.xlu0 %v794, 64
  %v805 = vpop.permute.xlu0 %804
  %v807 = vmul.f32 %v802, %v805
  %809 = vrot.lane.b32.xlu0 %v807, 64
  %v810 = vpop.permute.xlu0 %809
  %v812 = vadd.f32 %v720, %v810
  %v813 = vtanh.pop %v812
  %v814 = vsub.f32 1.0, %v802
  %816 = vrot.lane.b32.xlu0 %v813, 96
  %v817 = vpop.permute.xlu0 %816
  %v819 = vmul.f32 %v814, %v817
  %820 = vrot.lane.b32.xlu0 %v389, 32
  %v821 = vpop.permute.xlu0 %820
  %v823 = vmul.f32 %v802, %v821
  %v824 = vadd.f32 %v819, %v823
  %v825 = vadd.f32 %v722, %v796
  %v826 = vmul.f32 %v825, 0.5
  %v827 = vtanh.pop %v826
  %v828 = vmul.f32 %v827, 0.5
  %v829 = vadd.f32 %v828, 0.5
  %831 = vrot.lane.b32.xlu0 %v796, 64
  %v832 = vpop.permute.xlu0 %831
  %v834 = vmul.f32 %v829, %v832
  %836 = vrot.lane.b32.xlu0 %v834, 64
  %v837 = vpop.permute.xlu0 %836
  %v839 = vadd.f32 %v722, %v837
  %v840 = vtanh.pop %v839
  %v841 = vsub.f32 1.0, %v829
  %843 = vrot.lane.b32.xlu0 %v840, 96
  %v844 = vpop.permute.xlu0 %843
  %v846 = vmul.f32 %v841, %v844
  %v847 = vmul.f32 %v829, %v389
  %v848 = vadd.f32 %v846, %v847
  %850 = vrot.lane.b32.xlu0 %v824, 96
  %v851 = vpop.permute.xlu0 %850
  %v853 = vsel %vm79, %v851, %v848
  %855 = vrot.lane.b32.xlu0 %v848, 96
  %v856 = vpop.permute.xlu0 %855
  %v857 = vsel %vm79, %v856, 0
  %859 = vmatprep.subr.mxu0 0.0
  %860 = vmatpush1.msra.mxu0 %v65
  %861 = vmatprep.subr.mxu0 0.0
  %862 = vmatpush1.msra.mxu0 %v66
  %863 = vmatprep.subr.mxu0 0.0
  %864 = vmatpush1.msra.mxu0 %v67
  %865 = vmatprep.subr.mxu0 0.0
  %866 = vmatpush1.msra.mxu0 %v68
  %867 = vmatprep.subr.mxu0 0.0
  %868 = vmatpush1.msra.mxu0 0.0
  %869 = vmatprep.subr.mxu0 0.0
  %870 = vmatpush1.msra.mxu0 0.0
  %871 = vmatprep.subr.mxu0 0.0
  %872 = vmatpush1.msra.mxu0 0.0
  %873 = vmatprep.subr.mxu0 0.0
  %874 = vmatpush1.msra.mxu0 0.0
  %875 = vmatprep.subr.mxu0 0.0
  %876 = vmatpush1.msra.mxu0 0.0
  %877 = vmatprep.subr.mxu0 0.0
  %878 = vmatpush1.msra.mxu0 0.0
  %879 = vmatprep.subr.mxu0 0.0
  %880 = vmatpush1.msra.mxu0 0.0
  %881 = vmatprep.subr.mxu0 0.0
  %882 = vmatpush1.msra.mxu0 0.0
  %883 = vmatprep.subr.mxu0 0.0
  %884 = vmatpush1.msra.mxu0 0.0
  %885 = vmatprep.subr.mxu0 0.0
  %886 = vmatpush1.msra.mxu0 0.0
  %887 = vmatprep.subr.mxu0 0.0
  %888 = vmatpush1.msra.mxu0 0.0
  %889 = vmatprep.subr.mxu0 0.0
  %890 = vmatpush1.msra.mxu0 0.0
  %891 = vmatprep.subr.mxu0 0.0
  %892 = vmatpush1.msra.mxu0 0.0
  %893 = vmatprep.subr.mxu0 0.0
  %894 = vmatpush1.msra.mxu0 0.0
  %895 = vmatprep.subr.mxu0 0.0
  %896 = vmatpush1.msra.mxu0 0.0
  %897 = vmatprep.subr.mxu0 0.0
  %898 = vmatpush1.msra.mxu0 0.0
  %899 = vmatprep.subr.mxu0 0.0
  %900 = vmatpush1.msra.mxu0 0.0
  %901 = vmatprep.subr.mxu0 0.0
  %902 = vmatpush1.msra.mxu0 0.0
  %903 = vmatprep.subr.mxu0 0.0
  %904 = vmatpush1.msra.mxu0 0.0
  %905 = vmatprep.subr.mxu0 0.0
  %906 = vmatpush1.msra.mxu0 0.0
  %907 = vmatprep.subr.mxu0 0.0
  %908 = vmatpush1.msra.mxu0 0.0
  %909 = vmatprep.subr.mxu0 0.0
  %910 = vmatpush1.msra.mxu0 0.0
  %911 = vmatprep.subr.mxu0 0.0
  %912 = vmatpush1.msra.mxu0 0.0
  %913 = vmatprep.subr.mxu0 0.0
  %914 = vmatpush1.msra.mxu0 0.0
  %915 = vmatprep.subr.mxu0 0.0
  %916 = vmatpush1.msra.mxu0 0.0
  %917 = vmatprep.subr.mxu0 0.0
  %918 = vmatpush1.msra.mxu0 0.0
  %919 = vmatprep.subr.mxu0 0.0
  %920 = vmatpush1.msra.mxu0 0.0
  %921 = vmatprep.subr.mxu0 0.0
  %922 = vmatpush1.msra.mxu0 0.0
  %923 = vmatprep.mubr.f32.mxu0 0.0
  %924 = vmatmul.mubr.f32.gmra.mrb[0].mxu0 %v857
  %v925 = vpop.f32.mrb[0].mxu0
  %v926 = vadd.f32 0.0, %v925
  %v927 = vpop.f32.mrb[0].mxu0
  %928 = vdwg.mxu0
  %v929 = vsel %vm79, %v851, 0
  %931 = vmatprep.subr.mxu0 0.0
  %932 = vmatpush1.msra.mxu0 %v61
  %933 = vmatprep.subr.mxu0 0.0
  %934 = vmatpush1.msra.mxu0 %v62
  %935 = vmatprep.subr.mxu0 0.0
  %936 = vmatpush1.msra.mxu0 %v63
  %937 = vmatprep.subr.mxu0 0.0
  %938 = vmatpush1.msra.mxu0 %v64
  %939 = vmatprep.subr.mxu0 0.0
  %940 = vmatpush1.msra.mxu0 0.0
  %941 = vmatprep.subr.mxu0 0.0
  %942 = vmatpush1.msra.mxu0 0.0
  %943 = vmatprep.subr.mxu0 0.0
  %944 = vmatpush1.msra.mxu0 0.0
  %945 = vmatprep.subr.mxu0 0.0
  %946 = vmatpush1.msra.mxu0 0.0
  %947 = vmatprep.subr.mxu0 0.0
  %948 = vmatpush1.msra.mxu0 0.0
  %949 = vmatprep.subr.mxu0 0.0
  %950 = vmatpush1.msra.mxu0 0.0
  %951 = vmatprep.subr.mxu0 0.0
  %952 = vmatpush1.msra.mxu0 0.0
  %953 = vmatprep.subr.mxu0 0.0
  %954 = vmatpush1.msra.mxu0 0.0
  %955 = vmatprep.subr.mxu0 0.0
  %956 = vmatpush1.msra.mxu0 0.0
  %957 = vmatprep.subr.mxu0 0.0
  %958 = vmatpush1.msra.mxu0 0.0
  %959 = vmatprep.subr.mxu0 0.0
  %960 = vmatpush1.msra.mxu0 0.0
  %961 = vmatprep.subr.mxu0 0.0
  %962 = vmatpush1.msra.mxu0 0.0
  %963 = vmatprep.subr.mxu0 0.0
  %964 = vmatpush1.msra.mxu0 0.0
  %965 = vmatprep.subr.mxu0 0.0
  %966 = vmatpush1.msra.mxu0 0.0
  %967 = vmatprep.subr.mxu0 0.0
  %968 = vmatpush1.msra.mxu0 0.0
  %969 = vmatprep.subr.mxu0 0.0
  %970 = vmatpush1.msra.mxu0 0.0
  %971 = vmatprep.subr.mxu0 0.0
  %972 = vmatpush1.msra.mxu0 0.0
  %973 = vmatprep.subr.mxu0 0.0
  %974 = vmatpush1.msra.mxu0 0.0
  %975 = vmatprep.subr.mxu0 0.0
  %976 = vmatpush1.msra.mxu0 0.0
  %977 = vmatprep.subr.mxu0 0.0
  %978 = vmatpush1.msra.mxu0 0.0
  %979 = vmatprep.subr.mxu0 0.0
  %980 = vmatpush1.msra.mxu0 0.0
  %981 = vmatprep.subr.mxu0 0.0
  %982 = vmatpush1.msra.mxu0 0.0
  %983 = vmatprep.subr.mxu0 0.0
  %984 = vmatpush1.msra.mxu0 0.0
  %985 = vmatprep.subr.mxu0 0.0
  %986 = vmatpush1.msra.mxu0 0.0
  %987 = vmatprep.subr.mxu0 0.0
  %988 = vmatpush1.msra.mxu0 0.0
  %989 = vmatprep.subr.mxu0 0.0
  %990 = vmatpush1.msra.mxu0 0.0
  %991 = vmatprep.subr.mxu0 0.0
  %992 = vmatpush1.msra.mxu0 0.0
  %993 = vmatprep.subr.mxu0 0.0
  %994 = vmatpush1.msra.mxu0 0.0
  %995 = vmatprep.mubr.f32.mxu0 0.0
  %996 = vmatmul.mubr.f32.gmra.mrb[0].mxu0 %v929
  %v997 = vpop.f32.mrb[0].mxu0
  %v998 = vadd.f32 %v926, %v997
  %v999 = vpop.f32.mrb[0].mxu0
  %1000 = vdwg.mxu0
  %v1001 = vadd.f32 %v998, %v541
  %s1002 = scalar_lea.vmem %s10, 16
  %1003 = vst [vmem:[%s1002] sm:$0xff] %v1001
  %v1004 = vsel %vm546, %v1001, -inf
  %1005 = vmax.xlane.f32.xlu0 %v1004
  %v1006 = vpop.xlane.xlu0 %1005
  %vm1007 = vcmp.ge.f32.partialorder %v1004, %v1006
  %v1008 = vsel %vm1007, %v71, 128
  %v1009 = vand.u32 %v1008, 65535
  %v1010 = vshra.s32 %v1008, 16
  %v1011 = vcvt.s32.f32 %v1009
  %v1012 = vcvt.s32.f32 %v1010
  %1013 = vmin.xlane.f32.xlu0 %v1012
  %v1014 = vpop.xlane.xlu0 %1013
  %vm1015 = vcmp.eq.f32.partialorder %v1012, %v1014
  %v1016 = vsel %vm1015, %v1011, inf
  %1017 = vmin.xlane.f32.xlu0 %v1016
  %v1018 = vpop.xlane.xlu0 %1017
  %v1019 = vcvt.f32.s32 %v1018
  %v1020 = vcvt.f32.s32 %v1014
  %v1021 = vshll.u32 %v1020, 16
  %v1022 = vadd.s32 %v1021, %v1019
  %s1023 = scalar_lea.vmem %s2, 8
  %v1024 = vld [vmem:[%s1023] sm:$0xff]
  %vm1025 = vcmp.gt.s32.totalorder %v1024, 0
  %s1026 = scalar_lea.vmem %s1, 16
  %v1027 = vld [vmem:[%s1026] sm:$0xff]
  %v1028 = vsel %vm1025, %v1027, %v1022
  %1029 = vset.pattern.permute.xlu0 0
  %1030 = vperm.xlu0 %1029, %v1028
  %v1031 = vpop.permute.xlu0 %1030
  %vm1032 = vcmp.eq.s32.totalorder %v71, %v1031
  %v1033 = vsel %vm1032, 1, 0
  %v1034 = vcvt.s32.f32 %v1033
  %v1036 = vsel %vm88, %v1034, 0
  %1038 = vmatprep.subr.mxu0 0.0
  %1039 = vmatpush1.msra.mxu0 %v36
  %1040 = vmatprep.subr.mxu0 0.0
  %1041 = vmatpush1.msra.mxu0 %v37
  %1042 = vmatprep.subr.mxu0 0.0
  %1043 = vmatpush1.msra.mxu0 %v38
  %1044 = vmatprep.subr.mxu0 0.0
  %1045 = vmatpush1.msra.mxu0 0.0
  %1046 = vmatprep.subr.mxu0 0.0
  %1047 = vmatpush1.msra.mxu0 0.0
  %1048 = vmatprep.subr.mxu0 0.0
  %1049 = vmatpush1.msra.mxu0 0.0
  %1050 = vmatprep.subr.mxu0 0.0
  %1051 = vmatpush1.msra.mxu0 0.0
  %1052 = vmatprep.subr.mxu0 0.0
  %1053 = vmatpush1.msra.mxu0 0.0
  %1054 = vmatprep.subr.mxu0 0.0
  %1055 = vmatpush1.msra.mxu0 0.0
  %1056 = vmatprep.subr.mxu0 0.0
  %1057 = vmatpush1.msra.mxu0 0.0
  %1058 = vmatprep.subr.mxu0 0.0
  %1059 = vmatpush1.msra.mxu0 0.0
  %1060 = vmatprep.subr.mxu0 0.0
  %1061 = vmatpush1.msra.mxu0 0.0
  %1062 = vmatprep.subr.mxu0 0.0
  %1063 = vmatpush1.msra.mxu0 0.0
  %1064 = vmatprep.subr.mxu0 0.0
  %1065 = vmatpush1.msra.mxu0 0.0
  %1066 = vmatprep.subr.mxu0 0.0
  %1067 = vmatpush1.msra.mxu0 0.0
  %1068 = vmatprep.subr.mxu0 0.0
  %1069 = vmatpush1.msra.mxu0 0.0
  %1070 = vmatprep.subr.mxu0 0.0
  %1071 = vmatpush1.msra.mxu0 0.0
  %1072 = vmatprep.subr.mxu0 0.0
  %1073 = vmatpush1.msra.mxu0 0.0
  %1074 = vmatprep.subr.mxu0 0.0
  %1075 = vmatpush1.msra.mxu0 0.0
  %1076 = vmatprep.subr.mxu0 0.0
  %1077 = vmatpush1.msra.mxu0 0.0
  %1078 = vmatprep.subr.mxu0 0.0
  %1079 = vmatpush1.msra.mxu0 0.0
  %1080 = vmatprep.subr.mxu0 0.0
  %1081 = vmatpush1.msra.mxu0 0.0
  %1082 = vmatprep.subr.mxu0 0.0
  %1083 = vmatpush1.msra.mxu0 0.0
  %1084 = vmatprep.subr.mxu0 0.0
  %1085 = vmatpush1.msra.mxu0 0.0
  %1086 = vmatprep.subr.mxu0 0.0
  %1087 = vmatpush1.msra.mxu0 0.0
  %1088 = vmatprep.subr.mxu0 0.0
  %1089 = vmatpush1.msra.mxu0 0.0
  %1090 = vmatprep.subr.mxu0 0.0
  %1091 = vmatpush1.msra.mxu0 0.0
  %1092 = vmatprep.subr.mxu0 0.0
  %1093 = vmatpush1.msra.mxu0 0.0
  %1094 = vmatprep.subr.mxu0 0.0
  %1095 = vmatpush1.msra.mxu0 0.0
  %1096 = vmatprep.subr.mxu0 0.0
  %1097 = vmatpush1.msra.mxu0 0.0
  %1098 = vmatprep.subr.mxu0 0.0
  %1099 = vmatpush1.msra.mxu0 0.0
  %1100 = vmatprep.subr.mxu0 0.0
  %1101 = vmatpush1.msra.mxu0 0.0
  %1102 = vmatprep.mubr.f32.mxu0 0.0
  %1103 = vmatmul.mubr.f32.gmra.mrb[0].mxu0 %v1036
  %v1104 = vpop.f32.mrb[0].mxu0
  %v1105 = vadd.f32 0.0, %v1104
  %v1106 = vpop.f32.mrb[0].mxu0
  %1107 = vdwg.mxu0
  %v1109 = vsel %vm173, %v1105, 0
  %1111 = vmatprep.subr.mxu0 %v40
  %1112 = vmatpush1.msra.mxu0 %v39
  %1113 = vmatprep.subr.mxu0 %v42
  %1114 = vmatpush1.msra.mxu0 %v41
  %1115 = vmatprep.subr.mxu0 0.0
  %1116 = vmatpush1.msra.mxu0 0.0
  %1117 = vmatprep.subr.mxu0 0.0
  %1118 = vmatpush1.msra.mxu0 0.0
  %1119 = vmatprep.subr.mxu0 0.0
  %1120 = vmatpush1.msra.mxu0 0.0
  %1121 = vmatprep.subr.mxu0 0.0
  %1122 = vmatpush1.msra.mxu0 0.0
  %1123 = vmatprep.subr.mxu0 0.0
  %1124 = vmatpush1.msra.mxu0 0.0
  %1125 = vmatprep.subr.mxu0 0.0
  %1126 = vmatpush1.msra.mxu0 0.0
  %1127 = vmatprep.subr.mxu0 0.0
  %1128 = vmatpush1.msra.mxu0 0.0
  %1129 = vmatprep.subr.mxu0 0.0
  %1130 = vmatpush1.msra.mxu0 0.0
  %1131 = vmatprep.subr.mxu0 0.0
  %1132 = vmatpush1.msra.mxu0 0.0
  %1133 = vmatprep.subr.mxu0 0.0
  %1134 = vmatpush1.msra.mxu0 0.0
  %1135 = vmatprep.subr.mxu0 0.0
  %1136 = vmatpush1.msra.mxu0 0.0
  %1137 = vmatprep.subr.mxu0 0.0
  %1138 = vmatpush1.msra.mxu0 0.0
  %1139 = vmatprep.subr.mxu0 0.0
  %1140 = vmatpush1.msra.mxu0 0.0
  %1141 = vmatprep.subr.mxu0 0.0
  %1142 = vmatpush1.msra.mxu0 0.0
  %1143 = vmatprep.subr.mxu0 0.0
  %1144 = vmatpush1.msra.mxu0 0.0
  %1145 = vmatprep.subr.mxu0 0.0
  %1146 = vmatpush1.msra.mxu0 0.0
  %1147 = vmatprep.subr.mxu0 0.0
  %1148 = vmatpush1.msra.mxu0 0.0
  %1149 = vmatprep.subr.mxu0 0.0
  %1150 = vmatpush1.msra.mxu0 0.0
  %1151 = vmatprep.subr.mxu0 0.0
  %1152 = vmatpush1.msra.mxu0 0.0
  %1153 = vmatprep.subr.mxu0 0.0
  %1154 = vmatpush1.msra.mxu0 0.0
  %1155 = vmatprep.subr.mxu0 0.0
  %1156 = vmatpush1.msra.mxu0 0.0
  %1157 = vmatprep.subr.mxu0 0.0
  %1158 = vmatpush1.msra.mxu0 0.0
  %1159 = vmatprep.subr.mxu0 0.0
  %1160 = vmatpush1.msra.mxu0 0.0
  %1161 = vmatprep.subr.mxu0 0.0
  %1162 = vmatpush1.msra.mxu0 0.0
  %1163 = vmatprep.subr.mxu0 0.0
  %1164 = vmatpush1.msra.mxu0 0.0
  %1165 = vmatprep.subr.mxu0 0.0
  %1166 = vmatpush1.msra.mxu0 0.0
  %1167 = vmatprep.subr.mxu0 0.0
  %1168 = vmatpush1.msra.mxu0 0.0
  %1169 = vmatprep.subr.mxu0 0.0
  %1170 = vmatpush1.msra.mxu0 0.0
  %1171 = vmatprep.subr.mxu0 0.0
  %1172 = vmatpush1.msra.mxu0 0.0
  %1173 = vmatprep.subr.mxu0 0.0
  %1174 = vmatpush1.msra.mxu0 0.0
  %1175 = vmatprep.mubr.f32.mxu0 0.0
  %1176 = vmatmul.mubr.f32.gmra.mrb[0].mxu0 %v1109
  %v1177 = vpop.f32.mrb[0].mxu0
  %v1178 = vadd.f32 %v166, %v1177
  %v1179 = vpop.f32.mrb[0].mxu0
  %v1180 = vadd.f32 %v170, %v1179
  %1181 = vdwg.mxu0
  %v1183 = vsel %vm259, %v853, 0
  %1185 = vmatprep.subr.mxu0 %v44
  %1186 = vmatpush1.msra.mxu0 %v43
  %1187 = vmatprep.subr.mxu0 %v46
  %1188 = vmatpush1.msra.mxu0 %v45
  %1189 = vmatprep.subr.mxu0 %v48
  %1190 = vmatpush1.msra.mxu0 %v47
  %1191 = vmatprep.subr.mxu0 %v50
  %1192 = vmatpush1.msra.mxu0 %v49
  %1193 = vmatprep.subr.mxu0 %v52
  %1194 = vmatpush1.msra.mxu0 %v51
  %1195 = vmatprep.subr.mxu0 %v54
  %1196 = vmatpush1.msra.mxu0 %v53
  %1197 = vmatprep.subr.mxu0 %v56
  %1198 = vmatpush1.msra.mxu0 %v55
  %1199 = vmatprep.subr.mxu0 %v58
  %1200 = vmatpush1.msra.mxu0 %v57
  %1201 = vmatprep.subr.mxu0 0.0
  %1202 = vmatpush1.msra.mxu0 0.0
  %1203 = vmatprep.subr.mxu0 0.0
  %1204 = vmatpush1.msra.mxu0 0.0
  %1205 = vmatprep.subr.mxu0 0.0
  %1206 = vmatpush1.msra.mxu0 0.0
  %1207 = vmatprep.subr.mxu0 0.0
  %1208 = vmatpush1.msra.mxu0 0.0
  %1209 = vmatprep.subr.mxu0 0.0
  %1210 = vmatpush1.msra.mxu0 0.0
  %1211 = vmatprep.subr.mxu0 0.0
  %1212 = vmatpush1.msra.mxu0 0.0
  %1213 = vmatprep.subr.mxu0 0.0
  %1214 = vmatpush1.msra.mxu0 0.0
  %1215 = vmatprep.subr.mxu0 0.0
  %1216 = vmatpush1.msra.mxu0 0.0
  %1217 = vmatprep.subr.mxu0 0.0
  %1218 = vmatpush1.msra.mxu0 0.0
  %1219 = vmatprep.subr.mxu0 0.0
  %1220 = vmatpush1.msra.mxu0 0.0
  %1221 = vmatprep.subr.mxu0 0.0
  %1222 = vmatpush1.msra.mxu0 0.0
  %1223 = vmatprep.subr.mxu0 0.0
  %1224 = vmatpush1.msra.mxu0 0.0
  %1225 = vmatprep.subr.mxu0 0.0
  %1226 = vmatpush1.msra.mxu0 0.0
  %1227 = vmatprep.subr.mxu0 0.0
  %1228 = vmatpush1.msra.mxu0 0.0
  %1229 = vmatprep.subr.mxu0 0.0
  %1230 = vmatpush1.msra.mxu0 0.0
  %1231 = vmatprep.subr.mxu0 0.0
  %1232 = vmatpush1.msra.mxu0 0.0
  %1233 = vmatprep.subr.mxu0 0.0
  %1234 = vmatpush1.msra.mxu0 0.0
  %1235 = vmatprep.subr.mxu0 0.0
  %1236 = vmatpush1.msra.mxu0 0.0
  %1237 = vmatprep.subr.mxu0 0.0
  %1238 = vmatpush1.msra.mxu0 0.0
  %1239 = vmatprep.subr.mxu0 0.0
  %1240 = vmatpush1.msra.mxu0 0.0
  %1241 = vmatprep.subr.mxu0 0.0
  %1242 = vmatpush1.msra.mxu0 0.0
  %1243 = vmatprep.subr.mxu0 0.0
  %1244 = vmatpush1.msra.mxu0 0.0
  %1245 = vmatprep.subr.mxu0 0.0
  %1246 = vmatpush1.msra.mxu0 0.0
  %1247 = vmatprep.subr.mxu0 0.0
  %1248 = vmatpush1.msra.mxu0 0.0
  %1249 = vmatprep.mubr.f32.mxu0 0.0
  %1250 = vmatmul.mubr.f32.gmra.mrb[0].mxu0 %v1183
  %v1251 = vpop.f32.mrb[0].mxu0
  %v1252 = vadd.f32 %v252, %v1251
  %v1253 = vpop.f32.mrb[0].mxu0
  %v1254 = vadd.f32 %v256, %v1253
  %1255 = vdwg.mxu0
  %v1256 = vadd.f32 %v1178, %v1252
  %v1257 = vmul.f32 %v1256, 0.5
  %v1258 = vtanh.pop %v1257
  %v1259 = vmul.f32 %v1258, 0.5
  %v1260 = vadd.f32 %v1259, 0.5
  %1262 = vrot.lane.b32.xlu0 %v1252, 64
  %v1263 = vpop.permute.xlu0 %1262
  %v1265 = vmul.f32 %v1260, %v1263
  %1267 = vrot.lane.b32.xlu0 %v1265, 64
  %v1268 = vpop.permute.xlu0 %1267
  %v1270 = vadd.f32 %v1178, %v1268
  %v1271 = vtanh.pop %v1270
  %v1272 = vsub.f32 1.0, %v1260
  %1274 = vrot.lane.b32.xlu0 %v1271, 96
  %v1275 = vpop.permute.xlu0 %1274
  %v1277 = vmul.f32 %v1272, %v1275
  %1278 = vrot.lane.b32.xlu0 %v853, 32
  %v1279 = vpop.permute.xlu0 %1278
  %v1281 = vmul.f32 %v1260, %v1279
  %v1282 = vadd.f32 %v1277, %v1281
  %v1283 = vadd.f32 %v1180, %v1254
  %v1284 = vmul.f32 %v1283, 0.5
  %v1285 = vtanh.pop %v1284
  %v1286 = vmul.f32 %v1285, 0.5
  %v1287 = vadd.f32 %v1286, 0.5
  %1289 = vrot.lane.b32.xlu0 %v1254, 64
  %v1290 = vpop.permute.xlu0 %1289
  %v1292 = vmul.f32 %v1287, %v1290
  %1294 = vrot.lane.b32.xlu0 %v1292, 64
  %v1295 = vpop.permute.xlu0 %1294
  %v1297 = vadd.f32 %v1180, %v1295
  %v1298 = vtanh.pop %v1297
  %v1299 = vsub.f32 1.0, %v1287
  %1301 = vrot.lane.b32.xlu0 %v1298, 96
  %v1302 = vpop.permute.xlu0 %1301
  %v1304 = vmul.f32 %v1299, %v1302
  %v1305 = vmul.f32 %v1287, %v853
  %v1306 = vadd.f32 %v1304, %v1305
  %1308 = vrot.lane.b32.xlu0 %v1282, 96
  %v1309 = vpop.permute.xlu0 %1308
  %v1311 = vsel %vm79, %v1309, %v1306
  %1313 = vrot.lane.b32.xlu0 %v1306, 96
  %v1314 = vpop.permute.xlu0 %1313
  %v1315 = vsel %vm79, %v1314, 0
  %1317 = vmatprep.subr.mxu0 0.0
  %1318 = vmatpush1.msra.mxu0 %v65
  %1319 = vmatprep.subr.mxu0 0.0
  %1320 = vmatpush1.msra.mxu0 %v66
  %1321 = vmatprep.subr.mxu0 0.0
  %1322 = vmatpush1.msra.mxu0 %v67
  %1323 = vmatprep.subr.mxu0 0.0
  %1324 = vmatpush1.msra.mxu0 %v68
  %1325 = vmatprep.subr.mxu0 0.0
  %1326 = vmatpush1.msra.mxu0 0.0
  %1327 = vmatprep.subr.mxu0 0.0
  %1328 = vmatpush1.msra.mxu0 0.0
  %1329 = vmatprep.subr.mxu0 0.0
  %1330 = vmatpush1.msra.mxu0 0.0
  %1331 = vmatprep.subr.mxu0 0.0
  %1332 = vmatpush1.msra.mxu0 0.0
  %1333 = vmatprep.subr.mxu0 0.0
  %1334 = vmatpush1.msra.mxu0 0.0
  %1335 = vmatprep.subr.mxu0 0.0
  %1336 = vmatpush1.msra.mxu0 0.0
  %1337 = vmatprep.subr.mxu0 0.0
  %1338 = vmatpush1.msra.mxu0 0.0
  %1339 = vmatprep.subr.mxu0 0.0
  %1340 = vmatpush1.msra.mxu0 0.0
  %1341 = vmatprep.subr.mxu0 0.0
  %1342 = vmatpush1.msra.mxu0 0.0
  %1343 = vmatprep.subr.mxu0 0.0
  %1344 = vmatpush1.msra.mxu0 0.0
  %1345 = vmatprep.subr.mxu0 0.0
  %1346 = vmatpush1.msra.mxu0 0.0
  %1347 = vmatprep.subr.mxu0 0.0
  %1348 = vmatpush1.msra.mxu0 0.0
  %1349 = vmatprep.subr.mxu0 0.0
  %1350 = vmatpush1.msra.mxu0 0.0
  %1351 = vmatprep.subr.mxu0 0.0
  %1352 = vmatpush1.msra.mxu0 0.0
  %1353 = vmatprep.subr.mxu0 0.0
  %1354 = vmatpush1.msra.mxu0 0.0
  %1355 = vmatprep.subr.mxu0 0.0
  %1356 = vmatpush1.msra.mxu0 0.0
  %1357 = vmatprep.subr.mxu0 0.0
  %1358 = vmatpush1.msra.mxu0 0.0
  %1359 = vmatprep.subr.mxu0 0.0
  %1360 = vmatpush1.msra.mxu0 0.0
  %1361 = vmatprep.subr.mxu0 0.0
  %1362 = vmatpush1.msra.mxu0 0.0
  %1363 = vmatprep.subr.mxu0 0.0
  %1364 = vmatpush1.msra.mxu0 0.0
  %1365 = vmatprep.subr.mxu0 0.0
  %1366 = vmatpush1.msra.mxu0 0.0
  %1367 = vmatprep.subr.mxu0 0.0
  %1368 = vmatpush1.msra.mxu0 0.0
  %1369 = vmatprep.subr.mxu0 0.0
  %1370 = vmatpush1.msra.mxu0 0.0
  %1371 = vmatprep.subr.mxu0 0.0
  %1372 = vmatpush1.msra.mxu0 0.0
  %1373 = vmatprep.subr.mxu0 0.0
  %1374 = vmatpush1.msra.mxu0 0.0
  %1375 = vmatprep.subr.mxu0 0.0
  %1376 = vmatpush1.msra.mxu0 0.0
  %1377 = vmatprep.subr.mxu0 0.0
  %1378 = vmatpush1.msra.mxu0 0.0
  %1379 = vmatprep.subr.mxu0 0.0
  %1380 = vmatpush1.msra.mxu0 0.0
  %1381 = vmatprep.mubr.f32.mxu0 0.0
  %1382 = vmatmul.mubr.f32.gmra.mrb[0].mxu0 %v1315
  %v1383 = vpop.f32.mrb[0].mxu0
  %v1384 = vadd.f32 0.0, %v1383
  %v1385 = vpop.f32.mrb[0].mxu0
  %1386 = vdwg.mxu0
  %v1387 = vsel %vm79, %v1309, 0
  %1389 = vmatprep.subr.mxu0 0.0
  %1390 = vmatpush1.msra.mxu0 %v61
  %1391 = vmatprep.subr.mxu0 0.0
  %1392 = vmatpush1.msra.mxu0 %v62
  %1393 = vmatprep.subr.mxu0 0.0
  %1394 = vmatpush1.msra.mxu0 %v63
  %1395 = vmatprep.subr.mxu0 0.0
  %1396 = vmatpush1.msra.mxu0 %v64
  %1397 = vmatprep.subr.mxu0 0.0
  %1398 = vmatpush1.msra.mxu0 0.0
  %1399 = vmatprep.subr.mxu0 0.0
  %1400 = vmatpush1.msra.mxu0 0.0
  %1401 = vmatprep.subr.mxu0 0.0
  %1402 = vmatpush1.msra.mxu0 0.0
  %1403 = vmatprep.subr.mxu0 0.0
  %1404 = vmatpush1.msra.mxu0 0.0
  %1405 = vmatprep.subr.mxu0 0.0
  %1406 = vmatpush1.msra.mxu0 0.0
  %1407 = vmatprep.subr.mxu0 0.0
  %1408 = vmatpush1.msra.mxu0 0.0
  %1409 = vmatprep.subr.mxu0 0.0
  %1410 = vmatpush1.msra.mxu0 0.0
  %1411 = vmatprep.subr.mxu0 0.0
  %1412 = vmatpush1.msra.mxu0 0.0
  %1413 = vmatprep.subr.mxu0 0.0
  %1414 = vmatpush1.msra.mxu0 0.0
  %1415 = vmatprep.subr.mxu0 0.0
  %1416 = vmatpush1.msra.mxu0 0.0
  %1417 = vmatprep.subr.mxu0 0.0
  %1418 = vmatpush1.msra.mxu0 0.0
  %1419 = vmatprep.subr.mxu0 0.0
  %1420 = vmatpush1.msra.mxu0 0.0
  %1421 = vmatprep.subr.mxu0 0.0
  %1422 = vmatpush1.msra.mxu0 0.0
  %1423 = vmatprep.subr.mxu0 0.0
  %1424 = vmatpush1.msra.mxu0 0.0
  %1425 = vmatprep.subr.mxu0 0.0
  %1426 = vmatpush1.msra.mxu0 0.0
  %1427 = vmatprep.subr.mxu0 0.0
  %1428 = vmatpush1.msra.mxu0 0.0
  %1429 = vmatprep.subr.mxu0 0.0
  %1430 = vmatpush1.msra.mxu0 0.0
  %1431 = vmatprep.subr.mxu0 0.0
  %1432 = vmatpush1.msra.mxu0 0.0
  %1433 = vmatprep.subr.mxu0 0.0
  %1434 = vmatpush1.msra.mxu0 0.0
  %1435 = vmatprep.subr.mxu0 0.0
  %1436 = vmatpush1.msra.mxu0 0.0
  %1437 = vmatprep.subr.mxu0 0.0
  %1438 = vmatpush1.msra.mxu0 0.0
  %1439 = vmatprep.subr.mxu0 0.0
  %1440 = vmatpush1.msra.mxu0 0.0
  %1441 = vmatprep.subr.mxu0 0.0
  %1442 = vmatpush1.msra.mxu0 0.0
  %1443 = vmatprep.subr.mxu0 0.0
  %1444 = vmatpush1.msra.mxu0 0.0
  %1445 = vmatprep.subr.mxu0 0.0
  %1446 = vmatpush1.msra.mxu0 0.0
  %1447 = vmatprep.subr.mxu0 0.0
  %1448 = vmatpush1.msra.mxu0 0.0
  %1449 = vmatprep.subr.mxu0 0.0
  %1450 = vmatpush1.msra.mxu0 0.0
  %1451 = vmatprep.subr.mxu0 0.0
  %1452 = vmatpush1.msra.mxu0 0.0
  %1453 = vmatprep.mubr.f32.mxu0 0.0
  %1454 = vmatmul.mubr.f32.gmra.mrb[0].mxu0 %v1387
  %v1455 = vpop.f32.mrb[0].mxu0
  %v1456 = vadd.f32 %v1384, %v1455
  %v1457 = vpop.f32.mrb[0].mxu0
  %1458 = vdwg.mxu0
  %v1459 = vadd.f32 %v1456, %v541
  %s1460 = scalar_lea.vmem %s10, 24
  %1461 = vst [vmem:[%s1460] sm:$0xff] %v1459
  %v1462 = vsel %vm546, %v1459, -inf
  %1463 = vmax.xlane.f32.xlu0 %v1462
  %v1464 = vpop.xlane.xlu0 %1463
  %vm1465 = vcmp.ge.f32.partialorder %v1462, %v1464
  %v1466 = vsel %vm1465, %v71, 128
  %v1467 = vand.u32 %v1466, 65535
  %v1468 = vshra.s32 %v1466, 16
  %v1469 = vcvt.s32.f32 %v1467
  %v1470 = vcvt.s32.f32 %v1468
  %1471 = vmin.xlane.f32.xlu0 %v1470
  %v1472 = vpop.xlane.xlu0 %1471
  %vm1473 = vcmp.eq.f32.partialorder %v1470, %v1472
  %v1474 = vsel %vm1473, %v1469, inf
  %1475 = vmin.xlane.f32.xlu0 %v1474
  %v1476 = vpop.xlane.xlu0 %1475
  %v1477 = vcvt.f32.s32 %v1476
  %v1478 = vcvt.f32.s32 %v1472
  %v1479 = vshll.u32 %v1478, 16
  %v1480 = vadd.s32 %v1479, %v1477
  %s1481 = scalar_lea.vmem %s2, 16
  %v1482 = vld [vmem:[%s1481] sm:$0xff]
  %vm1483 = vcmp.gt.s32.totalorder %v1482, 0
  %s1484 = scalar_lea.vmem %s1, 24
  %v1485 = vld [vmem:[%s1484] sm:$0xff]
  %v1486 = vsel %vm1483, %v1485, %v1480
  %1487 = vset.pattern.permute.xlu0 0
  %1488 = vperm.xlu0 %1487, %v1486
  %v1489 = vpop.permute.xlu0 %1488
  %vm1490 = vcmp.eq.s32.totalorder %v71, %v1489
  %v1491 = vsel %vm1490, 1, 0
  %v1492 = vcvt.s32.f32 %v1491
  %v1494 = vsel %vm88, %v1492, 0
  %1496 = vmatprep.subr.mxu0 0.0
  %1497 = vmatpush1.msra.mxu0 %v36
  %1498 = vmatprep.subr.mxu0 0.0
  %1499 = vmatpush1.msra.mxu0 %v37
  %1500 = vmatprep.subr.mxu0 0.0
  %1501 = vmatpush1.msra.mxu0 %v38
  %1502 = vmatprep.subr.mxu0 0.0
  %1503 = vmatpush1.msra.mxu0 0.0
  %1504 = vmatprep.subr.mxu0 0.0
  %1505 = vmatpush1.msra.mxu0 0.0
  %1506 = vmatprep.subr.mxu0 0.0
  %1507 = vmatpush1.msra.mxu0 0.0
  %1508 = vmatprep.subr.mxu0 0.0
  %1509 = vmatpush1.msra.mxu0 0.0
  %1510 = vmatprep.subr.mxu0 0.0
  %1511 = vmatpush1.msra.mxu0 0.0
  %1512 = vmatprep.subr.mxu0 0.0
  %1513 = vmatpush1.msra.mxu0 0.0
  %1514 = vmatprep.subr.mxu0 0.0
  %1515 = vmatpush1.msra.mxu0 0.0
  %1516 = vmatprep.subr.mxu0 0.0
  %1517 = vmatpush1.msra.mxu0 0.0
  %1518 = vmatprep.subr.mxu0 0.0
  %1519 = vmatpush1.msra.mxu0 0.0
  %1520 = vmatprep.subr.mxu0 0.0
  %1521 = vmatpush1.msra.mxu0 0.0
  %1522 = vmatprep.subr.mxu0 0.0
  %1523 = vmatpush1.msra.mxu0 0.0
  %1524 = vmatprep.subr.mxu0 0.0
  %1525 = vmatpush1.msra.mxu0 0.0
  %1526 = vmatprep.subr.mxu0 0.0
  %1527 = vmatpush1.msra.mxu0 0.0
  %1528 = vmatprep.subr.mxu0 0.0
  %1529 = vmatpush1.msra.mxu0 0.0
  %1530 = vmatprep.subr.mxu0 0.0
  %1531 = vmatpush1.msra.mxu0 0.0
  %1532 = vmatprep.subr.mxu0 0.0
  %1533 = vmatpush1.msra.mxu0 0.0
  %1534 = vmatprep.subr.mxu0 0.0
  %1535 = vmatpush1.msra.mxu0 0.0
  %1536 = vmatprep.subr.mxu0 0.0
  %1537 = vmatpush1.msra.mxu0 0.0
  %1538 = vmatprep.subr.mxu0 0.0
  %1539 = vmatpush1.msra.mxu0 0.0
  %1540 = vmatprep.subr.mxu0 0.0
  %1541 = vmatpush1.msra.mxu0 0.0
  %1542 = vmatprep.subr.mxu0 0.0
  %1543 = vmatpush1.msra.mxu0 0.0
  %1544 = vmatprep.subr.mxu0 0.0
  %1545 = vmatpush1.msra.mxu0 0.0
  %1546 = vmatprep.subr.mxu0 0.0
  %1547 = vmatpush1.msra.mxu0 0.0
  %1548 = vmatprep.subr.mxu0 0.0
  %1549 = vmatpush1.msra.mxu0 0.0
  %1550 = vmatprep.subr.mxu0 0.0
  %1551 = vmatpush1.msra.mxu0 0.0
  %1552 = vmatprep.subr.mxu0 0.0
  %1553 = vmatpush1.msra.mxu0 0.0
  %1554 = vmatprep.subr.mxu0 0.0
  %1555 = vmatpush1.msra.mxu0 0.0
  %1556 = vmatprep.subr.mxu0 0.0
  %1557 = vmatpush1.msra.mxu0 0.0
  %1558 = vmatprep.subr.mxu0 0.0
  %1559 = vmatpush1.msra.mxu0 0.0
  %1560 = vmatprep.mubr.f32.mxu0 0.0
  %1561 = vmatmul.mubr.f32.gmra.mrb[0].mxu0 %v1494
  %v1562 = vpop.f32.mrb[0].mxu0
  %v1563 = vadd.f32 0.0, %v1562
  %v1564 = vpop.f32.mrb[0].mxu0
  %1565 = vdwg.mxu0
  %v1567 = vsel %vm173, %v1563, 0
  %1569 = vmatprep.subr.mxu0 %v40
  %1570 = vmatpush1.msra.mxu0 %v39
  %1571 = vmatprep.subr.mxu0 %v42
  %1572 = vmatpush1.msra.mxu0 %v41
  %1573 = vmatprep.subr.mxu0 0.0
  %1574 = vmatpush1.msra.mxu0 0.0
  %1575 = vmatprep.subr.mxu0 0.0
  %1576 = vmatpush1.msra.mxu0 0.0
  %1577 = vmatprep.subr.mxu0 0.0
  %1578 = vmatpush1.msra.mxu0 0.0
  %1579 = vmatprep.subr.mxu0 0.0
  %1580 = vmatpush1.msra.mxu0 0.0
  %1581 = vmatprep.subr.mxu0 0.0
  %1582 = vmatpush1.msra.mxu0 0.0
  %1583 = vmatprep.subr.mxu0 0.0
  %1584 = vmatpush1.msra.mxu0 0.0
  %1585 = vmatprep.subr.mxu0 0.0
  %1586 = vmatpush1.msra.mxu0 0.0
  %1587 = vmatprep.subr.mxu0 0.0
  %1588 = vmatpush1.msra.mxu0 0.0
  %1589 = vmatprep.subr.mxu0 0.0
  %1590 = vmatpush1.msra.mxu0 0.0
  %1591 = vmatprep.subr.mxu0 0.0
  %1592 = vmatpush1.msra.mxu0 0.0
  %1593 = vmatprep.subr.mxu0 0.0
  %1594 = vmatpush1.msra.mxu0 0.0
  %1595 = vmatprep.subr.mxu0 0.0
  %1596 = vmatpush1.msra.mxu0 0.0
  %1597 = vmatprep.subr.mxu0 0.0
  %1598 = vmatpush1.msra.mxu0 0.0
  %1599 = vmatprep.subr.mxu0 0.0
  %1600 = vmatpush1.msra.mxu0 0.0
  %1601 = vmatprep.subr.mxu0 0.0
  %1602 = vmatpush1.msra.mxu0 0.0
  %1603 = vmatprep.subr.mxu0 0.0
  %1604 = vmatpush1.msra.mxu0 0.0
  %1605 = vmatprep.subr.mxu0 0.0
  %1606 = vmatpush1.msra.mxu0 0.0
  %1607 = vmatprep.subr.mxu0 0.0
  %1608 = vmatpush1.msra.mxu0 0.0
  %1609 = vmatprep.subr.mxu0 0.0
  %1610 = vmatpush1.msra.mxu0 0.0
  %1611 = vmatprep.subr.mxu0 0.0
  %1612 = vmatpush1.msra.mxu0 0.0
  %1613 = vmatprep.subr.mxu0 0.0
  %1614 = vmatpush1.msra.mxu0 0.0
  %1615 = vmatprep.subr.mxu0 0.0
  %1616 = vmatpush1.msra.mxu0 0.0
  %1617 = vmatprep.subr.mxu0 0.0
  %1618 = vmatpush1.msra.mxu0 0.0
  %1619 = vmatprep.subr.mxu0 0.0
  %1620 = vmatpush1.msra.mxu0 0.0
  %1621 = vmatprep.subr.mxu0 0.0
  %1622 = vmatpush1.msra.mxu0 0.0
  %1623 = vmatprep.subr.mxu0 0.0
  %1624 = vmatpush1.msra.mxu0 0.0
  %1625 = vmatprep.subr.mxu0 0.0
  %1626 = vmatpush1.msra.mxu0 0.0
  %1627 = vmatprep.subr.mxu0 0.0
  %1628 = vmatpush1.msra.mxu0 0.0
  %1629 = vmatprep.subr.mxu0 0.0
  %1630 = vmatpush1.msra.mxu0 0.0
  %1631 = vmatprep.subr.mxu0 0.0
  %1632 = vmatpush1.msra.mxu0 0.0
  %1633 = vmatprep.mubr.f32.mxu0 0.0
  %1634 = vmatmul.mubr.f32.gmra.mrb[0].mxu0 %v1567
  %v1635 = vpop.f32.mrb[0].mxu0
  %v1636 = vadd.f32 %v166, %v1635
  %v1637 = vpop.f32.mrb[0].mxu0
  %v1638 = vadd.f32 %v170, %v1637
  %1639 = vdwg.mxu0
  %v1641 = vsel %vm259, %v1311, 0
  %1643 = vmatprep.subr.mxu0 %v44
  %1644 = vmatpush1.msra.mxu0 %v43
  %1645 = vmatprep.subr.mxu0 %v46
  %1646 = vmatpush1.msra.mxu0 %v45
  %1647 = vmatprep.subr.mxu0 %v48
  %1648 = vmatpush1.msra.mxu0 %v47
  %1649 = vmatprep.subr.mxu0 %v50
  %1650 = vmatpush1.msra.mxu0 %v49
  %1651 = vmatprep.subr.mxu0 %v52
  %1652 = vmatpush1.msra.mxu0 %v51
  %1653 = vmatprep.subr.mxu0 %v54
  %1654 = vmatpush1.msra.mxu0 %v53
  %1655 = vmatprep.subr.mxu0 %v56
  %1656 = vmatpush1.msra.mxu0 %v55
  %1657 = vmatprep.subr.mxu0 %v58
  %1658 = vmatpush1.msra.mxu0 %v57
  %1659 = vmatprep.subr.mxu0 0.0
  %1660 = vmatpush1.msra.mxu0 0.0
  %1661 = vmatprep.subr.mxu0 0.0
  %1662 = vmatpush1.msra.mxu0 0.0
  %1663 = vmatprep.subr.mxu0 0.0
  %1664 = vmatpush1.msra.mxu0 0.0
  %1665 = vmatprep.subr.mxu0 0.0
  %1666 = vmatpush1.msra.mxu0 0.0
  %1667 = vmatprep.subr.mxu0 0.0
  %1668 = vmatpush1.msra.mxu0 0.0
  %1669 = vmatprep.subr.mxu0 0.0
  %1670 = vmatpush1.msra.mxu0 0.0
  %1671 = vmatprep.subr.mxu0 0.0
  %1672 = vmatpush1.msra.mxu0 0.0
  %1673 = vmatprep.subr.mxu0 0.0
  %1674 = vmatpush1.msra.mxu0 0.0
  %1675 = vmatprep.subr.mxu0 0.0
  %1676 = vmatpush1.msra.mxu0 0.0
  %1677 = vmatprep.subr.mxu0 0.0
  %1678 = vmatpush1.msra.mxu0 0.0
  %1679 = vmatprep.subr.mxu0 0.0
  %1680 = vmatpush1.msra.mxu0 0.0
  %1681 = vmatprep.subr.mxu0 0.0
  %1682 = vmatpush1.msra.mxu0 0.0
  %1683 = vmatprep.subr.mxu0 0.0
  %1684 = vmatpush1.msra.mxu0 0.0
  %1685 = vmatprep.subr.mxu0 0.0
  %1686 = vmatpush1.msra.mxu0 0.0
  %1687 = vmatprep.subr.mxu0 0.0
  %1688 = vmatpush1.msra.mxu0 0.0
  %1689 = vmatprep.subr.mxu0 0.0
  %1690 = vmatpush1.msra.mxu0 0.0
  %1691 = vmatprep.subr.mxu0 0.0
  %1692 = vmatpush1.msra.mxu0 0.0
  %1693 = vmatprep.subr.mxu0 0.0
  %1694 = vmatpush1.msra.mxu0 0.0
  %1695 = vmatprep.subr.mxu0 0.0
  %1696 = vmatpush1.msra.mxu0 0.0
  %1697 = vmatprep.subr.mxu0 0.0
  %1698 = vmatpush1.msra.mxu0 0.0
  %1699 = vmatprep.subr.mxu0 0.0
  %1700 = vmatpush1.msra.mxu0 0.0
  %1701 = vmatprep.subr.mxu0 0.0
  %1702 = vmatpush1.msra.mxu0 0.0
  %1703 = vmatprep.subr.mxu0 0.0
  %1704 = vmatpush1.msra.mxu0 0.0
  %1705 = vmatprep.subr.mxu0 0.0
  %1706 = vmatpush1.msra.mxu0 0.0
  %1707 = vmatprep.mubr.f32.mxu0 0.0
  %1708 = vmatmul.mubr.f32.gmra.mrb[0].mxu0 %v1641
  %v1709 = vpop.f32.mrb[0].mxu0
  %v1710 = vadd.f32 %v252, %v1709
  %v1711 = vpop.f32.mrb[0].mxu0
  %v1712 = vadd.f32 %v256, %v1711
  %1713 = vdwg.mxu0
  %v1714 = vadd.f32 %v1636, %v1710
  %v1715 = vmul.f32 %v1714, 0.5
  %v1716 = vtanh.pop %v1715
  %v1717 = vmul.f32 %v1716, 0.5
  %v1718 = vadd.f32 %v1717, 0.5
  %1720 = vrot.lane.b32.xlu0 %v1710, 64
  %v1721 = vpop.permute.xlu0 %1720
  %v1723 = vmul.f32 %v1718, %v1721
  %1725 = vrot.lane.b32.xlu0 %v1723, 64
  %v1726 = vpop.permute.xlu0 %1725
  %v1728 = vadd.f32 %v1636, %v1726
  %v1729 = vtanh.pop %v1728
  %v1730 = vsub.f32 1.0, %v1718
  %1732 = vrot.lane.b32.xlu0 %v1729, 96
  %v1733 = vpop.permute.xlu0 %1732
  %v1735 = vmul.f32 %v1730, %v1733
  %1736 = vrot.lane.b32.xlu0 %v1311, 32
  %v1737 = vpop.permute.xlu0 %1736
  %v1739 = vmul.f32 %v1718, %v1737
  %v1740 = vadd.f32 %v1735, %v1739
  %v1741 = vadd.f32 %v1638, %v1712
  %v1742 = vmul.f32 %v1741, 0.5
  %v1743 = vtanh.pop %v1742
  %v1744 = vmul.f32 %v1743, 0.5
  %v1745 = vadd.f32 %v1744, 0.5
  %1747 = vrot.lane.b32.xlu0 %v1712, 64
  %v1748 = vpop.permute.xlu0 %1747
  %v1750 = vmul.f32 %v1745, %v1748
  %1752 = vrot.lane.b32.xlu0 %v1750, 64
  %v1753 = vpop.permute.xlu0 %1752
  %v1755 = vadd.f32 %v1638, %v1753
  %v1756 = vtanh.pop %v1755
  %v1757 = vsub.f32 1.0, %v1745
  %1759 = vrot.lane.b32.xlu0 %v1756, 96
  %v1760 = vpop.permute.xlu0 %1759
  %v1762 = vmul.f32 %v1757, %v1760
  %v1763 = vmul.f32 %v1745, %v1311
  %v1764 = vadd.f32 %v1762, %v1763
  %1766 = vrot.lane.b32.xlu0 %v1764, 96
  %v1767 = vpop.permute.xlu0 %1766
  %v1768 = vsel %vm79, %v1767, 0
  %1770 = vmatprep.subr.mxu0 0.0
  %1771 = vmatpush1.msra.mxu0 %v65
  %1772 = vmatprep.subr.mxu0 0.0
  %1773 = vmatpush1.msra.mxu0 %v66
  %1774 = vmatprep.subr.mxu0 0.0
  %1775 = vmatpush1.msra.mxu0 %v67
  %1776 = vmatprep.subr.mxu0 0.0
  %1777 = vmatpush1.msra.mxu0 %v68
  %1778 = vmatprep.subr.mxu0 0.0
  %1779 = vmatpush1.msra.mxu0 0.0
  %1780 = vmatprep.subr.mxu0 0.0
  %1781 = vmatpush1.msra.mxu0 0.0
  %1782 = vmatprep.subr.mxu0 0.0
  %1783 = vmatpush1.msra.mxu0 0.0
  %1784 = vmatprep.subr.mxu0 0.0
  %1785 = vmatpush1.msra.mxu0 0.0
  %1786 = vmatprep.subr.mxu0 0.0
  %1787 = vmatpush1.msra.mxu0 0.0
  %1788 = vmatprep.subr.mxu0 0.0
  %1789 = vmatpush1.msra.mxu0 0.0
  %1790 = vmatprep.subr.mxu0 0.0
  %1791 = vmatpush1.msra.mxu0 0.0
  %1792 = vmatprep.subr.mxu0 0.0
  %1793 = vmatpush1.msra.mxu0 0.0
  %1794 = vmatprep.subr.mxu0 0.0
  %1795 = vmatpush1.msra.mxu0 0.0
  %1796 = vmatprep.subr.mxu0 0.0
  %1797 = vmatpush1.msra.mxu0 0.0
  %1798 = vmatprep.subr.mxu0 0.0
  %1799 = vmatpush1.msra.mxu0 0.0
  %1800 = vmatprep.subr.mxu0 0.0
  %1801 = vmatpush1.msra.mxu0 0.0
  %1802 = vmatprep.subr.mxu0 0.0
  %1803 = vmatpush1.msra.mxu0 0.0
  %1804 = vmatprep.subr.mxu0 0.0
  %1805 = vmatpush1.msra.mxu0 0.0
  %1806 = vmatprep.subr.mxu0 0.0
  %1807 = vmatpush1.msra.mxu0 0.0
  %1808 = vmatprep.subr.mxu0 0.0
  %1809 = vmatpush1.msra.mxu0 0.0
  %1810 = vmatprep.subr.mxu0 0.0
  %1811 = vmatpush1.msra.mxu0 0.0
  %1812 = vmatprep.subr.mxu0 0.0
  %1813 = vmatpush1.msra.mxu0 0.0
  %1814 = vmatprep.subr.mxu0 0.0
  %1815 = vmatpush1.msra.mxu0 0.0
  %1816 = vmatprep.subr.mxu0 0.0
  %1817 = vmatpush1.msra.mxu0 0.0
  %1818 = vmatprep.subr.mxu0 0.0
  %1819 = vmatpush1.msra.mxu0 0.0
  %1820 = vmatprep.subr.mxu0 0.0
  %1821 = vmatpush1.msra.mxu0 0.0
  %1822 = vmatprep.subr.mxu0 0.0
  %1823 = vmatpush1.msra.mxu0 0.0
  %1824 = vmatprep.subr.mxu0 0.0
  %1825 = vmatpush1.msra.mxu0 0.0
  %1826 = vmatprep.subr.mxu0 0.0
  %1827 = vmatpush1.msra.mxu0 0.0
  %1828 = vmatprep.subr.mxu0 0.0
  %1829 = vmatpush1.msra.mxu0 0.0
  %1830 = vmatprep.subr.mxu0 0.0
  %1831 = vmatpush1.msra.mxu0 0.0
  %1832 = vmatprep.subr.mxu0 0.0
  %1833 = vmatpush1.msra.mxu0 0.0
  %1834 = vmatprep.mubr.f32.mxu0 0.0
  %1835 = vmatmul.mubr.f32.gmra.mrb[0].mxu0 %v1768
  %v1836 = vpop.f32.mrb[0].mxu0
  %v1837 = vadd.f32 0.0, %v1836
  %v1838 = vpop.f32.mrb[0].mxu0
  %1839 = vdwg.mxu0
  %1841 = vrot.lane.b32.xlu0 %v1740, 96
  %v1842 = vpop.permute.xlu0 %1841
  %v1843 = vsel %vm79, %v1842, 0
  %1845 = vmatprep.subr.mxu0 0.0
  %1846 = vmatpush1.msra.mxu0 %v61
  %1847 = vmatprep.subr.mxu0 0.0
  %1848 = vmatpush1.msra.mxu0 %v62
  %1849 = vmatprep.subr.mxu0 0.0
  %1850 = vmatpush1.msra.mxu0 %v63
  %1851 = vmatprep.subr.mxu0 0.0
  %1852 = vmatpush1.msra.mxu0 %v64
  %1853 = vmatprep.subr.mxu0 0.0
  %1854 = vmatpush1.msra.mxu0 0.0
  %1855 = vmatprep.subr.mxu0 0.0
  %1856 = vmatpush1.msra.mxu0 0.0
  %1857 = vmatprep.subr.mxu0 0.0
  %1858 = vmatpush1.msra.mxu0 0.0
  %1859 = vmatprep.subr.mxu0 0.0
  %1860 = vmatpush1.msra.mxu0 0.0
  %1861 = vmatprep.subr.mxu0 0.0
  %1862 = vmatpush1.msra.mxu0 0.0
  %1863 = vmatprep.subr.mxu0 0.0
  %1864 = vmatpush1.msra.mxu0 0.0
  %1865 = vmatprep.subr.mxu0 0.0
  %1866 = vmatpush1.msra.mxu0 0.0
  %1867 = vmatprep.subr.mxu0 0.0
  %1868 = vmatpush1.msra.mxu0 0.0
  %1869 = vmatprep.subr.mxu0 0.0
  %1870 = vmatpush1.msra.mxu0 0.0
  %1871 = vmatprep.subr.mxu0 0.0
  %1872 = vmatpush1.msra.mxu0 0.0
  %1873 = vmatprep.subr.mxu0 0.0
  %1874 = vmatpush1.msra.mxu0 0.0
  %1875 = vmatprep.subr.mxu0 0.0
  %1876 = vmatpush1.msra.mxu0 0.0
  %1877 = vmatprep.subr.mxu0 0.0
  %1878 = vmatpush1.msra.mxu0 0.0
  %1879 = vmatprep.subr.mxu0 0.0
  %1880 = vmatpush1.msra.mxu0 0.0
  %1881 = vmatprep.subr.mxu0 0.0
  %1882 = vmatpush1.msra.mxu0 0.0
  %1883 = vmatprep.subr.mxu0 0.0
  %1884 = vmatpush1.msra.mxu0 0.0
  %1885 = vmatprep.subr.mxu0 0.0
  %1886 = vmatpush1.msra.mxu0 0.0
  %1887 = vmatprep.subr.mxu0 0.0
  %1888 = vmatpush1.msra.mxu0 0.0
  %1889 = vmatprep.subr.mxu0 0.0
  %1890 = vmatpush1.msra.mxu0 0.0
  %1891 = vmatprep.subr.mxu0 0.0
  %1892 = vmatpush1.msra.mxu0 0.0
  %1893 = vmatprep.subr.mxu0 0.0
  %1894 = vmatpush1.msra.mxu0 0.0
  %1895 = vmatprep.subr.mxu0 0.0
  %1896 = vmatpush1.msra.mxu0 0.0
  %1897 = vmatprep.subr.mxu0 0.0
  %1898 = vmatpush1.msra.mxu0 0.0
  %1899 = vmatprep.subr.mxu0 0.0
  %1900 = vmatpush1.msra.mxu0 0.0
  %1901 = vmatprep.subr.mxu0 0.0
  %1902 = vmatpush1.msra.mxu0 0.0
  %1903 = vmatprep.subr.mxu0 0.0
  %1904 = vmatpush1.msra.mxu0 0.0
  %1905 = vmatprep.subr.mxu0 0.0
  %1906 = vmatpush1.msra.mxu0 0.0
  %1907 = vmatprep.subr.mxu0 0.0
  %1908 = vmatpush1.msra.mxu0 0.0
  %1909 = vmatprep.mubr.f32.mxu0 0.0
  %1910 = vmatmul.mubr.f32.gmra.mrb[0].mxu0 %v1843
  %v1911 = vpop.f32.mrb[0].mxu0
  %v1912 = vadd.f32 %v1837, %v1911
  %v1913 = vpop.f32.mrb[0].mxu0
  %1914 = vdwg.mxu0
  %v1915 = vadd.f32 %v1912, %v541
  %s1916 = scalar_lea.vmem %s10, 32
  %1917 = vst [vmem:[%s1916] sm:$0xff] %v1915
  // Predicated region
  $region42: #{seq2seq_forward.3} parent=0 // pred_check
    _
  $region43: #{seq2seq_forward.3} parent=0 // pred_check_branch
    %1919 = sbr.rel (0) target = $region45
  $region44: #{seq2seq_forward.3} parent=0 // pred_region
    _
  $region45: #{seq2seq_forward.3} parent=0 // pred_fallthru
    _
  // Predicated region
  $region46: #{seq2seq_forward.3} parent=0 // pred_check
    _
  $region47: #{seq2seq_forward.3} parent=0 // pred_check_branch
    %1921 = sbr.rel (0) target = $region49
  $region48: #{seq2seq_forward.3} parent=0 // pred_region
    _
  $region49: #{seq2seq_forward.3} parent=0 // pred_fallthru
    _

// kernel: seq2seq_forward.2
$region0: #{seq2seq_forward.2}
  #allocation0 [shape = 'u32[]', space=smem, size = 0x4, offset = 0x4, fixed_abs, tag = 'smem constant byte address 0x4 - core index']
  #allocation1 [shape = 'u32[144,128]{1,0:T(1,128)}', space=vmem, size = 0x12000, scoped, tag = 'internal scratch']
  #allocation2 [shape = 'f32[1,1]{1,0:T(1,128)S(1)}', space=vmem, size = 0x200, scoped, tag = 'scoped memory for seq2seq_forward.2']
  %s0 = inlined_call_operand.vmem [shape: f32[48,16], index: 0, kind: input, shape index: {}]
  %s1 = inlined_call_operand.vmem [shape: f32[64,16], index: 1, kind: input, shape index: {}, may-alias: {1,2}]
  %s2 = inlined_call_operand.vmem [shape: f32[8,8,16], index: 2, kind: input, shape index: {}, may-alias: {1,2}]
  %s3 = inlined_call_operand.vmem [shape: f32[3,16,256], index: 3, kind: input, shape index: {}]
  %s4 = inlined_call_operand.vmem [shape: f32[3,64,256], index: 4, kind: input, shape index: {}]
  %s5 = inlined_call_operand.vmem [shape: f32[3,1,256], index: 5, kind: input, shape index: {}]
  %s6 = inlined_call_operand.vmem [shape: f32[3,1,256], index: 6, kind: input, shape index: {}]
  %s7 = inlined_call_operand.vmem [shape: f32[64,32], index: 7, kind: input, shape index: {}]
  %s8 = inlined_call_operand.vmem [shape: f32[1,32], index: 8, kind: input, shape index: {}]
  %s9 = inlined_call_operand.vmem [shape: f32[1,32], index: 9, kind: input, shape index: {}]
  %s10 = inlined_call_operand.vmem [shape: f32[1,16], index: 10, kind: input, shape index: {}]
  %s11 = inlined_call_operand.<no memory space> [shape: f32[1,1], index: 11, kind: input, shape index: {}]
  %s12 = inlined_call_operand.vmem [shape: f32[64,32], index: 12, kind: input, shape index: {}]
  %s13 = inlined_call_operand.vmem [shape: f32[1,32], index: 13, kind: input, shape index: {}]
  %s14 = inlined_call_operand.vmem [shape: f32[2,8,32], index: 14, kind: output, shape index: {}]
  %s15 = sld [smem:[#allocation0]]
  $region66: #{seq2seq_forward.2} parent=0
    _
  %s17 = ssub.s32 1, %s15
  %s18 = scalar_select 0, %s17, %s15
  %v19 = vstv %s11
  %20 = vst [vmem:[#allocation2] sm:$0x1] %v19
  // Predicated region
  $region2: #{seq2seq_forward.2} parent=0 // pred_check
    _
  $region3: #{seq2seq_forward.2} parent=0 // pred_check_branch
    %22 = sbr.rel (0) target = $region5
  $region4: #{seq2seq_forward.2} parent=0 // pred_region
    _
  $region5: #{seq2seq_forward.2} parent=0 // pred_fallthru
    _
  // Predicated region
  $region6: #{seq2seq_forward.2} parent=0 // pred_check
    _
  $region7: #{seq2seq_forward.2} parent=0 // pred_check_branch
    %24 = sbr.rel (0) target = $region9
  $region8: #{seq2seq_forward.2} parent=0 // pred_region
    _
  $region9: #{seq2seq_forward.2} parent=0 // pred_fallthru
    _
  // Predicated region
  $region10: #{seq2seq_forward.2} parent=0 // pred_check
    _
  $region11: #{seq2seq_forward.2} parent=0 // pred_check_branch
    %26 = sbr.rel (0) target = $region13
  $region12: #{seq2seq_forward.2} parent=0 // pred_region
    _
  $region13: #{seq2seq_forward.2} parent=0 // pred_fallthru
    _
  // Predicated region
  $region14: #{seq2seq_forward.2} parent=0 // pred_check
    _
  $region15: #{seq2seq_forward.2} parent=0 // pred_check_branch
    %28 = sbr.rel (0) target = $region17
  $region16: #{seq2seq_forward.2} parent=0 // pred_region
    _
  $region17: #{seq2seq_forward.2} parent=0 // pred_fallthru
    _
  // Predicated region
  $region18: #{seq2seq_forward.2} parent=0 // pred_check
    _
  $region19: #{seq2seq_forward.2} parent=0 // pred_check_branch
    %30 = sbr.rel (0) target = $region21
  $region20: #{seq2seq_forward.2} parent=0 // pred_region
    _
  $region21: #{seq2seq_forward.2} parent=0 // pred_fallthru
    _
  // Predicated region
  $region22: #{seq2seq_forward.2} parent=0 // pred_check
    _
  $region23: #{seq2seq_forward.2} parent=0 // pred_check_branch
    %32 = sbr.rel (0) target = $region25
  $region24: #{seq2seq_forward.2} parent=0 // pred_region
    _
  $region25: #{seq2seq_forward.2} parent=0 // pred_fallthru
    _
  // Predicated region
  $region26: #{seq2seq_forward.2} parent=0 // pred_check
    _
  $region27: #{seq2seq_forward.2} parent=0 // pred_check_branch
    %34 = sbr.rel (0) target = $region29
  $region28: #{seq2seq_forward.2} parent=0 // pred_region
    _
  $region29: #{seq2seq_forward.2} parent=0 // pred_fallthru
    _
  // Predicated region
  $region30: #{seq2seq_forward.2} parent=0 // pred_check
    _
  $region31: #{seq2seq_forward.2} parent=0 // pred_check_branch
    %36 = sbr.rel (0) target = $region33
  $region32: #{seq2seq_forward.2} parent=0 // pred_region
    _
  $region33: #{seq2seq_forward.2} parent=0 // pred_fallthru
    _
  // Predicated region
  $region34: #{seq2seq_forward.2} parent=0 // pred_check
    _
  $region35: #{seq2seq_forward.2} parent=0 // pred_check_branch
    %38 = sbr.rel (0) target = $region37
  $region36: #{seq2seq_forward.2} parent=0 // pred_region
    _
  $region37: #{seq2seq_forward.2} parent=0 // pred_fallthru
    _
  // Predicated region
  $region38: #{seq2seq_forward.2} parent=0 // pred_check
    _
  $region39: #{seq2seq_forward.2} parent=0 // pred_check_branch
    %40 = sbr.rel (0) target = $region41
  $region40: #{seq2seq_forward.2} parent=0 // pred_region
    _
  $region41: #{seq2seq_forward.2} parent=0 // pred_fallthru
    _
  // Predicated region
  $region42: #{seq2seq_forward.2} parent=0 // pred_check
    _
  $region43: #{seq2seq_forward.2} parent=0 // pred_check_branch
    %42 = sbr.rel (0) target = $region45
  $region44: #{seq2seq_forward.2} parent=0 // pred_region
    _
  $region45: #{seq2seq_forward.2} parent=0 // pred_fallthru
    _
  // Predicated region
  $region46: #{seq2seq_forward.2} parent=0 // pred_check
    _
  $region47: #{seq2seq_forward.2} parent=0 // pred_check_branch
    %44 = sbr.rel (0) target = $region49
  $region48: #{seq2seq_forward.2} parent=0 // pred_region
    _
  $region49: #{seq2seq_forward.2} parent=0 // pred_fallthru
    _
  // Predicated region
  $region50: #{seq2seq_forward.2} parent=0 // pred_check
    _
  $region51: #{seq2seq_forward.2} parent=0 // pred_check_branch
    %46 = sbr.rel (0) target = $region53
  $region52: #{seq2seq_forward.2} parent=0 // pred_region
    _
  $region53: #{seq2seq_forward.2} parent=0 // pred_fallthru
    _
  // Predicated region
  $region54: #{seq2seq_forward.2} parent=0 // pred_check
    _
  $region55: #{seq2seq_forward.2} parent=0 // pred_check_branch
    %48 = sbr.rel (0) target = $region57
  $region56: #{seq2seq_forward.2} parent=0 // pred_region
    _
  $region57: #{seq2seq_forward.2} parent=0 // pred_fallthru
    _
  %v49 = vld [vmem:[%s0] sm:$0xff]
  %v50 = vld [vmem:[%s0 + $0x8] sm:$0xff]
  %v51 = vld [vmem:[%s0 + $0x10] sm:$0xff]
  %v52 = vld [vmem:[%s0 + $0x18] sm:$0xff]
  %v53 = vld [vmem:[%s0 + $0x20] sm:$0xff]
  %v54 = vld [vmem:[%s0 + $0x28] sm:$0xff]
  %v55 = vld [vmem:[%s3] sm:$0xff]
  %v56 = vld [vmem:[%s3 + $0x8] sm:$0xff]
  %v57 = vld [vmem:[%s3 + $0x10] sm:$0xff]
  %v58 = vld [vmem:[%s3 + $0x18] sm:$0xff]
  %v59 = vld [vmem:[%s5] sm:$0x3]
  %v61 = vlaneseq
  %v62 = vshrl.u32 %v61, 7
  %v63 = vsub.s32 0, %v62
  %v64 = vrot.slane %v59, %v63
  %v65 = vlaneseq
  %v66 = vshrl.u32 %v65, 7
  %v67 = vsub.s32 1, %v66
  %v68 = vrot.slane %v59, %v67
  %vm71 = vcmask 130048
  %v73 = vsel %vm71, %v49, 0
  %v76 = vsel %vm71, %v50, 0
  %v79 = vsel %vm71, %v51, 0
  %v82 = vsel %vm71, %v52, 0
  %v85 = vsel %vm71, %v53, 0
  %v88 = vsel %vm71, %v54, 0
  %90 = vmatprep.subr.mxu0 %v56
  %91 = vmatpush1.msra.mxu0 %v55
  %92 = vmatprep.subr.mxu0 %v58
  %93 = vmatpush1.msra.mxu0 %v57
  %94 = vmatprep.subr.mxu0 0.0
  %95 = vmatpush1.msra.mxu0 0.0
  %96 = vmatprep.subr.mxu0 0.0
  %97 = vmatpush1.msra.mxu0 0.0
  %98 = vmatprep.subr.mxu0 0.0
  %99 = vmatpush1.msra.mxu0 0.0
  %100 = vmatprep.subr.mxu0 0.0
  %101 = vmatpush1.msra.mxu0 0.0
  %102 = vmatprep.subr.mxu0 0.0
  %103 = vmatpush1.msra.mxu0 0.0
  %104 = vmatprep.subr.mxu0 0.0
  %105 = vmatpush1.msra.mxu0 0.0
  %106 = vmatprep.subr.mxu0 0.0
  %107 = vmatpush1.msra.mxu0 0.0
  %108 = vmatprep.subr.mxu0 0.0
  %109 = vmatpush1.msra.mxu0 0.0
  %110 = vmatprep.subr.mxu0 0.0
  %111 = vmatpush1.msra.mxu0 0.0
  %112 = vmatprep.subr.mxu0 0.0
  %113 = vmatpush1.msra.mxu0 0.0
  %114 = vmatprep.subr.mxu0 0.0
  %115 = vmatpush1.msra.mxu0 0.0
  %116 = vmatprep.subr.mxu0 0.0
  %117 = vmatpush1.msra.mxu0 0.0
  %118 = vmatprep.subr.mxu0 0.0
  %119 = vmatpush1.msra.mxu0 0.0
  %120 = vmatprep.subr.mxu0 0.0
  %121 = vmatpush1.msra.mxu0 0.0
  %122 = vmatprep.subr.mxu0 0.0
  %123 = vmatpush1.msra.mxu0 0.0
  %124 = vmatprep.subr.mxu0 0.0
  %125 = vmatpush1.msra.mxu0 0.0
  %126 = vmatprep.subr.mxu0 0.0
  %127 = vmatpush1.msra.mxu0 0.0
  %128 = vmatprep.subr.mxu0 0.0
  %129 = vmatpush1.msra.mxu0 0.0
  %130 = vmatprep.subr.mxu0 0.0
  %131 = vmatpush1.msra.mxu0 0.0
  %132 = vmatprep.subr.mxu0 0.0
  %133 = vmatpush1.msra.mxu0 0.0
  %134 = vmatprep.subr.mxu0 0.0
  %135 = vmatpush1.msra.mxu0 0.0
  %136 = vmatprep.subr.mxu0 0.0
  %137 = vmatpush1.msra.mxu0 0.0
  %138 = vmatprep.subr.mxu0 0.0
  %139 = vmatpush1.msra.mxu0 0.0
  %140 = vmatprep.subr.mxu0 0.0
  %141 = vmatpush1.msra.mxu0 0.0
  %142 = vmatprep.subr.mxu0 0.0
  %143 = vmatpush1.msra.mxu0 0.0
  %144 = vmatprep.subr.mxu0 0.0
  %145 = vmatpush1.msra.mxu0 0.0
  %146 = vmatprep.subr.mxu0 0.0
  %147 = vmatpush1.msra.mxu0 0.0
  %148 = vmatprep.subr.mxu0 0.0
  %149 = vmatpush1.msra.mxu0 0.0
  %150 = vmatprep.subr.mxu0 0.0
  %151 = vmatpush1.msra.mxu0 0.0
  %152 = vmatprep.subr.mxu0 0.0
  %153 = vmatpush1.msra.mxu0 0.0
  %154 = vmatprep.mubr.f32.mxu0 0.0
  %155 = vmatmul.mubr.f32.gmra.mrb[0].mxu0 %v73
  %v156 = vpop.f32.mrb[0].mxu0
  %v157 = vadd.f32 %v64, %v156
  %v158 = vpop.f32.mrb[0].mxu0
  %v159 = vadd.f32 %v68, %v158
  %160 = vmatprep.mubr.f32.mxu0 0.0
  %161 = vmatmul.mubr.f32.gmra.mrb[0].mxu0 %v76
  %v162 = vpop.f32.mrb[0].mxu0
  %v163 = vadd.f32 %v64, %v162
  %v164 = vpop.f32.mrb[0].mxu0
  %v165 = vadd.f32 %v68, %v164
  %166 = vmatprep.mubr.f32.mxu0 0.0
  %167 = vmatmul.mubr.f32.gmra.mrb[0].mxu0 %v79
  %v168 = vpop.f32.mrb[0].mxu0
  %v169 = vadd.f32 %v64, %v168
  %v170 = vpop.f32.mrb[0].mxu0
  %v171 = vadd.f32 %v68, %v170
  %172 = vmatprep.mubr.f32.mxu0 0.0
  %173 = vmatmul.mubr.f32.gmra.mrb[0].mxu0 %v82
  %v174 = vpop.f32.mrb[0].mxu0
  %v175 = vadd.f32 %v64, %v174
  %v176 = vpop.f32.mrb[0].mxu0
  %v177 = vadd.f32 %v68, %v176
  %178 = vmatprep.mubr.f32.mxu0 0.0
  %179 = vmatmul.mubr.f32.gmra.mrb[0].mxu0 %v85
  %v180 = vpop.f32.mrb[0].mxu0
  %v181 = vadd.f32 %v64, %v180
  %v182 = vpop.f32.mrb[0].mxu0
  %v183 = vadd.f32 %v68, %v182
  %184 = vmatprep.mubr.f32.mxu0 0.0
  %185 = vmatmul.mubr.f32.gmra.mrb[0].mxu0 %v88
  %v186 = vpop.f32.mrb[0].mxu0
  %v187 = vadd.f32 %v64, %v186
  %v188 = vpop.f32.mrb[0].mxu0
  %v189 = vadd.f32 %v68, %v188
  %190 = vdwg.mxu0
  %v191 = vld [vmem:[%s1] sm:$0xff]
  %v192 = vld [vmem:[%s1 + $0x8] sm:$0xff]
  %v193 = vld [vmem:[%s1 + $0x10] sm:$0xff]
  %v194 = vld [vmem:[%s1 + $0x18] sm:$0xff]
  %v195 = vld [vmem:[%s1 + $0x20] sm:$0xff]
  %v196 = vld [vmem:[%s1 + $0x28] sm:$0xff]
  %v197 = vld [vmem:[%s1 + $0x30] sm:$0xff]
  %v198 = vld [vmem:[%s1 + $0x38] sm:$0xff]
  %s199 = scalar_lea.vmem %s3, 32
  %v200 = vld [vmem:[%s199] sm:$0xff]
  %v201 = vld [vmem:[%s199 + $0x8] sm:$0xff]
  %v202 = vld [vmem:[%s199 + $0x10] sm:$0xff]
  %v203 = vld [vmem:[%s199 + $0x18] sm:$0xff]
  %s204 = scalar_lea.vmem %s5, 2
  %v205 = vld [vmem:[%s204] sm:$0x3]
  %v207 = vlaneseq
  %v208 = vshrl.u32 %v207, 7
  %v209 = vsub.s32 0, %v208
  %v210 = vrot.slane %v205, %v209
  %v211 = vlaneseq
  %v212 = vshrl.u32 %v211, 7
  %v213 = vsub.s32 1, %v212
  %v214 = vrot.slane %v205, %v213
  %v218 = vsel %vm71, %v191, 0
  %v221 = vsel %vm71, %v192, 0
  %v224 = vsel %vm71, %v193, 0
  %v227 = vsel %vm71, %v194, 0
  %v230 = vsel %vm71, %v195, 0
  %v233 = vsel %vm71, %v196, 0
  %v236 = vsel %vm71, %v197, 0
  %v239 = vsel %vm71, %v198, 0
  %241 = vmatprep.subr.mxu0 %v201
  %242 = vmatpush1.msra.mxu0 %v200
  %243 = vmatprep.subr.mxu0 %v203
  %244 = vmatpush1.msra.mxu0 %v202
  %245 = vmatprep.subr.mxu0 0.0
  %246 = vmatpush1.msra.mxu0 0.0
  %247 = vmatprep.subr.mxu0 0.0
  %248 = vmatpush1.msra.mxu0 0.0
  %249 = vmatprep.subr.mxu0 0.0
  %250 = vmatpush1.msra.mxu0 0.0
  %251 = vmatprep.subr.mxu0 0.0
  %252 = vmatpush1.msra.mxu0 0.0
  %253 = vmatprep.subr.mxu0 0.0
  %254 = vmatpush1.msra.mxu0 0.0
  %255 = vmatprep.subr.mxu0 0.0
  %256 = vmatpush1.msra.mxu0 0.0
  %257 = vmatprep.subr.mxu0 0.0
  %258 = vmatpush1.msra.mxu0 0.0
  %259 = vmatprep.subr.mxu0 0.0
  %260 = vmatpush1.msra.mxu0 0.0
  %261 = vmatprep.subr.mxu0 0.0
  %262 = vmatpush1.msra.mxu0 0.0
  %263 = vmatprep.subr.mxu0 0.0
  %264 = vmatpush1.msra.mxu0 0.0
  %265 = vmatprep.subr.mxu0 0.0
  %266 = vmatpush1.msra.mxu0 0.0
  %267 = vmatprep.subr.mxu0 0.0
  %268 = vmatpush1.msra.mxu0 0.0
  %269 = vmatprep.subr.mxu0 0.0
  %270 = vmatpush1.msra.mxu0 0.0
  %271 = vmatprep.subr.mxu0 0.0
  %272 = vmatpush1.msra.mxu0 0.0
  %273 = vmatprep.subr.mxu0 0.0
  %274 = vmatpush1.msra.mxu0 0.0
  %275 = vmatprep.subr.mxu0 0.0
  %276 = vmatpush1.msra.mxu0 0.0
  %277 = vmatprep.subr.mxu0 0.0
  %278 = vmatpush1.msra.mxu0 0.0
  %279 = vmatprep.subr.mxu0 0.0
  %280 = vmatpush1.msra.mxu0 0.0
  %281 = vmatprep.subr.mxu0 0.0
  %282 = vmatpush1.msra.mxu0 0.0
  %283 = vmatprep.subr.mxu0 0.0
  %284 = vmatpush1.msra.mxu0 0.0
  %285 = vmatprep.subr.mxu0 0.0
  %286 = vmatpush1.msra.mxu0 0.0
  %287 = vmatprep.subr.mxu0 0.0
  %288 = vmatpush1.msra.mxu0 0.0
  %289 = vmatprep.subr.mxu0 0.0
  %290 = vmatpush1.msra.mxu0 0.0
  %291 = vmatprep.subr.mxu0 0.0
  %292 = vmatpush1.msra.mxu0 0.0
  %293 = vmatprep.subr.mxu0 0.0
  %294 = vmatpush1.msra.mxu0 0.0
  %295 = vmatprep.subr.mxu0 0.0
  %296 = vmatpush1.msra.mxu0 0.0
  %297 = vmatprep.subr.mxu0 0.0
  %298 = vmatpush1.msra.mxu0 0.0
  %299 = vmatprep.subr.mxu0 0.0
  %300 = vmatpush1.msra.mxu0 0.0
  %301 = vmatprep.subr.mxu0 0.0
  %302 = vmatpush1.msra.mxu0 0.0
  %303 = vmatprep.subr.mxu0 0.0
  %304 = vmatpush1.msra.mxu0 0.0
  %305 = vmatprep.mubr.f32.mxu0 0.0
  %306 = vmatmul.mubr.f32.gmra.mrb[0].mxu0 %v218
  %v307 = vpop.f32.mrb[0].mxu0
  %v308 = vadd.f32 %v210, %v307
  %v309 = vpop.f32.mrb[0].mxu0
  %v310 = vadd.f32 %v214, %v309
  %311 = vmatprep.mubr.f32.mxu0 0.0
  %312 = vmatmul.mubr.f32.gmra.mrb[0].mxu0 %v221
  %v313 = vpop.f32.mrb[0].mxu0
  %v314 = vadd.f32 %v210, %v313
  %v315 = vpop.f32.mrb[0].mxu0
  %v316 = vadd.f32 %v214, %v315
  %317 = vmatprep.mubr.f32.mxu0 0.0
  %318 = vmatmul.mubr.f32.gmra.mrb[0].mxu0 %v224
  %v319 = vpop.f32.mrb[0].mxu0
  %v320 = vadd.f32 %v210, %v319
  %v321 = vpop.f32.mrb[0].mxu0
  %v322 = vadd.f32 %v214, %v321
  %323 = vmatprep.mubr.f32.mxu0 0.0
  %324 = vmatmul.mubr.f32.gmra.mrb[0].mxu0 %v227
  %v325 = vpop.f32.mrb[0].mxu0
  %v326 = vadd.f32 %v210, %v325
  %v327 = vpop.f32.mrb[0].mxu0
  %v328 = vadd.f32 %v214, %v327
  %329 = vmatprep.mubr.f32.mxu0 0.0
  %330 = vmatmul.mubr.f32.gmra.mrb[0].mxu0 %v230
  %v331 = vpop.f32.mrb[0].mxu0
  %v332 = vadd.f32 %v210, %v331
  %v333 = vpop.f32.mrb[0].mxu0
  %v334 = vadd.f32 %v214, %v333
  %335 = vmatprep.mubr.f32.mxu0 0.0
  %336 = vmatmul.mubr.f32.gmra.mrb[0].mxu0 %v233
  %v337 = vpop.f32.mrb[0].mxu0
  %v338 = vadd.f32 %v210, %v337
  %v339 = vpop.f32.mrb[0].mxu0
  %v340 = vadd.f32 %v214, %v339
  %341 = vmatprep.mubr.f32.mxu0 0.0
  %342 = vmatmul.mubr.f32.gmra.mrb[0].mxu0 %v236
  %v343 = vpop.f32.mrb[0].mxu0
  %v344 = vadd.f32 %v210, %v343
  %v345 = vpop.f32.mrb[0].mxu0
  %v346 = vadd.f32 %v214, %v345
  %347 = vmatprep.mubr.f32.mxu0 0.0
  %348 = vmatmul.mubr.f32.gmra.mrb[0].mxu0 %v239
  %v349 = vpop.f32.mrb[0].mxu0
  %v350 = vadd.f32 %v210, %v349
  %v351 = vpop.f32.mrb[0].mxu0
  %v352 = vadd.f32 %v214, %v351
  %353 = vdwg.mxu0
  %v354 = vld [vmem:[%s4] sm:$0xff]
  %v355 = vld [vmem:[%s4 + $0x8] sm:$0xff]
  %v356 = vld [vmem:[%s4 + $0x10] sm:$0xff]
  %v357 = vld [vmem:[%s4 + $0x18] sm:$0xff]
  %v358 = vld [vmem:[%s4 + $0x20] sm:$0xff]
  %v359 = vld [vmem:[%s4 + $0x28] sm:$0xff]
  %v360 = vld [vmem:[%s4 + $0x30] sm:$0xff]
  %v361 = vld [vmem:[%s4 + $0x38] sm:$0xff]
  %v362 = vld [vmem:[%s4 + $0x40] sm:$0xff]
  %v363 = vld [vmem:[%s4 + $0x48] sm:$0xff]
  %v364 = vld [vmem:[%s4 + $0x50] sm:$0xff]
  %v365 = vld [vmem:[%s4 + $0x58] sm:$0xff]
  %v366 = vld [vmem:[%s4 + $0x60] sm:$0xff]
  %v367 = vld [vmem:[%s4 + $0x68] sm:$0xff]
  %v368 = vld [vmem:[%s4 + $0x70] sm:$0xff]
  %v369 = vld [vmem:[%s4 + $0x78] sm:$0xff]
  %v370 = vld [vmem:[%s6] sm:$0x3]
  %s371 = scalar_lea.vmem %s4, 128
  %v372 = vld [vmem:[%s371] sm:$0xff]
  %v373 = vld [vmem:[%s371 + $0x8] sm:$0xff]
  %v374 = vld [vmem:[%s371 + $0x10] sm:$0xff]
  %v375 = vld [vmem:[%s371 + $0x18] sm:$0xff]
  %v376 = vld [vmem:[%s371 + $0x20] sm:$0xff]
  %v377 = vld [vmem:[%s371 + $0x28] sm:$0xff]
  %v378 = vld [vmem:[%s371 + $0x30] sm:$0xff]
  %v379 = vld [vmem:[%s371 + $0x38] sm:$0xff]
  %v380 = vld [vmem:[%s371 + $0x40] sm:$0xff]
  %v381 = vld [vmem:[%s371 + $0x48] sm:$0xff]
  %v382 = vld [vmem:[%s371 + $0x50] sm:$0xff]
  %v383 = vld [vmem:[%s371 + $0x58] sm:$0xff]
  %v384 = vld [vmem:[%s371 + $0x60] sm:$0xff]
  %v385 = vld [vmem:[%s371 + $0x68] sm:$0xff]
  %v386 = vld [vmem:[%s371 + $0x70] sm:$0xff]
  %v387 = vld [vmem:[%s371 + $0x78] sm:$0xff]
  %s388 = scalar_lea.vmem %s6, 2
  %v389 = vld [vmem:[%s388] sm:$0x3]
  %v391 = vlaneseq
  %v392 = vshrl.u32 %v391, 7
  %v393 = vsub.s32 0, %v392
  %v394 = vrot.slane %v370, %v393
  %v395 = vlaneseq
  %v396 = vshrl.u32 %v395, 7
  %v397 = vsub.s32 1, %v396
  %v398 = vrot.slane %v370, %v397
  %vm401 = vcmask 523264
  %v403 = vsel %vm401, 0.0, 0
  %405 = vmatprep.subr.mxu0 %v355
  %406 = vmatpush1.msra.mxu0 %v354
  %407 = vmatprep.subr.mxu0 %v357
  %408 = vmatpush1.msra.mxu0 %v356
  %409 = vmatprep.subr.mxu0 %v359
  %410 = vmatpush1.msra.mxu0 %v358
  %411 = vmatprep.subr.mxu0 %v361
  %412 = vmatpush1.msra.mxu0 %v360
  %413 = vmatprep.subr.mxu0 %v363
  %414 = vmatpush1.msra.mxu0 %v362
  %415 = vmatprep.subr.mxu0 %v365
  %416 = vmatpush1.msra.mxu0 %v364
  %417 = vmatprep.subr.mxu0 %v367
  %418 = vmatpush1.msra.mxu0 %v366
  %419 = vmatprep.subr.mxu0 %v369
  %420 = vmatpush1.msra.mxu0 %v368
  %421 = vmatprep.subr.mxu0 0.0
  %422 = vmatpush1.msra.mxu0 0.0
  %423 = vmatprep.subr.mxu0 0.0
  %424 = vmatpush1.msra.mxu0 0.0
  %425 = vmatprep.subr.mxu0 0.0
  %426 = vmatpush1.msra.mxu0 0.0
  %427 = vmatprep.subr.mxu0 0.0
  %428 = vmatpush1.msra.mxu0 0.0
  %429 = vmatprep.subr.mxu0 0.0
  %430 = vmatpush1.msra.mxu0 0.0
  %431 = vmatprep.subr.mxu0 0.0
  %432 = vmatpush1.msra.mxu0 0.0
  %433 = vmatprep.subr.mxu0 0.0
  %434 = vmatpush1.msra.mxu0 0.0
  %435 = vmatprep.subr.mxu0 0.0
  %436 = vmatpush1.msra.mxu0 0.0
  %437 = vmatprep.subr.mxu0 0.0
  %438 = vmatpush1.msra.mxu0 0.0
  %439 = vmatprep.subr.mxu0 0.0
  %440 = vmatpush1.msra.mxu0 0.0
  %441 = vmatprep.subr.mxu0 0.0
  %442 = vmatpush1.msra.mxu0 0.0
  %443 = vmatprep.subr.mxu0 0.0
  %444 = vmatpush1.msra.mxu0 0.0
  %445 = vmatprep.subr.mxu0 0.0
  %446 = vmatpush1.msra.mxu0 0.0
  %447 = vmatprep.subr.mxu0 0.0
  %448 = vmatpush1.msra.mxu0 0.0
  %449 = vmatprep.subr.mxu0 0.0
  %450 = vmatpush1.msra.mxu0 0.0
  %451 = vmatprep.subr.mxu0 0.0
  %452 = vmatpush1.msra.mxu0 0.0
  %453 = vmatprep.subr.mxu0 0.0
  %454 = vmatpush1.msra.mxu0 0.0
  %455 = vmatprep.subr.mxu0 0.0
  %456 = vmatpush1.msra.mxu0 0.0
  %457 = vmatprep.subr.mxu0 0.0
  %458 = vmatpush1.msra.mxu0 0.0
  %459 = vmatprep.subr.mxu0 0.0
  %460 = vmatpush1.msra.mxu0 0.0
  %461 = vmatprep.subr.mxu0 0.0
  %462 = vmatpush1.msra.mxu0 0.0
  %463 = vmatprep.subr.mxu0 0.0
  %464 = vmatpush1.msra.mxu0 0.0
  %465 = vmatprep.subr.mxu0 0.0
  %466 = vmatpush1.msra.mxu0 0.0
  %467 = vmatprep.subr.mxu0 0.0
  %468 = vmatpush1.msra.mxu0 0.0
  %469 = vmatprep.mubr.f32.mxu0 0.0
  %470 = vmatmul.mubr.f32.gmra.mrb[0].mxu0 %v403
  %v471 = vpop.f32.mrb[0].mxu0
  %v472 = vadd.f32 %v394, %v471
  %v473 = vpop.f32.mrb[0].mxu0
  %v474 = vadd.f32 %v398, %v473
  %475 = vdwg.mxu0
  %v476 = vadd.f32 %v157, %v472
  %v477 = vmul.f32 %v476, 0.5
  %v478 = vtanh.pop %v477
  %v479 = vmul.f32 %v478, 0.5
  %v480 = vadd.f32 %v479, 0.5
  %482 = vrot.lane.b32.xlu0 %v472, 64
  %v483 = vpop.permute.xlu0 %482
  %v485 = vmul.f32 %v480, %v483
  %487 = vrot.lane.b32.xlu0 %v485, 64
  %v488 = vpop.permute.xlu0 %487
  %v490 = vadd.f32 %v157, %v488
  %v491 = vtanh.pop %v490
  %v492 = vsub.f32 1.0, %v480
  %494 = vrot.lane.b32.xlu0 %v491, 96
  %v495 = vpop.permute.xlu0 %494
  %v497 = vmul.f32 %v492, %v495
  %v498 = vmul.f32 %v480, 0.0
  %v499 = vadd.f32 %v497, %v498
  %v500 = vadd.f32 %v189, %v474
  %v501 = vmul.f32 %v500, 0.5
  %v502 = vtanh.pop %v501
  %v503 = vmul.f32 %v502, 0.5
  %v504 = vadd.f32 %v503, 0.5
  %506 = vrot.lane.b32.xlu0 %v474, 64
  %v507 = vpop.permute.xlu0 %506
  %v509 = vmul.f32 %v504, %v507
  %511 = vrot.lane.b32.xlu0 %v509, 64
  %v512 = vpop.permute.xlu0 %511
  %v514 = vadd.f32 %v189, %v512
  %v515 = vtanh.pop %v514
  %v516 = vsub.f32 1.0, %v504
  %518 = vrot.lane.b32.xlu0 %v515, 96
  %v519 = vpop.permute.xlu0 %518
  %v521 = vmul.f32 %v516, %v519
  %v522 = vmul.f32 %v504, 0.0
  %v523 = vadd.f32 %v521, %v522
  %525 = vrot.lane.b32.xlu0 %v499, 96
  %v526 = vpop.permute.xlu0 %525
  %vm528 = vcmask 261120
  %v529 = vsel %vm528, %v526, %v523
  %v531 = vlaneseq
  %v532 = vshrl.u32 %v531, 7
  %v533 = vsub.s32 0, %v532
  %v534 = vrot.slane %v389, %v533
  %v535 = vlaneseq
  %v536 = vshrl.u32 %v535, 7
  %v537 = vsub.s32 1, %v536
  %v538 = vrot.slane %v389, %v537
  %541 = vmatprep.subr.mxu0 %v373
  %542 = vmatpush1.msra.mxu0 %v372
  %543 = vmatprep.subr.mxu0 %v375
  %544 = vmatpush1.msra.mxu0 %v374
  %545 = vmatprep.subr.mxu0 %v377
  %546 = vmatpush1.msra.mxu0 %v376
  %547 = vmatprep.subr.mxu0 %v379
  %548 = vmatpush1.msra.mxu0 %v378
  %549 = vmatprep.subr.mxu0 %v381
  %550 = vmatpush1.msra.mxu0 %v380
  %551 = vmatprep.subr.mxu0 %v383
  %552 = vmatpush1.msra.mxu0 %v382
  %553 = vmatprep.subr.mxu0 %v385
  %554 = vmatpush1.msra.mxu0 %v384
  %555 = vmatprep.subr.mxu0 %v387
  %556 = vmatpush1.msra.mxu0 %v386
  %557 = vmatprep.subr.mxu0 0.0
  %558 = vmatpush1.msra.mxu0 0.0
  %559 = vmatprep.subr.mxu0 0.0
  %560 = vmatpush1.msra.mxu0 0.0
  %561 = vmatprep.subr.mxu0 0.0
  %562 = vmatpush1.msra.mxu0 0.0
  %563 = vmatprep.subr.mxu0 0.0
  %564 = vmatpush1.msra.mxu0 0.0
  %565 = vmatprep.subr.mxu0 0.0
  %566 = vmatpush1.msra.mxu0 0.0
  %567 = vmatprep.subr.mxu0 0.0
  %568 = vmatpush1.msra.mxu0 0.0
  %569 = vmatprep.subr.mxu0 0.0
  %570 = vmatpush1.msra.mxu0 0.0
  %571 = vmatprep.subr.mxu0 0.0
  %572 = vmatpush1.msra.mxu0 0.0
  %573 = vmatprep.subr.mxu0 0.0
  %574 = vmatpush1.msra.mxu0 0.0
  %575 = vmatprep.subr.mxu0 0.0
  %576 = vmatpush1.msra.mxu0 0.0
  %577 = vmatprep.subr.mxu0 0.0
  %578 = vmatpush1.msra.mxu0 0.0
  %579 = vmatprep.subr.mxu0 0.0
  %580 = vmatpush1.msra.mxu0 0.0
  %581 = vmatprep.subr.mxu0 0.0
  %582 = vmatpush1.msra.mxu0 0.0
  %583 = vmatprep.subr.mxu0 0.0
  %584 = vmatpush1.msra.mxu0 0.0
  %585 = vmatprep.subr.mxu0 0.0
  %586 = vmatpush1.msra.mxu0 0.0
  %587 = vmatprep.subr.mxu0 0.0
  %588 = vmatpush1.msra.mxu0 0.0
  %589 = vmatprep.subr.mxu0 0.0
  %590 = vmatpush1.msra.mxu0 0.0
  %591 = vmatprep.subr.mxu0 0.0
  %592 = vmatpush1.msra.mxu0 0.0
  %593 = vmatprep.subr.mxu0 0.0
  %594 = vmatpush1.msra.mxu0 0.0
  %595 = vmatprep.subr.mxu0 0.0
  %596 = vmatpush1.msra.mxu0 0.0
  %597 = vmatprep.subr.mxu0 0.0
  %598 = vmatpush1.msra.mxu0 0.0
  %599 = vmatprep.subr.mxu0 0.0
  %600 = vmatpush1.msra.mxu0 0.0
  %601 = vmatprep.subr.mxu0 0.0
  %602 = vmatpush1.msra.mxu0 0.0
  %603 = vmatprep.subr.mxu0 0.0
  %604 = vmatpush1.msra.mxu0 0.0
  %605 = vmatprep.mubr.f32.mxu0 0.0
  %606 = vmatmul.mubr.f32.gmra.mrb[0].mxu0 %v403
  %v607 = vpop.f32.mrb[0].mxu0
  %v608 = vadd.f32 %v534, %v607
  %v609 = vpop.f32.mrb[0].mxu0
  %v610 = vadd.f32 %v538, %v609
  %611 = vdwg.mxu0
  %v612 = vadd.f32 %v308, %v608
  %v613 = vmul.f32 %v612, 0.5
  %v614 = vtanh.pop %v613
  %v615 = vmul.f32 %v614, 0.5
  %v616 = vadd.f32 %v615, 0.5
  %618 = vrot.lane.b32.xlu0 %v608, 64
  %v619 = vpop.permute.xlu0 %618
  %v621 = vmul.f32 %v616, %v619
  %623 = vrot.lane.b32.xlu0 %v621, 64
  %v624 = vpop.permute.xlu0 %623
  %v626 = vadd.f32 %v308, %v624
  %v627 = vtanh.pop %v626
  %v628 = vsub.f32 1.0, %v616
  %630 = vrot.lane.b32.xlu0 %v627, 96
  %v631 = vpop.permute.xlu0 %630
  %v633 = vmul.f32 %v628, %v631
  %v634 = vmul.f32 %v616, 0.0
  %v635 = vadd.f32 %v633, %v634
  %v636 = vadd.f32 %v352, %v610
  %v637 = vmul.f32 %v636, 0.5
  %v638 = vtanh.pop %v637
  %v639 = vmul.f32 %v638, 0.5
  %v640 = vadd.f32 %v639, 0.5
  %642 = vrot.lane.b32.xlu0 %v610, 64
  %v643 = vpop.permute.xlu0 %642
  %v645 = vmul.f32 %v640, %v643
  %647 = vrot.lane.b32.xlu0 %v645, 64
  %v648 = vpop.permute.xlu0 %647
  %v650 = vadd.f32 %v352, %v648
  %v651 = vtanh.pop %v650
  %v652 = vsub.f32 1.0, %v640
  %654 = vrot.lane.b32.xlu0 %v651, 96
  %v655 = vpop.permute.xlu0 %654
  %v657 = vmul.f32 %v652, %v655
  %v658 = vmul.f32 %v640, 0.0
  %v659 = vadd.f32 %v657, %v658
  %661 = vrot.lane.b32.xlu0 %v635, 96
  %v662 = vpop.permute.xlu0 %661
  %v664 = vsel %vm528, %v662, %v659
  %v666 = vsel %vm401, %v529, 0
  %668 = vmatprep.subr.mxu0 %v355
  %669 = vmatpush1.msra.mxu0 %v354
  %670 = vmatprep.subr.mxu0 %v357
  %671 = vmatpush1.msra.mxu0 %v356
  %672 = vmatprep.subr.mxu0 %v359
  %673 = vmatpush1.msra.mxu0 %v358
  %674 = vmatprep.subr.mxu0 %v361
  %675 = vmatpush1.msra.mxu0 %v360
  %676 = vmatprep.subr.mxu0 %v363
  %677 = vmatpush1.msra.mxu0 %v362
  %678 = vmatprep.subr.mxu0 %v365
  %679 = vmatpush1.msra.mxu0 %v364
  %680 = vmatprep.subr.mxu0 %v367
  %681 = vmatpush1.msra.mxu0 %v366
  %682 = vmatprep.subr.mxu0 %v369
  %683 = vmatpush1.msra.mxu0 %v368
  %684 = vmatprep.subr.mxu0 0.0
  %685 = vmatpush1.msra.mxu0 0.0
  %686 = vmatprep.subr.mxu0 0.0
  %687 = vmatpush1.msra.mxu0 0.0
  %688 = vmatprep.subr.mxu0 0.0
  %689 = vmatpush1.msra.mxu0 0.0
  %690 = vmatprep.subr.mxu0 0.0
  %691 = vmatpush1.msra.mxu0 0.0
  %692 = vmatprep.subr.mxu0 0.0
  %693 = vmatpush1.msra.mxu0 0.0
  %694 = vmatprep.subr.mxu0 0.0
  %695 = vmatpush1.msra.mxu0 0.0
  %696 = vmatprep.subr.mxu0 0.0
  %697 = vmatpush1.msra.mxu0 0.0
  %698 = vmatprep.subr.mxu0 0.0
  %699 = vmatpush1.msra.mxu0 0.0
  %700 = vmatprep.subr.mxu0 0.0
  %701 = vmatpush1.msra.mxu0 0.0
  %702 = vmatprep.subr.mxu0 0.0
  %703 = vmatpush1.msra.mxu0 0.0
  %704 = vmatprep.subr.mxu0 0.0
  %705 = vmatpush1.msra.mxu0 0.0
  %706 = vmatprep.subr.mxu0 0.0
  %707 = vmatpush1.msra.mxu0 0.0
  %708 = vmatprep.subr.mxu0 0.0
  %709 = vmatpush1.msra.mxu0 0.0
  %710 = vmatprep.subr.mxu0 0.0
  %711 = vmatpush1.msra.mxu0 0.0
  %712 = vmatprep.subr.mxu0 0.0
  %713 = vmatpush1.msra.mxu0 0.0
  %714 = vmatprep.subr.mxu0 0.0
  %715 = vmatpush1.msra.mxu0 0.0
  %716 = vmatprep.subr.mxu0 0.0
  %717 = vmatpush1.msra.mxu0 0.0
  %718 = vmatprep.subr.mxu0 0.0
  %719 = vmatpush1.msra.mxu0 0.0
  %720 = vmatprep.subr.mxu0 0.0
  %721 = vmatpush1.msra.mxu0 0.0
  %722 = vmatprep.subr.mxu0 0.0
  %723 = vmatpush1.msra.mxu0 0.0
  %724 = vmatprep.subr.mxu0 0.0
  %725 = vmatpush1.msra.mxu0 0.0
  %726 = vmatprep.subr.mxu0 0.0
  %727 = vmatpush1.msra.mxu0 0.0
  %728 = vmatprep.subr.mxu0 0.0
  %729 = vmatpush1.msra.mxu0 0.0
  %730 = vmatprep.subr.mxu0 0.0
  %731 = vmatpush1.msra.mxu0 0.0
  %732 = vmatprep.mubr.f32.mxu0 0.0
  %733 = vmatmul.mubr.f32.gmra.mrb[0].mxu0 %v666
  %v734 = vpop.f32.mrb[0].mxu0
  %v735 = vadd.f32 %v394, %v734
  %v736 = vpop.f32.mrb[0].mxu0
  %v737 = vadd.f32 %v398, %v736
  %738 = vdwg.mxu0
  %v739 = vadd.f32 %v163, %v735
  %v740 = vmul.f32 %v739, 0.5
  %v741 = vtanh.pop %v740
  %v742 = vmul.f32 %v741, 0.5
  %v743 = vadd.f32 %v742, 0.5
  %745 = vrot.lane.b32.xlu0 %v735, 64
  %v746 = vpop.permute.xlu0 %745
  %v748 = vmul.f32 %v743, %v746
  %750 = vrot.lane.b32.xlu0 %v748, 64
  %v751 = vpop.permute.xlu0 %750
  %v753 = vadd.f32 %v163, %v751
  %v754 = vtanh.pop %v753
  %v755 = vsub.f32 1.0, %v743
  %757 = vrot.lane.b32.xlu0 %v754, 96
  %v758 = vpop.permute.xlu0 %757
  %v760 = vmul.f32 %v755, %v758
  %761 = vrot.lane.b32.xlu0 %v529, 32
  %v762 = vpop.permute.xlu0 %761
  %v764 = vmul.f32 %v743, %v762
  %v765 = vadd.f32 %v760, %v764
  %v766 = vadd.f32 %v183, %v737
  %v767 = vmul.f32 %v766, 0.5
  %v768 = vtanh.pop %v767
  %v769 = vmul.f32 %v768, 0.5
  %v770 = vadd.f32 %v769, 0.5
  %772 = vrot.lane.b32.xlu0 %v737, 64
  %v773 = vpop.permute.xlu0 %772
  %v775 = vmul.f32 %v770, %v773
  %777 = vrot.lane.b32.xlu0 %v775, 64
  %v778 = vpop.permute.xlu0 %777
  %v780 = vadd.f32 %v183, %v778
  %v781 = vtanh.pop %v780
  %v782 = vsub.f32 1.0, %v770
  %784 = vrot.lane.b32.xlu0 %v781, 96
  %v785 = vpop.permute.xlu0 %784
  %v787 = vmul.f32 %v782, %v785
  %v788 = vmul.f32 %v770, %v529
  %v789 = vadd.f32 %v787, %v788
  %791 = vrot.lane.b32.xlu0 %v765, 96
  %v792 = vpop.permute.xlu0 %791
  %v794 = vsel %vm528, %v792, %v789
  %v796 = vsel %vm401, %v664, 0
  %798 = vmatprep.subr.mxu0 %v373
  %799 = vmatpush1.msra.mxu0 %v372
  %800 = vmatprep.subr.mxu0 %v375
  %801 = vmatpush1.msra.mxu0 %v374
  %802 = vmatprep.subr.mxu0 %v377
  %803 = vmatpush1.msra.mxu0 %v376
  %804 = vmatprep.subr.mxu0 %v379
  %805 = vmatpush1.msra.mxu0 %v378
  %806 = vmatprep.subr.mxu0 %v381
  %807 = vmatpush1.msra.mxu0 %v380
  %808 = vmatprep.subr.mxu0 %v383
  %809 = vmatpush1.msra.mxu0 %v382
  %810 = vmatprep.subr.mxu0 %v385
  %811 = vmatpush1.msra.mxu0 %v384
  %812 = vmatprep.subr.mxu0 %v387
  %813 = vmatpush1.msra.mxu0 %v386
  %814 = vmatprep.subr.mxu0 0.0
  %815 = vmatpush1.msra.mxu0 0.0
  %816 = vmatprep.subr.mxu0 0.0
  %817 = vmatpush1.msra.mxu0 0.0
  %818 = vmatprep.subr.mxu0 0.0
  %819 = vmatpush1.msra.mxu0 0.0
  %820 = vmatprep.subr.mxu0 0.0
  %821 = vmatpush1.msra.mxu0 0.0
  %822 = vmatprep.subr.mxu0 0.0
  %823 = vmatpush1.msra.mxu0 0.0
  %824 = vmatprep.subr.mxu0 0.0
  %825 = vmatpush1.msra.mxu0 0.0
  %826 = vmatprep.subr.mxu0 0.0
  %827 = vmatpush1.msra.mxu0 0.0
  %828 = vmatprep.subr.mxu0 0.0
  %829 = vmatpush1.msra.mxu0 0.0
  %830 = vmatprep.subr.mxu0 0.0
  %831 = vmatpush1.msra.mxu0 0.0
  %832 = vmatprep.subr.mxu0 0.0
  %833 = vmatpush1.msra.mxu0 0.0
  %834 = vmatprep.subr.mxu0 0.0
  %835 = vmatpush1.msra.mxu0 0.0
  %836 = vmatprep.subr.mxu0 0.0
  %837 = vmatpush1.msra.mxu0 0.0
  %838 = vmatprep.subr.mxu0 0.0
  %839 = vmatpush1.msra.mxu0 0.0
  %840 = vmatprep.subr.mxu0 0.0
  %841 = vmatpush1.msra.mxu0 0.0
  %842 = vmatprep.subr.mxu0 0.0
  %843 = vmatpush1.msra.mxu0 0.0
  %844 = vmatprep.subr.mxu0 0.0
  %845 = vmatpush1.msra.mxu0 0.0
  %846 = vmatprep.subr.mxu0 0.0
  %847 = vmatpush1.msra.mxu0 0.0
  %848 = vmatprep.subr.mxu0 0.0
  %849 = vmatpush1.msra.mxu0 0.0
  %850 = vmatprep.subr.mxu0 0.0
  %851 = vmatpush1.msra.mxu0 0.0
  %852 = vmatprep.subr.mxu0 0.0
  %853 = vmatpush1.msra.mxu0 0.0
  %854 = vmatprep.subr.mxu0 0.0
  %855 = vmatpush1.msra.mxu0 0.0
  %856 = vmatprep.subr.mxu0 0.0
  %857 = vmatpush1.msra.mxu0 0.0
  %858 = vmatprep.subr.mxu0 0.0
  %859 = vmatpush1.msra.mxu0 0.0
  %860 = vmatprep.subr.mxu0 0.0
  %861 = vmatpush1.msra.mxu0 0.0
  %862 = vmatprep.mubr.f32.mxu0 0.0
  %863 = vmatmul.mubr.f32.gmra.mrb[0].mxu0 %v796
  %v864 = vpop.f32.mrb[0].mxu0
  %v865 = vadd.f32 %v534, %v864
  %v866 = vpop.f32.mrb[0].mxu0
  %v867 = vadd.f32 %v538, %v866
  %868 = vdwg.mxu0
  %v869 = vadd.f32 %v314, %v865
  %v870 = vmul.f32 %v869, 0.5
  %v871 = vtanh.pop %v870
  %v872 = vmul.f32 %v871, 0.5
  %v873 = vadd.f32 %v872, 0.5
  %875 = vrot.lane.b32.xlu0 %v865, 64
  %v876 = vpop.permute.xlu0 %875
  %v878 = vmul.f32 %v873, %v876
  %880 = vrot.lane.b32.xlu0 %v878, 64
  %v881 = vpop.permute.xlu0 %880
  %v883 = vadd.f32 %v314, %v881
  %v884 = vtanh.pop %v883
  %v885 = vsub.f32 1.0, %v873
  %887 = vrot.lane.b32.xlu0 %v884, 96
  %v888 = vpop.permute.xlu0 %887
  %v890 = vmul.f32 %v885, %v888
  %891 = vrot.lane.b32.xlu0 %v664, 32
  %v892 = vpop.permute.xlu0 %891
  %v894 = vmul.f32 %v873, %v892
  %v895 = vadd.f32 %v890, %v894
  %v896 = vadd.f32 %v346, %v867
  %v897 = vmul.f32 %v896, 0.5
  %v898 = vtanh.pop %v897
  %v899 = vmul.f32 %v898, 0.5
  %v900 = vadd.f32 %v899, 0.5
  %902 = vrot.lane.b32.xlu0 %v867, 64
  %v903 = vpop.permute.xlu0 %902
  %v905 = vmul.f32 %v900, %v903
  %907 = vrot.lane.b32.xlu0 %v905, 64
  %v908 = vpop.permute.xlu0 %907
  %v910 = vadd.f32 %v346, %v908
  %v911 = vtanh.pop %v910
  %v912 = vsub.f32 1.0, %v900
  %914 = vrot.lane.b32.xlu0 %v911, 96
  %v915 = vpop.permute.xlu0 %914
  %v917 = vmul.f32 %v912, %v915
  %v918 = vmul.f32 %v900, %v664
  %v919 = vadd.f32 %v917, %v918
  %921 = vrot.lane.b32.xlu0 %v895, 96
  %v922 = vpop.permute.xlu0 %921
  %v924 = vsel %vm528, %v922, %v919
  %v926 = vsel %vm401, %v794, 0
  %928 = vmatprep.subr.mxu0 %v355
  %929 = vmatpush1.msra.mxu0 %v354
  %930 = vmatprep.subr.mxu0 %v357
  %931 = vmatpush1.msra.mxu0 %v356
  %932 = vmatprep.subr.mxu0 %v359
  %933 = vmatpush1.msra.mxu0 %v358
  %934 = vmatprep.subr.mxu0 %v361
  %935 = vmatpush1.msra.mxu0 %v360
  %936 = vmatprep.subr.mxu0 %v363
  %937 = vmatpush1.msra.mxu0 %v362
  %938 = vmatprep.subr.mxu0 %v365
  %939 = vmatpush1.msra.mxu0 %v364
  %940 = vmatprep.subr.mxu0 %v367
  %941 = vmatpush1.msra.mxu0 %v366
  %942 = vmatprep.subr.mxu0 %v369
  %943 = vmatpush1.msra.mxu0 %v368
  %944 = vmatprep.subr.mxu0 0.0
  %945 = vmatpush1.msra.mxu0 0.0
  %946 = vmatprep.subr.mxu0 0.0
  %947 = vmatpush1.msra.mxu0 0.0
  %948 = vmatprep.subr.mxu0 0.0
  %949 = vmatpush1.msra.mxu0 0.0
  %950 = vmatprep.subr.mxu0 0.0
  %951 = vmatpush1.msra.mxu0 0.0
  %952 = vmatprep.subr.mxu0 0.0
  %953 = vmatpush1.msra.mxu0 0.0
  %954 = vmatprep.subr.mxu0 0.0
  %955 = vmatpush1.msra.mxu0 0.0
  %956 = vmatprep.subr.mxu0 0.0
  %957 = vmatpush1.msra.mxu0 0.0
  %958 = vmatprep.subr.mxu0 0.0
  %959 = vmatpush1.msra.mxu0 0.0
  %960 = vmatprep.subr.mxu0 0.0
  %961 = vmatpush1.msra.mxu0 0.0
  %962 = vmatprep.subr.mxu0 0.0
  %963 = vmatpush1.msra.mxu0 0.0
  %964 = vmatprep.subr.mxu0 0.0
  %965 = vmatpush1.msra.mxu0 0.0
  %966 = vmatprep.subr.mxu0 0.0
  %967 = vmatpush1.msra.mxu0 0.0
  %968 = vmatprep.subr.mxu0 0.0
  %969 = vmatpush1.msra.mxu0 0.0
  %970 = vmatprep.subr.mxu0 0.0
  %971 = vmatpush1.msra.mxu0 0.0
  %972 = vmatprep.subr.mxu0 0.0
  %973 = vmatpush1.msra.mxu0 0.0
  %974 = vmatprep.subr.mxu0 0.0
  %975 = vmatpush1.msra.mxu0 0.0
  %976 = vmatprep.subr.mxu0 0.0
  %977 = vmatpush1.msra.mxu0 0.0
  %978 = vmatprep.subr.mxu0 0.0
  %979 = vmatpush1.msra.mxu0 0.0
  %980 = vmatprep.subr.mxu0 0.0
  %981 = vmatpush1.msra.mxu0 0.0
  %982 = vmatprep.subr.mxu0 0.0
  %983 = vmatpush1.msra.mxu0 0.0
  %984 = vmatprep.subr.mxu0 0.0
  %985 = vmatpush1.msra.mxu0 0.0
  %986 = vmatprep.subr.mxu0 0.0
  %987 = vmatpush1.msra.mxu0 0.0
  %988 = vmatprep.subr.mxu0 0.0
  %989 = vmatpush1.msra.mxu0 0.0
  %990 = vmatprep.subr.mxu0 0.0
  %991 = vmatpush1.msra.mxu0 0.0
  %992 = vmatprep.mubr.f32.mxu0 0.0
  %993 = vmatmul.mubr.f32.gmra.mrb[0].mxu0 %v926
  %v994 = vpop.f32.mrb[0].mxu0
  %v995 = vadd.f32 %v394, %v994
  %v996 = vpop.f32.mrb[0].mxu0
  %v997 = vadd.f32 %v398, %v996
  %998 = vdwg.mxu0
  %v999 = vadd.f32 %v169, %v995
  %v1000 = vmul.f32 %v999, 0.5
  %v1001 = vtanh.pop %v1000
  %v1002 = vmul.f32 %v1001, 0.5
  %v1003 = vadd.f32 %v1002, 0.5
  %1005 = vrot.lane.b32.xlu0 %v995, 64
  %v1006 = vpop.permute.xlu0 %1005
  %v1008 = vmul.f32 %v1003, %v1006
  %1010 = vrot.lane.b32.xlu0 %v1008, 64
  %v1011 = vpop.permute.xlu0 %1010
  %v1013 = vadd.f32 %v169, %v1011
  %v1014 = vtanh.pop %v1013
  %v1015 = vsub.f32 1.0, %v1003
  %1017 = vrot.lane.b32.xlu0 %v1014, 96
  %v1018 = vpop.permute.xlu0 %1017
  %v1020 = vmul.f32 %v1015, %v1018
  %1021 = vrot.lane.b32.xlu0 %v794, 32
  %v1022 = vpop.permute.xlu0 %1021
  %v1024 = vmul.f32 %v1003, %v1022
  %v1025 = vadd.f32 %v1020, %v1024
  %v1026 = vadd.f32 %v177, %v997
  %v1027 = vmul.f32 %v1026, 0.5
  %v1028 = vtanh.pop %v1027
  %v1029 = vmul.f32 %v1028, 0.5
  %v1030 = vadd.f32 %v1029, 0.5
  %1032 = vrot.lane.b32.xlu0 %v997, 64
  %v1033 = vpop.permute.xlu0 %1032
  %v1035 = vmul.f32 %v1030, %v1033
  %1037 = vrot.lane.b32.xlu0 %v1035, 64
  %v1038 = vpop.permute.xlu0 %1037
  %v1040 = vadd.f32 %v177, %v1038
  %v1041 = vtanh.pop %v1040
  %v1042 = vsub.f32 1.0, %v1030
  %1044 = vrot.lane.b32.xlu0 %v1041, 96
  %v1045 = vpop.permute.xlu0 %1044
  %v1047 = vmul.f32 %v1042, %v1045
  %v1048 = vmul.f32 %v1030, %v794
  %v1049 = vadd.f32 %v1047, %v1048
  %1051 = vrot.lane.b32.xlu0 %v1025, 96
  %v1052 = vpop.permute.xlu0 %1051
  %v1054 = vsel %vm528, %v1052, %v1049
  %v1056 = vsel %vm401, %v924, 0
  %1058 = vmatprep.subr.mxu0 %v373
  %1059 = vmatpush1.msra.mxu0 %v372
  %1060 = vmatprep.subr.mxu0 %v375
  %1061 = vmatpush1.msra.mxu0 %v374
  %1062 = vmatprep.subr.mxu0 %v377
  %1063 = vmatpush1.msra.mxu0 %v376
  %1064 = vmatprep.subr.mxu0 %v379
  %1065 = vmatpush1.msra.mxu0 %v378
  %1066 = vmatprep.subr.mxu0 %v381
  %1067 = vmatpush1.msra.mxu0 %v380
  %1068 = vmatprep.subr.mxu0 %v383
  %1069 = vmatpush1.msra.mxu0 %v382
  %1070 = vmatprep.subr.mxu0 %v385
  %1071 = vmatpush1.msra.mxu0 %v384
  %1072 = vmatprep.subr.mxu0 %v387
  %1073 = vmatpush1.msra.mxu0 %v386
  %1074 = vmatprep.subr.mxu0 0.0
  %1075 = vmatpush1.msra.mxu0 0.0
  %1076 = vmatprep.subr.mxu0 0.0
  %1077 = vmatpush1.msra.mxu0 0.0
  %1078 = vmatprep.subr.mxu0 0.0
  %1079 = vmatpush1.msra.mxu0 0.0
  %1080 = vmatprep.subr.mxu0 0.0
  %1081 = vmatpush1.msra.mxu0 0.0
  %1082 = vmatprep.subr.mxu0 0.0
  %1083 = vmatpush1.msra.mxu0 0.0
  %1084 = vmatprep.subr.mxu0 0.0
  %1085 = vmatpush1.msra.mxu0 0.0
  %1086 = vmatprep.subr.mxu0 0.0
  %1087 = vmatpush1.msra.mxu0 0.0
  %1088 = vmatprep.subr.mxu0 0.0
  %1089 = vmatpush1.msra.mxu0 0.0
  %1090 = vmatprep.subr.mxu0 0.0
  %1091 = vmatpush1.msra.mxu0 0.0
  %1092 = vmatprep.subr.mxu0 0.0
  %1093 = vmatpush1.msra.mxu0 0.0
  %1094 = vmatprep.subr.mxu0 0.0
  %1095 = vmatpush1.msra.mxu0 0.0
  %1096 = vmatprep.subr.mxu0 0.0
  %1097 = vmatpush1.msra.mxu0 0.0
  %1098 = vmatprep.subr.mxu0 0.0
  %1099 = vmatpush1.msra.mxu0 0.0
  %1100 = vmatprep.subr.mxu0 0.0
  %1101 = vmatpush1.msra.mxu0 0.0
  %1102 = vmatprep.subr.mxu0 0.0
  %1103 = vmatpush1.msra.mxu0 0.0
  %1104 = vmatprep.subr.mxu0 0.0
  %1105 = vmatpush1.msra.mxu0 0.0
  %1106 = vmatprep.subr.mxu0 0.0
  %1107 = vmatpush1.msra.mxu0 0.0
  %1108 = vmatprep.subr.mxu0 0.0
  %1109 = vmatpush1.msra.mxu0 0.0
  %1110 = vmatprep.subr.mxu0 0.0
  %1111 = vmatpush1.msra.mxu0 0.0
  %1112 = vmatprep.subr.mxu0 0.0
  %1113 = vmatpush1.msra.mxu0 0.0
  %1114 = vmatprep.subr.mxu0 0.0
  %1115 = vmatpush1.msra.mxu0 0.0
  %1116 = vmatprep.subr.mxu0 0.0
  %1117 = vmatpush1.msra.mxu0 0.0
  %1118 = vmatprep.subr.mxu0 0.0
  %1119 = vmatpush1.msra.mxu0 0.0
  %1120 = vmatprep.subr.mxu0 0.0
  %1121 = vmatpush1.msra.mxu0 0.0
  %1122 = vmatprep.mubr.f32.mxu0 0.0
  %1123 = vmatmul.mubr.f32.gmra.mrb[0].mxu0 %v1056
  %v1124 = vpop.f32.mrb[0].mxu0
  %v1125 = vadd.f32 %v534, %v1124
  %v1126 = vpop.f32.mrb[0].mxu0
  %v1127 = vadd.f32 %v538, %v1126
  %1128 = vdwg.mxu0
  %v1129 = vadd.f32 %v320, %v1125
  %v1130 = vmul.f32 %v1129, 0.5
  %v1131 = vtanh.pop %v1130
  %v1132 = vmul.f32 %v1131, 0.5
  %v1133 = vadd.f32 %v1132, 0.5
  %1135 = vrot.lane.b32.xlu0 %v1125, 64
  %v1136 = vpop.permute.xlu0 %1135
  %v1138 = vmul.f32 %v1133, %v1136
  %1140 = vrot.lane.b32.xlu0 %v1138, 64
  %v1141 = vpop.permute.xlu0 %1140
  %v1143 = vadd.f32 %v320, %v1141
  %v1144 = vtanh.pop %v1143
  %v1145 = vsub.f32 1.0, %v1133
  %1147 = vrot.lane.b32.xlu0 %v1144, 96
  %v1148 = vpop.permute.xlu0 %1147
  %v1150 = vmul.f32 %v1145, %v1148
  %1151 = vrot.lane.b32.xlu0 %v924, 32
  %v1152 = vpop.permute.xlu0 %1151
  %v1154 = vmul.f32 %v1133, %v1152
  %v1155 = vadd.f32 %v1150, %v1154
  %v1156 = vadd.f32 %v340, %v1127
  %v1157 = vmul.f32 %v1156, 0.5
  %v1158 = vtanh.pop %v1157
  %v1159 = vmul.f32 %v1158, 0.5
  %v1160 = vadd.f32 %v1159, 0.5
  %1162 = vrot.lane.b32.xlu0 %v1127, 64
  %v1163 = vpop.permute.xlu0 %1162
  %v1165 = vmul.f32 %v1160, %v1163
  %1167 = vrot.lane.b32.xlu0 %v1165, 64
  %v1168 = vpop.permute.xlu0 %1167
  %v1170 = vadd.f32 %v340, %v1168
  %v1171 = vtanh.pop %v1170
  %v1172 = vsub.f32 1.0, %v1160
  %1174 = vrot.lane.b32.xlu0 %v1171, 96
  %v1175 = vpop.permute.xlu0 %1174
  %v1177 = vmul.f32 %v1172, %v1175
  %v1178 = vmul.f32 %v1160, %v924
  %v1179 = vadd.f32 %v1177, %v1178
  %1181 = vrot.lane.b32.xlu0 %v1155, 96
  %v1182 = vpop.permute.xlu0 %1181
  %v1184 = vsel %vm528, %v1182, %v1179
  %v1186 = vsel %vm401, %v1054, 0
  %1188 = vmatprep.subr.mxu0 %v355
  %1189 = vmatpush1.msra.mxu0 %v354
  %1190 = vmatprep.subr.mxu0 %v357
  %1191 = vmatpush1.msra.mxu0 %v356
  %1192 = vmatprep.subr.mxu0 %v359
  %1193 = vmatpush1.msra.mxu0 %v358
  %1194 = vmatprep.subr.mxu0 %v361
  %1195 = vmatpush1.msra.mxu0 %v360
  %1196 = vmatprep.subr.mxu0 %v363
  %1197 = vmatpush1.msra.mxu0 %v362
  %1198 = vmatprep.subr.mxu0 %v365
  %1199 = vmatpush1.msra.mxu0 %v364
  %1200 = vmatprep.subr.mxu0 %v367
  %1201 = vmatpush1.msra.mxu0 %v366
  %1202 = vmatprep.subr.mxu0 %v369
  %1203 = vmatpush1.msra.mxu0 %v368
  %1204 = vmatprep.subr.mxu0 0.0
  %1205 = vmatpush1.msra.mxu0 0.0
  %1206 = vmatprep.subr.mxu0 0.0
  %1207 = vmatpush1.msra.mxu0 0.0
  %1208 = vmatprep.subr.mxu0 0.0
  %1209 = vmatpush1.msra.mxu0 0.0
  %1210 = vmatprep.subr.mxu0 0.0
  %1211 = vmatpush1.msra.mxu0 0.0
  %1212 = vmatprep.subr.mxu0 0.0
  %1213 = vmatpush1.msra.mxu0 0.0
  %1214 = vmatprep.subr.mxu0 0.0
  %1215 = vmatpush1.msra.mxu0 0.0
  %1216 = vmatprep.subr.mxu0 0.0
  %1217 = vmatpush1.msra.mxu0 0.0
  %1218 = vmatprep.subr.mxu0 0.0
  %1219 = vmatpush1.msra.mxu0 0.0
  %1220 = vmatprep.subr.mxu0 0.0
  %1221 = vmatpush1.msra.mxu0 0.0
  %1222 = vmatprep.subr.mxu0 0.0
  %1223 = vmatpush1.msra.mxu0 0.0
  %1224 = vmatprep.subr.mxu0 0.0
  %1225 = vmatpush1.msra.mxu0 0.0
  %1226 = vmatprep.subr.mxu0 0.0
  %1227 = vmatpush1.msra.mxu0 0.0
  %1228 = vmatprep.subr.mxu0 0.0
  %1229 = vmatpush1.msra.mxu0 0.0
  %1230 = vmatprep.subr.mxu0 0.0
  %1231 = vmatpush1.msra.mxu0 0.0
  %1232 = vmatprep.subr.mxu0 0.0
  %1233 = vmatpush1.msra.mxu0 0.0
  %1234 = vmatprep.subr.mxu0 0.0
  %1235 = vmatpush1.msra.mxu0 0.0
  %1236 = vmatprep.subr.mxu0 0.0
  %1237 = vmatpush1.msra.mxu0 0.0
  %1238 = vmatprep.subr.mxu0 0.0
  %1239 = vmatpush1.msra.mxu0 0.0
  %1240 = vmatprep.subr.mxu0 0.0
  %1241 = vmatpush1.msra.mxu0 0.0
  %1242 = vmatprep.subr.mxu0 0.0
  %1243 = vmatpush1.msra.mxu0 0.0
  %1244 = vmatprep.subr.mxu0 0.0
  %1245 = vmatpush1.msra.mxu0 0.0
  %1246 = vmatprep.subr.mxu0 0.0
  %1247 = vmatpush1.msra.mxu0 0.0
  %1248 = vmatprep.subr.mxu0 0.0
  %1249 = vmatpush1.msra.mxu0 0.0
  %1250 = vmatprep.subr.mxu0 0.0
  %1251 = vmatpush1.msra.mxu0 0.0
  %1252 = vmatprep.mubr.f32.mxu0 0.0
  %1253 = vmatmul.mubr.f32.gmra.mrb[0].mxu0 %v1186
  %v1254 = vpop.f32.mrb[0].mxu0
  %v1255 = vadd.f32 %v394, %v1254
  %v1256 = vpop.f32.mrb[0].mxu0
  %v1257 = vadd.f32 %v398, %v1256
  %1258 = vdwg.mxu0
  %v1259 = vadd.f32 %v175, %v1255
  %v1260 = vmul.f32 %v1259, 0.5
  %v1261 = vtanh.pop %v1260
  %v1262 = vmul.f32 %v1261, 0.5
  %v1263 = vadd.f32 %v1262, 0.5
  %1265 = vrot.lane.b32.xlu0 %v1255, 64
  %v1266 = vpop.permute.xlu0 %1265
  %v1268 = vmul.f32 %v1263, %v1266
  %1270 = vrot.lane.b32.xlu0 %v1268, 64
  %v1271 = vpop.permute.xlu0 %1270
  %v1273 = vadd.f32 %v175, %v1271
  %v1274 = vtanh.pop %v1273
  %v1275 = vsub.f32 1.0, %v1263
  %1277 = vrot.lane.b32.xlu0 %v1274, 96
  %v1278 = vpop.permute.xlu0 %1277
  %v1280 = vmul.f32 %v1275, %v1278
  %1281 = vrot.lane.b32.xlu0 %v1054, 32
  %v1282 = vpop.permute.xlu0 %1281
  %v1284 = vmul.f32 %v1263, %v1282
  %v1285 = vadd.f32 %v1280, %v1284
  %v1286 = vadd.f32 %v171, %v1257
  %v1287 = vmul.f32 %v1286, 0.5
  %v1288 = vtanh.pop %v1287
  %v1289 = vmul.f32 %v1288, 0.5
  %v1290 = vadd.f32 %v1289, 0.5
  %1292 = vrot.lane.b32.xlu0 %v1257, 64
  %v1293 = vpop.permute.xlu0 %1292
  %v1295 = vmul.f32 %v1290, %v1293
  %1297 = vrot.lane.b32.xlu0 %v1295, 64
  %v1298 = vpop.permute.xlu0 %1297
  %v1300 = vadd.f32 %v171, %v1298
  %v1301 = vtanh.pop %v1300
  %v1302 = vsub.f32 1.0, %v1290
  %1304 = vrot.lane.b32.xlu0 %v1301, 96
  %v1305 = vpop.permute.xlu0 %1304
  %v1307 = vmul.f32 %v1302, %v1305
  %v1308 = vmul.f32 %v1290, %v1054
  %v1309 = vadd.f32 %v1307, %v1308
  %1311 = vrot.lane.b32.xlu0 %v1285, 96
  %v1312 = vpop.permute.xlu0 %1311
  %v1314 = vsel %vm528, %v1312, %v1309
  %v1316 = vsel %vm401, %v1184, 0
  %1318 = vmatprep.subr.mxu0 %v373
  %1319 = vmatpush1.msra.mxu0 %v372
  %1320 = vmatprep.subr.mxu0 %v375
  %1321 = vmatpush1.msra.mxu0 %v374
  %1322 = vmatprep.subr.mxu0 %v377
  %1323 = vmatpush1.msra.mxu0 %v376
  %1324 = vmatprep.subr.mxu0 %v379
  %1325 = vmatpush1.msra.mxu0 %v378
  %1326 = vmatprep.subr.mxu0 %v381
  %1327 = vmatpush1.msra.mxu0 %v380
  %1328 = vmatprep.subr.mxu0 %v383
  %1329 = vmatpush1.msra.mxu0 %v382
  %1330 = vmatprep.subr.mxu0 %v385
  %1331 = vmatpush1.msra.mxu0 %v384
  %1332 = vmatprep.subr.mxu0 %v387
  %1333 = vmatpush1.msra.mxu0 %v386
  %1334 = vmatprep.subr.mxu0 0.0
  %1335 = vmatpush1.msra.mxu0 0.0
  %1336 = vmatprep.subr.mxu0 0.0
  %1337 = vmatpush1.msra.mxu0 0.0
  %1338 = vmatprep.subr.mxu0 0.0
  %1339 = vmatpush1.msra.mxu0 0.0
  %1340 = vmatprep.subr.mxu0 0.0
  %1341 = vmatpush1.msra.mxu0 0.0
  %1342 = vmatprep.subr.mxu0 0.0
  %1343 = vmatpush1.msra.mxu0 0.0
  %1344 = vmatprep.subr.mxu0 0.0
  %1345 = vmatpush1.msra.mxu0 0.0
  %1346 = vmatprep.subr.mxu0 0.0
  %1347 = vmatpush1.msra.mxu0 0.0
  %1348 = vmatprep.subr.mxu0 0.0
  %1349 = vmatpush1.msra.mxu0 0.0
  %1350 = vmatprep.subr.mxu0 0.0
  %1351 = vmatpush1.msra.mxu0 0.0
  %1352 = vmatprep.subr.mxu0 0.0
  %1353 = vmatpush1.msra.mxu0 0.0
  %1354 = vmatprep.subr.mxu0 0.0
  %1355 = vmatpush1.msra.mxu0 0.0
  %1356 = vmatprep.subr.mxu0 0.0
  %1357 = vmatpush1.msra.mxu0 0.0
  %1358 = vmatprep.subr.mxu0 0.0
  %1359 = vmatpush1.msra.mxu0 0.0
  %1360 = vmatprep.subr.mxu0 0.0
  %1361 = vmatpush1.msra.mxu0 0.0
  %1362 = vmatprep.subr.mxu0 0.0
  %1363 = vmatpush1.msra.mxu0 0.0
  %1364 = vmatprep.subr.mxu0 0.0
  %1365 = vmatpush1.msra.mxu0 0.0
  %1366 = vmatprep.subr.mxu0 0.0
  %1367 = vmatpush1.msra.mxu0 0.0
  %1368 = vmatprep.subr.mxu0 0.0
  %1369 = vmatpush1.msra.mxu0 0.0
  %1370 = vmatprep.subr.mxu0 0.0
  %1371 = vmatpush1.msra.mxu0 0.0
  %1372 = vmatprep.subr.mxu0 0.0
  %1373 = vmatpush1.msra.mxu0 0.0
  %1374 = vmatprep.subr.mxu0 0.0
  %1375 = vmatpush1.msra.mxu0 0.0
  %1376 = vmatprep.subr.mxu0 0.0
  %1377 = vmatpush1.msra.mxu0 0.0
  %1378 = vmatprep.subr.mxu0 0.0
  %1379 = vmatpush1.msra.mxu0 0.0
  %1380 = vmatprep.subr.mxu0 0.0
  %1381 = vmatpush1.msra.mxu0 0.0
  %1382 = vmatprep.mubr.f32.mxu0 0.0
  %1383 = vmatmul.mubr.f32.gmra.mrb[0].mxu0 %v1316
  %v1384 = vpop.f32.mrb[0].mxu0
  %v1385 = vadd.f32 %v534, %v1384
  %v1386 = vpop.f32.mrb[0].mxu0
  %v1387 = vadd.f32 %v538, %v1386
  %1388 = vdwg.mxu0
  %v1389 = vadd.f32 %v326, %v1385
  %v1390 = vmul.f32 %v1389, 0.5
  %v1391 = vtanh.pop %v1390
  %v1392 = vmul.f32 %v1391, 0.5
  %v1393 = vadd.f32 %v1392, 0.5
  %1395 = vrot.lane.b32.xlu0 %v1385, 64
  %v1396 = vpop.permute.xlu0 %1395
  %v1398 = vmul.f32 %v1393, %v1396
  %1400 = vrot.lane.b32.xlu0 %v1398, 64
  %v1401 = vpop.permute.xlu0 %1400
  %v1403 = vadd.f32 %v326, %v1401
  %v1404 = vtanh.pop %v1403
  %v1405 = vsub.f32 1.0, %v1393
  %1407 = vrot.lane.b32.xlu0 %v1404, 96
  %v1408 = vpop.permute.xlu0 %1407
  %v1410 = vmul.f32 %v1405, %v1408
  %1411 = vrot.lane.b32.xlu0 %v1184, 32
  %v1412 = vpop.permute.xlu0 %1411
  %v1414 = vmul.f32 %v1393, %v1412
  %v1415 = vadd.f32 %v1410, %v1414
  %v1416 = vadd.f32 %v334, %v1387
  %v1417 = vmul.f32 %v1416, 0.5
  %v1418 = vtanh.pop %v1417
  %v1419 = vmul.f32 %v1418, 0.5
  %v1420 = vadd.f32 %v1419, 0.5
  %1422 = vrot.lane.b32.xlu0 %v1387, 64
  %v1423 = vpop.permute.xlu0 %1422
  %v1425 = vmul.f32 %v1420, %v1423
  %1427 = vrot.lane.b32.xlu0 %v1425, 64
  %v1428 = vpop.permute.xlu0 %1427
  %v1430 = vadd.f32 %v334, %v1428
  %v1431 = vtanh.pop %v1430
  %v1432 = vsub.f32 1.0, %v1420
  %1434 = vrot.lane.b32.xlu0 %v1431, 96
  %v1435 = vpop.permute.xlu0 %1434
  %v1437 = vmul.f32 %v1432, %v1435
  %v1438 = vmul.f32 %v1420, %v1184
  %v1439 = vadd.f32 %v1437, %v1438
  %1441 = vrot.lane.b32.xlu0 %v1415, 96
  %v1442 = vpop.permute.xlu0 %1441
  %v1444 = vsel %vm528, %v1442, %v1439
  %v1446 = vsel %vm401, %v1314, 0
  %1448 = vmatprep.subr.mxu0 %v355
  %1449 = vmatpush1.msra.mxu0 %v354
  %1450 = vmatprep.subr.mxu0 %v357
  %1451 = vmatpush1.msra.mxu0 %v356
  %1452 = vmatprep.subr.mxu0 %v359
  %1453 = vmatpush1.msra.mxu0 %v358
  %1454 = vmatprep.subr.mxu0 %v361
  %1455 = vmatpush1.msra.mxu0 %v360
  %1456 = vmatprep.subr.mxu0 %v363
  %1457 = vmatpush1.msra.mxu0 %v362
  %1458 = vmatprep.subr.mxu0 %v365
  %1459 = vmatpush1.msra.mxu0 %v364
  %1460 = vmatprep.subr.mxu0 %v367
  %1461 = vmatpush1.msra.mxu0 %v366
  %1462 = vmatprep.subr.mxu0 %v369
  %1463 = vmatpush1.msra.mxu0 %v368
  %1464 = vmatprep.subr.mxu0 0.0
  %1465 = vmatpush1.msra.mxu0 0.0
  %1466 = vmatprep.subr.mxu0 0.0
  %1467 = vmatpush1.msra.mxu0 0.0
  %1468 = vmatprep.subr.mxu0 0.0
  %1469 = vmatpush1.msra.mxu0 0.0
  %1470 = vmatprep.subr.mxu0 0.0
  %1471 = vmatpush1.msra.mxu0 0.0
  %1472 = vmatprep.subr.mxu0 0.0
  %1473 = vmatpush1.msra.mxu0 0.0
  %1474 = vmatprep.subr.mxu0 0.0
  %1475 = vmatpush1.msra.mxu0 0.0
  %1476 = vmatprep.subr.mxu0 0.0
  %1477 = vmatpush1.msra.mxu0 0.0
  %1478 = vmatprep.subr.mxu0 0.0
  %1479 = vmatpush1.msra.mxu0 0.0
  %1480 = vmatprep.subr.mxu0 0.0
  %1481 = vmatpush1.msra.mxu0 0.0
  %1482 = vmatprep.subr.mxu0 0.0
  %1483 = vmatpush1.msra.mxu0 0.0
  %1484 = vmatprep.subr.mxu0 0.0
  %1485 = vmatpush1.msra.mxu0 0.0
  %1486 = vmatprep.subr.mxu0 0.0
  %1487 = vmatpush1.msra.mxu0 0.0
  %1488 = vmatprep.subr.mxu0 0.0
  %1489 = vmatpush1.msra.mxu0 0.0
  %1490 = vmatprep.subr.mxu0 0.0
  %1491 = vmatpush1.msra.mxu0 0.0
  %1492 = vmatprep.subr.mxu0 0.0
  %1493 = vmatpush1.msra.mxu0 0.0
  %1494 = vmatprep.subr.mxu0 0.0
  %1495 = vmatpush1.msra.mxu0 0.0
  %1496 = vmatprep.subr.mxu0 0.0
  %1497 = vmatpush1.msra.mxu0 0.0
  %1498 = vmatprep.subr.mxu0 0.0
  %1499 = vmatpush1.msra.mxu0 0.0
  %1500 = vmatprep.subr.mxu0 0.0
  %1501 = vmatpush1.msra.mxu0 0.0
  %1502 = vmatprep.subr.mxu0 0.0
  %1503 = vmatpush1.msra.mxu0 0.0
  %1504 = vmatprep.subr.mxu0 0.0
  %1505 = vmatpush1.msra.mxu0 0.0
  %1506 = vmatprep.subr.mxu0 0.0
  %1507 = vmatpush1.msra.mxu0 0.0
  %1508 = vmatprep.subr.mxu0 0.0
  %1509 = vmatpush1.msra.mxu0 0.0
  %1510 = vmatprep.subr.mxu0 0.0
  %1511 = vmatpush1.msra.mxu0 0.0
  %1512 = vmatprep.mubr.f32.mxu0 0.0
  %1513 = vmatmul.mubr.f32.gmra.mrb[0].mxu0 %v1446
  %v1514 = vpop.f32.mrb[0].mxu0
  %v1515 = vadd.f32 %v394, %v1514
  %v1516 = vpop.f32.mrb[0].mxu0
  %v1517 = vadd.f32 %v398, %v1516
  %1518 = vdwg.mxu0
  %v1519 = vadd.f32 %v181, %v1515
  %v1520 = vmul.f32 %v1519, 0.5
  %v1521 = vtanh.pop %v1520
  %v1522 = vmul.f32 %v1521, 0.5
  %v1523 = vadd.f32 %v1522, 0.5
  %1525 = vrot.lane.b32.xlu0 %v1515, 64
  %v1526 = vpop.permute.xlu0 %1525
  %v1528 = vmul.f32 %v1523, %v1526
  %1530 = vrot.lane.b32.xlu0 %v1528, 64
  %v1531 = vpop.permute.xlu0 %1530
  %v1533 = vadd.f32 %v181, %v1531
  %v1534 = vtanh.pop %v1533
  %v1535 = vsub.f32 1.0, %v1523
  %1537 = vrot.lane.b32.xlu0 %v1534, 96
  %v1538 = vpop.permute.xlu0 %1537
  %v1540 = vmul.f32 %v1535, %v1538
  %1541 = vrot.lane.b32.xlu0 %v1314, 32
  %v1542 = vpop.permute.xlu0 %1541
  %v1544 = vmul.f32 %v1523, %v1542
  %v1545 = vadd.f32 %v1540, %v1544
  %v1546 = vadd.f32 %v165, %v1517
  %v1547 = vmul.f32 %v1546, 0.5
  %v1548 = vtanh.pop %v1547
  %v1549 = vmul.f32 %v1548, 0.5
  %v1550 = vadd.f32 %v1549, 0.5
  %1552 = vrot.lane.b32.xlu0 %v1517, 64
  %v1553 = vpop.permute.xlu0 %1552
  %v1555 = vmul.f32 %v1550, %v1553
  %1557 = vrot.lane.b32.xlu0 %v1555, 64
  %v1558 = vpop.permute.xlu0 %1557
  %v1560 = vadd.f32 %v165, %v1558
  %v1561 = vtanh.pop %v1560
  %v1562 = vsub.f32 1.0, %v1550
  %1564 = vrot.lane.b32.xlu0 %v1561, 96
  %v1565 = vpop.permute.xlu0 %1564
  %v1567 = vmul.f32 %v1562, %v1565
  %v1568 = vmul.f32 %v1550, %v1314
  %v1569 = vadd.f32 %v1567, %v1568
  %1571 = vrot.lane.b32.xlu0 %v1545, 96
  %v1572 = vpop.permute.xlu0 %1571
  %v1574 = vsel %vm528, %v1572, %v1569
  %v1576 = vsel %vm401, %v1444, 0
  %1578 = vmatprep.subr.mxu0 %v373
  %1579 = vmatpush1.msra.mxu0 %v372
  %1580 = vmatprep.subr.mxu0 %v375
  %1581 = vmatpush1.msra.mxu0 %v374
  %1582 = vmatprep.subr.mxu0 %v377
  %1583 = vmatpush1.msra.mxu0 %v376
  %1584 = vmatprep.subr.mxu0 %v379
  %1585 = vmatpush1.msra.mxu0 %v378
  %1586 = vmatprep.subr.mxu0 %v381
  %1587 = vmatpush1.msra.mxu0 %v380
  %1588 = vmatprep.subr.mxu0 %v383
  %1589 = vmatpush1.msra.mxu0 %v382
  %1590 = vmatprep.subr.mxu0 %v385
  %1591 = vmatpush1.msra.mxu0 %v384
  %1592 = vmatprep.subr.mxu0 %v387
  %1593 = vmatpush1.msra.mxu0 %v386
  %1594 = vmatprep.subr.mxu0 0.0
  %1595 = vmatpush1.msra.mxu0 0.0
  %1596 = vmatprep.subr.mxu0 0.0
  %1597 = vmatpush1.msra.mxu0 0.0
  %1598 = vmatprep.subr.mxu0 0.0
  %1599 = vmatpush1.msra.mxu0 0.0
  %1600 = vmatprep.subr.mxu0 0.0
  %1601 = vmatpush1.msra.mxu0 0.0
  %1602 = vmatprep.subr.mxu0 0.0
  %1603 = vmatpush1.msra.mxu0 0.0
  %1604 = vmatprep.subr.mxu0 0.0
  %1605 = vmatpush1.msra.mxu0 0.0
  %1606 = vmatprep.subr.mxu0 0.0
  %1607 = vmatpush1.msra.mxu0 0.0
  %1608 = vmatprep.subr.mxu0 0.0
  %1609 = vmatpush1.msra.mxu0 0.0
  %1610 = vmatprep.subr.mxu0 0.0
  %1611 = vmatpush1.msra.mxu0 0.0
  %1612 = vmatprep.subr.mxu0 0.0
  %1613 = vmatpush1.msra.mxu0 0.0
  %1614 = vmatprep.subr.mxu0 0.0
  %1615 = vmatpush1.msra.mxu0 0.0
  %1616 = vmatprep.subr.mxu0 0.0
  %1617 = vmatpush1.msra.mxu0 0.0
  %1618 = vmatprep.subr.mxu0 0.0
  %1619 = vmatpush1.msra.mxu0 0.0
  %1620 = vmatprep.subr.mxu0 0.0
  %1621 = vmatpush1.msra.mxu0 0.0
  %1622 = vmatprep.subr.mxu0 0.0
  %1623 = vmatpush1.msra.mxu0 0.0
  %1624 = vmatprep.subr.mxu0 0.0
  %1625 = vmatpush1.msra.mxu0 0.0
  %1626 = vmatprep.subr.mxu0 0.0
  %1627 = vmatpush1.msra.mxu0 0.0
  %1628 = vmatprep.subr.mxu0 0.0
  %1629 = vmatpush1.msra.mxu0 0.0
  %1630 = vmatprep.subr.mxu0 0.0
  %1631 = vmatpush1.msra.mxu0 0.0
  %1632 = vmatprep.subr.mxu0 0.0
  %1633 = vmatpush1.msra.mxu0 0.0
  %1634 = vmatprep.subr.mxu0 0.0
  %1635 = vmatpush1.msra.mxu0 0.0
  %1636 = vmatprep.subr.mxu0 0.0
  %1637 = vmatpush1.msra.mxu0 0.0
  %1638 = vmatprep.subr.mxu0 0.0
  %1639 = vmatpush1.msra.mxu0 0.0
  %1640 = vmatprep.subr.mxu0 0.0
  %1641 = vmatpush1.msra.mxu0 0.0
  %1642 = vmatprep.mubr.f32.mxu0 0.0
  %1643 = vmatmul.mubr.f32.gmra.mrb[0].mxu0 %v1576
  %v1644 = vpop.f32.mrb[0].mxu0
  %v1645 = vadd.f32 %v534, %v1644
  %v1646 = vpop.f32.mrb[0].mxu0
  %v1647 = vadd.f32 %v538, %v1646
  %1648 = vdwg.mxu0
  %v1649 = vadd.f32 %v332, %v1645
  %v1650 = vmul.f32 %v1649, 0.5
  %v1651 = vtanh.pop %v1650
  %v1652 = vmul.f32 %v1651, 0.5
  %v1653 = vadd.f32 %v1652, 0.5
  %1655 = vrot.lane.b32.xlu0 %v1645, 64
  %v1656 = vpop.permute.xlu0 %1655
  %v1658 = vmul.f32 %v1653, %v1656
  %1660 = vrot.lane.b32.xlu0 %v1658, 64
  %v1661 = vpop.permute.xlu0 %1660
  %v1663 = vadd.f32 %v332, %v1661
  %v1664 = vtanh.pop %v1663
  %v1665 = vsub.f32 1.0, %v1653
  %1667 = vrot.lane.b32.xlu0 %v1664, 96
  %v1668 = vpop.permute.xlu0 %1667
  %v1670 = vmul.f32 %v1665, %v1668
  %1671 = vrot.lane.b32.xlu0 %v1444, 32
  %v1672 = vpop.permute.xlu0 %1671
  %v1674 = vmul.f32 %v1653, %v1672
  %v1675 = vadd.f32 %v1670, %v1674
  %v1676 = vadd.f32 %v328, %v1647
  %v1677 = vmul.f32 %v1676, 0.5
  %v1678 = vtanh.pop %v1677
  %v1679 = vmul.f32 %v1678, 0.5
  %v1680 = vadd.f32 %v1679, 0.5
  %1682 = vrot.lane.b32.xlu0 %v1647, 64
  %v1683 = vpop.permute.xlu0 %1682
  %v1685 = vmul.f32 %v1680, %v1683
  %1687 = vrot.lane.b32.xlu0 %v1685, 64
  %v1688 = vpop.permute.xlu0 %1687
  %v1690 = vadd.f32 %v328, %v1688
  %v1691 = vtanh.pop %v1690
  %v1692 = vsub.f32 1.0, %v1680
  %1694 = vrot.lane.b32.xlu0 %v1691, 96
  %v1695 = vpop.permute.xlu0 %1694
  %v1697 = vmul.f32 %v1692, %v1695
  %v1698 = vmul.f32 %v1680, %v1444
  %v1699 = vadd.f32 %v1697, %v1698
  %1701 = vrot.lane.b32.xlu0 %v1675, 96
  %v1702 = vpop.permute.xlu0 %1701
  %v1704 = vsel %vm528, %v1702, %v1699
  %v1706 = vsel %vm401, %v1574, 0
  %1708 = vmatprep.subr.mxu0 %v355
  %1709 = vmatpush1.msra.mxu0 %v354
  %1710 = vmatprep.subr.mxu0 %v357
  %1711 = vmatpush1.msra.mxu0 %v356
  %1712 = vmatprep.subr.mxu0 %v359
  %1713 = vmatpush1.msra.mxu0 %v358
  %1714 = vmatprep.subr.mxu0 %v361
  %1715 = vmatpush1.msra.mxu0 %v360
  %1716 = vmatprep.subr.mxu0 %v363
  %1717 = vmatpush1.msra.mxu0 %v362
  %1718 = vmatprep.subr.mxu0 %v365
  %1719 = vmatpush1.msra.mxu0 %v364
  %1720 = vmatprep.subr.mxu0 %v367
  %1721 = vmatpush1.msra.mxu0 %v366
  %1722 = vmatprep.subr.mxu0 %v369
  %1723 = vmatpush1.msra.mxu0 %v368
  %1724 = vmatprep.subr.mxu0 0.0
  %1725 = vmatpush1.msra.mxu0 0.0
  %1726 = vmatprep.subr.mxu0 0.0
  %1727 = vmatpush1.msra.mxu0 0.0
  %1728 = vmatprep.subr.mxu0 0.0
  %1729 = vmatpush1.msra.mxu0 0.0
  %1730 = vmatprep.subr.mxu0 0.0
  %1731 = vmatpush1.msra.mxu0 0.0
  %1732 = vmatprep.subr.mxu0 0.0
  %1733 = vmatpush1.msra.mxu0 0.0
  %1734 = vmatprep.subr.mxu0 0.0
  %1735 = vmatpush1.msra.mxu0 0.0
  %1736 = vmatprep.subr.mxu0 0.0
  %1737 = vmatpush1.msra.mxu0 0.0
  %1738 = vmatprep.subr.mxu0 0.0
  %1739 = vmatpush1.msra.mxu0 0.0
  %1740 = vmatprep.subr.mxu0 0.0
  %1741 = vmatpush1.msra.mxu0 0.0
  %1742 = vmatprep.subr.mxu0 0.0
  %1743 = vmatpush1.msra.mxu0 0.0
  %1744 = vmatprep.subr.mxu0 0.0
  %1745 = vmatpush1.msra.mxu0 0.0
  %1746 = vmatprep.subr.mxu0 0.0
  %1747 = vmatpush1.msra.mxu0 0.0
  %1748 = vmatprep.subr.mxu0 0.0
  %1749 = vmatpush1.msra.mxu0 0.0
  %1750 = vmatprep.subr.mxu0 0.0
  %1751 = vmatpush1.msra.mxu0 0.0
  %1752 = vmatprep.subr.mxu0 0.0
  %1753 = vmatpush1.msra.mxu0 0.0
  %1754 = vmatprep.subr.mxu0 0.0
  %1755 = vmatpush1.msra.mxu0 0.0
  %1756 = vmatprep.subr.mxu0 0.0
  %1757 = vmatpush1.msra.mxu0 0.0
  %1758 = vmatprep.subr.mxu0 0.0
  %1759 = vmatpush1.msra.mxu0 0.0
  %1760 = vmatprep.subr.mxu0 0.0
  %1761 = vmatpush1.msra.mxu0 0.0
  %1762 = vmatprep.subr.mxu0 0.0
  %1763 = vmatpush1.msra.mxu0 0.0
  %1764 = vmatprep.subr.mxu0 0.0
  %1765 = vmatpush1.msra.mxu0 0.0
  %1766 = vmatprep.subr.mxu0 0.0
  %1767 = vmatpush1.msra.mxu0 0.0
  %1768 = vmatprep.subr.mxu0 0.0
  %1769 = vmatpush1.msra.mxu0 0.0
  %1770 = vmatprep.subr.mxu0 0.0
  %1771 = vmatpush1.msra.mxu0 0.0
  %1772 = vmatprep.mubr.f32.mxu0 0.0
  %1773 = vmatmul.mubr.f32.gmra.mrb[0].mxu0 %v1706
  %v1774 = vpop.f32.mrb[0].mxu0
  %v1775 = vadd.f32 %v394, %v1774
  %v1776 = vpop.f32.mrb[0].mxu0
  %v1777 = vadd.f32 %v398, %v1776
  %1778 = vdwg.mxu0
  %v1779 = vadd.f32 %v187, %v1775
  %v1780 = vmul.f32 %v1779, 0.5
  %v1781 = vtanh.pop %v1780
  %v1782 = vmul.f32 %v1781, 0.5
  %v1783 = vadd.f32 %v1782, 0.5
  %1785 = vrot.lane.b32.xlu0 %v1775, 64
  %v1786 = vpop.permute.xlu0 %1785
  %v1788 = vmul.f32 %v1783, %v1786
  %1790 = vrot.lane.b32.xlu0 %v1788, 64
  %v1791 = vpop.permute.xlu0 %1790
  %v1793 = vadd.f32 %v187, %v1791
  %v1794 = vtanh.pop %v1793
  %v1795 = vsub.f32 1.0, %v1783
  %1797 = vrot.lane.b32.xlu0 %v1794, 96
  %v1798 = vpop.permute.xlu0 %1797
  %v1800 = vmul.f32 %v1795, %v1798
  %1801 = vrot.lane.b32.xlu0 %v1574, 32
  %v1802 = vpop.permute.xlu0 %1801
  %v1804 = vmul.f32 %v1783, %v1802
  %v1805 = vadd.f32 %v1800, %v1804
  %v1806 = vadd.f32 %v159, %v1777
  %v1807 = vmul.f32 %v1806, 0.5
  %v1808 = vtanh.pop %v1807
  %v1809 = vmul.f32 %v1808, 0.5
  %v1810 = vadd.f32 %v1809, 0.5
  %1812 = vrot.lane.b32.xlu0 %v1777, 64
  %v1813 = vpop.permute.xlu0 %1812
  %v1815 = vmul.f32 %v1810, %v1813
  %1817 = vrot.lane.b32.xlu0 %v1815, 64
  %v1818 = vpop.permute.xlu0 %1817
  %v1820 = vadd.f32 %v159, %v1818
  %v1821 = vtanh.pop %v1820
  %v1822 = vsub.f32 1.0, %v1810
  %1824 = vrot.lane.b32.xlu0 %v1821, 96
  %v1825 = vpop.permute.xlu0 %1824
  %v1827 = vmul.f32 %v1822, %v1825
  %v1828 = vmul.f32 %v1810, %v1574
  %v1829 = vadd.f32 %v1827, %v1828
  %1831 = vrot.lane.b32.xlu0 %v1805, 96
  %v1832 = vpop.permute.xlu0 %1831
  %v1834 = vsel %vm528, %v1832, %v1829
  %v1836 = vsel %vm401, %v1704, 0
  %1838 = vmatprep.subr.mxu0 %v373
  %1839 = vmatpush1.msra.mxu0 %v372
  %1840 = vmatprep.subr.mxu0 %v375
  %1841 = vmatpush1.msra.mxu0 %v374
  %1842 = vmatprep.subr.mxu0 %v377
  %1843 = vmatpush1.msra.mxu0 %v376
  %1844 = vmatprep.subr.mxu0 %v379
  %1845 = vmatpush1.msra.mxu0 %v378
  %1846 = vmatprep.subr.mxu0 %v381
  %1847 = vmatpush1.msra.mxu0 %v380
  %1848 = vmatprep.subr.mxu0 %v383
  %1849 = vmatpush1.msra.mxu0 %v382
  %1850 = vmatprep.subr.mxu0 %v385
  %1851 = vmatpush1.msra.mxu0 %v384
  %1852 = vmatprep.subr.mxu0 %v387
  %1853 = vmatpush1.msra.mxu0 %v386
  %1854 = vmatprep.subr.mxu0 0.0
  %1855 = vmatpush1.msra.mxu0 0.0
  %1856 = vmatprep.subr.mxu0 0.0
  %1857 = vmatpush1.msra.mxu0 0.0
  %1858 = vmatprep.subr.mxu0 0.0
  %1859 = vmatpush1.msra.mxu0 0.0
  %1860 = vmatprep.subr.mxu0 0.0
  %1861 = vmatpush1.msra.mxu0 0.0
  %1862 = vmatprep.subr.mxu0 0.0
  %1863 = vmatpush1.msra.mxu0 0.0
  %1864 = vmatprep.subr.mxu0 0.0
  %1865 = vmatpush1.msra.mxu0 0.0
  %1866 = vmatprep.subr.mxu0 0.0
  %1867 = vmatpush1.msra.mxu0 0.0
  %1868 = vmatprep.subr.mxu0 0.0
  %1869 = vmatpush1.msra.mxu0 0.0
  %1870 = vmatprep.subr.mxu0 0.0
  %1871 = vmatpush1.msra.mxu0 0.0
  %1872 = vmatprep.subr.mxu0 0.0
  %1873 = vmatpush1.msra.mxu0 0.0
  %1874 = vmatprep.subr.mxu0 0.0
  %1875 = vmatpush1.msra.mxu0 0.0
  %1876 = vmatprep.subr.mxu0 0.0
  %1877 = vmatpush1.msra.mxu0 0.0
  %1878 = vmatprep.subr.mxu0 0.0
  %1879 = vmatpush1.msra.mxu0 0.0
  %1880 = vmatprep.subr.mxu0 0.0
  %1881 = vmatpush1.msra.mxu0 0.0
  %1882 = vmatprep.subr.mxu0 0.0
  %1883 = vmatpush1.msra.mxu0 0.0
  %1884 = vmatprep.subr.mxu0 0.0
  %1885 = vmatpush1.msra.mxu0 0.0
  %1886 = vmatprep.subr.mxu0 0.0
  %1887 = vmatpush1.msra.mxu0 0.0
  %1888 = vmatprep.subr.mxu0 0.0
  %1889 = vmatpush1.msra.mxu0 0.0
  %1890 = vmatprep.subr.mxu0 0.0
  %1891 = vmatpush1.msra.mxu0 0.0
  %1892 = vmatprep.subr.mxu0 0.0
  %1893 = vmatpush1.msra.mxu0 0.0
  %1894 = vmatprep.subr.mxu0 0.0
  %1895 = vmatpush1.msra.mxu0 0.0
  %1896 = vmatprep.subr.mxu0 0.0
  %1897 = vmatpush1.msra.mxu0 0.0
  %1898 = vmatprep.subr.mxu0 0.0
  %1899 = vmatpush1.msra.mxu0 0.0
  %1900 = vmatprep.subr.mxu0 0.0
  %1901 = vmatpush1.msra.mxu0 0.0
  %1902 = vmatprep.mubr.f32.mxu0 0.0
  %1903 = vmatmul.mubr.f32.gmra.mrb[0].mxu0 %v1836
  %v1904 = vpop.f32.mrb[0].mxu0
  %v1905 = vadd.f32 %v534, %v1904
  %v1906 = vpop.f32.mrb[0].mxu0
  %v1907 = vadd.f32 %v538, %v1906
  %1908 = vdwg.mxu0
  %v1909 = vadd.f32 %v338, %v1905
  %v1910 = vmul.f32 %v1909, 0.5
  %v1911 = vtanh.pop %v1910
  %v1912 = vmul.f32 %v1911, 0.5
  %v1913 = vadd.f32 %v1912, 0.5
  %1915 = vrot.lane.b32.xlu0 %v1905, 64
  %v1916 = vpop.permute.xlu0 %1915
  %v1918 = vmul.f32 %v1913, %v1916
  %1920 = vrot.lane.b32.xlu0 %v1918, 64
  %v1921 = vpop.permute.xlu0 %1920
  %v1923 = vadd.f32 %v338, %v1921
  %v1924 = vtanh.pop %v1923
  %v1925 = vsub.f32 1.0, %v1913
  %1927 = vrot.lane.b32.xlu0 %v1924, 96
  %v1928 = vpop.permute.xlu0 %1927
  %v1930 = vmul.f32 %v1925, %v1928
  %1931 = vrot.lane.b32.xlu0 %v1704, 32
  %v1932 = vpop.permute.xlu0 %1931
  %v1934 = vmul.f32 %v1913, %v1932
  %v1935 = vadd.f32 %v1930, %v1934
  %v1936 = vadd.f32 %v322, %v1907
  %v1937 = vmul.f32 %v1936, 0.5
  %v1938 = vtanh.pop %v1937
  %v1939 = vmul.f32 %v1938, 0.5
  %v1940 = vadd.f32 %v1939, 0.5
  %1942 = vrot.lane.b32.xlu0 %v1907, 64
  %v1943 = vpop.permute.xlu0 %1942
  %v1945 = vmul.f32 %v1940, %v1943
  %1947 = vrot.lane.b32.xlu0 %v1945, 64
  %v1948 = vpop.permute.xlu0 %1947
  %v1950 = vadd.f32 %v322, %v1948
  %v1951 = vtanh.pop %v1950
  %v1952 = vsub.f32 1.0, %v1940
  %1954 = vrot.lane.b32.xlu0 %v1951, 96
  %v1955 = vpop.permute.xlu0 %1954
  %v1957 = vmul.f32 %v1952, %v1955
  %v1958 = vmul.f32 %v1940, %v1704
  %v1959 = vadd.f32 %v1957, %v1958
  %1961 = vrot.lane.b32.xlu0 %v1935, 96
  %v1962 = vpop.permute.xlu0 %1961
  %v1964 = vsel %vm528, %v1962, %v1959
  %v1966 = vsel %vm401, %v1964, 0
  %1968 = vmatprep.subr.mxu0 %v373
  %1969 = vmatpush1.msra.mxu0 %v372
  %1970 = vmatprep.subr.mxu0 %v375
  %1971 = vmatpush1.msra.mxu0 %v374
  %1972 = vmatprep.subr.mxu0 %v377
  %1973 = vmatpush1.msra.mxu0 %v376
  %1974 = vmatprep.subr.mxu0 %v379
  %1975 = vmatpush1.msra.mxu0 %v378
  %1976 = vmatprep.subr.mxu0 %v381
  %1977 = vmatpush1.msra.mxu0 %v380
  %1978 = vmatprep.subr.mxu0 %v383
  %1979 = vmatpush1.msra.mxu0 %v382
  %1980 = vmatprep.subr.mxu0 %v385
  %1981 = vmatpush1.msra.mxu0 %v384
  %1982 = vmatprep.subr.mxu0 %v387
  %1983 = vmatpush1.msra.mxu0 %v386
  %1984 = vmatprep.subr.mxu0 0.0
  %1985 = vmatpush1.msra.mxu0 0.0
  %1986 = vmatprep.subr.mxu0 0.0
  %1987 = vmatpush1.msra.mxu0 0.0
  %1988 = vmatprep.subr.mxu0 0.0
  %1989 = vmatpush1.msra.mxu0 0.0
  %1990 = vmatprep.subr.mxu0 0.0
  %1991 = vmatpush1.msra.mxu0 0.0
  %1992 = vmatprep.subr.mxu0 0.0
  %1993 = vmatpush1.msra.mxu0 0.0
  %1994 = vmatprep.subr.mxu0 0.0
  %1995 = vmatpush1.msra.mxu0 0.0
  %1996 = vmatprep.subr.mxu0 0.0
  %1997 = vmatpush1.msra.mxu0 0.0
  %1998 = vmatprep.subr.mxu0 0.0
  %1999 = vmatpush1.msra.mxu0 0.0
  %2000 = vmatprep.subr.mxu0 0.0
  %2001 = vmatpush1.msra.mxu0 0.0
  %2002 = vmatprep.subr.mxu0 0.0
  %2003 = vmatpush1.msra.mxu0 0.0
  %2004 = vmatprep.subr.mxu0 0.0
  %2005 = vmatpush1.msra.mxu0 0.0
  %2006 = vmatprep.subr.mxu0 0.0
  %2007 = vmatpush1.msra.mxu0 0.0
  %2008 = vmatprep.subr.mxu0 0.0
  %2009 = vmatpush1.msra.mxu0 0.0
  %2010 = vmatprep.subr.mxu0 0.0
  %2011 = vmatpush1.msra.mxu0 0.0
  %2012 = vmatprep.subr.mxu0 0.0
  %2013 = vmatpush1.msra.mxu0 0.0
  %2014 = vmatprep.subr.mxu0 0.0
  %2015 = vmatpush1.msra.mxu0 0.0
  %2016 = vmatprep.subr.mxu0 0.0
  %2017 = vmatpush1.msra.mxu0 0.0
  %2018 = vmatprep.subr.mxu0 0.0
  %2019 = vmatpush1.msra.mxu0 0.0
  %2020 = vmatprep.subr.mxu0 0.0
  %2021 = vmatpush1.msra.mxu0 0.0
  %2022 = vmatprep.subr.mxu0 0.0
  %2023 = vmatpush1.msra.mxu0 0.0
  %2024 = vmatprep.subr.mxu0 0.0
  %2025 = vmatpush1.msra.mxu0 0.0
  %2026 = vmatprep.subr.mxu0 0.0
  %2027 = vmatpush1.msra.mxu0 0.0
  %2028 = vmatprep.subr.mxu0 0.0
  %2029 = vmatpush1.msra.mxu0 0.0
  %2030 = vmatprep.subr.mxu0 0.0
  %2031 = vmatpush1.msra.mxu0 0.0
  %2032 = vmatprep.mubr.f32.mxu0 0.0
  %2033 = vmatmul.mubr.f32.gmra.mrb[0].mxu0 %v1966
  %v2034 = vpop.f32.mrb[0].mxu0
  %v2035 = vadd.f32 %v534, %v2034
  %v2036 = vpop.f32.mrb[0].mxu0
  %v2037 = vadd.f32 %v538, %v2036
  %2038 = vdwg.mxu0
  %v2039 = vadd.f32 %v344, %v2035
  %v2040 = vmul.f32 %v2039, 0.5
  %v2041 = vtanh.pop %v2040
  %v2042 = vmul.f32 %v2041, 0.5
  %v2043 = vadd.f32 %v2042, 0.5
  %2045 = vrot.lane.b32.xlu0 %v2035, 64
  %v2046 = vpop.permute.xlu0 %2045
  %v2048 = vmul.f32 %v2043, %v2046
  %2050 = vrot.lane.b32.xlu0 %v2048, 64
  %v2051 = vpop.permute.xlu0 %2050
  %v2053 = vadd.f32 %v344, %v2051
  %v2054 = vtanh.pop %v2053
  %v2055 = vsub.f32 1.0, %v2043
  %2057 = vrot.lane.b32.xlu0 %v2054, 96
  %v2058 = vpop.permute.xlu0 %2057
  %v2060 = vmul.f32 %v2055, %v2058
  %2061 = vrot.lane.b32.xlu0 %v1964, 32
  %v2062 = vpop.permute.xlu0 %2061
  %v2064 = vmul.f32 %v2043, %v2062
  %v2065 = vadd.f32 %v2060, %v2064
  %v2066 = vadd.f32 %v316, %v2037
  %v2067 = vmul.f32 %v2066, 0.5
  %v2068 = vtanh.pop %v2067
  %v2069 = vmul.f32 %v2068, 0.5
  %v2070 = vadd.f32 %v2069, 0.5
  %2072 = vrot.lane.b32.xlu0 %v2037, 64
  %v2073 = vpop.permute.xlu0 %2072
  %v2075 = vmul.f32 %v2070, %v2073
  %2077 = vrot.lane.b32.xlu0 %v2075, 64
  %v2078 = vpop.permute.xlu0 %2077
  %v2080 = vadd.f32 %v316, %v2078
  %v2081 = vtanh.pop %v2080
  %v2082 = vsub.f32 1.0, %v2070
  %2084 = vrot.lane.b32.xlu0 %v2081, 96
  %v2085 = vpop.permute.xlu0 %2084
  %v2087 = vmul.f32 %v2082, %v2085
  %v2088 = vmul.f32 %v2070, %v1964
  %v2089 = vadd.f32 %v2087, %v2088
  %2091 = vrot.lane.b32.xlu0 %v2065, 96
  %v2092 = vpop.permute.xlu0 %2091
  %v2094 = vsel %vm528, %v2092, %v2089
  %v2096 = vsel %vm401, %v2094, 0
  %2098 = vmatprep.subr.mxu0 %v373
  %2099 = vmatpush1.msra.mxu0 %v372
  %2100 = vmatprep.subr.mxu0 %v375
  %2101 = vmatpush1.msra.mxu0 %v374
  %2102 = vmatprep.subr.mxu0 %v377
  %2103 = vmatpush1.msra.mxu0 %v376
  %2104 = vmatprep.subr.mxu0 %v379
  %2105 = vmatpush1.msra.mxu0 %v378
  %2106 = vmatprep.subr.mxu0 %v381
  %2107 = vmatpush1.msra.mxu0 %v380
  %2108 = vmatprep.subr.mxu0 %v383
  %2109 = vmatpush1.msra.mxu0 %v382
  %2110 = vmatprep.subr.mxu0 %v385
  %2111 = vmatpush1.msra.mxu0 %v384
  %2112 = vmatprep.subr.mxu0 %v387
  %2113 = vmatpush1.msra.mxu0 %v386
  %2114 = vmatprep.subr.mxu0 0.0
  %2115 = vmatpush1.msra.mxu0 0.0
  %2116 = vmatprep.subr.mxu0 0.0
  %2117 = vmatpush1.msra.mxu0 0.0
  %2118 = vmatprep.subr.mxu0 0.0
  %2119 = vmatpush1.msra.mxu0 0.0
  %2120 = vmatprep.subr.mxu0 0.0
  %2121 = vmatpush1.msra.mxu0 0.0
  %2122 = vmatprep.subr.mxu0 0.0
  %2123 = vmatpush1.msra.mxu0 0.0
  %2124 = vmatprep.subr.mxu0 0.0
  %2125 = vmatpush1.msra.mxu0 0.0
  %2126 = vmatprep.subr.mxu0 0.0
  %2127 = vmatpush1.msra.mxu0 0.0
  %2128 = vmatprep.subr.mxu0 0.0
  %2129 = vmatpush1.msra.mxu0 0.0
  %2130 = vmatprep.subr.mxu0 0.0
  %2131 = vmatpush1.msra.mxu0 0.0
  %2132 = vmatprep.subr.mxu0 0.0
  %2133 = vmatpush1.msra.mxu0 0.0
  %2134 = vmatprep.subr.mxu0 0.0
  %2135 = vmatpush1.msra.mxu0 0.0
  %2136 = vmatprep.subr.mxu0 0.0
  %2137 = vmatpush1.msra.mxu0 0.0
  %2138 = vmatprep.subr.mxu0 0.0
  %2139 = vmatpush1.msra.mxu0 0.0
  %2140 = vmatprep.subr.mxu0 0.0
  %2141 = vmatpush1.msra.mxu0 0.0
  %2142 = vmatprep.subr.mxu0 0.0
  %2143 = vmatpush1.msra.mxu0 0.0
  %2144 = vmatprep.subr.mxu0 0.0
  %2145 = vmatpush1.msra.mxu0 0.0
  %2146 = vmatprep.subr.mxu0 0.0
  %2147 = vmatpush1.msra.mxu0 0.0
  %2148 = vmatprep.subr.mxu0 0.0
  %2149 = vmatpush1.msra.mxu0 0.0
  %2150 = vmatprep.subr.mxu0 0.0
  %2151 = vmatpush1.msra.mxu0 0.0
  %2152 = vmatprep.subr.mxu0 0.0
  %2153 = vmatpush1.msra.mxu0 0.0
  %2154 = vmatprep.subr.mxu0 0.0
  %2155 = vmatpush1.msra.mxu0 0.0
  %2156 = vmatprep.subr.mxu0 0.0
  %2157 = vmatpush1.msra.mxu0 0.0
  %2158 = vmatprep.subr.mxu0 0.0
  %2159 = vmatpush1.msra.mxu0 0.0
  %2160 = vmatprep.subr.mxu0 0.0
  %2161 = vmatpush1.msra.mxu0 0.0
  %2162 = vmatprep.mubr.f32.mxu0 0.0
  %2163 = vmatmul.mubr.f32.gmra.mrb[0].mxu0 %v2096
  %v2164 = vpop.f32.mrb[0].mxu0
  %v2165 = vadd.f32 %v534, %v2164
  %v2166 = vpop.f32.mrb[0].mxu0
  %v2167 = vadd.f32 %v538, %v2166
  %2168 = vdwg.mxu0
  %v2169 = vadd.f32 %v350, %v2165
  %v2170 = vmul.f32 %v2169, 0.5
  %v2171 = vtanh.pop %v2170
  %v2172 = vmul.f32 %v2171, 0.5
  %v2173 = vadd.f32 %v2172, 0.5
  %2175 = vrot.lane.b32.xlu0 %v2165, 64
  %v2176 = vpop.permute.xlu0 %2175
  %v2178 = vmul.f32 %v2173, %v2176
  %2180 = vrot.lane.b32.xlu0 %v2178, 64
  %v2181 = vpop.permute.xlu0 %2180
  %v2183 = vadd.f32 %v350, %v2181
  %v2184 = vtanh.pop %v2183
  %v2185 = vsub.f32 1.0, %v2173
  %2187 = vrot.lane.b32.xlu0 %v2184, 96
  %v2188 = vpop.permute.xlu0 %2187
  %v2190 = vmul.f32 %v2185, %v2188
  %2191 = vrot.lane.b32.xlu0 %v2094, 32
  %v2192 = vpop.permute.xlu0 %2191
  %v2194 = vmul.f32 %v2173, %v2192
  %v2195 = vadd.f32 %v2190, %v2194
  %v2196 = vadd.f32 %v310, %v2167
  %v2197 = vmul.f32 %v2196, 0.5
  %v2198 = vtanh.pop %v2197
  %v2199 = vmul.f32 %v2198, 0.5
  %v2200 = vadd.f32 %v2199, 0.5
  %2202 = vrot.lane.b32.xlu0 %v2167, 64
  %v2203 = vpop.permute.xlu0 %2202
  %v2205 = vmul.f32 %v2200, %v2203
  %2207 = vrot.lane.b32.xlu0 %v2205, 64
  %v2208 = vpop.permute.xlu0 %2207
  %v2210 = vadd.f32 %v310, %v2208
  %v2211 = vtanh.pop %v2210
  %v2212 = vsub.f32 1.0, %v2200
  %2214 = vrot.lane.b32.xlu0 %v2211, 96
  %v2215 = vpop.permute.xlu0 %2214
  %v2217 = vmul.f32 %v2212, %v2215
  %v2218 = vmul.f32 %v2200, %v2094
  %v2219 = vadd.f32 %v2217, %v2218
  %2221 = vrot.lane.b32.xlu0 %v2195, 96
  %v2222 = vpop.permute.xlu0 %2221
  %v2224 = vsel %vm528, %v2222, %v2219
  %v2225 = vld [vmem:[%s7] sm:$0xff]
  %v2226 = vld [vmem:[%s7 + $0x8] sm:$0xff]
  %v2227 = vld [vmem:[%s7 + $0x10] sm:$0xff]
  %v2228 = vld [vmem:[%s7 + $0x18] sm:$0xff]
  %v2229 = vld [vmem:[%s7 + $0x20] sm:$0xff]
  %v2230 = vld [vmem:[%s7 + $0x28] sm:$0xff]
  %v2231 = vld [vmem:[%s7 + $0x30] sm:$0xff]
  %v2232 = vld [vmem:[%s7 + $0x38] sm:$0xff]
  %v2233 = vld [vmem:[%s8] sm:$0x1]
  %v2235 = vlaneseq
  %v2236 = vshrl.u32 %v2235, 7
  %v2237 = vsub.s32 0, %v2236
  %v2238 = vrot.slane %v2233, %v2237
  %v2241 = vsel %vm401, %v1834, 0
  %2243 = vmatprep.subr.mxu0 0.0
  %2244 = vmatpush1.msra.mxu0 %v2225
  %2245 = vmatprep.subr.mxu0 0.0
  %2246 = vmatpush1.msra.mxu0 %v2226
  %2247 = vmatprep.subr.mxu0 0.0
  %2248 = vmatpush1.msra.mxu0 %v2227
  %2249 = vmatprep.subr.mxu0 0.0
  %2250 = vmatpush1.msra.mxu0 %v2228
  %2251 = vmatprep.subr.mxu0 0.0
  %2252 = vmatpush1.msra.mxu0 %v2229
  %2253 = vmatprep.subr.mxu0 0.0
  %2254 = vmatpush1.msra.mxu0 %v2230
  %2255 = vmatprep.subr.mxu0 0.0
  %2256 = vmatpush1.msra.mxu0 %v2231
  %2257 = vmatprep.subr.mxu0 0.0
  %2258 = vmatpush1.msra.mxu0 %v2232
  %2259 = vmatprep.subr.mxu0 0.0
  %2260 = vmatpush1.msra.mxu0 0.0
  %2261 = vmatprep.subr.mxu0 0.0
  %2262 = vmatpush1.msra.mxu0 0.0
  %2263 = vmatprep.subr.mxu0 0.0
  %2264 = vmatpush1.msra.mxu0 0.0
  %2265 = vmatprep.subr.mxu0 0.0
  %2266 = vmatpush1.msra.mxu0 0.0
  %2267 = vmatprep.subr.mxu0 0.0
  %2268 = vmatpush1.msra.mxu0 0.0
  %2269 = vmatprep.subr.mxu0 0.0
  %2270 = vmatpush1.msra.mxu0 0.0
  %2271 = vmatprep.subr.mxu0 0.0
  %2272 = vmatpush1.msra.mxu0 0.0
  %2273 = vmatprep.subr.mxu0 0.0
  %2274 = vmatpush1.msra.mxu0 0.0
  %2275 = vmatprep.subr.mxu0 0.0
  %2276 = vmatpush1.msra.mxu0 0.0
  %2277 = vmatprep.subr.mxu0 0.0
  %2278 = vmatpush1.msra.mxu0 0.0
  %2279 = vmatprep.subr.mxu0 0.0
  %2280 = vmatpush1.msra.mxu0 0.0
  %2281 = vmatprep.subr.mxu0 0.0
  %2282 = vmatpush1.msra.mxu0 0.0
  %2283 = vmatprep.subr.mxu0 0.0
  %2284 = vmatpush1.msra.mxu0 0.0
  %2285 = vmatprep.subr.mxu0 0.0
  %2286 = vmatpush1.msra.mxu0 0.0
  %2287 = vmatprep.subr.mxu0 0.0
  %2288 = vmatpush1.msra.mxu0 0.0
  %2289 = vmatprep.subr.mxu0 0.0
  %2290 = vmatpush1.msra.mxu0 0.0
  %2291 = vmatprep.subr.mxu0 0.0
  %2292 = vmatpush1.msra.mxu0 0.0
  %2293 = vmatprep.subr.mxu0 0.0
  %2294 = vmatpush1.msra.mxu0 0.0
  %2295 = vmatprep.subr.mxu0 0.0
  %2296 = vmatpush1.msra.mxu0 0.0
  %2297 = vmatprep.subr.mxu0 0.0
  %2298 = vmatpush1.msra.mxu0 0.0
  %2299 = vmatprep.subr.mxu0 0.0
  %2300 = vmatpush1.msra.mxu0 0.0
  %2301 = vmatprep.subr.mxu0 0.0
  %2302 = vmatpush1.msra.mxu0 0.0
  %2303 = vmatprep.subr.mxu0 0.0
  %2304 = vmatpush1.msra.mxu0 0.0
  %2305 = vmatprep.subr.mxu0 0.0
  %2306 = vmatpush1.msra.mxu0 0.0
  %2307 = vmatprep.mubr.f32.mxu0 0.0
  %2308 = vmatmul.mubr.f32.gmra.mrb[0].mxu0 %v2241
  %v2309 = vpop.f32.mrb[0].mxu0
  %v2310 = vadd.f32 %v2238, %v2309
  %v2311 = vpop.f32.mrb[0].mxu0
  %2312 = vdwg.mxu0
  %v2313 = vld [vmem:[%s2] sm:$0xff]
  %v2314 = vld [vmem:[%s2 + $0x8] sm:$0xff]
  %v2315 = vld [vmem:[%s2 + $0x10] sm:$0xff]
  %v2316 = vld [vmem:[%s2 + $0x18] sm:$0xff]
  %v2317 = vld [vmem:[%s2 + $0x20] sm:$0xff]
  %v2318 = vld [vmem:[%s2 + $0x28] sm:$0xff]
  %v2319 = vld [vmem:[%s2 + $0x30] sm:$0xff]
  %v2320 = vld [vmem:[%s2 + $0x38] sm:$0xff]
  %v2321 = vld [vmem:[%s10] sm:$0x1]
  %v2323 = vlaneseq
  %v2324 = vshrl.u32 %v2323, 7
  %v2325 = vsub.s32 0, %v2324
  %v2326 = vrot.slane %v2321, %v2325
  %v2328 = vmul.f32 %v2313, %v2326
  %v2329 = vmul.f32 %v2314, %v2326
  %v2330 = vmul.f32 %v2315, %v2326
  %v2331 = vmul.f32 %v2316, %v2326
  %v2332 = vmul.f32 %v2317, %v2326
  %v2333 = vmul.f32 %v2318, %v2326
  %v2334 = vmul.f32 %v2319, %v2326
  %v2335 = vmul.f32 %v2320, %v2326
  %v2336 = vsel %vm71, %v2328, 0.0
  %2337 = vadd.xlane.f32.xlu0 %v2336
  %v2338 = vpop.xlane.xlu0 %2337
  %v2339 = vsel %vm71, %v2329, 0.0
  %2340 = vadd.xlane.f32.xlu0 %v2339
  %v2341 = vpop.xlane.xlu0 %2340
  %v2342 = vsel %vm71, %v2330, 0.0
  %2343 = vadd.xlane.f32.xlu0 %v2342
  %v2344 = vpop.xlane.xlu0 %2343
  %v2345 = vsel %vm71, %v2331, 0.0
  %2346 = vadd.xlane.f32.xlu0 %v2345
  %v2347 = vpop.xlane.xlu0 %2346
  %v2348 = vsel %vm71, %v2332, 0.0
  %2349 = vadd.xlane.f32.xlu0 %v2348
  %v2350 = vpop.xlane.xlu0 %2349
  %v2351 = vsel %vm71, %v2333, 0.0
  %2352 = vadd.xlane.f32.xlu0 %v2351
  %v2353 = vpop.xlane.xlu0 %2352
  %v2354 = vsel %vm71, %v2334, 0.0
  %2355 = vadd.xlane.f32.xlu0 %v2354
  %v2356 = vpop.xlane.xlu0 %2355
  %v2357 = vsel %vm71, %v2335, 0.0
  %2358 = vadd.xlane.f32.xlu0 %v2357
  %v2359 = vpop.xlane.xlu0 %2358
  %v2360 = vld [vmem:[%s9] sm:$0x1]
  %v2362 = vlaneseq
  %v2363 = vshrl.u32 %v2362, 7
  %v2364 = vsub.s32 0, %v2363
  %v2365 = vrot.slane %v2360, %v2364
  %v2367 = vmul.f32 %v2310, %v2365
  %v2368 = vsel %vm528, %v2367, 0.0
  %2369 = vadd.xlane.f32.xlu0 %v2368
  %v2370 = vpop.xlane.xlu0 %2369
  %v2371 = vadd.f32 %v2338, %v2370
  %v2372 = vadd.f32 %v2341, %v2370
  %v2373 = vadd.f32 %v2344, %v2370
  %v2374 = vadd.f32 %v2347, %v2370
  %v2375 = vadd.f32 %v2350, %v2370
  %v2376 = vadd.f32 %v2353, %v2370
  %v2377 = vadd.f32 %v2356, %v2370
  %v2378 = vadd.f32 %v2359, %v2370
  %v2379 = vld [vmem:[#allocation2] sm:$0x1]
  %v2381 = vlaneseq
  %v2382 = vshrl.u32 %v2381, 7
  %v2383 = vsub.s32 0, %v2382
  %v2384 = vrot.slane %v2379, %v2383
  %v2386 = vadd.f32 %v2371, %v2384
  %v2387 = vadd.f32 %v2372, %v2384
  %v2388 = vadd.f32 %v2373, %v2384
  %v2389 = vadd.f32 %v2374, %v2384
  %v2390 = vadd.f32 %v2375, %v2384
  %v2391 = vadd.f32 %v2376, %v2384
  %v2392 = vadd.f32 %v2377, %v2384
  %v2393 = vadd.f32 %v2378, %v2384
  %vm2394 = vcmask 7168
  %v2395 = vsel %vm2394, %v2386, -inf
  %v2396 = vsel %vm2394, %v2387, -inf
  %v2397 = vsel %vm2394, %v2388, -inf
  %v2398 = vsel %vm2394, %v2389, -inf
  %v2399 = vsel %vm2394, %v2390, -inf
  %v2400 = vmax.f32 %v2395, %v2399
  %v2401 = vsel %vm2394, %v2391, -inf
  %v2402 = vmax.f32 %v2396, %v2401
  %v2403 = vsel %vm2394, %v2392, -inf
  %v2404 = vmax.f32 %v2397, %v2403
  %v2405 = vsel %vm2394, %v2393, -inf
  %v2406 = vmax.f32 %v2398, %v2405
  %v2407 = vmax.f32 %v2400, %v2402
  %v2408 = vmax.f32 %v2404, %v2406
  %v2409 = vmax.f32 %v2407, %v2408
  %v2410 = vsub.f32 %v2386, %v2409
  %v2411 = vsub.f32 %v2387, %v2409
  %v2412 = vsub.f32 %v2388, %v2409
  %v2413 = vsub.f32 %v2389, %v2409
  %v2414 = vsub.f32 %v2390, %v2409
  %v2415 = vsub.f32 %v2391, %v2409
  %v2416 = vsub.f32 %v2392, %v2409
  %v2417 = vsub.f32 %v2393, %v2409
  %v2418 = vmul.f32 %v2410, 1.442695
  %v2419 = vpow.pop %v2418
  %v2420 = vmul.f32 %v2411, 1.442695
  %v2421 = vpow.pop %v2420
  %v2422 = vmul.f32 %v2412, 1.442695
  %v2423 = vpow.pop %v2422
  %v2424 = vmul.f32 %v2413, 1.442695
  %v2425 = vpow.pop %v2424
  %v2426 = vmul.f32 %v2414, 1.442695
  %v2427 = vpow.pop %v2426
  %v2428 = vmul.f32 %v2415, 1.442695
  %v2429 = vpow.pop %v2428
  %v2430 = vmul.f32 %v2416, 1.442695
  %v2431 = vpow.pop %v2430
  %v2432 = vmul.f32 %v2417, 1.442695
  %v2433 = vpow.pop %v2432
  %v2434 = vsel %vm2394, %v2419, 0.0
  %v2435 = vsel %vm2394, %v2421, 0.0
  %v2436 = vadd.f32 %v2434, %v2435
  %v2437 = vsel %vm2394, %v2423, 0.0
  %v2438 = vadd.f32 %v2436, %v2437
  %v2439 = vsel %vm2394, %v2425, 0.0
  %v2440 = vadd.f32 %v2438, %v2439
  %v2441 = vsel %vm2394, %v2427, 0.0
  %v2442 = vadd.f32 %v2440, %v2441
  %v2443 = vsel %vm2394, %v2429, 0.0
  %v2444 = vadd.f32 %v2442, %v2443
  %v2445 = vsel %vm2394, %v2431, 0.0
  %v2446 = vadd.f32 %v2444, %v2445
  %v2447 = vsel %vm2394, %v2433, 0.0
  %v2448 = vadd.f32 %v2446, %v2447
  %v2449 = vrcp.pop %v2448
  %v2450 = vmul.f32 %v2419, %v2449
  %v2451 = vmul.f32 %v2421, %v2449
  %v2452 = vmul.f32 %v2423, %v2449
  %v2453 = vmul.f32 %v2425, %v2449
  %v2454 = vmul.f32 %v2427, %v2449
  %v2455 = vmul.f32 %v2429, %v2449
  %v2456 = vmul.f32 %v2431, %v2449
  %v2457 = vmul.f32 %v2433, %v2449
  %2459 = vset.pattern.permute.xlu0 0
  %2460 = vperm.xlu0 %2459, %v2450
  %v2461 = vpop.permute.xlu0 %2460
  %2464 = vset.pattern.permute.xlu0 0
  %2465 = vperm.xlu0 %2464, %v2451
  %v2466 = vpop.permute.xlu0 %2465
  %2469 = vset.pattern.permute.xlu0 0
  %2470 = vperm.xlu0 %2469, %v2452
  %v2471 = vpop.permute.xlu0 %2470
  %2474 = vset.pattern.permute.xlu0 0
  %2475 = vperm.xlu0 %2474, %v2453
  %v2476 = vpop.permute.xlu0 %2475
  %2479 = vset.pattern.permute.xlu0 0
  %2480 = vperm.xlu0 %2479, %v2454
  %v2481 = vpop.permute.xlu0 %2480
  %2484 = vset.pattern.permute.xlu0 0
  %2485 = vperm.xlu0 %2484, %v2455
  %v2486 = vpop.permute.xlu0 %2485
  %2489 = vset.pattern.permute.xlu0 0
  %2490 = vperm.xlu0 %2489, %v2456
  %v2491 = vpop.permute.xlu0 %2490
  %2494 = vset.pattern.permute.xlu0 0
  %2495 = vperm.xlu0 %2494, %v2457
  %v2496 = vpop.permute.xlu0 %2495
  %v2498 = vmul.f32 %v2461, %v2313
  %v2499 = vmul.f32 %v2466, %v2314
  %v2500 = vmul.f32 %v2471, %v2315
  %v2501 = vmul.f32 %v2476, %v2316
  %v2502 = vmul.f32 %v2481, %v2317
  %v2503 = vmul.f32 %v2486, %v2318
  %v2504 = vmul.f32 %v2491, %v2319
  %v2505 = vmul.f32 %v2496, %v2320
  %v2506 = vsel %vm71, %v2498, 0.0
  %v2507 = vsel %vm71, %v2499, 0.0
  %v2508 = vadd.f32 %v2506, %v2507
  %v2509 = vsel %vm71, %v2500, 0.0
  %v2510 = vadd.f32 %v2508, %v2509
  %v2511 = vsel %vm71, %v2501, 0.0
  %v2512 = vadd.f32 %v2510, %v2511
  %v2513 = vsel %vm71, %v2502, 0.0
  %v2514 = vadd.f32 %v2512, %v2513
  %v2515 = vsel %vm71, %v2503, 0.0
  %v2516 = vadd.f32 %v2514, %v2515
  %v2517 = vsel %vm71, %v2504, 0.0
  %v2518 = vadd.f32 %v2516, %v2517
  %v2519 = vsel %vm71, %v2505, 0.0
  %v2520 = vadd.f32 %v2518, %v2519
  %s2521 = scalar_lea.vmem %s3, 64
  %v2522 = vld [vmem:[%s2521] sm:$0xff]
  %v2523 = vld [vmem:[%s2521 + $0x8] sm:$0xff]
  %v2524 = vld [vmem:[%s2521 + $0x10] sm:$0xff]
  %v2525 = vld [vmem:[%s2521 + $0x18] sm:$0xff]
  %s2526 = scalar_lea.vmem %s5, 4
  %v2527 = vld [vmem:[%s2526] sm:$0x3]
  %v2529 = vlaneseq
  %v2530 = vshrl.u32 %v2529, 7
  %v2531 = vsub.s32 0, %v2530
  %v2532 = vrot.slane %v2527, %v2531
  %v2533 = vlaneseq
  %v2534 = vshrl.u32 %v2533, 7
  %v2535 = vsub.s32 1, %v2534
  %v2536 = vrot.slane %v2527, %v2535
  %v2540 = vsel %vm71, %v2520, 0
  %2542 = vmatprep.subr.mxu0 %v2523
  %2543 = vmatpush1.msra.mxu0 %v2522
  %2544 = vmatprep.subr.mxu0 %v2525
  %2545 = vmatpush1.msra.mxu0 %v2524
  %2546 = vmatprep.subr.mxu0 0.0
  %2547 = vmatpush1.msra.mxu0 0.0
  %2548 = vmatprep.subr.mxu0 0.0
  %2549 = vmatpush1.msra.mxu0 0.0
  %2550 = vmatprep.subr.mxu0 0.0
  %2551 = vmatpush1.msra.mxu0 0.0
  %2552 = vmatprep.subr.mxu0 0.0
  %2553 = vmatpush1.msra.mxu0 0.0
  %2554 = vmatprep.subr.mxu0 0.0
  %2555 = vmatpush1.msra.mxu0 0.0
  %2556 = vmatprep.subr.mxu0 0.0
  %2557 = vmatpush1.msra.mxu0 0.0
  %2558 = vmatprep.subr.mxu0 0.0
  %2559 = vmatpush1.msra.mxu0 0.0
  %2560 = vmatprep.subr.mxu0 0.0
  %2561 = vmatpush1.msra.mxu0 0.0
  %2562 = vmatprep.subr.mxu0 0.0
  %2563 = vmatpush1.msra.mxu0 0.0
  %2564 = vmatprep.subr.mxu0 0.0
  %2565 = vmatpush1.msra.mxu0 0.0
  %2566 = vmatprep.subr.mxu0 0.0
  %2567 = vmatpush1.msra.mxu0 0.0
  %2568 = vmatprep.subr.mxu0 0.0
  %2569 = vmatpush1.msra.mxu0 0.0
  %2570 = vmatprep.subr.mxu0 0.0
  %2571 = vmatpush1.msra.mxu0 0.0
  %2572 = vmatprep.subr.mxu0 0.0
  %2573 = vmatpush1.msra.mxu0 0.0
  %2574 = vmatprep.subr.mxu0 0.0
  %2575 = vmatpush1.msra.mxu0 0.0
  %2576 = vmatprep.subr.mxu0 0.0
  %2577 = vmatpush1.msra.mxu0 0.0
  %2578 = vmatprep.subr.mxu0 0.0
  %2579 = vmatpush1.msra.mxu0 0.0
  %2580 = vmatprep.subr.mxu0 0.0
  %2581 = vmatpush1.msra.mxu0 0.0
  %2582 = vmatprep.subr.mxu0 0.0
  %2583 = vmatpush1.msra.mxu0 0.0
  %2584 = vmatprep.subr.mxu0 0.0
  %2585 = vmatpush1.msra.mxu0 0.0
  %2586 = vmatprep.subr.mxu0 0.0
  %2587 = vmatpush1.msra.mxu0 0.0
  %2588 = vmatprep.subr.mxu0 0.0
  %2589 = vmatpush1.msra.mxu0 0.0
  %2590 = vmatprep.subr.mxu0 0.0
  %2591 = vmatpush1.msra.mxu0 0.0
  %2592 = vmatprep.subr.mxu0 0.0
  %2593 = vmatpush1.msra.mxu0 0.0
  %2594 = vmatprep.subr.mxu0 0.0
  %2595 = vmatpush1.msra.mxu0 0.0
  %2596 = vmatprep.subr.mxu0 0.0
  %2597 = vmatpush1.msra.mxu0 0.0
  %2598 = vmatprep.subr.mxu0 0.0
  %2599 = vmatpush1.msra.mxu0 0.0
  %2600 = vmatprep.subr.mxu0 0.0
  %2601 = vmatpush1.msra.mxu0 0.0
  %2602 = vmatprep.subr.mxu0 0.0
  %2603 = vmatpush1.msra.mxu0 0.0
  %2604 = vmatprep.subr.mxu0 0.0
  %2605 = vmatpush1.msra.mxu0 0.0
  %2606 = vmatprep.mubr.f32.mxu0 0.0
  %2607 = vmatmul.mubr.f32.gmra.mrb[0].mxu0 %v2540
  %v2608 = vpop.f32.mrb[0].mxu0
  %v2609 = vadd.f32 %v2532, %v2608
  %v2610 = vpop.f32.mrb[0].mxu0
  %v2611 = vadd.f32 %v2536, %v2610
  %2612 = vdwg.mxu0
  %2614 = vrot.lane.b32.xlu0 %v2310, 32
  %v2615 = vpop.permute.xlu0 %2614
  %v2617 = vsel %vm528, %v2310, %v2615
  %s2618 = scalar_lea.vmem %s4, 256
  %v2619 = vld [vmem:[%s2618] sm:$0xff]
  %v2620 = vld [vmem:[%s2618 + $0x8] sm:$0xff]
  %v2621 = vld [vmem:[%s2618 + $0x10] sm:$0xff]
  %v2622 = vld [vmem:[%s2618 + $0x18] sm:$0xff]
  %v2623 = vld [vmem:[%s2618 + $0x20] sm:$0xff]
  %v2624 = vld [vmem:[%s2618 + $0x28] sm:$0xff]
  %v2625 = vld [vmem:[%s2618 + $0x30] sm:$0xff]
  %v2626 = vld [vmem:[%s2618 + $0x38] sm:$0xff]
  %v2627 = vld [vmem:[%s2618 + $0x40] sm:$0xff]
  %v2628 = vld [vmem:[%s2618 + $0x48] sm:$0xff]
  %v2629 = vld [vmem:[%s2618 + $0x50] sm:$0xff]
  %v2630 = vld [vmem:[%s2618 + $0x58] sm:$0xff]
  %v2631 = vld [vmem:[%s2618 + $0x60] sm:$0xff]
  %v2632 = vld [vmem:[%s2618 + $0x68] sm:$0xff]
  %v2633 = vld [vmem:[%s2618 + $0x70] sm:$0xff]
  %v2634 = vld [vmem:[%s2618 + $0x78] sm:$0xff]
  %s2635 = scalar_lea.vmem %s6, 4
  %v2636 = vld [vmem:[%s2635] sm:$0x3]
  %v2638 = vlaneseq
  %v2639 = vshrl.u32 %v2638, 7
  %v2640 = vsub.s32 0, %v2639
  %v2641 = vrot.slane %v2636, %v2640
  %v2642 = vlaneseq
  %v2643 = vshrl.u32 %v2642, 7
  %v2644 = vsub.s32 1, %v2643
  %v2645 = vrot.slane %v2636, %v2644
  %v2649 = vsel %vm401, %v2617, 0
  %2651 = vmatprep.subr.mxu0 %v2620
  %2652 = vmatpush1.msra.mxu0 %v2619
  %2653 = vmatprep.subr.mxu0 %v2622
  %2654 = vmatpush1.msra.mxu0 %v2621
  %2655 = vmatprep.subr.mxu0 %v2624
  %2656 = vmatpush1.msra.mxu0 %v2623
  %2657 = vmatprep.subr.mxu0 %v2626
  %2658 = vmatpush1.msra.mxu0 %v2625
  %2659 = vmatprep.subr.mxu0 %v2628
  %2660 = vmatpush1.msra.mxu0 %v2627
  %2661 = vmatprep.subr.mxu0 %v2630
  %2662 = vmatpush1.msra.mxu0 %v2629
  %2663 = vmatprep.subr.mxu0 %v2632
  %2664 = vmatpush1.msra.mxu0 %v2631
  %2665 = vmatprep.subr.mxu0 %v2634
  %2666 = vmatpush1.msra.mxu0 %v2633
  %2667 = vmatprep.subr.mxu0 0.0
  %2668 = vmatpush1.msra.mxu0 0.0
  %2669 = vmatprep.subr.mxu0 0.0
  %2670 = vmatpush1.msra.mxu0 0.0
  %2671 = vmatprep.subr.mxu0 0.0
  %2672 = vmatpush1.msra.mxu0 0.0
  %2673 = vmatprep.subr.mxu0 0.0
  %2674 = vmatpush1.msra.mxu0 0.0
  %2675 = vmatprep.subr.mxu0 0.0
  %2676 = vmatpush1.msra.mxu0 0.0
  %2677 = vmatprep.subr.mxu0 0.0
  %2678 = vmatpush1.msra.mxu0 0.0
  %2679 = vmatprep.subr.mxu0 0.0
  %2680 = vmatpush1.msra.mxu0 0.0
  %2681 = vmatprep.subr.mxu0 0.0
  %2682 = vmatpush1.msra.mxu0 0.0
  %2683 = vmatprep.subr.mxu0 0.0
  %2684 = vmatpush1.msra.mxu0 0.0
  %2685 = vmatprep.subr.mxu0 0.0
  %2686 = vmatpush1.msra.mxu0 0.0
  %2687 = vmatprep.subr.mxu0 0.0
  %2688 = vmatpush1.msra.mxu0 0.0
  %2689 = vmatprep.subr.mxu0 0.0
  %2690 = vmatpush1.msra.mxu0 0.0
  %2691 = vmatprep.subr.mxu0 0.0
  %2692 = vmatpush1.msra.mxu0 0.0
  %2693 = vmatprep.subr.mxu0 0.0
  %2694 = vmatpush1.msra.mxu0 0.0
  %2695 = vmatprep.subr.mxu0 0.0
  %2696 = vmatpush1.msra.mxu0 0.0
  %2697 = vmatprep.subr.mxu0 0.0
  %2698 = vmatpush1.msra.mxu0 0.0
  %2699 = vmatprep.subr.mxu0 0.0
  %2700 = vmatpush1.msra.mxu0 0.0
  %2701 = vmatprep.subr.mxu0 0.0
  %2702 = vmatpush1.msra.mxu0 0.0
  %2703 = vmatprep.subr.mxu0 0.0
  %2704 = vmatpush1.msra.mxu0 0.0
  %2705 = vmatprep.subr.mxu0 0.0
  %2706 = vmatpush1.msra.mxu0 0.0
  %2707 = vmatprep.subr.mxu0 0.0
  %2708 = vmatpush1.msra.mxu0 0.0
  %2709 = vmatprep.subr.mxu0 0.0
  %2710 = vmatpush1.msra.mxu0 0.0
  %2711 = vmatprep.subr.mxu0 0.0
  %2712 = vmatpush1.msra.mxu0 0.0
  %2713 = vmatprep.subr.mxu0 0.0
  %2714 = vmatpush1.msra.mxu0 0.0
  %2715 = vmatprep.mubr.f32.mxu0 0.0
  %2716 = vmatmul.mubr.f32.gmra.mrb[0].mxu0 %v2649
  %v2717 = vpop.f32.mrb[0].mxu0
  %v2718 = vadd.f32 %v2641, %v2717
  %v2719 = vpop.f32.mrb[0].mxu0
  %v2720 = vadd.f32 %v2645, %v2719
  %2721 = vdwg.mxu0
  %v2722 = vadd.f32 %v2609, %v2718
  %v2723 = vmul.f32 %v2722, 0.5
  %v2724 = vtanh.pop %v2723
  %v2725 = vmul.f32 %v2724, 0.5
  %v2726 = vadd.f32 %v2725, 0.5
  %2728 = vrot.lane.b32.xlu0 %v2718, 64
  %v2729 = vpop.permute.xlu0 %2728
  %v2731 = vmul.f32 %v2726, %v2729
  %2733 = vrot.lane.b32.xlu0 %v2731, 64
  %v2734 = vpop.permute.xlu0 %2733
  %v2736 = vadd.f32 %v2609, %v2734
  %v2737 = vtanh.pop %v2736
  %v2738 = vsub.f32 1.0, %v2726
  %2740 = vrot.lane.b32.xlu0 %v2737, 96
  %v2741 = vpop.permute.xlu0 %2740
  %v2743 = vmul.f32 %v2738, %v2741
  %v2744 = vmul.f32 %v2726, %v2615
  %v2745 = vadd.f32 %v2743, %v2744
  %v2746 = vadd.f32 %v2611, %v2720
  %v2747 = vmul.f32 %v2746, 0.5
  %v2748 = vtanh.pop %v2747
  %v2749 = vmul.f32 %v2748, 0.5
  %v2750 = vadd.f32 %v2749, 0.5
  %2752 = vrot.lane.b32.xlu0 %v2720, 64
  %v2753 = vpop.permute.xlu0 %2752
  %v2755 = vmul.f32 %v2750, %v2753
  %2757 = vrot.lane.b32.xlu0 %v2755, 64
  %v2758 = vpop.permute.xlu0 %2757
  %v2760 = vadd.f32 %v2611, %v2758
  %v2761 = vtanh.pop %v2760
  %v2762 = vsub.f32 1.0, %v2750
  %2764 = vrot.lane.b32.xlu0 %v2761, 96
  %v2765 = vpop.permute.xlu0 %2764
  %v2767 = vmul.f32 %v2762, %v2765
  %v2768 = vmul.f32 %v2750, %v2615
  %v2769 = vadd.f32 %v2767, %v2768
  %v2770 = vld [vmem:[%s12] sm:$0xff]
  %v2771 = vld [vmem:[%s12 + $0x8] sm:$0xff]
  %v2772 = vld [vmem:[%s12 + $0x10] sm:$0xff]
  %v2773 = vld [vmem:[%s12 + $0x18] sm:$0xff]
  %v2774 = vld [vmem:[%s12 + $0x20] sm:$0xff]
  %v2775 = vld [vmem:[%s12 + $0x28] sm:$0xff]
  %v2776 = vld [vmem:[%s12 + $0x30] sm:$0xff]
  %v2777 = vld [vmem:[%s12 + $0x38] sm:$0xff]
  %v2778 = vld [vmem:[%s13] sm:$0x1]
  %v2780 = vsel %vm528, %v2224, 0
  %2782 = vmatprep.subr.mxu0 0.0
  %2783 = vmatpush1.msra.mxu0 %v2774
  %2784 = vmatprep.subr.mxu0 0.0
  %2785 = vmatpush1.msra.mxu0 %v2775
  %2786 = vmatprep.subr.mxu0 0.0
  %2787 = vmatpush1.msra.mxu0 %v2776
  %2788 = vmatprep.subr.mxu0 0.0
  %2789 = vmatpush1.msra.mxu0 %v2777
  %2790 = vmatprep.subr.mxu0 0.0
  %2791 = vmatpush1.msra.mxu0 0.0
  %2792 = vmatprep.subr.mxu0 0.0
  %2793 = vmatpush1.msra.mxu0 0.0
  %2794 = vmatprep.subr.mxu0 0.0
  %2795 = vmatpush1.msra.mxu0 0.0
  %2796 = vmatprep.subr.mxu0 0.0
  %2797 = vmatpush1.msra.mxu0 0.0
  %2798 = vmatprep.subr.mxu0 0.0
  %2799 = vmatpush1.msra.mxu0 0.0
  %2800 = vmatprep.subr.mxu0 0.0
  %2801 = vmatpush1.msra.mxu0 0.0
  %2802 = vmatprep.subr.mxu0 0.0
  %2803 = vmatpush1.msra.mxu0 0.0
  %2804 = vmatprep.subr.mxu0 0.0
  %2805 = vmatpush1.msra.mxu0 0.0
  %2806 = vmatprep.subr.mxu0 0.0
  %2807 = vmatpush1.msra.mxu0 0.0
  %2808 = vmatprep.subr.mxu0 0.0
  %2809 = vmatpush1.msra.mxu0 0.0
  %2810 = vmatprep.subr.mxu0 0.0
  %2811 = vmatpush1.msra.mxu0 0.0
  %2812 = vmatprep.subr.mxu0 0.0
  %2813 = vmatpush1.msra.mxu0 0.0
  %2814 = vmatprep.subr.mxu0 0.0
  %2815 = vmatpush1.msra.mxu0 0.0
  %2816 = vmatprep.subr.mxu0 0.0
  %2817 = vmatpush1.msra.mxu0 0.0
  %2818 = vmatprep.subr.mxu0 0.0
  %2819 = vmatpush1.msra.mxu0 0.0
  %2820 = vmatprep.subr.mxu0 0.0
  %2821 = vmatpush1.msra.mxu0 0.0
  %2822 = vmatprep.subr.mxu0 0.0
  %2823 = vmatpush1.msra.mxu0 0.0
  %2824 = vmatprep.subr.mxu0 0.0
  %2825 = vmatpush1.msra.mxu0 0.0
  %2826 = vmatprep.subr.mxu0 0.0
  %2827 = vmatpush1.msra.mxu0 0.0
  %2828 = vmatprep.subr.mxu0 0.0
  %2829 = vmatpush1.msra.mxu0 0.0
  %2830 = vmatprep.subr.mxu0 0.0
  %2831 = vmatpush1.msra.mxu0 0.0
  %2832 = vmatprep.subr.mxu0 0.0
  %2833 = vmatpush1.msra.mxu0 0.0
  %2834 = vmatprep.subr.mxu0 0.0
  %2835 = vmatpush1.msra.mxu0 0.0
  %2836 = vmatprep.subr.mxu0 0.0
  %2837 = vmatpush1.msra.mxu0 0.0
  %2838 = vmatprep.subr.mxu0 0.0
  %2839 = vmatpush1.msra.mxu0 0.0
  %2840 = vmatprep.subr.mxu0 0.0
  %2841 = vmatpush1.msra.mxu0 0.0
  %2842 = vmatprep.subr.mxu0 0.0
  %2843 = vmatpush1.msra.mxu0 0.0
  %2844 = vmatprep.subr.mxu0 0.0
  %2845 = vmatpush1.msra.mxu0 0.0
  %2846 = vmatprep.mubr.f32.mxu0 0.0
  %2847 = vmatmul.mubr.f32.gmra.mrb[0].mxu0 %v2780
  %v2848 = vpop.f32.mrb[0].mxu0
  %v2849 = vadd.f32 0.0, %v2848
  %v2850 = vpop.f32.mrb[0].mxu0
  %2851 = vdwg.mxu0
  %2853 = vrot.lane.b32.xlu0 %v2745, 96
  %v2854 = vpop.permute.xlu0 %2853
  %v2855 = vsel %vm528, %v2854, 0
  %2857 = vmatprep.subr.mxu0 0.0
  %2858 = vmatpush1.msra.mxu0 %v2770
  %2859 = vmatprep.subr.mxu0 0.0
  %2860 = vmatpush1.msra.mxu0 %v2771
  %2861 = vmatprep.subr.mxu0 0.0
  %2862 = vmatpush1.msra.mxu0 %v2772
  %2863 = vmatprep.subr.mxu0 0.0
  %2864 = vmatpush1.msra.mxu0 %v2773
  %2865 = vmatprep.subr.mxu0 0.0
  %2866 = vmatpush1.msra.mxu0 0.0
  %2867 = vmatprep.subr.mxu0 0.0
  %2868 = vmatpush1.msra.mxu0 0.0
  %2869 = vmatprep.subr.mxu0 0.0
  %2870 = vmatpush1.msra.mxu0 0.0
  %2871 = vmatprep.subr.mxu0 0.0
  %2872 = vmatpush1.msra.mxu0 0.0
  %2873 = vmatprep.subr.mxu0 0.0
  %2874 = vmatpush1.msra.mxu0 0.0
  %2875 = vmatprep.subr.mxu0 0.0
  %2876 = vmatpush1.msra.mxu0 0.0
  %2877 = vmatprep.subr.mxu0 0.0
  %2878 = vmatpush1.msra.mxu0 0.0
  %2879 = vmatprep.subr.mxu0 0.0
  %2880 = vmatpush1.msra.mxu0 0.0
  %2881 = vmatprep.subr.mxu0 0.0
  %2882 = vmatpush1.msra.mxu0 0.0
  %2883 = vmatprep.subr.mxu0 0.0
  %2884 = vmatpush1.msra.mxu0 0.0
  %2885 = vmatprep.subr.mxu0 0.0
  %2886 = vmatpush1.msra.mxu0 0.0
  %2887 = vmatprep.subr.mxu0 0.0
  %2888 = vmatpush1.msra.mxu0 0.0
  %2889 = vmatprep.subr.mxu0 0.0
  %2890 = vmatpush1.msra.mxu0 0.0
  %2891 = vmatprep.subr.mxu0 0.0
  %2892 = vmatpush1.msra.mxu0 0.0
  %2893 = vmatprep.subr.mxu0 0.0
  %2894 = vmatpush1.msra.mxu0 0.0
  %2895 = vmatprep.subr.mxu0 0.0
  %2896 = vmatpush1.msra.mxu0 0.0
  %2897 = vmatprep.subr.mxu0 0.0
  %2898 = vmatpush1.msra.mxu0 0.0
  %2899 = vmatprep.subr.mxu0 0.0
  %2900 = vmatpush1.msra.mxu0 0.0
  %2901 = vmatprep.subr.mxu0 0.0
  %2902 = vmatpush1.msra.mxu0 0.0
  %2903 = vmatprep.subr.mxu0 0.0
  %2904 = vmatpush1.msra.mxu0 0.0
  %2905 = vmatprep.subr.mxu0 0.0
  %2906 = vmatpush1.msra.mxu0 0.0
  %2907 = vmatprep.subr.mxu0 0.0
  %2908 = vmatpush1.msra.mxu0 0.0
  %2909 = vmatprep.subr.mxu0 0.0
  %2910 = vmatpush1.msra.mxu0 0.0
  %2911 = vmatprep.subr.mxu0 0.0
  %2912 = vmatpush1.msra.mxu0 0.0
  %2913 = vmatprep.subr.mxu0 0.0
  %2914 = vmatpush1.msra.mxu0 0.0
  %2915 = vmatprep.subr.mxu0 0.0
  %2916 = vmatpush1.msra.mxu0 0.0
  %2917 = vmatprep.subr.mxu0 0.0
  %2918 = vmatpush1.msra.mxu0 0.0
  %2919 = vmatprep.subr.mxu0 0.0
  %2920 = vmatpush1.msra.mxu0 0.0
  %2921 = vmatprep.mubr.f32.mxu0 0.0
  %2922 = vmatmul.mubr.f32.gmra.mrb[0].mxu0 %v2855
  %v2923 = vpop.f32.mrb[0].mxu0
  %v2924 = vadd.f32 %v2849, %v2923
  %v2925 = vpop.f32.mrb[0].mxu0
  %2926 = vdwg.mxu0
  %v2928 = vlaneseq
  %v2929 = vshrl.u32 %v2928, 7
  %v2930 = vsub.s32 0, %v2929
  %v2931 = vrot.slane %v2778, %v2930
  %v2933 = vadd.f32 %v2924, %v2931
  %2934 = vst.msk [vmem:[%s14] sm:$0xff] %vm528, %v2933
  %2935 = vrot.lane.b32.xlu0 %v2224, 96
  %v2936 = vpop.permute.xlu0 %2935
  %v2937 = vsel %vm528, %v2936, 0
  %2939 = vmatprep.subr.mxu0 0.0
  %2940 = vmatpush1.msra.mxu0 %v2774
  %2941 = vmatprep.subr.mxu0 0.0
  %2942 = vmatpush1.msra.mxu0 %v2775
  %2943 = vmatprep.subr.mxu0 0.0
  %2944 = vmatpush1.msra.mxu0 %v2776
  %2945 = vmatprep.subr.mxu0 0.0
  %2946 = vmatpush1.msra.mxu0 %v2777
  %2947 = vmatprep.subr.mxu0 0.0
  %2948 = vmatpush1.msra.mxu0 0.0
  %2949 = vmatprep.subr.mxu0 0.0
  %2950 = vmatpush1.msra.mxu0 0.0
  %2951 = vmatprep.subr.mxu0 0.0
  %2952 = vmatpush1.msra.mxu0 0.0
  %2953 = vmatprep.subr.mxu0 0.0
  %2954 = vmatpush1.msra.mxu0 0.0
  %2955 = vmatprep.subr.mxu0 0.0
  %2956 = vmatpush1.msra.mxu0 0.0
  %2957 = vmatprep.subr.mxu0 0.0
  %2958 = vmatpush1.msra.mxu0 0.0
  %2959 = vmatprep.subr.mxu0 0.0
  %2960 = vmatpush1.msra.mxu0 0.0
  %2961 = vmatprep.subr.mxu0 0.0
  %2962 = vmatpush1.msra.mxu0 0.0
  %2963 = vmatprep.subr.mxu0 0.0
  %2964 = vmatpush1.msra.mxu0 0.0
  %2965 = vmatprep.subr.mxu0 0.0
  %2966 = vmatpush1.msra.mxu0 0.0
  %2967 = vmatprep.subr.mxu0 0.0
  %2968 = vmatpush1.msra.mxu0 0.0
  %2969 = vmatprep.subr.mxu0 0.0
  %2970 = vmatpush1.msra.mxu0 0.0
  %2971 = vmatprep.subr.mxu0 0.0
  %2972 = vmatpush1.msra.mxu0 0.0
  %2973 = vmatprep.subr.mxu0 0.0
  %2974 = vmatpush1.msra.mxu0 0.0
  %2975 = vmatprep.subr.mxu0 0.0
  %2976 = vmatpush1.msra.mxu0 0.0
  %2977 = vmatprep.subr.mxu0 0.0
  %2978 = vmatpush1.msra.mxu0 0.0
  %2979 = vmatprep.subr.mxu0 0.0
  %2980 = vmatpush1.msra.mxu0 0.0
  %2981 = vmatprep.subr.mxu0 0.0
  %2982 = vmatpush1.msra.mxu0 0.0
  %2983 = vmatprep.subr.mxu0 0.0
  %2984 = vmatpush1.msra.mxu0 0.0
  %2985 = vmatprep.subr.mxu0 0.0
  %2986 = vmatpush1.msra.mxu0 0.0
  %2987 = vmatprep.subr.mxu0 0.0
  %2988 = vmatpush1.msra.mxu0 0.0
  %2989 = vmatprep.subr.mxu0 0.0
  %2990 = vmatpush1.msra.mxu0 0.0
  %2991 = vmatprep.subr.mxu0 0.0
  %2992 = vmatpush1.msra.mxu0 0.0
  %2993 = vmatprep.subr.mxu0 0.0
  %2994 = vmatpush1.msra.mxu0 0.0
  %2995 = vmatprep.subr.mxu0 0.0
  %2996 = vmatpush1.msra.mxu0 0.0
  %2997 = vmatprep.subr.mxu0 0.0
  %2998 = vmatpush1.msra.mxu0 0.0
  %2999 = vmatprep.subr.mxu0 0.0
  %3000 = vmatpush1.msra.mxu0 0.0
  %3001 = vmatprep.subr.mxu0 0.0
  %3002 = vmatpush1.msra.mxu0 0.0
  %3003 = vmatprep.mubr.f32.mxu0 0.0
  %3004 = vmatmul.mubr.f32.gmra.mrb[0].mxu0 %v2937
  %v3005 = vpop.f32.mrb[0].mxu0
  %v3006 = vadd.f32 0.0, %v3005
  %v3007 = vpop.f32.mrb[0].mxu0
  %3008 = vdwg.mxu0
  %3010 = vrot.lane.b32.xlu0 %v2769, 96
  %v3011 = vpop.permute.xlu0 %3010
  %v3012 = vsel %vm528, %v3011, 0
  %3014 = vmatprep.subr.mxu0 0.0
  %3015 = vmatpush1.msra.mxu0 %v2770
  %3016 = vmatprep.subr.mxu0 0.0
  %3017 = vmatpush1.msra.mxu0 %v2771
  %3018 = vmatprep.subr.mxu0 0.0
  %3019 = vmatpush1.msra.mxu0 %v2772
  %3020 = vmatprep.subr.mxu0 0.0
  %3021 = vmatpush1.msra.mxu0 %v2773
  %3022 = vmatprep.subr.mxu0 0.0
  %3023 = vmatpush1.msra.mxu0 0.0
  %3024 = vmatprep.subr.mxu0 0.0
  %3025 = vmatpush1.msra.mxu0 0.0
  %3026 = vmatprep.subr.mxu0 0.0
  %3027 = vmatpush1.msra.mxu0 0.0
  %3028 = vmatprep.subr.mxu0 0.0
  %3029 = vmatpush1.msra.mxu0 0.0
  %3030 = vmatprep.subr.mxu0 0.0
  %3031 = vmatpush1.msra.mxu0 0.0
  %3032 = vmatprep.subr.mxu0 0.0
  %3033 = vmatpush1.msra.mxu0 0.0
  %3034 = vmatprep.subr.mxu0 0.0
  %3035 = vmatpush1.msra.mxu0 0.0
  %3036 = vmatprep.subr.mxu0 0.0
  %3037 = vmatpush1.msra.mxu0 0.0
  %3038 = vmatprep.subr.mxu0 0.0
  %3039 = vmatpush1.msra.mxu0 0.0
  %3040 = vmatprep.subr.mxu0 0.0
  %3041 = vmatpush1.msra.mxu0 0.0
  %3042 = vmatprep.subr.mxu0 0.0
  %3043 = vmatpush1.msra.mxu0 0.0
  %3044 = vmatprep.subr.mxu0 0.0
  %3045 = vmatpush1.msra.mxu0 0.0
  %3046 = vmatprep.subr.mxu0 0.0
  %3047 = vmatpush1.msra.mxu0 0.0
  %3048 = vmatprep.subr.mxu0 0.0
  %3049 = vmatpush1.msra.mxu0 0.0
  %3050 = vmatprep.subr.mxu0 0.0
  %3051 = vmatpush1.msra.mxu0 0.0
  %3052 = vmatprep.subr.mxu0 0.0
  %3053 = vmatpush1.msra.mxu0 0.0
  %3054 = vmatprep.subr.mxu0 0.0
  %3055 = vmatpush1.msra.mxu0 0.0
  %3056 = vmatprep.subr.mxu0 0.0
  %3057 = vmatpush1.msra.mxu0 0.0
  %3058 = vmatprep.subr.mxu0 0.0
  %3059 = vmatpush1.msra.mxu0 0.0
  %3060 = vmatprep.subr.mxu0 0.0
  %3061 = vmatpush1.msra.mxu0 0.0
  %3062 = vmatprep.subr.mxu0 0.0
  %3063 = vmatpush1.msra.mxu0 0.0
  %3064 = vmatprep.subr.mxu0 0.0
  %3065 = vmatpush1.msra.mxu0 0.0
  %3066 = vmatprep.subr.mxu0 0.0
  %3067 = vmatpush1.msra.mxu0 0.0
  %3068 = vmatprep.subr.mxu0 0.0
  %3069 = vmatpush1.msra.mxu0 0.0
  %3070 = vmatprep.subr.mxu0 0.0
  %3071 = vmatpush1.msra.mxu0 0.0
  %3072 = vmatprep.subr.mxu0 0.0
  %3073 = vmatpush1.msra.mxu0 0.0
  %3074 = vmatprep.subr.mxu0 0.0
  %3075 = vmatpush1.msra.mxu0 0.0
  %3076 = vmatprep.subr.mxu0 0.0
  %3077 = vmatpush1.msra.mxu0 0.0
  %3078 = vmatprep.mubr.f32.mxu0 0.0
  %3079 = vmatmul.mubr.f32.gmra.mrb[0].mxu0 %v3012
  %v3080 = vpop.f32.mrb[0].mxu0
  %v3081 = vadd.f32 %v3006, %v3080
  %v3082 = vpop.f32.mrb[0].mxu0
  %3083 = vdwg.mxu0
  %v3084 = vadd.f32 %v3081, %v2931
  %s3085 = scalar_lea.vmem %s14, 8
  %3086 = vst.msk [vmem:[%s3085] sm:$0xff] %vm528, %v3084
  // Predicated region
  $region58: #{seq2seq_forward.2} parent=0 // pred_check
    _
  $region59: #{seq2seq_forward.2} parent=0 // pred_check_branch
    %3088 = sbr.rel (0) target = $region61
  $region60: #{seq2seq_forward.2} parent=0 // pred_region
    _
  $region61: #{seq2seq_forward.2} parent=0 // pred_fallthru
    _
  // Predicated region
  $region62: #{seq2seq_forward.2} parent=0 // pred_check
    _
  $region63: #{seq2seq_forward.2} parent=0 // pred_check_branch
    %3090 = sbr.rel (0) target = $region65
  $region64: #{seq2seq_forward.2} parent=0 // pred_region
    _
  $region65: #{seq2seq_forward.2} parent=0 // pred_fallthru
    _

</llo_original>
